<compile_context>
chip_gen: v6e
topology: v6e:2x2x1
jax: 0.10.0
libtpu: 0.0.40
codegen_flags: <defaults>
</compile_context>

<pallas_src>
import functools

import jax
import jax.numpy as jnp
from jax.experimental import pallas as pl
from jax.experimental.pallas import tpu as pltpu


def _nearest_upsample_kernel(x_ref, o_ref, *, scale: int):
    """x_ref: (1, TC, TH, W) VMEM tile -> o_ref: (1, TC, TH*scale, W*scale)."""
    _, tc, th, w = x_ref.shape
    ws = w * scale
    # Statically unrolled loop over input rows: each input row h yields `scale`
    # identical output rows [h*scale, (h+1)*scale).  Per-iteration temporaries
    # are one (TC, W*scale) row group -> no block-sized reshape intermediate.
    for h in range(th):
        row = x_ref[0, :, h, :]                                      # (TC, W)
        # Lane (W) repeat: out[..., w] = row[..., w // scale].
        # Adjacent-dim broadcast + reshape only (no non-adjacent merge).
        row_w = jnp.broadcast_to(row[:, :, None], (tc, w, scale)).reshape(tc, ws)
        # Sublane (H) repeat: broadcast straight into the store.
        o_ref[0, :, h * scale:(h + 1) * scale, :] = jnp.broadcast_to(
            row_w[:, None, :], (tc, scale, ws)
        )


def _pick_tiles(C, H, W, s, itemsize, budget_bytes, max_rows=64):
    """Largest (TC, TH) whose double-buffered in+out blocks fit the budget."""

    def footprint(tc, th):
        # double-buffered input block + double-buffered s^2-larger output block
        return 2 * (1 + s * s) * tc * th * W * itemsize

    # TH must divide H and be a multiple of 8 (sublane rule) unless it is all
    # of H; cap it so the in-kernel unrolled row loop stays short.
    th_cands = [
        t for t in range(min(H, max_rows), 0, -1)
        if H % t == 0 and (t % 8 == 0 or t == H)
    ]
    if not th_cands:
        th_cands = [H]
    tc_cands = [c for c in range(C, 0, -1) if C % c == 0]

    for tc in tc_cands:
        for th in th_cands:
            if footprint(tc, th) <= budget_bytes:
                return tc, th
    return tc_cands[-1], th_cands[-1]


def interpolate_nearest(x: jax.Array, scale_factor) -> jax.Array:
    """Equivalent of Interpolate(scale_factor, mode='nearest')(x) for NCHW input."""
    s = int(scale_factor)
    # TODO(synk): non-integer scale factors and other interpolation modes
    # (bilinear, etc.) are not implemented in this kernel.
    assert float(s) == float(scale_factor), "only integer scale factors supported"
    N, C, H, W = x.shape
    Ho, Wo = H * s, W * s
    itemsize = jnp.dtype(x.dtype).itemsize

    # Keep the per-step working set around <= 20 MiB: fits v7x's 64 MiB VMEM
    # with headroom while staying large enough to amortize per-step overhead.
    TC, TH = _pick_tiles(C, H, W, s, itemsize, budget_bytes=20 * 1024 * 1024)
    THo = TH * s
    grid = (N, C // TC, H // TH)

    kernel = functools.partial(_nearest_upsample_kernel, scale=s)

    # Purely HBM-bound: bytes read + bytes written, zero meaningful flops.
    bytes_accessed = N * C * H * W * itemsize * (1 + s * s)

    return pl.pallas_call(
        kernel,
        out_shape=jax.ShapeDtypeStruct((N, C, Ho, Wo), x.dtype),
        grid=grid,
        in_specs=[
            pl.BlockSpec((1, TC, TH, W), lambda n, c, h: (n, c, h, 0)),
        ],
        out_specs=pl.BlockSpec((1, TC, THo, Wo), lambda n, c, h: (n, c, h, 0)),
        compiler_params=pltpu.CompilerParams(
            # Each output block is written exactly once -> all axes parallel,
            # letting megacore shard the grid.
            dimension_semantics=("parallel", "parallel", "parallel"),
            vmem_limit_bytes=48 * 1024 * 1024,
        ),
        cost_estimate=pl.CostEstimate(
            flops=0, transcendentals=0, bytes_accessed=bytes_accessed
        ),
    )(x)


if __name__ == "__main__":
    key = jax.random.PRNGKey(0)
    N, C, H, W = 2, 4, 16, 16
    scale_factor = 2

    x = jax.random.normal(key, (N, C, H, W), dtype=jnp.float32)

    out = jax.block_until_ready(interpolate_nearest(x, scale_factor))

    # Reference (plain JAX) nearest-neighbor upsample, matching PyTorch
    # semantics for integer scale factors.
    ref = jnp.repeat(jnp.repeat(x, scale_factor, axis=2), scale_factor, axis=3)

    assert out.shape == (N, C, H * scale_factor, W * scale_factor)
    assert out.dtype == x.dtype
    assert jnp.allclose(out, ref), "mismatch vs reference nearest upsample"

    print("KERNEL_OK")
</pallas_src>

<mosaic_0001>
module attributes {stable_mosaic.version = 11 : i64} {
  func.func @_nearest_upsample_kernel(%arg0: i32, %arg1: i32, %arg2: i32, %arg3: memref<1x4x16x16xf32, #tpu.memory_space<vmem>>, %arg4: memref<1x4x32x32xf32, #tpu.memory_space<vmem>>) attributes {dimension_semantics = [#tpu.dimension_semantics<parallel>, #tpu.dimension_semantics<parallel>, #tpu.dimension_semantics<parallel>], iteration_bounds = array<i64: 2, 1, 1>, scalar_prefetch = 0 : i64, scratch_operands = 0 : i64, tpu.core_type = #tpu.core_type<tc>, window_params = [{transform_indices = @transform_0, window_bounds = array<i64: 1, 4, 16, 16>}, {transform_indices = @transform_1, window_bounds = array<i64: 1, 4, 32, 32>}]} {
    %c0 = arith.constant 0 : index
    %c0_0 = arith.constant 0 : index
    %c0_1 = arith.constant 0 : index
    %c0_2 = arith.constant 0 : index
    %0 = vector.load %arg3[%c0, %c0_0, %c0_1, %c0_2] : memref<1x4x16x16xf32, #tpu.memory_space<vmem>>, vector<1x4x1x16xf32>
    %1 = vector.shape_cast %0 : vector<1x4x1x16xf32> to vector<4x16xf32>
    %2 = vector.shape_cast %1 : vector<4x16xf32> to vector<4x16x1xf32>
    %3 = vector.shape_cast %2 : vector<4x16x1xf32> to vector<4x16x1xf32>
    %4 = vector.broadcast %3 : vector<4x16x1xf32> to vector<4x16x2xf32>
    %5 = vector.shape_cast %4 : vector<4x16x2xf32> to vector<4x32xf32>
    %6 = vector.shape_cast %5 : vector<4x32xf32> to vector<4x1x32xf32>
    %7 = vector.shape_cast %6 : vector<4x1x32xf32> to vector<4x1x32xf32>
    %8 = vector.broadcast %7 : vector<4x1x32xf32> to vector<4x2x32xf32>
    %c0_3 = arith.constant 0 : index
    %c0_4 = arith.constant 0 : index
    %c0_5 = arith.constant 0 : index
    %c0_6 = arith.constant 0 : index
    %9 = vector.load %arg4[%c0_3, %c0_4, %c0_5, %c0_6] : memref<1x4x32x32xf32, #tpu.memory_space<vmem>>, vector<1x4x2x32xf32>
    %10 = vector.shape_cast %9 : vector<1x4x2x32xf32> to vector<4x2x32xf32>
    %11 = vector.shape_cast %8 : vector<4x2x32xf32> to vector<1x4x2x32xf32>
    tpu.vector_store %arg4[%c0_3, %c0_4, %c0_5, %c0_6], %11 {strides = array<i32>} : memref<1x4x32x32xf32, #tpu.memory_space<vmem>>, vector<1x4x2x32xf32>,
    %c0_7 = arith.constant 0 : index
    %c0_8 = arith.constant 0 : index
    %c1 = arith.constant 1 : index
    %c0_9 = arith.constant 0 : index
    %12 = vector.load %arg3[%c0_7, %c0_8, %c1, %c0_9] : memref<1x4x16x16xf32, #tpu.memory_space<vmem>>, vector<1x4x1x16xf32>
    %13 = vector.shape_cast %12 : vector<1x4x1x16xf32> to vector<4x16xf32>
    %14 = vector.shape_cast %13 : vector<4x16xf32> to vector<4x16x1xf32>
    %15 = vector.shape_cast %14 : vector<4x16x1xf32> to vector<4x16x1xf32>
    %16 = vector.broadcast %15 : vector<4x16x1xf32> to vector<4x16x2xf32>
    %17 = vector.shape_cast %16 : vector<4x16x2xf32> to vector<4x32xf32>
    %18 = vector.shape_cast %17 : vector<4x32xf32> to vector<4x1x32xf32>
    %19 = vector.shape_cast %18 : vector<4x1x32xf32> to vector<4x1x32xf32>
    %20 = vector.broadcast %19 : vector<4x1x32xf32> to vector<4x2x32xf32>
    %c0_10 = arith.constant 0 : index
    %c0_11 = arith.constant 0 : index
    %c2 = arith.constant 2 : index
    %c0_12 = arith.constant 0 : index
    %21 = vector.load %arg4[%c0_10, %c0_11, %c2, %c0_12] : memref<1x4x32x32xf32, #tpu.memory_space<vmem>>, vector<1x4x2x32xf32>
    %22 = vector.shape_cast %21 : vector<1x4x2x32xf32> to vector<4x2x32xf32>
    %23 = vector.shape_cast %20 : vector<4x2x32xf32> to vector<1x4x2x32xf32>
    tpu.vector_store %arg4[%c0_10, %c0_11, %c2, %c0_12], %23 {strides = array<i32>} : memref<1x4x32x32xf32, #tpu.memory_space<vmem>>, vector<1x4x2x32xf32>,
    %c0_13 = arith.constant 0 : index
    %c0_14 = arith.constant 0 : index
    %c2_15 = arith.constant 2 : index
    %c0_16 = arith.constant 0 : index
    %24 = vector.load %arg3[%c0_13, %c0_14, %c2_15, %c0_16] : memref<1x4x16x16xf32, #tpu.memory_space<vmem>>, vector<1x4x1x16xf32>
    %25 = vector.shape_cast %24 : vector<1x4x1x16xf32> to vector<4x16xf32>
    %26 = vector.shape_cast %25 : vector<4x16xf32> to vector<4x16x1xf32>
    %27 = vector.shape_cast %26 : vector<4x16x1xf32> to vector<4x16x1xf32>
    %28 = vector.broadcast %27 : vector<4x16x1xf32> to vector<4x16x2xf32>
    %29 = vector.shape_cast %28 : vector<4x16x2xf32> to vector<4x32xf32>
    %30 = vector.shape_cast %29 : vector<4x32xf32> to vector<4x1x32xf32>
    %31 = vector.shape_cast %30 : vector<4x1x32xf32> to vector<4x1x32xf32>
    %32 = vector.broadcast %31 : vector<4x1x32xf32> to vector<4x2x32xf32>
    %c0_17 = arith.constant 0 : index
    %c0_18 = arith.constant 0 : index
    %c4 = arith.constant 4 : index
    %c0_19 = arith.constant 0 : index
    %33 = vector.load %arg4[%c0_17, %c0_18, %c4, %c0_19] : memref<1x4x32x32xf32, #tpu.memory_space<vmem>>, vector<1x4x2x32xf32>
    %34 = vector.shape_cast %33 : vector<1x4x2x32xf32> to vector<4x2x32xf32>
    %35 = vector.shape_cast %32 : vector<4x2x32xf32> to vector<1x4x2x32xf32>
    tpu.vector_store %arg4[%c0_17, %c0_18, %c4, %c0_19], %35 {strides = array<i32>} : memref<1x4x32x32xf32, #tpu.memory_space<vmem>>, vector<1x4x2x32xf32>,
    %c0_20 = arith.constant 0 : index
    %c0_21 = arith.constant 0 : index
    %c3 = arith.constant 3 : index
    %c0_22 = arith.constant 0 : index
    %36 = vector.load %arg3[%c0_20, %c0_21, %c3, %c0_22] : memref<1x4x16x16xf32, #tpu.memory_space<vmem>>, vector<1x4x1x16xf32>
    %37 = vector.shape_cast %36 : vector<1x4x1x16xf32> to vector<4x16xf32>
    %38 = vector.shape_cast %37 : vector<4x16xf32> to vector<4x16x1xf32>
    %39 = vector.shape_cast %38 : vector<4x16x1xf32> to vector<4x16x1xf32>
    %40 = vector.broadcast %39 : vector<4x16x1xf32> to vector<4x16x2xf32>
    %41 = vector.shape_cast %40 : vector<4x16x2xf32> to vector<4x32xf32>
    %42 = vector.shape_cast %41 : vector<4x32xf32> to vector<4x1x32xf32>
    %43 = vector.shape_cast %42 : vector<4x1x32xf32> to vector<4x1x32xf32>
    %44 = vector.broadcast %43 : vector<4x1x32xf32> to vector<4x2x32xf32>
    %c0_23 = arith.constant 0 : index
    %c0_24 = arith.constant 0 : index
    %c6 = arith.constant 6 : index
    %c0_25 = arith.constant 0 : index
    %45 = vector.load %arg4[%c0_23, %c0_24, %c6, %c0_25] : memref<1x4x32x32xf32, #tpu.memory_space<vmem>>, vector<1x4x2x32xf32>
    %46 = vector.shape_cast %45 : vector<1x4x2x32xf32> to vector<4x2x32xf32>
    %47 = vector.shape_cast %44 : vector<4x2x32xf32> to vector<1x4x2x32xf32>
    tpu.vector_store %arg4[%c0_23, %c0_24, %c6, %c0_25], %47 {strides = array<i32>} : memref<1x4x32x32xf32, #tpu.memory_space<vmem>>, vector<1x4x2x32xf32>,
    %c0_26 = arith.constant 0 : index
    %c0_27 = arith.constant 0 : index
    %c4_28 = arith.constant 4 : index
    %c0_29 = arith.constant 0 : index
    %48 = vector.load %arg3[%c0_26, %c0_27, %c4_28, %c0_29] : memref<1x4x16x16xf32, #tpu.memory_space<vmem>>, vector<1x4x1x16xf32>
    %49 = vector.shape_cast %48 : vector<1x4x1x16xf32> to vector<4x16xf32>
    %50 = vector.shape_cast %49 : vector<4x16xf32> to vector<4x16x1xf32>
    %51 = vector.shape_cast %50 : vector<4x16x1xf32> to vector<4x16x1xf32>
    %52 = vector.broadcast %51 : vector<4x16x1xf32> to vector<4x16x2xf32>
    %53 = vector.shape_cast %52 : vector<4x16x2xf32> to vector<4x32xf32>
    %54 = vector.shape_cast %53 : vector<4x32xf32> to vector<4x1x32xf32>
    %55 = vector.shape_cast %54 : vector<4x1x32xf32> to vector<4x1x32xf32>
    %56 = vector.broadcast %55 : vector<4x1x32xf32> to vector<4x2x32xf32>
    %c0_30 = arith.constant 0 : index
    %c0_31 = arith.constant 0 : index
    %c8 = arith.constant 8 : index
    %c0_32 = arith.constant 0 : index
    %57 = vector.load %arg4[%c0_30, %c0_31, %c8, %c0_32] : memref<1x4x32x32xf32, #tpu.memory_space<vmem>>, vector<1x4x2x32xf32>
    %58 = vector.shape_cast %57 : vector<1x4x2x32xf32> to vector<4x2x32xf32>
    %59 = vector.shape_cast %56 : vector<4x2x32xf32> to vector<1x4x2x32xf32>
    tpu.vector_store %arg4[%c0_30, %c0_31, %c8, %c0_32], %59 {strides = array<i32>} : memref<1x4x32x32xf32, #tpu.memory_space<vmem>>, vector<1x4x2x32xf32>,
    %c0_33 = arith.constant 0 : index
    %c0_34 = arith.constant 0 : index
    %c5 = arith.constant 5 : index
    %c0_35 = arith.constant 0 : index
    %60 = vector.load %arg3[%c0_33, %c0_34, %c5, %c0_35] : memref<1x4x16x16xf32, #tpu.memory_space<vmem>>, vector<1x4x1x16xf32>
    %61 = vector.shape_cast %60 : vector<1x4x1x16xf32> to vector<4x16xf32>
    %62 = vector.shape_cast %61 : vector<4x16xf32> to vector<4x16x1xf32>
    %63 = vector.shape_cast %62 : vector<4x16x1xf32> to vector<4x16x1xf32>
    %64 = vector.broadcast %63 : vector<4x16x1xf32> to vector<4x16x2xf32>
    %65 = vector.shape_cast %64 : vector<4x16x2xf32> to vector<4x32xf32>
    %66 = vector.shape_cast %65 : vector<4x32xf32> to vector<4x1x32xf32>
    %67 = vector.shape_cast %66 : vector<4x1x32xf32> to vector<4x1x32xf32>
    %68 = vector.broadcast %67 : vector<4x1x32xf32> to vector<4x2x32xf32>
    %c0_36 = arith.constant 0 : index
    %c0_37 = arith.constant 0 : index
    %c10 = arith.constant 10 : index
    %c0_38 = arith.constant 0 : index
    %69 = vector.load %arg4[%c0_36, %c0_37, %c10, %c0_38] : memref<1x4x32x32xf32, #tpu.memory_space<vmem>>, vector<1x4x2x32xf32>
    %70 = vector.shape_cast %69 : vector<1x4x2x32xf32> to vector<4x2x32xf32>
    %71 = vector.shape_cast %68 : vector<4x2x32xf32> to vector<1x4x2x32xf32>
    tpu.vector_store %arg4[%c0_36, %c0_37, %c10, %c0_38], %71 {strides = array<i32>} : memref<1x4x32x32xf32, #tpu.memory_space<vmem>>, vector<1x4x2x32xf32>,
    %c0_39 = arith.constant 0 : index
    %c0_40 = arith.constant 0 : index
    %c6_41 = arith.constant 6 : index
    %c0_42 = arith.constant 0 : index
    %72 = vector.load %arg3[%c0_39, %c0_40, %c6_41, %c0_42] : memref<1x4x16x16xf32, #tpu.memory_space<vmem>>, vector<1x4x1x16xf32>
    %73 = vector.shape_cast %72 : vector<1x4x1x16xf32> to vector<4x16xf32>
    %74 = vector.shape_cast %73 : vector<4x16xf32> to vector<4x16x1xf32>
    %75 = vector.shape_cast %74 : vector<4x16x1xf32> to vector<4x16x1xf32>
    %76 = vector.broadcast %75 : vector<4x16x1xf32> to vector<4x16x2xf32>
    %77 = vector.shape_cast %76 : vector<4x16x2xf32> to vector<4x32xf32>
    %78 = vector.shape_cast %77 : vector<4x32xf32> to vector<4x1x32xf32>
    %79 = vector.shape_cast %78 : vector<4x1x32xf32> to vector<4x1x32xf32>
    %80 = vector.broadcast %79 : vector<4x1x32xf32> to vector<4x2x32xf32>
    %c0_43 = arith.constant 0 : index
    %c0_44 = arith.constant 0 : index
    %c12 = arith.constant 12 : index
    %c0_45 = arith.constant 0 : index
    %81 = vector.load %arg4[%c0_43, %c0_44, %c12, %c0_45] : memref<1x4x32x32xf32, #tpu.memory_space<vmem>>, vector<1x4x2x32xf32>
    %82 = vector.shape_cast %81 : vector<1x4x2x32xf32> to vector<4x2x32xf32>
    %83 = vector.shape_cast %80 : vector<4x2x32xf32> to vector<1x4x2x32xf32>
    tpu.vector_store %arg4[%c0_43, %c0_44, %c12, %c0_45], %83 {strides = array<i32>} : memref<1x4x32x32xf32, #tpu.memory_space<vmem>>, vector<1x4x2x32xf32>,
    %c0_46 = arith.constant 0 : index
    %c0_47 = arith.constant 0 : index
    %c7 = arith.constant 7 : index
    %c0_48 = arith.constant 0 : index
    %84 = vector.load %arg3[%c0_46, %c0_47, %c7, %c0_48] : memref<1x4x16x16xf32, #tpu.memory_space<vmem>>, vector<1x4x1x16xf32>
    %85 = vector.shape_cast %84 : vector<1x4x1x16xf32> to vector<4x16xf32>
    %86 = vector.shape_cast %85 : vector<4x16xf32> to vector<4x16x1xf32>
    %87 = vector.shape_cast %86 : vector<4x16x1xf32> to vector<4x16x1xf32>
    %88 = vector.broadcast %87 : vector<4x16x1xf32> to vector<4x16x2xf32>
    %89 = vector.shape_cast %88 : vector<4x16x2xf32> to vector<4x32xf32>
    %90 = vector.shape_cast %89 : vector<4x32xf32> to vector<4x1x32xf32>
    %91 = vector.shape_cast %90 : vector<4x1x32xf32> to vector<4x1x32xf32>
    %92 = vector.broadcast %91 : vector<4x1x32xf32> to vector<4x2x32xf32>
    %c0_49 = arith.constant 0 : index
    %c0_50 = arith.constant 0 : index
    %c14 = arith.constant 14 : index
    %c0_51 = arith.constant 0 : index
    %93 = vector.load %arg4[%c0_49, %c0_50, %c14, %c0_51] : memref<1x4x32x32xf32, #tpu.memory_space<vmem>>, vector<1x4x2x32xf32>
    %94 = vector.shape_cast %93 : vector<1x4x2x32xf32> to vector<4x2x32xf32>
    %95 = vector.shape_cast %92 : vector<4x2x32xf32> to vector<1x4x2x32xf32>
    tpu.vector_store %arg4[%c0_49, %c0_50, %c14, %c0_51], %95 {strides = array<i32>} : memref<1x4x32x32xf32, #tpu.memory_space<vmem>>, vector<1x4x2x32xf32>,
    %c0_52 = arith.constant 0 : index
    %c0_53 = arith.constant 0 : index
    %c8_54 = arith.constant 8 : index
    %c0_55 = arith.constant 0 : index
    %96 = vector.load %arg3[%c0_52, %c0_53, %c8_54, %c0_55] : memref<1x4x16x16xf32, #tpu.memory_space<vmem>>, vector<1x4x1x16xf32>
    %97 = vector.shape_cast %96 : vector<1x4x1x16xf32> to vector<4x16xf32>
    %98 = vector.shape_cast %97 : vector<4x16xf32> to vector<4x16x1xf32>
    %99 = vector.shape_cast %98 : vector<4x16x1xf32> to vector<4x16x1xf32>
    %100 = vector.broadcast %99 : vector<4x16x1xf32> to vector<4x16x2xf32>
    %101 = vector.shape_cast %100 : vector<4x16x2xf32> to vector<4x32xf32>
    %102 = vector.shape_cast %101 : vector<4x32xf32> to vector<4x1x32xf32>
    %103 = vector.shape_cast %102 : vector<4x1x32xf32> to vector<4x1x32xf32>
    %104 = vector.broadcast %103 : vector<4x1x32xf32> to vector<4x2x32xf32>
    %c0_56 = arith.constant 0 : index
    %c0_57 = arith.constant 0 : index
    %c16 = arith.constant 16 : index
    %c0_58 = arith.constant 0 : index
    %105 = vector.load %arg4[%c0_56, %c0_57, %c16, %c0_58] : memref<1x4x32x32xf32, #tpu.memory_space<vmem>>, vector<1x4x2x32xf32>
    %106 = vector.shape_cast %105 : vector<1x4x2x32xf32> to vector<4x2x32xf32>
    %107 = vector.shape_cast %104 : vector<4x2x32xf32> to vector<1x4x2x32xf32>
    tpu.vector_store %arg4[%c0_56, %c0_57, %c16, %c0_58], %107 {strides = array<i32>} : memref<1x4x32x32xf32, #tpu.memory_space<vmem>>, vector<1x4x2x32xf32>,
    %c0_59 = arith.constant 0 : index
    %c0_60 = arith.constant 0 : index
    %c9 = arith.constant 9 : index
    %c0_61 = arith.constant 0 : index
    %108 = vector.load %arg3[%c0_59, %c0_60, %c9, %c0_61] : memref<1x4x16x16xf32, #tpu.memory_space<vmem>>, vector<1x4x1x16xf32>
    %109 = vector.shape_cast %108 : vector<1x4x1x16xf32> to vector<4x16xf32>
    %110 = vector.shape_cast %109 : vector<4x16xf32> to vector<4x16x1xf32>
    %111 = vector.shape_cast %110 : vector<4x16x1xf32> to vector<4x16x1xf32>
    %112 = vector.broadcast %111 : vector<4x16x1xf32> to vector<4x16x2xf32>
    %113 = vector.shape_cast %112 : vector<4x16x2xf32> to vector<4x32xf32>
    %114 = vector.shape_cast %113 : vector<4x32xf32> to vector<4x1x32xf32>
    %115 = vector.shape_cast %114 : vector<4x1x32xf32> to vector<4x1x32xf32>
    %116 = vector.broadcast %115 : vector<4x1x32xf32> to vector<4x2x32xf32>
    %c0_62 = arith.constant 0 : index
    %c0_63 = arith.constant 0 : index
    %c18 = arith.constant 18 : index
    %c0_64 = arith.constant 0 : index
    %117 = vector.load %arg4[%c0_62, %c0_63, %c18, %c0_64] : memref<1x4x32x32xf32, #tpu.memory_space<vmem>>, vector<1x4x2x32xf32>
    %118 = vector.shape_cast %117 : vector<1x4x2x32xf32> to vector<4x2x32xf32>
    %119 = vector.shape_cast %116 : vector<4x2x32xf32> to vector<1x4x2x32xf32>
    tpu.vector_store %arg4[%c0_62, %c0_63, %c18, %c0_64], %119 {strides = array<i32>} : memref<1x4x32x32xf32, #tpu.memory_space<vmem>>, vector<1x4x2x32xf32>,
    %c0_65 = arith.constant 0 : index
    %c0_66 = arith.constant 0 : index
    %c10_67 = arith.constant 10 : index
    %c0_68 = arith.constant 0 : index
    %120 = vector.load %arg3[%c0_65, %c0_66, %c10_67, %c0_68] : memref<1x4x16x16xf32, #tpu.memory_space<vmem>>, vector<1x4x1x16xf32>
    %121 = vector.shape_cast %120 : vector<1x4x1x16xf32> to vector<4x16xf32>
    %122 = vector.shape_cast %121 : vector<4x16xf32> to vector<4x16x1xf32>
    %123 = vector.shape_cast %122 : vector<4x16x1xf32> to vector<4x16x1xf32>
    %124 = vector.broadcast %123 : vector<4x16x1xf32> to vector<4x16x2xf32>
    %125 = vector.shape_cast %124 : vector<4x16x2xf32> to vector<4x32xf32>
    %126 = vector.shape_cast %125 : vector<4x32xf32> to vector<4x1x32xf32>
    %127 = vector.shape_cast %126 : vector<4x1x32xf32> to vector<4x1x32xf32>
    %128 = vector.broadcast %127 : vector<4x1x32xf32> to vector<4x2x32xf32>
    %c0_69 = arith.constant 0 : index
    %c0_70 = arith.constant 0 : index
    %c20 = arith.constant 20 : index
    %c0_71 = arith.constant 0 : index
    %129 = vector.load %arg4[%c0_69, %c0_70, %c20, %c0_71] : memref<1x4x32x32xf32, #tpu.memory_space<vmem>>, vector<1x4x2x32xf32>
    %130 = vector.shape_cast %129 : vector<1x4x2x32xf32> to vector<4x2x32xf32>
    %131 = vector.shape_cast %128 : vector<4x2x32xf32> to vector<1x4x2x32xf32>
    tpu.vector_store %arg4[%c0_69, %c0_70, %c20, %c0_71], %131 {strides = array<i32>} : memref<1x4x32x32xf32, #tpu.memory_space<vmem>>, vector<1x4x2x32xf32>,
    %c0_72 = arith.constant 0 : index
    %c0_73 = arith.constant 0 : index
    %c11 = arith.constant 11 : index
    %c0_74 = arith.constant 0 : index
    %132 = vector.load %arg3[%c0_72, %c0_73, %c11, %c0_74] : memref<1x4x16x16xf32, #tpu.memory_space<vmem>>, vector<1x4x1x16xf32>
    %133 = vector.shape_cast %132 : vector<1x4x1x16xf32> to vector<4x16xf32>
    %134 = vector.shape_cast %133 : vector<4x16xf32> to vector<4x16x1xf32>
    %135 = vector.shape_cast %134 : vector<4x16x1xf32> to vector<4x16x1xf32>
    %136 = vector.broadcast %135 : vector<4x16x1xf32> to vector<4x16x2xf32>
    %137 = vector.shape_cast %136 : vector<4x16x2xf32> to vector<4x32xf32>
    %138 = vector.shape_cast %137 : vector<4x32xf32> to vector<4x1x32xf32>
    %139 = vector.shape_cast %138 : vector<4x1x32xf32> to vector<4x1x32xf32>
    %140 = vector.broadcast %139 : vector<4x1x32xf32> to vector<4x2x32xf32>
    %c0_75 = arith.constant 0 : index
    %c0_76 = arith.constant 0 : index
    %c22 = arith.constant 22 : index
    %c0_77 = arith.constant 0 : index
    %141 = vector.load %arg4[%c0_75, %c0_76, %c22, %c0_77] : memref<1x4x32x32xf32, #tpu.memory_space<vmem>>, vector<1x4x2x32xf32>
    %142 = vector.shape_cast %141 : vector<1x4x2x32xf32> to vector<4x2x32xf32>
    %143 = vector.shape_cast %140 : vector<4x2x32xf32> to vector<1x4x2x32xf32>
    tpu.vector_store %arg4[%c0_75, %c0_76, %c22, %c0_77], %143 {strides = array<i32>} : memref<1x4x32x32xf32, #tpu.memory_space<vmem>>, vector<1x4x2x32xf32>,
    %c0_78 = arith.constant 0 : index
    %c0_79 = arith.constant 0 : index
    %c12_80 = arith.constant 12 : index
    %c0_81 = arith.constant 0 : index
    %144 = vector.load %arg3[%c0_78, %c0_79, %c12_80, %c0_81] : memref<1x4x16x16xf32, #tpu.memory_space<vmem>>, vector<1x4x1x16xf32>
    %145 = vector.shape_cast %144 : vector<1x4x1x16xf32> to vector<4x16xf32>
    %146 = vector.shape_cast %145 : vector<4x16xf32> to vector<4x16x1xf32>
    %147 = vector.shape_cast %146 : vector<4x16x1xf32> to vector<4x16x1xf32>
    %148 = vector.broadcast %147 : vector<4x16x1xf32> to vector<4x16x2xf32>
    %149 = vector.shape_cast %148 : vector<4x16x2xf32> to vector<4x32xf32>
    %150 = vector.shape_cast %149 : vector<4x32xf32> to vector<4x1x32xf32>
    %151 = vector.shape_cast %150 : vector<4x1x32xf32> to vector<4x1x32xf32>
    %152 = vector.broadcast %151 : vector<4x1x32xf32> to vector<4x2x32xf32>
    %c0_82 = arith.constant 0 : index
    %c0_83 = arith.constant 0 : index
    %c24 = arith.constant 24 : index
    %c0_84 = arith.constant 0 : index
    %153 = vector.load %arg4[%c0_82, %c0_83, %c24, %c0_84] : memref<1x4x32x32xf32, #tpu.memory_space<vmem>>, vector<1x4x2x32xf32>
    %154 = vector.shape_cast %153 : vector<1x4x2x32xf32> to vector<4x2x32xf32>
    %155 = vector.shape_cast %152 : vector<4x2x32xf32> to vector<1x4x2x32xf32>
    tpu.vector_store %arg4[%c0_82, %c0_83, %c24, %c0_84], %155 {strides = array<i32>} : memref<1x4x32x32xf32, #tpu.memory_space<vmem>>, vector<1x4x2x32xf32>,
    %c0_85 = arith.constant 0 : index
    %c0_86 = arith.constant 0 : index
    %c13 = arith.constant 13 : index
    %c0_87 = arith.constant 0 : index
    %156 = vector.load %arg3[%c0_85, %c0_86, %c13, %c0_87] : memref<1x4x16x16xf32, #tpu.memory_space<vmem>>, vector<1x4x1x16xf32>
    %157 = vector.shape_cast %156 : vector<1x4x1x16xf32> to vector<4x16xf32>
    %158 = vector.shape_cast %157 : vector<4x16xf32> to vector<4x16x1xf32>
    %159 = vector.shape_cast %158 : vector<4x16x1xf32> to vector<4x16x1xf32>
    %160 = vector.broadcast %159 : vector<4x16x1xf32> to vector<4x16x2xf32>
    %161 = vector.shape_cast %160 : vector<4x16x2xf32> to vector<4x32xf32>
    %162 = vector.shape_cast %161 : vector<4x32xf32> to vector<4x1x32xf32>
    %163 = vector.shape_cast %162 : vector<4x1x32xf32> to vector<4x1x32xf32>
    %164 = vector.broadcast %163 : vector<4x1x32xf32> to vector<4x2x32xf32>
    %c0_88 = arith.constant 0 : index
    %c0_89 = arith.constant 0 : index
    %c26 = arith.constant 26 : index
    %c0_90 = arith.constant 0 : index
    %165 = vector.load %arg4[%c0_88, %c0_89, %c26, %c0_90] : memref<1x4x32x32xf32, #tpu.memory_space<vmem>>, vector<1x4x2x32xf32>
    %166 = vector.shape_cast %165 : vector<1x4x2x32xf32> to vector<4x2x32xf32>
    %167 = vector.shape_cast %164 : vector<4x2x32xf32> to vector<1x4x2x32xf32>
    tpu.vector_store %arg4[%c0_88, %c0_89, %c26, %c0_90], %167 {strides = array<i32>} : memref<1x4x32x32xf32, #tpu.memory_space<vmem>>, vector<1x4x2x32xf32>,
    %c0_91 = arith.constant 0 : index
    %c0_92 = arith.constant 0 : index
    %c14_93 = arith.constant 14 : index
    %c0_94 = arith.constant 0 : index
    %168 = vector.load %arg3[%c0_91, %c0_92, %c14_93, %c0_94] : memref<1x4x16x16xf32, #tpu.memory_space<vmem>>, vector<1x4x1x16xf32>
    %169 = vector.shape_cast %168 : vector<1x4x1x16xf32> to vector<4x16xf32>
    %170 = vector.shape_cast %169 : vector<4x16xf32> to vector<4x16x1xf32>
    %171 = vector.shape_cast %170 : vector<4x16x1xf32> to vector<4x16x1xf32>
    %172 = vector.broadcast %171 : vector<4x16x1xf32> to vector<4x16x2xf32>
    %173 = vector.shape_cast %172 : vector<4x16x2xf32> to vector<4x32xf32>
    %174 = vector.shape_cast %173 : vector<4x32xf32> to vector<4x1x32xf32>
    %175 = vector.shape_cast %174 : vector<4x1x32xf32> to vector<4x1x32xf32>
    %176 = vector.broadcast %175 : vector<4x1x32xf32> to vector<4x2x32xf32>
    %c0_95 = arith.constant 0 : index
    %c0_96 = arith.constant 0 : index
    %c28 = arith.constant 28 : index
    %c0_97 = arith.constant 0 : index
    %177 = vector.load %arg4[%c0_95, %c0_96, %c28, %c0_97] : memref<1x4x32x32xf32, #tpu.memory_space<vmem>>, vector<1x4x2x32xf32>
    %178 = vector.shape_cast %177 : vector<1x4x2x32xf32> to vector<4x2x32xf32>
    %179 = vector.shape_cast %176 : vector<4x2x32xf32> to vector<1x4x2x32xf32>
    tpu.vector_store %arg4[%c0_95, %c0_96, %c28, %c0_97], %179 {strides = array<i32>} : memref<1x4x32x32xf32, #tpu.memory_space<vmem>>, vector<1x4x2x32xf32>,
    %c0_98 = arith.constant 0 : index
    %c0_99 = arith.constant 0 : index
    %c15 = arith.constant 15 : index
    %c0_100 = arith.constant 0 : index
    %180 = vector.load %arg3[%c0_98, %c0_99, %c15, %c0_100] : memref<1x4x16x16xf32, #tpu.memory_space<vmem>>, vector<1x4x1x16xf32>
    %181 = vector.shape_cast %180 : vector<1x4x1x16xf32> to vector<4x16xf32>
    %182 = vector.shape_cast %181 : vector<4x16xf32> to vector<4x16x1xf32>
    %183 = vector.shape_cast %182 : vector<4x16x1xf32> to vector<4x16x1xf32>
    %184 = vector.broadcast %183 : vector<4x16x1xf32> to vector<4x16x2xf32>
    %185 = vector.shape_cast %184 : vector<4x16x2xf32> to vector<4x32xf32>
    %186 = vector.shape_cast %185 : vector<4x32xf32> to vector<4x1x32xf32>
    %187 = vector.shape_cast %186 : vector<4x1x32xf32> to vector<4x1x32xf32>
    %188 = vector.broadcast %187 : vector<4x1x32xf32> to vector<4x2x32xf32>
    %c0_101 = arith.constant 0 : index
    %c0_102 = arith.constant 0 : index
    %c30 = arith.constant 30 : index
    %c0_103 = arith.constant 0 : index
    %189 = vector.load %arg4[%c0_101, %c0_102, %c30, %c0_103] : memref<1x4x32x32xf32, #tpu.memory_space<vmem>>, vector<1x4x2x32xf32>
    %190 = vector.shape_cast %189 : vector<1x4x2x32xf32> to vector<4x2x32xf32>
    %191 = vector.shape_cast %188 : vector<4x2x32xf32> to vector<1x4x2x32xf32>
    tpu.vector_store %arg4[%c0_101, %c0_102, %c30, %c0_103], %191 {strides = array<i32>} : memref<1x4x32x32xf32, #tpu.memory_space<vmem>>, vector<1x4x2x32xf32>,
    return
  }
  func.func @transform_0(%arg0: i32, %arg1: i32, %arg2: i32) -> (i32, i32, i32, i32) {
    %c0_i32 = arith.constant 0 : i32
    %c0_i32_0 = arith.constant 0 : i32
    return %arg0, %arg1, %arg2, %c0_i32 : i32, i32, i32, i32
  }
  func.func @transform_1(%arg0: i32, %arg1: i32, %arg2: i32) -> (i32, i32, i32, i32) {
    %c0_i32 = arith.constant 0 : i32
    %c0_i32_0 = arith.constant 0 : i32
    return %arg0, %arg1, %arg2, %c0_i32 : i32, i32, i32, i32
  }
}

</mosaic_0001>

<llo_original>
// kernel: tpu_custom_call.1
$region0: #{tpu_custom_call.1}
  #allocation0 [shape = 'u32[]', space=smem, size = 0x4, offset = 0x4, fixed_abs, tag = 'smem constant byte address 0x4 - core index']
  #allocation1 [shape = 'u32[144,128]{1,0:T(1,128)}', space=vmem, size = 0x12000, scoped, tag = 'internal scratch']
  %s0 = inlined_call_operand.hbm [shape: f32[2,4,16,16], index: 0, kind: input, shape index: {}]
  %s1 = inlined_call_operand.hbm [shape: f32[2,4,32,32], index: 1, kind: output, shape index: {}]
  %s2 = sld [smem:[#allocation0]]
  $region41: #{tpu_custom_call.1} parent=0
    _
  %s4 = ssub.s32 1, %s2
  %s5 = scalar_select 0, %s4, %s2
  $region1: #{tpu_custom_call.1} parent=0
    #allocation2 [shape = 'u8[65536]{0}', space=vmem, size = 0x10000, scoped, tag = 'input window, operand 0']
    #allocation3 [shape = 's32[2]{0}', space=sflag, size = 0x8, scoped, tag = 'scoped memory for tpu_custom_call.1']
    #allocation4 [shape = 's32[2]{0}', space=sflag, size = 0x8, scoped, tag = 'scoped memory for tpu_custom_call.1']
    #allocation5 [shape = 'u8[131072]{0}', space=vmem, size = 0x20000, scoped, tag = 'output window, operand 0']
    %6 = vsyncpa [#allocation3], 0
    %s7 = scalar_lea.sflag [#allocation3], 1
    %8 = vsyncpa %s7, 0
    %9 = vsyncpa [#allocation4], 0
    %s10 = scalar_lea.sflag [#allocation4], 1
    %11 = vsyncpa %s10, 0
    loop: start=0, step=1, limit=4
    $region2: #{tpu_custom_call.1} parent=1 // loop_pre_header
      _
    $region3: #{tpu_custom_call.1} parent=1 // loop_header
      %s13 = sphi 0, %s17
      %p14 = scmp.ge.s32.totalorder %s13, 4
      %s20 = sphi 0, %s39
      %s21 = sphi 0, %s35
      %s22 = sphi 0, %s31
      %s23 = sphi 0, %s20
      %s24 = sphi 0, %s21
      %s25 = sphi 0, %s22
      %s26 = sphi 0, %s23
      %s27 = sphi 0, %s24
      %s28 = sphi 0, %s25
      %s46 = sphi 0, %s48
      %s49 = sphi 0, %s46
      %s50 = sphi 0, %s49
      %s66 = sphi 0, %s50
      %s76 = sphi 0, %s78
      %s79 = sphi 0, %s76
      %s80 = sphi 0, %s79
      %s96 = sphi 0, %s80
    $region4: #{tpu_custom_call.1} parent=1 // loop_header_branch
      %16 = sbr.rel (%p14) target = $region8
    $region5: #{tpu_custom_call.1} parent=1 // loop_body
      %s18 = ssub.s32 %s13, 1
      %s19 = ssub.s32 %s13, 2
      %s29 = sadd.s32 1, %s22
      %p30 = scmp.ge.s32.totalorder %s29, 1
      %s31 = scalar_select %p30, 0, %s29
      %s32 = sadd.s32 1, %s21
      %s33 = scalar_select %p30, %s32, %s21
      %p34 = scmp.ge.s32.totalorder %s33, 1
      %s35 = scalar_select %p34, 0, %s33
      %s36 = sadd.s32 1, %s20
      %s37 = scalar_select %p34, %s36, %s20
      %p38 = scmp.ge.s32.totalorder %s37, 2
      %s39 = scalar_select %p38, 0, %s37
      %s40 = ssub.s32 %s20, %s39
      %s41 = ssub.s32 %s21, %s35
      %s42 = sor.u32 %s40, %s41
      %s43 = ssub.s32 %s22, %s31
      %s44 = sor.u32 %s42, %s43
      %p45 = scmp.eq.s32.totalorder %s44, 0
      %s47 = sadd.s32 %s46, 1
      %s48 = scalar_select %p45, %s46, %s47
      %p51 = pneg %p45
      %p52 = scmp.eq.s32.totalorder %s13, 1
      %p53 = por %p51, %p52
      %p54 = scmp.ne.s32.totalorder %s46, %s49
      %p55 = scmp.eq.s32.totalorder %s13, 0
      %p56 = por %p54, %p55
      %p57 = scmp.ne.s32.totalorder %s46, %s49
      %p58 = scmp.eq.s32.totalorder %s18, 1
      %p59 = por %p57, %p58
      %p60 = scmp.ne.s32.totalorder %s49, %s50
      %p61 = scmp.eq.s32.totalorder %s18, 0
      %p62 = por %p60, %p61
      %p63 = scmp.ne.s32.totalorder %s49, %s50
      %p64 = scmp.eq.s32.totalorder %s19, 1
      %p65 = por %p63, %p64
      %p67 = scmp.ne.s32.totalorder %s50, %s66
      %p68 = scmp.eq.s32.totalorder %s19, 0
      %p69 = por %p67, %p68
      %s70 = ssub.s32 %s20, %s39
      %s71 = ssub.s32 %s21, %s35
      %s72 = sor.u32 %s70, %s71
      %s73 = ssub.s32 %s22, %s31
      %s74 = sor.u32 %s72, %s73
      %p75 = scmp.eq.s32.totalorder %s74, 0
      %s77 = sadd.s32 %s76, 1
      %s78 = scalar_select %p75, %s76, %s77
      %p81 = pneg %p75
      %p82 = scmp.eq.s32.totalorder %s13, 1
      %p83 = por %p81, %p82
      %p84 = scmp.ne.s32.totalorder %s76, %s79
      %p85 = scmp.eq.s32.totalorder %s13, 0
      %p86 = por %p84, %p85
      %p87 = scmp.ne.s32.totalorder %s76, %s79
      %p88 = scmp.eq.s32.totalorder %s18, 1
      %p89 = por %p87, %p88
      %p90 = scmp.ne.s32.totalorder %s79, %s80
      %p91 = scmp.eq.s32.totalorder %s18, 0
      %p92 = por %p90, %p91
      %p93 = scmp.ne.s32.totalorder %s79, %s80
      %p94 = scmp.eq.s32.totalorder %s19, 1
      %p95 = por %p93, %p94
      %p97 = scmp.ne.s32.totalorder %s80, %s96
      %p98 = scmp.eq.s32.totalorder %s19, 0
      %p99 = por %p97, %p98
      %p100 = scmp.le.s32.totalorder 1, %s13
      %p101 = scmp.lt.s32.totalorder %s13, 3
      %p102 = pnand %p100, %p101
      %p103 = pneg %p102
      // Predicated region
      $region9: #{tpu_custom_call.1} parent=5 // pred_check
        _
      $region10: #{tpu_custom_call.1} parent=5 // pred_check_branch
        %105 = sbr.rel (%p102) target = $region12
      $region11: #{tpu_custom_call.1} parent=5 // pred_region
        %s106 = ssub.s32 %s13, 1
      $region12: #{tpu_custom_call.1} parent=5 // pred_fallthru
        _
      %p107 = scmp.lt.s32.totalorder %s13, 2
      // Predicated region
      $region13: #{tpu_custom_call.1} parent=5 // pred_check
        %p108 = pneg %p107
      $region14: #{tpu_custom_call.1} parent=5 // pred_check_branch
        %110 = sbr.rel (%p108) target = $region16
      $region15: #{tpu_custom_call.1} parent=5 // pred_region
        // Predicated region
        $region17: #{tpu_custom_call.1} parent=15 // pred_check
          %p111 = pneg %p56
        $region18: #{tpu_custom_call.1} parent=15 // pred_check_branch
          %113 = sbr.rel (%p111) target = $region20
        $region19: #{tpu_custom_call.1} parent=15 // pred_region
          %s114 = sand.u32 %s46, 1
          %s115 = scalar_lea.sflag [#allocation3], %s114
          %s116 = sand.u32 %s46, 1
          %s117 = smul.addr %s116, 64
          %s118 = scalar_lea.vmem [#allocation2], %s117
          %s119 = smul.u32 4, %s21
          %s120 = smul.u32 2, %s22
          %s122 = ssub.s32 1024, 1024
          %123 = vsyncadd %s115, %s122
          %s124 = smul.addr %s119, 2
          %s125 = sadd.s32 %s120, %s124
          %s126 = smul.addr %s20, 8
          %s127 = sadd.s32 %s125, %s126
          %s128 = smul.addr %s127, 128
          %s129 = scalar_lea.hbm %s0, %s128
          %s130 = sshll.u32 %s118, 4
          %s131 = int_to_ptr.vmem [resolvable:$true] %s130
          %136 = dma.hbm_to_vmem [thread:$0]  %s129, 1024, %s131, %s115, 128, 128, 8
        $region20: #{tpu_custom_call.1} parent=15 // pred_fallthru
          _
      $region16: #{tpu_custom_call.1} parent=5 // pred_fallthru
        _
      %p137 = scmp.le.s32.totalorder 1, %s13
      %p138 = scmp.lt.s32.totalorder %s13, 3
      %p139 = pnand %p137, %p138
      %p140 = pneg %p139
      // Predicated region
      $region21: #{tpu_custom_call.1} parent=5 // pred_check
        _
      $region22: #{tpu_custom_call.1} parent=5 // pred_check_branch
        %142 = sbr.rel (%p139) target = $region24
      $region23: #{tpu_custom_call.1} parent=5 // pred_region
        %s143 = ssub.s32 %s13, 1
        %s144 = sand.u32 %s49, 1
        %s145 = scalar_lea.sflag [#allocation3], %s144
        %s146 = sand.u32 %s49, 1
        %s147 = smul.addr %s146, 64
        %s148 = scalar_lea.vmem [#allocation2], %s147
        // Predicated region
        $region25: #{tpu_custom_call.1} parent=23 // pred_check
          %p149 = pneg %p62
        $region26: #{tpu_custom_call.1} parent=23 // pred_check_branch
          %151 = sbr.rel (%p149) target = $region28
        $region27: #{tpu_custom_call.1} parent=23 // pred_region
          %152 = dma.done %s145, 1024
        $region28: #{tpu_custom_call.1} parent=23 // pred_fallthru
          _
        %s153 = sand.u32 %s49, 1
        %s154 = scalar_lea.sflag [#allocation3], %s153
        %s155 = sand.u32 %s49, 1
        %s156 = smul.addr %s155, 64
        %s157 = scalar_lea.vmem [#allocation2], %s156
        %p158 = pneg %p62
        %p159 = pneg %p59
        %p160 = pneg %p92
        %p161 = pneg %p89
        %s162 = sand.u32 %s79, 1
        %s163 = scalar_lea.sflag [#allocation4], %s162
        %s164 = sand.u32 %s79, 1
        %s165 = smul.addr %s164, 128
        %s166 = scalar_lea.vmem [#allocation5], %s165
        %s167 = smul.u32 4, %s24
        %s168 = smul.u32 2, %s25
        %s169 = smul.u32 4, %s24
        %s170 = smul.u32 4, %s25
        %v171 = vld [vmem:[%s148] sm:$0x1]
        %v172 = vld [vmem:[%s148 + $0x10] sm:$0x1]
        %v173 = vld [vmem:[%s148 + $0x20] sm:$0x1]
        %v174 = vld [vmem:[%s148 + $0x30] sm:$0x1]
        %v175 = vlaneseq
        %v176 = vshrl.u32 %v175, 7
        %v177 = vsub.s32 0, %v176
        %v178 = vrot.slane %v171, %v177
        %180 = vbcast.lane.b32.xlu0 %v178, 256
        %v181 = vpop.permute.xlu0 %180
        %s183 = sor.u32 256, 8
        %184 = vbcast.lane.b32.xlu0 %v178, %s183
        %v185 = vpop.permute.xlu0 %184
        %v186 = vlaneseq
        %v187 = vshrl.u32 %v186, 7
        %v188 = vsub.s32 0, %v187
        %v189 = vrot.slane %v172, %v188
        %191 = vbcast.lane.b32.xlu0 %v189, 256
        %v192 = vpop.permute.xlu0 %191
        %s194 = sor.u32 256, 8
        %195 = vbcast.lane.b32.xlu0 %v189, %s194
        %v196 = vpop.permute.xlu0 %195
        %v197 = vlaneseq
        %v198 = vshrl.u32 %v197, 7
        %v199 = vsub.s32 0, %v198
        %v200 = vrot.slane %v173, %v199
        %202 = vbcast.lane.b32.xlu0 %v200, 256
        %v203 = vpop.permute.xlu0 %202
        %s205 = sor.u32 256, 8
        %206 = vbcast.lane.b32.xlu0 %v200, %s205
        %v207 = vpop.permute.xlu0 %206
        %v208 = vlaneseq
        %v209 = vshrl.u32 %v208, 7
        %v210 = vsub.s32 0, %v209
        %v211 = vrot.slane %v174, %v210
        %213 = vbcast.lane.b32.xlu0 %v211, 256
        %v214 = vpop.permute.xlu0 %213
        %s216 = sor.u32 256, 8
        %217 = vbcast.lane.b32.xlu0 %v211, %s216
        %v218 = vpop.permute.xlu0 %217
        %v219 = vcombine.high %v181, 0.0
        %v221 = vunpack.c.l.s4 1983009808
        %v222 = vunpack.c.0.s8 %v221
        %v223 = vlaneseq
        %v224 = vshrl.u32 %v223, 7
        %v225 = vsub.s32 %v222, %v224
        %v226 = vrot.slane %v181, %v225
        %v228 = vunpack.c.l.s4 1983009808
        %v229 = vunpack.c.0.s8 %v228
        %v230 = vlaneseq
        %v231 = vshrl.u32 %v230, 7
        %v232 = vsub.s32 %v229, %v231
        %v233 = vrot.slane %v219, %v232
        %v234 = vcombine.high %v226, 0.0
        %v236 = vunpack.c.l.s4 1934713408
        %v237 = vunpack.c.0.s8 %v236
        %v238 = vlaneseq
        %v239 = vshrl.u32 %v238, 7
        %v240 = vsub.s32 %v237, %v239
        %v241 = vrot.slane %v226, %v240
        %v243 = vunpack.c.l.s4 1934713408
        %v244 = vunpack.c.0.s8 %v243
        %v245 = vlaneseq
        %v246 = vshrl.u32 %v245, 7
        %v247 = vsub.s32 %v244, %v246
        %v248 = vrot.slane %v234, %v247
        %v249 = vcombine.high %v233, 0.0
        %v251 = vunpack.c.l.s4 1934713408
        %v252 = vunpack.c.0.s8 %v251
        %v253 = vlaneseq
        %v254 = vshrl.u32 %v253, 7
        %v255 = vsub.s32 %v252, %v254
        %v256 = vrot.slane %v233, %v255
        %v258 = vunpack.c.l.s4 1934713408
        %v259 = vunpack.c.0.s8 %v258
        %v260 = vlaneseq
        %v261 = vshrl.u32 %v260, 7
        %v262 = vsub.s32 %v259, %v261
        %v263 = vrot.slane %v249, %v262
        %v264 = vcombine.high %v241, 0.0
        %v265 = vcombine.high %v248, 0.0
        %v266 = vcombine.high %v256, 0.0
        %v267 = vcombine.high %v263, 0.0
        %v268 = vcombine.high %v185, 0.0
        %v270 = vunpack.c.l.s4 1983009808
        %v271 = vunpack.c.0.s8 %v270
        %v272 = vlaneseq
        %v273 = vshrl.u32 %v272, 7
        %v274 = vsub.s32 %v271, %v273
        %v275 = vrot.slane %v185, %v274
        %v277 = vunpack.c.l.s4 1983009808
        %v278 = vunpack.c.0.s8 %v277
        %v279 = vlaneseq
        %v280 = vshrl.u32 %v279, 7
        %v281 = vsub.s32 %v278, %v280
        %v282 = vrot.slane %v268, %v281
        %v283 = vcombine.high %v275, 0.0
        %v285 = vunpack.c.l.s4 1934713408
        %v286 = vunpack.c.0.s8 %v285
        %v287 = vlaneseq
        %v288 = vshrl.u32 %v287, 7
        %v289 = vsub.s32 %v286, %v288
        %v290 = vrot.slane %v275, %v289
        %v292 = vunpack.c.l.s4 1934713408
        %v293 = vunpack.c.0.s8 %v292
        %v294 = vlaneseq
        %v295 = vshrl.u32 %v294, 7
        %v296 = vsub.s32 %v293, %v295
        %v297 = vrot.slane %v283, %v296
        %v298 = vcombine.high %v282, 0.0
        %v300 = vunpack.c.l.s4 1934713408
        %v301 = vunpack.c.0.s8 %v300
        %v302 = vlaneseq
        %v303 = vshrl.u32 %v302, 7
        %v304 = vsub.s32 %v301, %v303
        %v305 = vrot.slane %v282, %v304
        %v307 = vunpack.c.l.s4 1934713408
        %v308 = vunpack.c.0.s8 %v307
        %v309 = vlaneseq
        %v310 = vshrl.u32 %v309, 7
        %v311 = vsub.s32 %v308, %v310
        %v312 = vrot.slane %v298, %v311
        %v313 = vcombine.high %v290, 0.0
        %v314 = vcombine.high %v297, 0.0
        %v315 = vcombine.high %v305, 0.0
        %v316 = vcombine.high %v312, 0.0
        %v317 = vcombine.high %v192, 0.0
        %v319 = vunpack.c.l.s4 1983009808
        %v320 = vunpack.c.0.s8 %v319
        %v321 = vlaneseq
        %v322 = vshrl.u32 %v321, 7
        %v323 = vsub.s32 %v320, %v322
        %v324 = vrot.slane %v192, %v323
        %v326 = vunpack.c.l.s4 1983009808
        %v327 = vunpack.c.0.s8 %v326
        %v328 = vlaneseq
        %v329 = vshrl.u32 %v328, 7
        %v330 = vsub.s32 %v327, %v329
        %v331 = vrot.slane %v317, %v330
        %v332 = vcombine.high %v324, 0.0
        %v334 = vunpack.c.l.s4 1934713408
        %v335 = vunpack.c.0.s8 %v334
        %v336 = vlaneseq
        %v337 = vshrl.u32 %v336, 7
        %v338 = vsub.s32 %v335, %v337
        %v339 = vrot.slane %v324, %v338
        %v341 = vunpack.c.l.s4 1934713408
        %v342 = vunpack.c.0.s8 %v341
        %v343 = vlaneseq
        %v344 = vshrl.u32 %v343, 7
        %v345 = vsub.s32 %v342, %v344
        %v346 = vrot.slane %v332, %v345
        %v347 = vcombine.high %v331, 0.0
        %v349 = vunpack.c.l.s4 1934713408
        %v350 = vunpack.c.0.s8 %v349
        %v351 = vlaneseq
        %v352 = vshrl.u32 %v351, 7
        %v353 = vsub.s32 %v350, %v352
        %v354 = vrot.slane %v331, %v353
        %v356 = vunpack.c.l.s4 1934713408
        %v357 = vunpack.c.0.s8 %v356
        %v358 = vlaneseq
        %v359 = vshrl.u32 %v358, 7
        %v360 = vsub.s32 %v357, %v359
        %v361 = vrot.slane %v347, %v360
        %v362 = vcombine.high %v339, 0.0
        %v363 = vcombine.high %v346, 0.0
        %v364 = vcombine.high %v354, 0.0
        %v365 = vcombine.high %v361, 0.0
        %v366 = vcombine.high %v196, 0.0
        %v368 = vunpack.c.l.s4 1983009808
        %v369 = vunpack.c.0.s8 %v368
        %v370 = vlaneseq
        %v371 = vshrl.u32 %v370, 7
        %v372 = vsub.s32 %v369, %v371
        %v373 = vrot.slane %v196, %v372
        %v375 = vunpack.c.l.s4 1983009808
        %v376 = vunpack.c.0.s8 %v375
        %v377 = vlaneseq
        %v378 = vshrl.u32 %v377, 7
        %v379 = vsub.s32 %v376, %v378
        %v380 = vrot.slane %v366, %v379
        %v381 = vcombine.high %v373, 0.0
        %v383 = vunpack.c.l.s4 1934713408
        %v384 = vunpack.c.0.s8 %v383
        %v385 = vlaneseq
        %v386 = vshrl.u32 %v385, 7
        %v387 = vsub.s32 %v384, %v386
        %v388 = vrot.slane %v373, %v387
        %v390 = vunpack.c.l.s4 1934713408
        %v391 = vunpack.c.0.s8 %v390
        %v392 = vlaneseq
        %v393 = vshrl.u32 %v392, 7
        %v394 = vsub.s32 %v391, %v393
        %v395 = vrot.slane %v381, %v394
        %v396 = vcombine.high %v380, 0.0
        %v398 = vunpack.c.l.s4 1934713408
        %v399 = vunpack.c.0.s8 %v398
        %v400 = vlaneseq
        %v401 = vshrl.u32 %v400, 7
        %v402 = vsub.s32 %v399, %v401
        %v403 = vrot.slane %v380, %v402
        %v405 = vunpack.c.l.s4 1934713408
        %v406 = vunpack.c.0.s8 %v405
        %v407 = vlaneseq
        %v408 = vshrl.u32 %v407, 7
        %v409 = vsub.s32 %v406, %v408
        %v410 = vrot.slane %v396, %v409
        %v411 = vcombine.high %v388, 0.0
        %v412 = vcombine.high %v395, 0.0
        %v413 = vcombine.high %v403, 0.0
        %v414 = vcombine.high %v410, 0.0
        %v415 = vcombine.high %v203, 0.0
        %v417 = vunpack.c.l.s4 1983009808
        %v418 = vunpack.c.0.s8 %v417
        %v419 = vlaneseq
        %v420 = vshrl.u32 %v419, 7
        %v421 = vsub.s32 %v418, %v420
        %v422 = vrot.slane %v203, %v421
        %v424 = vunpack.c.l.s4 1983009808
        %v425 = vunpack.c.0.s8 %v424
        %v426 = vlaneseq
        %v427 = vshrl.u32 %v426, 7
        %v428 = vsub.s32 %v425, %v427
        %v429 = vrot.slane %v415, %v428
        %v430 = vcombine.high %v422, 0.0
        %v432 = vunpack.c.l.s4 1934713408
        %v433 = vunpack.c.0.s8 %v432
        %v434 = vlaneseq
        %v435 = vshrl.u32 %v434, 7
        %v436 = vsub.s32 %v433, %v435
        %v437 = vrot.slane %v422, %v436
        %v439 = vunpack.c.l.s4 1934713408
        %v440 = vunpack.c.0.s8 %v439
        %v441 = vlaneseq
        %v442 = vshrl.u32 %v441, 7
        %v443 = vsub.s32 %v440, %v442
        %v444 = vrot.slane %v430, %v443
        %v445 = vcombine.high %v429, 0.0
        %v447 = vunpack.c.l.s4 1934713408
        %v448 = vunpack.c.0.s8 %v447
        %v449 = vlaneseq
        %v450 = vshrl.u32 %v449, 7
        %v451 = vsub.s32 %v448, %v450
        %v452 = vrot.slane %v429, %v451
        %v454 = vunpack.c.l.s4 1934713408
        %v455 = vunpack.c.0.s8 %v454
        %v456 = vlaneseq
        %v457 = vshrl.u32 %v456, 7
        %v458 = vsub.s32 %v455, %v457
        %v459 = vrot.slane %v445, %v458
        %v460 = vcombine.high %v437, 0.0
        %v461 = vcombine.high %v444, 0.0
        %v462 = vcombine.high %v452, 0.0
        %v463 = vcombine.high %v459, 0.0
        %v464 = vcombine.high %v207, 0.0
        %v466 = vunpack.c.l.s4 1983009808
        %v467 = vunpack.c.0.s8 %v466
        %v468 = vlaneseq
        %v469 = vshrl.u32 %v468, 7
        %v470 = vsub.s32 %v467, %v469
        %v471 = vrot.slane %v207, %v470
        %v473 = vunpack.c.l.s4 1983009808
        %v474 = vunpack.c.0.s8 %v473
        %v475 = vlaneseq
        %v476 = vshrl.u32 %v475, 7
        %v477 = vsub.s32 %v474, %v476
        %v478 = vrot.slane %v464, %v477
        %v479 = vcombine.high %v471, 0.0
        %v481 = vunpack.c.l.s4 1934713408
        %v482 = vunpack.c.0.s8 %v481
        %v483 = vlaneseq
        %v484 = vshrl.u32 %v483, 7
        %v485 = vsub.s32 %v482, %v484
        %v486 = vrot.slane %v471, %v485
        %v488 = vunpack.c.l.s4 1934713408
        %v489 = vunpack.c.0.s8 %v488
        %v490 = vlaneseq
        %v491 = vshrl.u32 %v490, 7
        %v492 = vsub.s32 %v489, %v491
        %v493 = vrot.slane %v479, %v492
        %v494 = vcombine.high %v478, 0.0
        %v496 = vunpack.c.l.s4 1934713408
        %v497 = vunpack.c.0.s8 %v496
        %v498 = vlaneseq
        %v499 = vshrl.u32 %v498, 7
        %v500 = vsub.s32 %v497, %v499
        %v501 = vrot.slane %v478, %v500
        %v503 = vunpack.c.l.s4 1934713408
        %v504 = vunpack.c.0.s8 %v503
        %v505 = vlaneseq
        %v506 = vshrl.u32 %v505, 7
        %v507 = vsub.s32 %v504, %v506
        %v508 = vrot.slane %v494, %v507
        %v509 = vcombine.high %v486, 0.0
        %v510 = vcombine.high %v493, 0.0
        %v511 = vcombine.high %v501, 0.0
        %v512 = vcombine.high %v508, 0.0
        %v513 = vcombine.high %v214, 0.0
        %v515 = vunpack.c.l.s4 1983009808
        %v516 = vunpack.c.0.s8 %v515
        %v517 = vlaneseq
        %v518 = vshrl.u32 %v517, 7
        %v519 = vsub.s32 %v516, %v518
        %v520 = vrot.slane %v214, %v519
        %v522 = vunpack.c.l.s4 1983009808
        %v523 = vunpack.c.0.s8 %v522
        %v524 = vlaneseq
        %v525 = vshrl.u32 %v524, 7
        %v526 = vsub.s32 %v523, %v525
        %v527 = vrot.slane %v513, %v526
        %v528 = vcombine.high %v520, 0.0
        %v530 = vunpack.c.l.s4 1934713408
        %v531 = vunpack.c.0.s8 %v530
        %v532 = vlaneseq
        %v533 = vshrl.u32 %v532, 7
        %v534 = vsub.s32 %v531, %v533
        %v535 = vrot.slane %v520, %v534
        %v537 = vunpack.c.l.s4 1934713408
        %v538 = vunpack.c.0.s8 %v537
        %v539 = vlaneseq
        %v540 = vshrl.u32 %v539, 7
        %v541 = vsub.s32 %v538, %v540
        %v542 = vrot.slane %v528, %v541
        %v543 = vcombine.high %v527, 0.0
        %v545 = vunpack.c.l.s4 1934713408
        %v546 = vunpack.c.0.s8 %v545
        %v547 = vlaneseq
        %v548 = vshrl.u32 %v547, 7
        %v549 = vsub.s32 %v546, %v548
        %v550 = vrot.slane %v527, %v549
        %v552 = vunpack.c.l.s4 1934713408
        %v553 = vunpack.c.0.s8 %v552
        %v554 = vlaneseq
        %v555 = vshrl.u32 %v554, 7
        %v556 = vsub.s32 %v553, %v555
        %v557 = vrot.slane %v543, %v556
        %v558 = vcombine.high %v535, 0.0
        %v559 = vcombine.high %v542, 0.0
        %v560 = vcombine.high %v550, 0.0
        %v561 = vcombine.high %v557, 0.0
        %v562 = vcombine.high %v218, 0.0
        %v564 = vunpack.c.l.s4 1983009808
        %v565 = vunpack.c.0.s8 %v564
        %v566 = vlaneseq
        %v567 = vshrl.u32 %v566, 7
        %v568 = vsub.s32 %v565, %v567
        %v569 = vrot.slane %v218, %v568
        %v571 = vunpack.c.l.s4 1983009808
        %v572 = vunpack.c.0.s8 %v571
        %v573 = vlaneseq
        %v574 = vshrl.u32 %v573, 7
        %v575 = vsub.s32 %v572, %v574
        %v576 = vrot.slane %v562, %v575
        %v577 = vcombine.high %v569, 0.0
        %v579 = vunpack.c.l.s4 1934713408
        %v580 = vunpack.c.0.s8 %v579
        %v581 = vlaneseq
        %v582 = vshrl.u32 %v581, 7
        %v583 = vsub.s32 %v580, %v582
        %v584 = vrot.slane %v569, %v583
        %v586 = vunpack.c.l.s4 1934713408
        %v587 = vunpack.c.0.s8 %v586
        %v588 = vlaneseq
        %v589 = vshrl.u32 %v588, 7
        %v590 = vsub.s32 %v587, %v589
        %v591 = vrot.slane %v577, %v590
        %v592 = vcombine.high %v576, 0.0
        %v594 = vunpack.c.l.s4 1934713408
        %v595 = vunpack.c.0.s8 %v594
        %v596 = vlaneseq
        %v597 = vshrl.u32 %v596, 7
        %v598 = vsub.s32 %v595, %v597
        %v599 = vrot.slane %v576, %v598
        %v601 = vunpack.c.l.s4 1934713408
        %v602 = vunpack.c.0.s8 %v601
        %v603 = vlaneseq
        %v604 = vshrl.u32 %v603, 7
        %v605 = vsub.s32 %v602, %v604
        %v606 = vrot.slane %v592, %v605
        %v607 = vcombine.high %v584, 0.0
        %v608 = vcombine.high %v591, 0.0
        %v609 = vcombine.high %v599, 0.0
        %v610 = vcombine.high %v606, 0.0
        %615 = vrot.lane.b32.xlu0 %v264, 2
        %v616 = vpop.permute.xlu0 %615
        %617 = vrot.lane.b32.xlu0 %v362, 2
        %v618 = vpop.permute.xlu0 %617
        %619 = vrot.lane.b32.xlu0 %v460, 2
        %v620 = vpop.permute.xlu0 %619
        %621 = vrot.lane.b32.xlu0 %v558, 2
        %v622 = vpop.permute.xlu0 %621
        %631 = vrot.lane.b32.xlu0 %v248, 4
        %v632 = vpop.permute.xlu0 %631
        %633 = vrot.lane.b32.xlu0 %v346, 4
        %v634 = vpop.permute.xlu0 %633
        %635 = vrot.lane.b32.xlu0 %v444, 4
        %v636 = vpop.permute.xlu0 %635
        %637 = vrot.lane.b32.xlu0 %v542, 4
        %v638 = vpop.permute.xlu0 %637
        %647 = vrot.lane.b32.xlu0 %v265, 6
        %v648 = vpop.permute.xlu0 %647
        %649 = vrot.lane.b32.xlu0 %v363, 6
        %v650 = vpop.permute.xlu0 %649
        %651 = vrot.lane.b32.xlu0 %v461, 6
        %v652 = vpop.permute.xlu0 %651
        %653 = vrot.lane.b32.xlu0 %v559, 6
        %v654 = vpop.permute.xlu0 %653
        %663 = vrot.lane.b32.xlu0 %v256, 8
        %v664 = vpop.permute.xlu0 %663
        %665 = vrot.lane.b32.xlu0 %v354, 8
        %v666 = vpop.permute.xlu0 %665
        %667 = vrot.lane.b32.xlu0 %v452, 8
        %v668 = vpop.permute.xlu0 %667
        %669 = vrot.lane.b32.xlu0 %v550, 8
        %v670 = vpop.permute.xlu0 %669
        %679 = vrot.lane.b32.xlu0 %v266, 10
        %v680 = vpop.permute.xlu0 %679
        %681 = vrot.lane.b32.xlu0 %v364, 10
        %v682 = vpop.permute.xlu0 %681
        %683 = vrot.lane.b32.xlu0 %v462, 10
        %v684 = vpop.permute.xlu0 %683
        %685 = vrot.lane.b32.xlu0 %v560, 10
        %v686 = vpop.permute.xlu0 %685
        %695 = vrot.lane.b32.xlu0 %v263, 12
        %v696 = vpop.permute.xlu0 %695
        %697 = vrot.lane.b32.xlu0 %v361, 12
        %v698 = vpop.permute.xlu0 %697
        %699 = vrot.lane.b32.xlu0 %v459, 12
        %v700 = vpop.permute.xlu0 %699
        %701 = vrot.lane.b32.xlu0 %v557, 12
        %v702 = vpop.permute.xlu0 %701
        %711 = vrot.lane.b32.xlu0 %v267, 14
        %v712 = vpop.permute.xlu0 %711
        %713 = vrot.lane.b32.xlu0 %v365, 14
        %v714 = vpop.permute.xlu0 %713
        %715 = vrot.lane.b32.xlu0 %v463, 14
        %v716 = vpop.permute.xlu0 %715
        %717 = vrot.lane.b32.xlu0 %v561, 14
        %v718 = vpop.permute.xlu0 %717
        %727 = vrot.lane.b32.xlu0 %v290, 16
        %v728 = vpop.permute.xlu0 %727
        %729 = vrot.lane.b32.xlu0 %v388, 16
        %v730 = vpop.permute.xlu0 %729
        %731 = vrot.lane.b32.xlu0 %v486, 16
        %v732 = vpop.permute.xlu0 %731
        %733 = vrot.lane.b32.xlu0 %v584, 16
        %v734 = vpop.permute.xlu0 %733
        %743 = vrot.lane.b32.xlu0 %v313, 18
        %v744 = vpop.permute.xlu0 %743
        %745 = vrot.lane.b32.xlu0 %v411, 18
        %v746 = vpop.permute.xlu0 %745
        %747 = vrot.lane.b32.xlu0 %v509, 18
        %v748 = vpop.permute.xlu0 %747
        %749 = vrot.lane.b32.xlu0 %v607, 18
        %v750 = vpop.permute.xlu0 %749
        %759 = vrot.lane.b32.xlu0 %v297, 20
        %v760 = vpop.permute.xlu0 %759
        %761 = vrot.lane.b32.xlu0 %v395, 20
        %v762 = vpop.permute.xlu0 %761
        %763 = vrot.lane.b32.xlu0 %v493, 20
        %v764 = vpop.permute.xlu0 %763
        %765 = vrot.lane.b32.xlu0 %v591, 20
        %v766 = vpop.permute.xlu0 %765
        %775 = vrot.lane.b32.xlu0 %v314, 22
        %v776 = vpop.permute.xlu0 %775
        %777 = vrot.lane.b32.xlu0 %v412, 22
        %v778 = vpop.permute.xlu0 %777
        %779 = vrot.lane.b32.xlu0 %v510, 22
        %v780 = vpop.permute.xlu0 %779
        %781 = vrot.lane.b32.xlu0 %v608, 22
        %v782 = vpop.permute.xlu0 %781
        %791 = vrot.lane.b32.xlu0 %v305, 24
        %v792 = vpop.permute.xlu0 %791
        %793 = vrot.lane.b32.xlu0 %v403, 24
        %v794 = vpop.permute.xlu0 %793
        %795 = vrot.lane.b32.xlu0 %v501, 24
        %v796 = vpop.permute.xlu0 %795
        %797 = vrot.lane.b32.xlu0 %v599, 24
        %v798 = vpop.permute.xlu0 %797
        %807 = vrot.lane.b32.xlu0 %v315, 26
        %v808 = vpop.permute.xlu0 %807
        %809 = vrot.lane.b32.xlu0 %v413, 26
        %v810 = vpop.permute.xlu0 %809
        %811 = vrot.lane.b32.xlu0 %v511, 26
        %v812 = vpop.permute.xlu0 %811
        %813 = vrot.lane.b32.xlu0 %v609, 26
        %v814 = vpop.permute.xlu0 %813
        %823 = vrot.lane.b32.xlu0 %v312, 28
        %v824 = vpop.permute.xlu0 %823
        %825 = vrot.lane.b32.xlu0 %v410, 28
        %v826 = vpop.permute.xlu0 %825
        %827 = vrot.lane.b32.xlu0 %v508, 28
        %v828 = vpop.permute.xlu0 %827
        %829 = vrot.lane.b32.xlu0 %v606, 28
        %v830 = vpop.permute.xlu0 %829
        %839 = vrot.lane.b32.xlu0 %v316, 30
        %v840 = vpop.permute.xlu0 %839
        %841 = vrot.lane.b32.xlu0 %v414, 30
        %v842 = vpop.permute.xlu0 %841
        %843 = vrot.lane.b32.xlu0 %v512, 30
        %v844 = vpop.permute.xlu0 %843
        %845 = vrot.lane.b32.xlu0 %v610, 30
        %v846 = vpop.permute.xlu0 %845
        %vm851 = vcmask 15360
        %v852 = vsel %vm851, %v241, %v616
        %v853 = vsel %vm851, %v339, %v618
        %v854 = vsel %vm851, %v437, %v620
        %v855 = vsel %vm851, %v535, %v622
        %vm856 = vcmask 31744
        %v857 = vsel %vm856, %v852, %v632
        %v858 = vsel %vm856, %v853, %v634
        %v859 = vsel %vm856, %v854, %v636
        %v860 = vsel %vm856, %v855, %v638
        %vm861 = vcmask 48128
        %v862 = vsel %vm861, %v857, %v648
        %v863 = vsel %vm861, %v858, %v650
        %v864 = vsel %vm861, %v859, %v652
        %v865 = vsel %vm861, %v860, %v654
        %vm866 = vcmask 64512
        %v867 = vsel %vm866, %v862, %v664
        %v868 = vsel %vm866, %v863, %v666
        %v869 = vsel %vm866, %v864, %v668
        %v870 = vsel %vm866, %v865, %v670
        %vm871 = vcmask 80896
        %v872 = vsel %vm871, %v867, %v680
        %v873 = vsel %vm871, %v868, %v682
        %v874 = vsel %vm871, %v869, %v684
        %v875 = vsel %vm871, %v870, %v686
        %vm876 = vcmask 97280
        %v877 = vsel %vm876, %v872, %v696
        %v878 = vsel %vm876, %v873, %v698
        %v879 = vsel %vm876, %v874, %v700
        %v880 = vsel %vm876, %v875, %v702
        %vm881 = vcmask 113664
        %v882 = vsel %vm881, %v877, %v712
        %v883 = vsel %vm881, %v878, %v714
        %v884 = vsel %vm881, %v879, %v716
        %v885 = vsel %vm881, %v880, %v718
        %vm886 = vcmask 130048
        %v887 = vsel %vm886, %v882, %v728
        %v888 = vsel %vm886, %v883, %v730
        %v889 = vsel %vm886, %v884, %v732
        %v890 = vsel %vm886, %v885, %v734
        %vm891 = vcmask 146432
        %v892 = vsel %vm891, %v887, %v744
        %v893 = vsel %vm891, %v888, %v746
        %v894 = vsel %vm891, %v889, %v748
        %v895 = vsel %vm891, %v890, %v750
        %vm896 = vcmask 162816
        %v897 = vsel %vm896, %v892, %v760
        %v898 = vsel %vm896, %v893, %v762
        %v899 = vsel %vm896, %v894, %v764
        %v900 = vsel %vm896, %v895, %v766
        %vm901 = vcmask 179200
        %v902 = vsel %vm901, %v897, %v776
        %v903 = vsel %vm901, %v898, %v778
        %v904 = vsel %vm901, %v899, %v780
        %v905 = vsel %vm901, %v900, %v782
        %vm906 = vcmask 195584
        %v907 = vsel %vm906, %v902, %v792
        %v908 = vsel %vm906, %v903, %v794
        %v909 = vsel %vm906, %v904, %v796
        %v910 = vsel %vm906, %v905, %v798
        %vm911 = vcmask 211968
        %v912 = vsel %vm911, %v907, %v808
        %v913 = vsel %vm911, %v908, %v810
        %v914 = vsel %vm911, %v909, %v812
        %v915 = vsel %vm911, %v910, %v814
        %vm916 = vcmask 228352
        %v917 = vsel %vm916, %v912, %v824
        %v918 = vsel %vm916, %v913, %v826
        %v919 = vsel %vm916, %v914, %v828
        %v920 = vsel %vm916, %v915, %v830
        %vm921 = vcmask 244736
        %v922 = vsel %vm921, %v917, %v840
        %v923 = vsel %vm921, %v918, %v842
        %v924 = vsel %vm921, %v919, %v844
        %v925 = vsel %vm921, %v920, %v846
        %v926 = vlaneseq
        %v927 = vshrl.u32 %v926, 7
        %v928 = vsub.s32 0, %v927
        %v929 = vrot.slane %v922, %v928
        %v930 = vlaneseq
        %v931 = vshrl.u32 %v930, 7
        %v932 = vsub.s32 0, %v931
        %v933 = vrot.slane %v923, %v932
        %v934 = vlaneseq
        %v935 = vshrl.u32 %v934, 7
        %v936 = vsub.s32 0, %v935
        %v937 = vrot.slane %v924, %v936
        %v938 = vlaneseq
        %v939 = vshrl.u32 %v938, 7
        %v940 = vsub.s32 0, %v939
        %v941 = vrot.slane %v925, %v940
        %vm942 = vcmask 254976
        %943 = vst.msk [vmem:[%s166] sm:$0x3] %vm942, %v929
        %944 = vst.msk [vmem:[%s166 + $0x20] sm:$0x3] %vm942, %v933
        %945 = vst.msk [vmem:[%s166 + $0x40] sm:$0x3] %vm942, %v937
        %946 = vst.msk [vmem:[%s166 + $0x60] sm:$0x3] %vm942, %v941
        %v947 = vld [vmem:[%s148 + $0x1] sm:$0x1]
        %v948 = vld [vmem:[%s148 + $0x11] sm:$0x1]
        %v949 = vld [vmem:[%s148 + $0x21] sm:$0x1]
        %v950 = vld [vmem:[%s148 + $0x31] sm:$0x1]
        %v951 = vlaneseq
        %v952 = vshrl.u32 %v951, 7
        %v953 = vsub.s32 0, %v952
        %v954 = vrot.slane %v947, %v953
        %956 = vbcast.lane.b32.xlu0 %v954, 256
        %v957 = vpop.permute.xlu0 %956
        %s959 = sor.u32 256, 8
        %960 = vbcast.lane.b32.xlu0 %v954, %s959
        %v961 = vpop.permute.xlu0 %960
        %v962 = vlaneseq
        %v963 = vshrl.u32 %v962, 7
        %v964 = vsub.s32 0, %v963
        %v965 = vrot.slane %v948, %v964
        %967 = vbcast.lane.b32.xlu0 %v965, 256
        %v968 = vpop.permute.xlu0 %967
        %s970 = sor.u32 256, 8
        %971 = vbcast.lane.b32.xlu0 %v965, %s970
        %v972 = vpop.permute.xlu0 %971
        %v973 = vlaneseq
        %v974 = vshrl.u32 %v973, 7
        %v975 = vsub.s32 0, %v974
        %v976 = vrot.slane %v949, %v975
        %978 = vbcast.lane.b32.xlu0 %v976, 256
        %v979 = vpop.permute.xlu0 %978
        %s981 = sor.u32 256, 8
        %982 = vbcast.lane.b32.xlu0 %v976, %s981
        %v983 = vpop.permute.xlu0 %982
        %v984 = vlaneseq
        %v985 = vshrl.u32 %v984, 7
        %v986 = vsub.s32 0, %v985
        %v987 = vrot.slane %v950, %v986
        %989 = vbcast.lane.b32.xlu0 %v987, 256
        %v990 = vpop.permute.xlu0 %989
        %s992 = sor.u32 256, 8
        %993 = vbcast.lane.b32.xlu0 %v987, %s992
        %v994 = vpop.permute.xlu0 %993
        %v995 = vcombine.high %v957, 0.0
        %v997 = vunpack.c.l.s4 1983009808
        %v998 = vunpack.c.0.s8 %v997
        %v999 = vlaneseq
        %v1000 = vshrl.u32 %v999, 7
        %v1001 = vsub.s32 %v998, %v1000
        %v1002 = vrot.slane %v957, %v1001
        %v1004 = vunpack.c.l.s4 1983009808
        %v1005 = vunpack.c.0.s8 %v1004
        %v1006 = vlaneseq
        %v1007 = vshrl.u32 %v1006, 7
        %v1008 = vsub.s32 %v1005, %v1007
        %v1009 = vrot.slane %v995, %v1008
        %v1010 = vcombine.high %v1002, 0.0
        %v1012 = vunpack.c.l.s4 1934713408
        %v1013 = vunpack.c.0.s8 %v1012
        %v1014 = vlaneseq
        %v1015 = vshrl.u32 %v1014, 7
        %v1016 = vsub.s32 %v1013, %v1015
        %v1017 = vrot.slane %v1002, %v1016
        %v1019 = vunpack.c.l.s4 1934713408
        %v1020 = vunpack.c.0.s8 %v1019
        %v1021 = vlaneseq
        %v1022 = vshrl.u32 %v1021, 7
        %v1023 = vsub.s32 %v1020, %v1022
        %v1024 = vrot.slane %v1010, %v1023
        %v1025 = vcombine.high %v1009, 0.0
        %v1027 = vunpack.c.l.s4 1934713408
        %v1028 = vunpack.c.0.s8 %v1027
        %v1029 = vlaneseq
        %v1030 = vshrl.u32 %v1029, 7
        %v1031 = vsub.s32 %v1028, %v1030
        %v1032 = vrot.slane %v1009, %v1031
        %v1034 = vunpack.c.l.s4 1934713408
        %v1035 = vunpack.c.0.s8 %v1034
        %v1036 = vlaneseq
        %v1037 = vshrl.u32 %v1036, 7
        %v1038 = vsub.s32 %v1035, %v1037
        %v1039 = vrot.slane %v1025, %v1038
        %v1040 = vcombine.high %v1017, 0.0
        %v1041 = vcombine.high %v1024, 0.0
        %v1042 = vcombine.high %v1032, 0.0
        %v1043 = vcombine.high %v1039, 0.0
        %v1044 = vcombine.high %v961, 0.0
        %v1046 = vunpack.c.l.s4 1983009808
        %v1047 = vunpack.c.0.s8 %v1046
        %v1048 = vlaneseq
        %v1049 = vshrl.u32 %v1048, 7
        %v1050 = vsub.s32 %v1047, %v1049
        %v1051 = vrot.slane %v961, %v1050
        %v1053 = vunpack.c.l.s4 1983009808
        %v1054 = vunpack.c.0.s8 %v1053
        %v1055 = vlaneseq
        %v1056 = vshrl.u32 %v1055, 7
        %v1057 = vsub.s32 %v1054, %v1056
        %v1058 = vrot.slane %v1044, %v1057
        %v1059 = vcombine.high %v1051, 0.0
        %v1061 = vunpack.c.l.s4 1934713408
        %v1062 = vunpack.c.0.s8 %v1061
        %v1063 = vlaneseq
        %v1064 = vshrl.u32 %v1063, 7
        %v1065 = vsub.s32 %v1062, %v1064
        %v1066 = vrot.slane %v1051, %v1065
        %v1068 = vunpack.c.l.s4 1934713408
        %v1069 = vunpack.c.0.s8 %v1068
        %v1070 = vlaneseq
        %v1071 = vshrl.u32 %v1070, 7
        %v1072 = vsub.s32 %v1069, %v1071
        %v1073 = vrot.slane %v1059, %v1072
        %v1074 = vcombine.high %v1058, 0.0
        %v1076 = vunpack.c.l.s4 1934713408
        %v1077 = vunpack.c.0.s8 %v1076
        %v1078 = vlaneseq
        %v1079 = vshrl.u32 %v1078, 7
        %v1080 = vsub.s32 %v1077, %v1079
        %v1081 = vrot.slane %v1058, %v1080
        %v1083 = vunpack.c.l.s4 1934713408
        %v1084 = vunpack.c.0.s8 %v1083
        %v1085 = vlaneseq
        %v1086 = vshrl.u32 %v1085, 7
        %v1087 = vsub.s32 %v1084, %v1086
        %v1088 = vrot.slane %v1074, %v1087
        %v1089 = vcombine.high %v1066, 0.0
        %v1090 = vcombine.high %v1073, 0.0
        %v1091 = vcombine.high %v1081, 0.0
        %v1092 = vcombine.high %v1088, 0.0
        %v1093 = vcombine.high %v968, 0.0
        %v1095 = vunpack.c.l.s4 1983009808
        %v1096 = vunpack.c.0.s8 %v1095
        %v1097 = vlaneseq
        %v1098 = vshrl.u32 %v1097, 7
        %v1099 = vsub.s32 %v1096, %v1098
        %v1100 = vrot.slane %v968, %v1099
        %v1102 = vunpack.c.l.s4 1983009808
        %v1103 = vunpack.c.0.s8 %v1102
        %v1104 = vlaneseq
        %v1105 = vshrl.u32 %v1104, 7
        %v1106 = vsub.s32 %v1103, %v1105
        %v1107 = vrot.slane %v1093, %v1106
        %v1108 = vcombine.high %v1100, 0.0
        %v1110 = vunpack.c.l.s4 1934713408
        %v1111 = vunpack.c.0.s8 %v1110
        %v1112 = vlaneseq
        %v1113 = vshrl.u32 %v1112, 7
        %v1114 = vsub.s32 %v1111, %v1113
        %v1115 = vrot.slane %v1100, %v1114
        %v1117 = vunpack.c.l.s4 1934713408
        %v1118 = vunpack.c.0.s8 %v1117
        %v1119 = vlaneseq
        %v1120 = vshrl.u32 %v1119, 7
        %v1121 = vsub.s32 %v1118, %v1120
        %v1122 = vrot.slane %v1108, %v1121
        %v1123 = vcombine.high %v1107, 0.0
        %v1125 = vunpack.c.l.s4 1934713408
        %v1126 = vunpack.c.0.s8 %v1125
        %v1127 = vlaneseq
        %v1128 = vshrl.u32 %v1127, 7
        %v1129 = vsub.s32 %v1126, %v1128
        %v1130 = vrot.slane %v1107, %v1129
        %v1132 = vunpack.c.l.s4 1934713408
        %v1133 = vunpack.c.0.s8 %v1132
        %v1134 = vlaneseq
        %v1135 = vshrl.u32 %v1134, 7
        %v1136 = vsub.s32 %v1133, %v1135
        %v1137 = vrot.slane %v1123, %v1136
        %v1138 = vcombine.high %v1115, 0.0
        %v1139 = vcombine.high %v1122, 0.0
        %v1140 = vcombine.high %v1130, 0.0
        %v1141 = vcombine.high %v1137, 0.0
        %v1142 = vcombine.high %v972, 0.0
        %v1144 = vunpack.c.l.s4 1983009808
        %v1145 = vunpack.c.0.s8 %v1144
        %v1146 = vlaneseq
        %v1147 = vshrl.u32 %v1146, 7
        %v1148 = vsub.s32 %v1145, %v1147
        %v1149 = vrot.slane %v972, %v1148
        %v1151 = vunpack.c.l.s4 1983009808
        %v1152 = vunpack.c.0.s8 %v1151
        %v1153 = vlaneseq
        %v1154 = vshrl.u32 %v1153, 7
        %v1155 = vsub.s32 %v1152, %v1154
        %v1156 = vrot.slane %v1142, %v1155
        %v1157 = vcombine.high %v1149, 0.0
        %v1159 = vunpack.c.l.s4 1934713408
        %v1160 = vunpack.c.0.s8 %v1159
        %v1161 = vlaneseq
        %v1162 = vshrl.u32 %v1161, 7
        %v1163 = vsub.s32 %v1160, %v1162
        %v1164 = vrot.slane %v1149, %v1163
        %v1166 = vunpack.c.l.s4 1934713408
        %v1167 = vunpack.c.0.s8 %v1166
        %v1168 = vlaneseq
        %v1169 = vshrl.u32 %v1168, 7
        %v1170 = vsub.s32 %v1167, %v1169
        %v1171 = vrot.slane %v1157, %v1170
        %v1172 = vcombine.high %v1156, 0.0
        %v1174 = vunpack.c.l.s4 1934713408
        %v1175 = vunpack.c.0.s8 %v1174
        %v1176 = vlaneseq
        %v1177 = vshrl.u32 %v1176, 7
        %v1178 = vsub.s32 %v1175, %v1177
        %v1179 = vrot.slane %v1156, %v1178
        %v1181 = vunpack.c.l.s4 1934713408
        %v1182 = vunpack.c.0.s8 %v1181
        %v1183 = vlaneseq
        %v1184 = vshrl.u32 %v1183, 7
        %v1185 = vsub.s32 %v1182, %v1184
        %v1186 = vrot.slane %v1172, %v1185
        %v1187 = vcombine.high %v1164, 0.0
        %v1188 = vcombine.high %v1171, 0.0
        %v1189 = vcombine.high %v1179, 0.0
        %v1190 = vcombine.high %v1186, 0.0
        %v1191 = vcombine.high %v979, 0.0
        %v1193 = vunpack.c.l.s4 1983009808
        %v1194 = vunpack.c.0.s8 %v1193
        %v1195 = vlaneseq
        %v1196 = vshrl.u32 %v1195, 7
        %v1197 = vsub.s32 %v1194, %v1196
        %v1198 = vrot.slane %v979, %v1197
        %v1200 = vunpack.c.l.s4 1983009808
        %v1201 = vunpack.c.0.s8 %v1200
        %v1202 = vlaneseq
        %v1203 = vshrl.u32 %v1202, 7
        %v1204 = vsub.s32 %v1201, %v1203
        %v1205 = vrot.slane %v1191, %v1204
        %v1206 = vcombine.high %v1198, 0.0
        %v1208 = vunpack.c.l.s4 1934713408
        %v1209 = vunpack.c.0.s8 %v1208
        %v1210 = vlaneseq
        %v1211 = vshrl.u32 %v1210, 7
        %v1212 = vsub.s32 %v1209, %v1211
        %v1213 = vrot.slane %v1198, %v1212
        %v1215 = vunpack.c.l.s4 1934713408
        %v1216 = vunpack.c.0.s8 %v1215
        %v1217 = vlaneseq
        %v1218 = vshrl.u32 %v1217, 7
        %v1219 = vsub.s32 %v1216, %v1218
        %v1220 = vrot.slane %v1206, %v1219
        %v1221 = vcombine.high %v1205, 0.0
        %v1223 = vunpack.c.l.s4 1934713408
        %v1224 = vunpack.c.0.s8 %v1223
        %v1225 = vlaneseq
        %v1226 = vshrl.u32 %v1225, 7
        %v1227 = vsub.s32 %v1224, %v1226
        %v1228 = vrot.slane %v1205, %v1227
        %v1230 = vunpack.c.l.s4 1934713408
        %v1231 = vunpack.c.0.s8 %v1230
        %v1232 = vlaneseq
        %v1233 = vshrl.u32 %v1232, 7
        %v1234 = vsub.s32 %v1231, %v1233
        %v1235 = vrot.slane %v1221, %v1234
        %v1236 = vcombine.high %v1213, 0.0
        %v1237 = vcombine.high %v1220, 0.0
        %v1238 = vcombine.high %v1228, 0.0
        %v1239 = vcombine.high %v1235, 0.0
        %v1240 = vcombine.high %v983, 0.0
        %v1242 = vunpack.c.l.s4 1983009808
        %v1243 = vunpack.c.0.s8 %v1242
        %v1244 = vlaneseq
        %v1245 = vshrl.u32 %v1244, 7
        %v1246 = vsub.s32 %v1243, %v1245
        %v1247 = vrot.slane %v983, %v1246
        %v1249 = vunpack.c.l.s4 1983009808
        %v1250 = vunpack.c.0.s8 %v1249
        %v1251 = vlaneseq
        %v1252 = vshrl.u32 %v1251, 7
        %v1253 = vsub.s32 %v1250, %v1252
        %v1254 = vrot.slane %v1240, %v1253
        %v1255 = vcombine.high %v1247, 0.0
        %v1257 = vunpack.c.l.s4 1934713408
        %v1258 = vunpack.c.0.s8 %v1257
        %v1259 = vlaneseq
        %v1260 = vshrl.u32 %v1259, 7
        %v1261 = vsub.s32 %v1258, %v1260
        %v1262 = vrot.slane %v1247, %v1261
        %v1264 = vunpack.c.l.s4 1934713408
        %v1265 = vunpack.c.0.s8 %v1264
        %v1266 = vlaneseq
        %v1267 = vshrl.u32 %v1266, 7
        %v1268 = vsub.s32 %v1265, %v1267
        %v1269 = vrot.slane %v1255, %v1268
        %v1270 = vcombine.high %v1254, 0.0
        %v1272 = vunpack.c.l.s4 1934713408
        %v1273 = vunpack.c.0.s8 %v1272
        %v1274 = vlaneseq
        %v1275 = vshrl.u32 %v1274, 7
        %v1276 = vsub.s32 %v1273, %v1275
        %v1277 = vrot.slane %v1254, %v1276
        %v1279 = vunpack.c.l.s4 1934713408
        %v1280 = vunpack.c.0.s8 %v1279
        %v1281 = vlaneseq
        %v1282 = vshrl.u32 %v1281, 7
        %v1283 = vsub.s32 %v1280, %v1282
        %v1284 = vrot.slane %v1270, %v1283
        %v1285 = vcombine.high %v1262, 0.0
        %v1286 = vcombine.high %v1269, 0.0
        %v1287 = vcombine.high %v1277, 0.0
        %v1288 = vcombine.high %v1284, 0.0
        %v1289 = vcombine.high %v990, 0.0
        %v1291 = vunpack.c.l.s4 1983009808
        %v1292 = vunpack.c.0.s8 %v1291
        %v1293 = vlaneseq
        %v1294 = vshrl.u32 %v1293, 7
        %v1295 = vsub.s32 %v1292, %v1294
        %v1296 = vrot.slane %v990, %v1295
        %v1298 = vunpack.c.l.s4 1983009808
        %v1299 = vunpack.c.0.s8 %v1298
        %v1300 = vlaneseq
        %v1301 = vshrl.u32 %v1300, 7
        %v1302 = vsub.s32 %v1299, %v1301
        %v1303 = vrot.slane %v1289, %v1302
        %v1304 = vcombine.high %v1296, 0.0
        %v1306 = vunpack.c.l.s4 1934713408
        %v1307 = vunpack.c.0.s8 %v1306
        %v1308 = vlaneseq
        %v1309 = vshrl.u32 %v1308, 7
        %v1310 = vsub.s32 %v1307, %v1309
        %v1311 = vrot.slane %v1296, %v1310
        %v1313 = vunpack.c.l.s4 1934713408
        %v1314 = vunpack.c.0.s8 %v1313
        %v1315 = vlaneseq
        %v1316 = vshrl.u32 %v1315, 7
        %v1317 = vsub.s32 %v1314, %v1316
        %v1318 = vrot.slane %v1304, %v1317
        %v1319 = vcombine.high %v1303, 0.0
        %v1321 = vunpack.c.l.s4 1934713408
        %v1322 = vunpack.c.0.s8 %v1321
        %v1323 = vlaneseq
        %v1324 = vshrl.u32 %v1323, 7
        %v1325 = vsub.s32 %v1322, %v1324
        %v1326 = vrot.slane %v1303, %v1325
        %v1328 = vunpack.c.l.s4 1934713408
        %v1329 = vunpack.c.0.s8 %v1328
        %v1330 = vlaneseq
        %v1331 = vshrl.u32 %v1330, 7
        %v1332 = vsub.s32 %v1329, %v1331
        %v1333 = vrot.slane %v1319, %v1332
        %v1334 = vcombine.high %v1311, 0.0
        %v1335 = vcombine.high %v1318, 0.0
        %v1336 = vcombine.high %v1326, 0.0
        %v1337 = vcombine.high %v1333, 0.0
        %v1338 = vcombine.high %v994, 0.0
        %v1340 = vunpack.c.l.s4 1983009808
        %v1341 = vunpack.c.0.s8 %v1340
        %v1342 = vlaneseq
        %v1343 = vshrl.u32 %v1342, 7
        %v1344 = vsub.s32 %v1341, %v1343
        %v1345 = vrot.slane %v994, %v1344
        %v1347 = vunpack.c.l.s4 1983009808
        %v1348 = vunpack.c.0.s8 %v1347
        %v1349 = vlaneseq
        %v1350 = vshrl.u32 %v1349, 7
        %v1351 = vsub.s32 %v1348, %v1350
        %v1352 = vrot.slane %v1338, %v1351
        %v1353 = vcombine.high %v1345, 0.0
        %v1355 = vunpack.c.l.s4 1934713408
        %v1356 = vunpack.c.0.s8 %v1355
        %v1357 = vlaneseq
        %v1358 = vshrl.u32 %v1357, 7
        %v1359 = vsub.s32 %v1356, %v1358
        %v1360 = vrot.slane %v1345, %v1359
        %v1362 = vunpack.c.l.s4 1934713408
        %v1363 = vunpack.c.0.s8 %v1362
        %v1364 = vlaneseq
        %v1365 = vshrl.u32 %v1364, 7
        %v1366 = vsub.s32 %v1363, %v1365
        %v1367 = vrot.slane %v1353, %v1366
        %v1368 = vcombine.high %v1352, 0.0
        %v1370 = vunpack.c.l.s4 1934713408
        %v1371 = vunpack.c.0.s8 %v1370
        %v1372 = vlaneseq
        %v1373 = vshrl.u32 %v1372, 7
        %v1374 = vsub.s32 %v1371, %v1373
        %v1375 = vrot.slane %v1352, %v1374
        %v1377 = vunpack.c.l.s4 1934713408
        %v1378 = vunpack.c.0.s8 %v1377
        %v1379 = vlaneseq
        %v1380 = vshrl.u32 %v1379, 7
        %v1381 = vsub.s32 %v1378, %v1380
        %v1382 = vrot.slane %v1368, %v1381
        %v1383 = vcombine.high %v1360, 0.0
        %v1384 = vcombine.high %v1367, 0.0
        %v1385 = vcombine.high %v1375, 0.0
        %v1386 = vcombine.high %v1382, 0.0
        %1391 = vrot.lane.b32.xlu0 %v1040, 2
        %v1392 = vpop.permute.xlu0 %1391
        %1393 = vrot.lane.b32.xlu0 %v1138, 2
        %v1394 = vpop.permute.xlu0 %1393
        %1395 = vrot.lane.b32.xlu0 %v1236, 2
        %v1396 = vpop.permute.xlu0 %1395
        %1397 = vrot.lane.b32.xlu0 %v1334, 2
        %v1398 = vpop.permute.xlu0 %1397
        %1407 = vrot.lane.b32.xlu0 %v1024, 4
        %v1408 = vpop.permute.xlu0 %1407
        %1409 = vrot.lane.b32.xlu0 %v1122, 4
        %v1410 = vpop.permute.xlu0 %1409
        %1411 = vrot.lane.b32.xlu0 %v1220, 4
        %v1412 = vpop.permute.xlu0 %1411
        %1413 = vrot.lane.b32.xlu0 %v1318, 4
        %v1414 = vpop.permute.xlu0 %1413
        %1423 = vrot.lane.b32.xlu0 %v1041, 6
        %v1424 = vpop.permute.xlu0 %1423
        %1425 = vrot.lane.b32.xlu0 %v1139, 6
        %v1426 = vpop.permute.xlu0 %1425
        %1427 = vrot.lane.b32.xlu0 %v1237, 6
        %v1428 = vpop.permute.xlu0 %1427
        %1429 = vrot.lane.b32.xlu0 %v1335, 6
        %v1430 = vpop.permute.xlu0 %1429
        %1439 = vrot.lane.b32.xlu0 %v1032, 8
        %v1440 = vpop.permute.xlu0 %1439
        %1441 = vrot.lane.b32.xlu0 %v1130, 8
        %v1442 = vpop.permute.xlu0 %1441
        %1443 = vrot.lane.b32.xlu0 %v1228, 8
        %v1444 = vpop.permute.xlu0 %1443
        %1445 = vrot.lane.b32.xlu0 %v1326, 8
        %v1446 = vpop.permute.xlu0 %1445
        %1455 = vrot.lane.b32.xlu0 %v1042, 10
        %v1456 = vpop.permute.xlu0 %1455
        %1457 = vrot.lane.b32.xlu0 %v1140, 10
        %v1458 = vpop.permute.xlu0 %1457
        %1459 = vrot.lane.b32.xlu0 %v1238, 10
        %v1460 = vpop.permute.xlu0 %1459
        %1461 = vrot.lane.b32.xlu0 %v1336, 10
        %v1462 = vpop.permute.xlu0 %1461
        %1471 = vrot.lane.b32.xlu0 %v1039, 12
        %v1472 = vpop.permute.xlu0 %1471
        %1473 = vrot.lane.b32.xlu0 %v1137, 12
        %v1474 = vpop.permute.xlu0 %1473
        %1475 = vrot.lane.b32.xlu0 %v1235, 12
        %v1476 = vpop.permute.xlu0 %1475
        %1477 = vrot.lane.b32.xlu0 %v1333, 12
        %v1478 = vpop.permute.xlu0 %1477
        %1487 = vrot.lane.b32.xlu0 %v1043, 14
        %v1488 = vpop.permute.xlu0 %1487
        %1489 = vrot.lane.b32.xlu0 %v1141, 14
        %v1490 = vpop.permute.xlu0 %1489
        %1491 = vrot.lane.b32.xlu0 %v1239, 14
        %v1492 = vpop.permute.xlu0 %1491
        %1493 = vrot.lane.b32.xlu0 %v1337, 14
        %v1494 = vpop.permute.xlu0 %1493
        %1503 = vrot.lane.b32.xlu0 %v1066, 16
        %v1504 = vpop.permute.xlu0 %1503
        %1505 = vrot.lane.b32.xlu0 %v1164, 16
        %v1506 = vpop.permute.xlu0 %1505
        %1507 = vrot.lane.b32.xlu0 %v1262, 16
        %v1508 = vpop.permute.xlu0 %1507
        %1509 = vrot.lane.b32.xlu0 %v1360, 16
        %v1510 = vpop.permute.xlu0 %1509
        %1519 = vrot.lane.b32.xlu0 %v1089, 18
        %v1520 = vpop.permute.xlu0 %1519
        %1521 = vrot.lane.b32.xlu0 %v1187, 18
        %v1522 = vpop.permute.xlu0 %1521
        %1523 = vrot.lane.b32.xlu0 %v1285, 18
        %v1524 = vpop.permute.xlu0 %1523
        %1525 = vrot.lane.b32.xlu0 %v1383, 18
        %v1526 = vpop.permute.xlu0 %1525
        %1535 = vrot.lane.b32.xlu0 %v1073, 20
        %v1536 = vpop.permute.xlu0 %1535
        %1537 = vrot.lane.b32.xlu0 %v1171, 20
        %v1538 = vpop.permute.xlu0 %1537
        %1539 = vrot.lane.b32.xlu0 %v1269, 20
        %v1540 = vpop.permute.xlu0 %1539
        %1541 = vrot.lane.b32.xlu0 %v1367, 20
        %v1542 = vpop.permute.xlu0 %1541
        %1551 = vrot.lane.b32.xlu0 %v1090, 22
        %v1552 = vpop.permute.xlu0 %1551
        %1553 = vrot.lane.b32.xlu0 %v1188, 22
        %v1554 = vpop.permute.xlu0 %1553
        %1555 = vrot.lane.b32.xlu0 %v1286, 22
        %v1556 = vpop.permute.xlu0 %1555
        %1557 = vrot.lane.b32.xlu0 %v1384, 22
        %v1558 = vpop.permute.xlu0 %1557
        %1567 = vrot.lane.b32.xlu0 %v1081, 24
        %v1568 = vpop.permute.xlu0 %1567
        %1569 = vrot.lane.b32.xlu0 %v1179, 24
        %v1570 = vpop.permute.xlu0 %1569
        %1571 = vrot.lane.b32.xlu0 %v1277, 24
        %v1572 = vpop.permute.xlu0 %1571
        %1573 = vrot.lane.b32.xlu0 %v1375, 24
        %v1574 = vpop.permute.xlu0 %1573
        %1583 = vrot.lane.b32.xlu0 %v1091, 26
        %v1584 = vpop.permute.xlu0 %1583
        %1585 = vrot.lane.b32.xlu0 %v1189, 26
        %v1586 = vpop.permute.xlu0 %1585
        %1587 = vrot.lane.b32.xlu0 %v1287, 26
        %v1588 = vpop.permute.xlu0 %1587
        %1589 = vrot.lane.b32.xlu0 %v1385, 26
        %v1590 = vpop.permute.xlu0 %1589
        %1599 = vrot.lane.b32.xlu0 %v1088, 28
        %v1600 = vpop.permute.xlu0 %1599
        %1601 = vrot.lane.b32.xlu0 %v1186, 28
        %v1602 = vpop.permute.xlu0 %1601
        %1603 = vrot.lane.b32.xlu0 %v1284, 28
        %v1604 = vpop.permute.xlu0 %1603
        %1605 = vrot.lane.b32.xlu0 %v1382, 28
        %v1606 = vpop.permute.xlu0 %1605
        %1615 = vrot.lane.b32.xlu0 %v1092, 30
        %v1616 = vpop.permute.xlu0 %1615
        %1617 = vrot.lane.b32.xlu0 %v1190, 30
        %v1618 = vpop.permute.xlu0 %1617
        %1619 = vrot.lane.b32.xlu0 %v1288, 30
        %v1620 = vpop.permute.xlu0 %1619
        %1621 = vrot.lane.b32.xlu0 %v1386, 30
        %v1622 = vpop.permute.xlu0 %1621
        %v1627 = vsel %vm851, %v1017, %v1392
        %v1628 = vsel %vm851, %v1115, %v1394
        %v1629 = vsel %vm851, %v1213, %v1396
        %v1630 = vsel %vm851, %v1311, %v1398
        %v1631 = vsel %vm856, %v1627, %v1408
        %v1632 = vsel %vm856, %v1628, %v1410
        %v1633 = vsel %vm856, %v1629, %v1412
        %v1634 = vsel %vm856, %v1630, %v1414
        %v1635 = vsel %vm861, %v1631, %v1424
        %v1636 = vsel %vm861, %v1632, %v1426
        %v1637 = vsel %vm861, %v1633, %v1428
        %v1638 = vsel %vm861, %v1634, %v1430
        %v1639 = vsel %vm866, %v1635, %v1440
        %v1640 = vsel %vm866, %v1636, %v1442
        %v1641 = vsel %vm866, %v1637, %v1444
        %v1642 = vsel %vm866, %v1638, %v1446
        %v1643 = vsel %vm871, %v1639, %v1456
        %v1644 = vsel %vm871, %v1640, %v1458
        %v1645 = vsel %vm871, %v1641, %v1460
        %v1646 = vsel %vm871, %v1642, %v1462
        %v1647 = vsel %vm876, %v1643, %v1472
        %v1648 = vsel %vm876, %v1644, %v1474
        %v1649 = vsel %vm876, %v1645, %v1476
        %v1650 = vsel %vm876, %v1646, %v1478
        %v1651 = vsel %vm881, %v1647, %v1488
        %v1652 = vsel %vm881, %v1648, %v1490
        %v1653 = vsel %vm881, %v1649, %v1492
        %v1654 = vsel %vm881, %v1650, %v1494
        %v1655 = vsel %vm886, %v1651, %v1504
        %v1656 = vsel %vm886, %v1652, %v1506
        %v1657 = vsel %vm886, %v1653, %v1508
        %v1658 = vsel %vm886, %v1654, %v1510
        %v1659 = vsel %vm891, %v1655, %v1520
        %v1660 = vsel %vm891, %v1656, %v1522
        %v1661 = vsel %vm891, %v1657, %v1524
        %v1662 = vsel %vm891, %v1658, %v1526
        %v1663 = vsel %vm896, %v1659, %v1536
        %v1664 = vsel %vm896, %v1660, %v1538
        %v1665 = vsel %vm896, %v1661, %v1540
        %v1666 = vsel %vm896, %v1662, %v1542
        %v1667 = vsel %vm901, %v1663, %v1552
        %v1668 = vsel %vm901, %v1664, %v1554
        %v1669 = vsel %vm901, %v1665, %v1556
        %v1670 = vsel %vm901, %v1666, %v1558
        %v1671 = vsel %vm906, %v1667, %v1568
        %v1672 = vsel %vm906, %v1668, %v1570
        %v1673 = vsel %vm906, %v1669, %v1572
        %v1674 = vsel %vm906, %v1670, %v1574
        %v1675 = vsel %vm911, %v1671, %v1584
        %v1676 = vsel %vm911, %v1672, %v1586
        %v1677 = vsel %vm911, %v1673, %v1588
        %v1678 = vsel %vm911, %v1674, %v1590
        %v1679 = vsel %vm916, %v1675, %v1600
        %v1680 = vsel %vm916, %v1676, %v1602
        %v1681 = vsel %vm916, %v1677, %v1604
        %v1682 = vsel %vm916, %v1678, %v1606
        %v1683 = vsel %vm921, %v1679, %v1616
        %v1684 = vsel %vm921, %v1680, %v1618
        %v1685 = vsel %vm921, %v1681, %v1620
        %v1686 = vsel %vm921, %v1682, %v1622
        %v1687 = vlaneseq
        %v1688 = vshrl.u32 %v1687, 7
        %v1689 = vsub.s32 0, %v1688
        %v1690 = vrot.slane %v1683, %v1689
        %v1691 = vlaneseq
        %v1692 = vshrl.u32 %v1691, 7
        %v1693 = vsub.s32 0, %v1692
        %v1694 = vrot.slane %v1684, %v1693
        %v1695 = vlaneseq
        %v1696 = vshrl.u32 %v1695, 7
        %v1697 = vsub.s32 0, %v1696
        %v1698 = vrot.slane %v1685, %v1697
        %v1699 = vlaneseq
        %v1700 = vshrl.u32 %v1699, 7
        %v1701 = vsub.s32 0, %v1700
        %v1702 = vrot.slane %v1686, %v1701
        %1703 = vst.msk [vmem:[%s166 + $0x2] sm:$0x3] %vm942, %v1690
        %1704 = vst.msk [vmem:[%s166 + $0x22] sm:$0x3] %vm942, %v1694
        %1705 = vst.msk [vmem:[%s166 + $0x42] sm:$0x3] %vm942, %v1698
        %1706 = vst.msk [vmem:[%s166 + $0x62] sm:$0x3] %vm942, %v1702
        %v1707 = vld [vmem:[%s148 + $0x2] sm:$0x1]
        %v1708 = vld [vmem:[%s148 + $0x12] sm:$0x1]
        %v1709 = vld [vmem:[%s148 + $0x22] sm:$0x1]
        %v1710 = vld [vmem:[%s148 + $0x32] sm:$0x1]
        %v1711 = vlaneseq
        %v1712 = vshrl.u32 %v1711, 7
        %v1713 = vsub.s32 0, %v1712
        %v1714 = vrot.slane %v1707, %v1713
        %1716 = vbcast.lane.b32.xlu0 %v1714, 256
        %v1717 = vpop.permute.xlu0 %1716
        %s1719 = sor.u32 256, 8
        %1720 = vbcast.lane.b32.xlu0 %v1714, %s1719
        %v1721 = vpop.permute.xlu0 %1720
        %v1722 = vlaneseq
        %v1723 = vshrl.u32 %v1722, 7
        %v1724 = vsub.s32 0, %v1723
        %v1725 = vrot.slane %v1708, %v1724
        %1727 = vbcast.lane.b32.xlu0 %v1725, 256
        %v1728 = vpop.permute.xlu0 %1727
        %s1730 = sor.u32 256, 8
        %1731 = vbcast.lane.b32.xlu0 %v1725, %s1730
        %v1732 = vpop.permute.xlu0 %1731
        %v1733 = vlaneseq
        %v1734 = vshrl.u32 %v1733, 7
        %v1735 = vsub.s32 0, %v1734
        %v1736 = vrot.slane %v1709, %v1735
        %1738 = vbcast.lane.b32.xlu0 %v1736, 256
        %v1739 = vpop.permute.xlu0 %1738
        %s1741 = sor.u32 256, 8
        %1742 = vbcast.lane.b32.xlu0 %v1736, %s1741
        %v1743 = vpop.permute.xlu0 %1742
        %v1744 = vlaneseq
        %v1745 = vshrl.u32 %v1744, 7
        %v1746 = vsub.s32 0, %v1745
        %v1747 = vrot.slane %v1710, %v1746
        %1749 = vbcast.lane.b32.xlu0 %v1747, 256
        %v1750 = vpop.permute.xlu0 %1749
        %s1752 = sor.u32 256, 8
        %1753 = vbcast.lane.b32.xlu0 %v1747, %s1752
        %v1754 = vpop.permute.xlu0 %1753
        %v1755 = vcombine.high %v1717, 0.0
        %v1757 = vunpack.c.l.s4 1983009808
        %v1758 = vunpack.c.0.s8 %v1757
        %v1759 = vlaneseq
        %v1760 = vshrl.u32 %v1759, 7
        %v1761 = vsub.s32 %v1758, %v1760
        %v1762 = vrot.slane %v1717, %v1761
        %v1764 = vunpack.c.l.s4 1983009808
        %v1765 = vunpack.c.0.s8 %v1764
        %v1766 = vlaneseq
        %v1767 = vshrl.u32 %v1766, 7
        %v1768 = vsub.s32 %v1765, %v1767
        %v1769 = vrot.slane %v1755, %v1768
        %v1770 = vcombine.high %v1762, 0.0
        %v1772 = vunpack.c.l.s4 1934713408
        %v1773 = vunpack.c.0.s8 %v1772
        %v1774 = vlaneseq
        %v1775 = vshrl.u32 %v1774, 7
        %v1776 = vsub.s32 %v1773, %v1775
        %v1777 = vrot.slane %v1762, %v1776
        %v1779 = vunpack.c.l.s4 1934713408
        %v1780 = vunpack.c.0.s8 %v1779
        %v1781 = vlaneseq
        %v1782 = vshrl.u32 %v1781, 7
        %v1783 = vsub.s32 %v1780, %v1782
        %v1784 = vrot.slane %v1770, %v1783
        %v1785 = vcombine.high %v1769, 0.0
        %v1787 = vunpack.c.l.s4 1934713408
        %v1788 = vunpack.c.0.s8 %v1787
        %v1789 = vlaneseq
        %v1790 = vshrl.u32 %v1789, 7
        %v1791 = vsub.s32 %v1788, %v1790
        %v1792 = vrot.slane %v1769, %v1791
        %v1794 = vunpack.c.l.s4 1934713408
        %v1795 = vunpack.c.0.s8 %v1794
        %v1796 = vlaneseq
        %v1797 = vshrl.u32 %v1796, 7
        %v1798 = vsub.s32 %v1795, %v1797
        %v1799 = vrot.slane %v1785, %v1798
        %v1800 = vcombine.high %v1777, 0.0
        %v1801 = vcombine.high %v1784, 0.0
        %v1802 = vcombine.high %v1792, 0.0
        %v1803 = vcombine.high %v1799, 0.0
        %v1804 = vcombine.high %v1721, 0.0
        %v1806 = vunpack.c.l.s4 1983009808
        %v1807 = vunpack.c.0.s8 %v1806
        %v1808 = vlaneseq
        %v1809 = vshrl.u32 %v1808, 7
        %v1810 = vsub.s32 %v1807, %v1809
        %v1811 = vrot.slane %v1721, %v1810
        %v1813 = vunpack.c.l.s4 1983009808
        %v1814 = vunpack.c.0.s8 %v1813
        %v1815 = vlaneseq
        %v1816 = vshrl.u32 %v1815, 7
        %v1817 = vsub.s32 %v1814, %v1816
        %v1818 = vrot.slane %v1804, %v1817
        %v1819 = vcombine.high %v1811, 0.0
        %v1821 = vunpack.c.l.s4 1934713408
        %v1822 = vunpack.c.0.s8 %v1821
        %v1823 = vlaneseq
        %v1824 = vshrl.u32 %v1823, 7
        %v1825 = vsub.s32 %v1822, %v1824
        %v1826 = vrot.slane %v1811, %v1825
        %v1828 = vunpack.c.l.s4 1934713408
        %v1829 = vunpack.c.0.s8 %v1828
        %v1830 = vlaneseq
        %v1831 = vshrl.u32 %v1830, 7
        %v1832 = vsub.s32 %v1829, %v1831
        %v1833 = vrot.slane %v1819, %v1832
        %v1834 = vcombine.high %v1818, 0.0
        %v1836 = vunpack.c.l.s4 1934713408
        %v1837 = vunpack.c.0.s8 %v1836
        %v1838 = vlaneseq
        %v1839 = vshrl.u32 %v1838, 7
        %v1840 = vsub.s32 %v1837, %v1839
        %v1841 = vrot.slane %v1818, %v1840
        %v1843 = vunpack.c.l.s4 1934713408
        %v1844 = vunpack.c.0.s8 %v1843
        %v1845 = vlaneseq
        %v1846 = vshrl.u32 %v1845, 7
        %v1847 = vsub.s32 %v1844, %v1846
        %v1848 = vrot.slane %v1834, %v1847
        %v1849 = vcombine.high %v1826, 0.0
        %v1850 = vcombine.high %v1833, 0.0
        %v1851 = vcombine.high %v1841, 0.0
        %v1852 = vcombine.high %v1848, 0.0
        %v1853 = vcombine.high %v1728, 0.0
        %v1855 = vunpack.c.l.s4 1983009808
        %v1856 = vunpack.c.0.s8 %v1855
        %v1857 = vlaneseq
        %v1858 = vshrl.u32 %v1857, 7
        %v1859 = vsub.s32 %v1856, %v1858
        %v1860 = vrot.slane %v1728, %v1859
        %v1862 = vunpack.c.l.s4 1983009808
        %v1863 = vunpack.c.0.s8 %v1862
        %v1864 = vlaneseq
        %v1865 = vshrl.u32 %v1864, 7
        %v1866 = vsub.s32 %v1863, %v1865
        %v1867 = vrot.slane %v1853, %v1866
        %v1868 = vcombine.high %v1860, 0.0
        %v1870 = vunpack.c.l.s4 1934713408
        %v1871 = vunpack.c.0.s8 %v1870
        %v1872 = vlaneseq
        %v1873 = vshrl.u32 %v1872, 7
        %v1874 = vsub.s32 %v1871, %v1873
        %v1875 = vrot.slane %v1860, %v1874
        %v1877 = vunpack.c.l.s4 1934713408
        %v1878 = vunpack.c.0.s8 %v1877
        %v1879 = vlaneseq
        %v1880 = vshrl.u32 %v1879, 7
        %v1881 = vsub.s32 %v1878, %v1880
        %v1882 = vrot.slane %v1868, %v1881
        %v1883 = vcombine.high %v1867, 0.0
        %v1885 = vunpack.c.l.s4 1934713408
        %v1886 = vunpack.c.0.s8 %v1885
        %v1887 = vlaneseq
        %v1888 = vshrl.u32 %v1887, 7
        %v1889 = vsub.s32 %v1886, %v1888
        %v1890 = vrot.slane %v1867, %v1889
        %v1892 = vunpack.c.l.s4 1934713408
        %v1893 = vunpack.c.0.s8 %v1892
        %v1894 = vlaneseq
        %v1895 = vshrl.u32 %v1894, 7
        %v1896 = vsub.s32 %v1893, %v1895
        %v1897 = vrot.slane %v1883, %v1896
        %v1898 = vcombine.high %v1875, 0.0
        %v1899 = vcombine.high %v1882, 0.0
        %v1900 = vcombine.high %v1890, 0.0
        %v1901 = vcombine.high %v1897, 0.0
        %v1902 = vcombine.high %v1732, 0.0
        %v1904 = vunpack.c.l.s4 1983009808
        %v1905 = vunpack.c.0.s8 %v1904
        %v1906 = vlaneseq
        %v1907 = vshrl.u32 %v1906, 7
        %v1908 = vsub.s32 %v1905, %v1907
        %v1909 = vrot.slane %v1732, %v1908
        %v1911 = vunpack.c.l.s4 1983009808
        %v1912 = vunpack.c.0.s8 %v1911
        %v1913 = vlaneseq
        %v1914 = vshrl.u32 %v1913, 7
        %v1915 = vsub.s32 %v1912, %v1914
        %v1916 = vrot.slane %v1902, %v1915
        %v1917 = vcombine.high %v1909, 0.0
        %v1919 = vunpack.c.l.s4 1934713408
        %v1920 = vunpack.c.0.s8 %v1919
        %v1921 = vlaneseq
        %v1922 = vshrl.u32 %v1921, 7
        %v1923 = vsub.s32 %v1920, %v1922
        %v1924 = vrot.slane %v1909, %v1923
        %v1926 = vunpack.c.l.s4 1934713408
        %v1927 = vunpack.c.0.s8 %v1926
        %v1928 = vlaneseq
        %v1929 = vshrl.u32 %v1928, 7
        %v1930 = vsub.s32 %v1927, %v1929
        %v1931 = vrot.slane %v1917, %v1930
        %v1932 = vcombine.high %v1916, 0.0
        %v1934 = vunpack.c.l.s4 1934713408
        %v1935 = vunpack.c.0.s8 %v1934
        %v1936 = vlaneseq
        %v1937 = vshrl.u32 %v1936, 7
        %v1938 = vsub.s32 %v1935, %v1937
        %v1939 = vrot.slane %v1916, %v1938
        %v1941 = vunpack.c.l.s4 1934713408
        %v1942 = vunpack.c.0.s8 %v1941
        %v1943 = vlaneseq
        %v1944 = vshrl.u32 %v1943, 7
        %v1945 = vsub.s32 %v1942, %v1944
        %v1946 = vrot.slane %v1932, %v1945
        %v1947 = vcombine.high %v1924, 0.0
        %v1948 = vcombine.high %v1931, 0.0
        %v1949 = vcombine.high %v1939, 0.0
        %v1950 = vcombine.high %v1946, 0.0
        %v1951 = vcombine.high %v1739, 0.0
        %v1953 = vunpack.c.l.s4 1983009808
        %v1954 = vunpack.c.0.s8 %v1953
        %v1955 = vlaneseq
        %v1956 = vshrl.u32 %v1955, 7
        %v1957 = vsub.s32 %v1954, %v1956
        %v1958 = vrot.slane %v1739, %v1957
        %v1960 = vunpack.c.l.s4 1983009808
        %v1961 = vunpack.c.0.s8 %v1960
        %v1962 = vlaneseq
        %v1963 = vshrl.u32 %v1962, 7
        %v1964 = vsub.s32 %v1961, %v1963
        %v1965 = vrot.slane %v1951, %v1964
        %v1966 = vcombine.high %v1958, 0.0
        %v1968 = vunpack.c.l.s4 1934713408
        %v1969 = vunpack.c.0.s8 %v1968
        %v1970 = vlaneseq
        %v1971 = vshrl.u32 %v1970, 7
        %v1972 = vsub.s32 %v1969, %v1971
        %v1973 = vrot.slane %v1958, %v1972
        %v1975 = vunpack.c.l.s4 1934713408
        %v1976 = vunpack.c.0.s8 %v1975
        %v1977 = vlaneseq
        %v1978 = vshrl.u32 %v1977, 7
        %v1979 = vsub.s32 %v1976, %v1978
        %v1980 = vrot.slane %v1966, %v1979
        %v1981 = vcombine.high %v1965, 0.0
        %v1983 = vunpack.c.l.s4 1934713408
        %v1984 = vunpack.c.0.s8 %v1983
        %v1985 = vlaneseq
        %v1986 = vshrl.u32 %v1985, 7
        %v1987 = vsub.s32 %v1984, %v1986
        %v1988 = vrot.slane %v1965, %v1987
        %v1990 = vunpack.c.l.s4 1934713408
        %v1991 = vunpack.c.0.s8 %v1990
        %v1992 = vlaneseq
        %v1993 = vshrl.u32 %v1992, 7
        %v1994 = vsub.s32 %v1991, %v1993
        %v1995 = vrot.slane %v1981, %v1994
        %v1996 = vcombine.high %v1973, 0.0
        %v1997 = vcombine.high %v1980, 0.0
        %v1998 = vcombine.high %v1988, 0.0
        %v1999 = vcombine.high %v1995, 0.0
        %v2000 = vcombine.high %v1743, 0.0
        %v2002 = vunpack.c.l.s4 1983009808
        %v2003 = vunpack.c.0.s8 %v2002
        %v2004 = vlaneseq
        %v2005 = vshrl.u32 %v2004, 7
        %v2006 = vsub.s32 %v2003, %v2005
        %v2007 = vrot.slane %v1743, %v2006
        %v2009 = vunpack.c.l.s4 1983009808
        %v2010 = vunpack.c.0.s8 %v2009
        %v2011 = vlaneseq
        %v2012 = vshrl.u32 %v2011, 7
        %v2013 = vsub.s32 %v2010, %v2012
        %v2014 = vrot.slane %v2000, %v2013
        %v2015 = vcombine.high %v2007, 0.0
        %v2017 = vunpack.c.l.s4 1934713408
        %v2018 = vunpack.c.0.s8 %v2017
        %v2019 = vlaneseq
        %v2020 = vshrl.u32 %v2019, 7
        %v2021 = vsub.s32 %v2018, %v2020
        %v2022 = vrot.slane %v2007, %v2021
        %v2024 = vunpack.c.l.s4 1934713408
        %v2025 = vunpack.c.0.s8 %v2024
        %v2026 = vlaneseq
        %v2027 = vshrl.u32 %v2026, 7
        %v2028 = vsub.s32 %v2025, %v2027
        %v2029 = vrot.slane %v2015, %v2028
        %v2030 = vcombine.high %v2014, 0.0
        %v2032 = vunpack.c.l.s4 1934713408
        %v2033 = vunpack.c.0.s8 %v2032
        %v2034 = vlaneseq
        %v2035 = vshrl.u32 %v2034, 7
        %v2036 = vsub.s32 %v2033, %v2035
        %v2037 = vrot.slane %v2014, %v2036
        %v2039 = vunpack.c.l.s4 1934713408
        %v2040 = vunpack.c.0.s8 %v2039
        %v2041 = vlaneseq
        %v2042 = vshrl.u32 %v2041, 7
        %v2043 = vsub.s32 %v2040, %v2042
        %v2044 = vrot.slane %v2030, %v2043
        %v2045 = vcombine.high %v2022, 0.0
        %v2046 = vcombine.high %v2029, 0.0
        %v2047 = vcombine.high %v2037, 0.0
        %v2048 = vcombine.high %v2044, 0.0
        %v2049 = vcombine.high %v1750, 0.0
        %v2051 = vunpack.c.l.s4 1983009808
        %v2052 = vunpack.c.0.s8 %v2051
        %v2053 = vlaneseq
        %v2054 = vshrl.u32 %v2053, 7
        %v2055 = vsub.s32 %v2052, %v2054
        %v2056 = vrot.slane %v1750, %v2055
        %v2058 = vunpack.c.l.s4 1983009808
        %v2059 = vunpack.c.0.s8 %v2058
        %v2060 = vlaneseq
        %v2061 = vshrl.u32 %v2060, 7
        %v2062 = vsub.s32 %v2059, %v2061
        %v2063 = vrot.slane %v2049, %v2062
        %v2064 = vcombine.high %v2056, 0.0
        %v2066 = vunpack.c.l.s4 1934713408
        %v2067 = vunpack.c.0.s8 %v2066
        %v2068 = vlaneseq
        %v2069 = vshrl.u32 %v2068, 7
        %v2070 = vsub.s32 %v2067, %v2069
        %v2071 = vrot.slane %v2056, %v2070
        %v2073 = vunpack.c.l.s4 1934713408
        %v2074 = vunpack.c.0.s8 %v2073
        %v2075 = vlaneseq
        %v2076 = vshrl.u32 %v2075, 7
        %v2077 = vsub.s32 %v2074, %v2076
        %v2078 = vrot.slane %v2064, %v2077
        %v2079 = vcombine.high %v2063, 0.0
        %v2081 = vunpack.c.l.s4 1934713408
        %v2082 = vunpack.c.0.s8 %v2081
        %v2083 = vlaneseq
        %v2084 = vshrl.u32 %v2083, 7
        %v2085 = vsub.s32 %v2082, %v2084
        %v2086 = vrot.slane %v2063, %v2085
        %v2088 = vunpack.c.l.s4 1934713408
        %v2089 = vunpack.c.0.s8 %v2088
        %v2090 = vlaneseq
        %v2091 = vshrl.u32 %v2090, 7
        %v2092 = vsub.s32 %v2089, %v2091
        %v2093 = vrot.slane %v2079, %v2092
        %v2094 = vcombine.high %v2071, 0.0
        %v2095 = vcombine.high %v2078, 0.0
        %v2096 = vcombine.high %v2086, 0.0
        %v2097 = vcombine.high %v2093, 0.0
        %v2098 = vcombine.high %v1754, 0.0
        %v2100 = vunpack.c.l.s4 1983009808
        %v2101 = vunpack.c.0.s8 %v2100
        %v2102 = vlaneseq
        %v2103 = vshrl.u32 %v2102, 7
        %v2104 = vsub.s32 %v2101, %v2103
        %v2105 = vrot.slane %v1754, %v2104
        %v2107 = vunpack.c.l.s4 1983009808
        %v2108 = vunpack.c.0.s8 %v2107
        %v2109 = vlaneseq
        %v2110 = vshrl.u32 %v2109, 7
        %v2111 = vsub.s32 %v2108, %v2110
        %v2112 = vrot.slane %v2098, %v2111
        %v2113 = vcombine.high %v2105, 0.0
        %v2115 = vunpack.c.l.s4 1934713408
        %v2116 = vunpack.c.0.s8 %v2115
        %v2117 = vlaneseq
        %v2118 = vshrl.u32 %v2117, 7
        %v2119 = vsub.s32 %v2116, %v2118
        %v2120 = vrot.slane %v2105, %v2119
        %v2122 = vunpack.c.l.s4 1934713408
        %v2123 = vunpack.c.0.s8 %v2122
        %v2124 = vlaneseq
        %v2125 = vshrl.u32 %v2124, 7
        %v2126 = vsub.s32 %v2123, %v2125
        %v2127 = vrot.slane %v2113, %v2126
        %v2128 = vcombine.high %v2112, 0.0
        %v2130 = vunpack.c.l.s4 1934713408
        %v2131 = vunpack.c.0.s8 %v2130
        %v2132 = vlaneseq
        %v2133 = vshrl.u32 %v2132, 7
        %v2134 = vsub.s32 %v2131, %v2133
        %v2135 = vrot.slane %v2112, %v2134
        %v2137 = vunpack.c.l.s4 1934713408
        %v2138 = vunpack.c.0.s8 %v2137
        %v2139 = vlaneseq
        %v2140 = vshrl.u32 %v2139, 7
        %v2141 = vsub.s32 %v2138, %v2140
        %v2142 = vrot.slane %v2128, %v2141
        %v2143 = vcombine.high %v2120, 0.0
        %v2144 = vcombine.high %v2127, 0.0
        %v2145 = vcombine.high %v2135, 0.0
        %v2146 = vcombine.high %v2142, 0.0
        %2151 = vrot.lane.b32.xlu0 %v1800, 2
        %v2152 = vpop.permute.xlu0 %2151
        %2153 = vrot.lane.b32.xlu0 %v1898, 2
        %v2154 = vpop.permute.xlu0 %2153
        %2155 = vrot.lane.b32.xlu0 %v1996, 2
        %v2156 = vpop.permute.xlu0 %2155
        %2157 = vrot.lane.b32.xlu0 %v2094, 2
        %v2158 = vpop.permute.xlu0 %2157
        %2167 = vrot.lane.b32.xlu0 %v1784, 4
        %v2168 = vpop.permute.xlu0 %2167
        %2169 = vrot.lane.b32.xlu0 %v1882, 4
        %v2170 = vpop.permute.xlu0 %2169
        %2171 = vrot.lane.b32.xlu0 %v1980, 4
        %v2172 = vpop.permute.xlu0 %2171
        %2173 = vrot.lane.b32.xlu0 %v2078, 4
        %v2174 = vpop.permute.xlu0 %2173
        %2183 = vrot.lane.b32.xlu0 %v1801, 6
        %v2184 = vpop.permute.xlu0 %2183
        %2185 = vrot.lane.b32.xlu0 %v1899, 6
        %v2186 = vpop.permute.xlu0 %2185
        %2187 = vrot.lane.b32.xlu0 %v1997, 6
        %v2188 = vpop.permute.xlu0 %2187
        %2189 = vrot.lane.b32.xlu0 %v2095, 6
        %v2190 = vpop.permute.xlu0 %2189
        %2199 = vrot.lane.b32.xlu0 %v1792, 8
        %v2200 = vpop.permute.xlu0 %2199
        %2201 = vrot.lane.b32.xlu0 %v1890, 8
        %v2202 = vpop.permute.xlu0 %2201
        %2203 = vrot.lane.b32.xlu0 %v1988, 8
        %v2204 = vpop.permute.xlu0 %2203
        %2205 = vrot.lane.b32.xlu0 %v2086, 8
        %v2206 = vpop.permute.xlu0 %2205
        %2215 = vrot.lane.b32.xlu0 %v1802, 10
        %v2216 = vpop.permute.xlu0 %2215
        %2217 = vrot.lane.b32.xlu0 %v1900, 10
        %v2218 = vpop.permute.xlu0 %2217
        %2219 = vrot.lane.b32.xlu0 %v1998, 10
        %v2220 = vpop.permute.xlu0 %2219
        %2221 = vrot.lane.b32.xlu0 %v2096, 10
        %v2222 = vpop.permute.xlu0 %2221
        %2231 = vrot.lane.b32.xlu0 %v1799, 12
        %v2232 = vpop.permute.xlu0 %2231
        %2233 = vrot.lane.b32.xlu0 %v1897, 12
        %v2234 = vpop.permute.xlu0 %2233
        %2235 = vrot.lane.b32.xlu0 %v1995, 12
        %v2236 = vpop.permute.xlu0 %2235
        %2237 = vrot.lane.b32.xlu0 %v2093, 12
        %v2238 = vpop.permute.xlu0 %2237
        %2247 = vrot.lane.b32.xlu0 %v1803, 14
        %v2248 = vpop.permute.xlu0 %2247
        %2249 = vrot.lane.b32.xlu0 %v1901, 14
        %v2250 = vpop.permute.xlu0 %2249
        %2251 = vrot.lane.b32.xlu0 %v1999, 14
        %v2252 = vpop.permute.xlu0 %2251
        %2253 = vrot.lane.b32.xlu0 %v2097, 14
        %v2254 = vpop.permute.xlu0 %2253
        %2263 = vrot.lane.b32.xlu0 %v1826, 16
        %v2264 = vpop.permute.xlu0 %2263
        %2265 = vrot.lane.b32.xlu0 %v1924, 16
        %v2266 = vpop.permute.xlu0 %2265
        %2267 = vrot.lane.b32.xlu0 %v2022, 16
        %v2268 = vpop.permute.xlu0 %2267
        %2269 = vrot.lane.b32.xlu0 %v2120, 16
        %v2270 = vpop.permute.xlu0 %2269
        %2279 = vrot.lane.b32.xlu0 %v1849, 18
        %v2280 = vpop.permute.xlu0 %2279
        %2281 = vrot.lane.b32.xlu0 %v1947, 18
        %v2282 = vpop.permute.xlu0 %2281
        %2283 = vrot.lane.b32.xlu0 %v2045, 18
        %v2284 = vpop.permute.xlu0 %2283
        %2285 = vrot.lane.b32.xlu0 %v2143, 18
        %v2286 = vpop.permute.xlu0 %2285
        %2295 = vrot.lane.b32.xlu0 %v1833, 20
        %v2296 = vpop.permute.xlu0 %2295
        %2297 = vrot.lane.b32.xlu0 %v1931, 20
        %v2298 = vpop.permute.xlu0 %2297
        %2299 = vrot.lane.b32.xlu0 %v2029, 20
        %v2300 = vpop.permute.xlu0 %2299
        %2301 = vrot.lane.b32.xlu0 %v2127, 20
        %v2302 = vpop.permute.xlu0 %2301
        %2311 = vrot.lane.b32.xlu0 %v1850, 22
        %v2312 = vpop.permute.xlu0 %2311
        %2313 = vrot.lane.b32.xlu0 %v1948, 22
        %v2314 = vpop.permute.xlu0 %2313
        %2315 = vrot.lane.b32.xlu0 %v2046, 22
        %v2316 = vpop.permute.xlu0 %2315
        %2317 = vrot.lane.b32.xlu0 %v2144, 22
        %v2318 = vpop.permute.xlu0 %2317
        %2327 = vrot.lane.b32.xlu0 %v1841, 24
        %v2328 = vpop.permute.xlu0 %2327
        %2329 = vrot.lane.b32.xlu0 %v1939, 24
        %v2330 = vpop.permute.xlu0 %2329
        %2331 = vrot.lane.b32.xlu0 %v2037, 24
        %v2332 = vpop.permute.xlu0 %2331
        %2333 = vrot.lane.b32.xlu0 %v2135, 24
        %v2334 = vpop.permute.xlu0 %2333
        %2343 = vrot.lane.b32.xlu0 %v1851, 26
        %v2344 = vpop.permute.xlu0 %2343
        %2345 = vrot.lane.b32.xlu0 %v1949, 26
        %v2346 = vpop.permute.xlu0 %2345
        %2347 = vrot.lane.b32.xlu0 %v2047, 26
        %v2348 = vpop.permute.xlu0 %2347
        %2349 = vrot.lane.b32.xlu0 %v2145, 26
        %v2350 = vpop.permute.xlu0 %2349
        %2359 = vrot.lane.b32.xlu0 %v1848, 28
        %v2360 = vpop.permute.xlu0 %2359
        %2361 = vrot.lane.b32.xlu0 %v1946, 28
        %v2362 = vpop.permute.xlu0 %2361
        %2363 = vrot.lane.b32.xlu0 %v2044, 28
        %v2364 = vpop.permute.xlu0 %2363
        %2365 = vrot.lane.b32.xlu0 %v2142, 28
        %v2366 = vpop.permute.xlu0 %2365
        %2375 = vrot.lane.b32.xlu0 %v1852, 30
        %v2376 = vpop.permute.xlu0 %2375
        %2377 = vrot.lane.b32.xlu0 %v1950, 30
        %v2378 = vpop.permute.xlu0 %2377
        %2379 = vrot.lane.b32.xlu0 %v2048, 30
        %v2380 = vpop.permute.xlu0 %2379
        %2381 = vrot.lane.b32.xlu0 %v2146, 30
        %v2382 = vpop.permute.xlu0 %2381
        %v2387 = vsel %vm851, %v1777, %v2152
        %v2388 = vsel %vm851, %v1875, %v2154
        %v2389 = vsel %vm851, %v1973, %v2156
        %v2390 = vsel %vm851, %v2071, %v2158
        %v2391 = vsel %vm856, %v2387, %v2168
        %v2392 = vsel %vm856, %v2388, %v2170
        %v2393 = vsel %vm856, %v2389, %v2172
        %v2394 = vsel %vm856, %v2390, %v2174
        %v2395 = vsel %vm861, %v2391, %v2184
        %v2396 = vsel %vm861, %v2392, %v2186
        %v2397 = vsel %vm861, %v2393, %v2188
        %v2398 = vsel %vm861, %v2394, %v2190
        %v2399 = vsel %vm866, %v2395, %v2200
        %v2400 = vsel %vm866, %v2396, %v2202
        %v2401 = vsel %vm866, %v2397, %v2204
        %v2402 = vsel %vm866, %v2398, %v2206
        %v2403 = vsel %vm871, %v2399, %v2216
        %v2404 = vsel %vm871, %v2400, %v2218
        %v2405 = vsel %vm871, %v2401, %v2220
        %v2406 = vsel %vm871, %v2402, %v2222
        %v2407 = vsel %vm876, %v2403, %v2232
        %v2408 = vsel %vm876, %v2404, %v2234
        %v2409 = vsel %vm876, %v2405, %v2236
        %v2410 = vsel %vm876, %v2406, %v2238
        %v2411 = vsel %vm881, %v2407, %v2248
        %v2412 = vsel %vm881, %v2408, %v2250
        %v2413 = vsel %vm881, %v2409, %v2252
        %v2414 = vsel %vm881, %v2410, %v2254
        %v2415 = vsel %vm886, %v2411, %v2264
        %v2416 = vsel %vm886, %v2412, %v2266
        %v2417 = vsel %vm886, %v2413, %v2268
        %v2418 = vsel %vm886, %v2414, %v2270
        %v2419 = vsel %vm891, %v2415, %v2280
        %v2420 = vsel %vm891, %v2416, %v2282
        %v2421 = vsel %vm891, %v2417, %v2284
        %v2422 = vsel %vm891, %v2418, %v2286
        %v2423 = vsel %vm896, %v2419, %v2296
        %v2424 = vsel %vm896, %v2420, %v2298
        %v2425 = vsel %vm896, %v2421, %v2300
        %v2426 = vsel %vm896, %v2422, %v2302
        %v2427 = vsel %vm901, %v2423, %v2312
        %v2428 = vsel %vm901, %v2424, %v2314
        %v2429 = vsel %vm901, %v2425, %v2316
        %v2430 = vsel %vm901, %v2426, %v2318
        %v2431 = vsel %vm906, %v2427, %v2328
        %v2432 = vsel %vm906, %v2428, %v2330
        %v2433 = vsel %vm906, %v2429, %v2332
        %v2434 = vsel %vm906, %v2430, %v2334
        %v2435 = vsel %vm911, %v2431, %v2344
        %v2436 = vsel %vm911, %v2432, %v2346
        %v2437 = vsel %vm911, %v2433, %v2348
        %v2438 = vsel %vm911, %v2434, %v2350
        %v2439 = vsel %vm916, %v2435, %v2360
        %v2440 = vsel %vm916, %v2436, %v2362
        %v2441 = vsel %vm916, %v2437, %v2364
        %v2442 = vsel %vm916, %v2438, %v2366
        %v2443 = vsel %vm921, %v2439, %v2376
        %v2444 = vsel %vm921, %v2440, %v2378
        %v2445 = vsel %vm921, %v2441, %v2380
        %v2446 = vsel %vm921, %v2442, %v2382
        %v2447 = vlaneseq
        %v2448 = vshrl.u32 %v2447, 7
        %v2449 = vsub.s32 0, %v2448
        %v2450 = vrot.slane %v2443, %v2449
        %v2451 = vlaneseq
        %v2452 = vshrl.u32 %v2451, 7
        %v2453 = vsub.s32 0, %v2452
        %v2454 = vrot.slane %v2444, %v2453
        %v2455 = vlaneseq
        %v2456 = vshrl.u32 %v2455, 7
        %v2457 = vsub.s32 0, %v2456
        %v2458 = vrot.slane %v2445, %v2457
        %v2459 = vlaneseq
        %v2460 = vshrl.u32 %v2459, 7
        %v2461 = vsub.s32 0, %v2460
        %v2462 = vrot.slane %v2446, %v2461
        %2463 = vst.msk [vmem:[%s166 + $0x4] sm:$0x3] %vm942, %v2450
        %2464 = vst.msk [vmem:[%s166 + $0x24] sm:$0x3] %vm942, %v2454
        %2465 = vst.msk [vmem:[%s166 + $0x44] sm:$0x3] %vm942, %v2458
        %2466 = vst.msk [vmem:[%s166 + $0x64] sm:$0x3] %vm942, %v2462
        %v2467 = vld [vmem:[%s148 + $0x3] sm:$0x1]
        %v2468 = vld [vmem:[%s148 + $0x13] sm:$0x1]
        %v2469 = vld [vmem:[%s148 + $0x23] sm:$0x1]
        %v2470 = vld [vmem:[%s148 + $0x33] sm:$0x1]
        %v2471 = vlaneseq
        %v2472 = vshrl.u32 %v2471, 7
        %v2473 = vsub.s32 0, %v2472
        %v2474 = vrot.slane %v2467, %v2473
        %2476 = vbcast.lane.b32.xlu0 %v2474, 256
        %v2477 = vpop.permute.xlu0 %2476
        %s2479 = sor.u32 256, 8
        %2480 = vbcast.lane.b32.xlu0 %v2474, %s2479
        %v2481 = vpop.permute.xlu0 %2480
        %v2482 = vlaneseq
        %v2483 = vshrl.u32 %v2482, 7
        %v2484 = vsub.s32 0, %v2483
        %v2485 = vrot.slane %v2468, %v2484
        %2487 = vbcast.lane.b32.xlu0 %v2485, 256
        %v2488 = vpop.permute.xlu0 %2487
        %s2490 = sor.u32 256, 8
        %2491 = vbcast.lane.b32.xlu0 %v2485, %s2490
        %v2492 = vpop.permute.xlu0 %2491
        %v2493 = vlaneseq
        %v2494 = vshrl.u32 %v2493, 7
        %v2495 = vsub.s32 0, %v2494
        %v2496 = vrot.slane %v2469, %v2495
        %2498 = vbcast.lane.b32.xlu0 %v2496, 256
        %v2499 = vpop.permute.xlu0 %2498
        %s2501 = sor.u32 256, 8
        %2502 = vbcast.lane.b32.xlu0 %v2496, %s2501
        %v2503 = vpop.permute.xlu0 %2502
        %v2504 = vlaneseq
        %v2505 = vshrl.u32 %v2504, 7
        %v2506 = vsub.s32 0, %v2505
        %v2507 = vrot.slane %v2470, %v2506
        %2509 = vbcast.lane.b32.xlu0 %v2507, 256
        %v2510 = vpop.permute.xlu0 %2509
        %s2512 = sor.u32 256, 8
        %2513 = vbcast.lane.b32.xlu0 %v2507, %s2512
        %v2514 = vpop.permute.xlu0 %2513
        %v2515 = vcombine.high %v2477, 0.0
        %v2517 = vunpack.c.l.s4 1983009808
        %v2518 = vunpack.c.0.s8 %v2517
        %v2519 = vlaneseq
        %v2520 = vshrl.u32 %v2519, 7
        %v2521 = vsub.s32 %v2518, %v2520
        %v2522 = vrot.slane %v2477, %v2521
        %v2524 = vunpack.c.l.s4 1983009808
        %v2525 = vunpack.c.0.s8 %v2524
        %v2526 = vlaneseq
        %v2527 = vshrl.u32 %v2526, 7
        %v2528 = vsub.s32 %v2525, %v2527
        %v2529 = vrot.slane %v2515, %v2528
        %v2530 = vcombine.high %v2522, 0.0
        %v2532 = vunpack.c.l.s4 1934713408
        %v2533 = vunpack.c.0.s8 %v2532
        %v2534 = vlaneseq
        %v2535 = vshrl.u32 %v2534, 7
        %v2536 = vsub.s32 %v2533, %v2535
        %v2537 = vrot.slane %v2522, %v2536
        %v2539 = vunpack.c.l.s4 1934713408
        %v2540 = vunpack.c.0.s8 %v2539
        %v2541 = vlaneseq
        %v2542 = vshrl.u32 %v2541, 7
        %v2543 = vsub.s32 %v2540, %v2542
        %v2544 = vrot.slane %v2530, %v2543
        %v2545 = vcombine.high %v2529, 0.0
        %v2547 = vunpack.c.l.s4 1934713408
        %v2548 = vunpack.c.0.s8 %v2547
        %v2549 = vlaneseq
        %v2550 = vshrl.u32 %v2549, 7
        %v2551 = vsub.s32 %v2548, %v2550
        %v2552 = vrot.slane %v2529, %v2551
        %v2554 = vunpack.c.l.s4 1934713408
        %v2555 = vunpack.c.0.s8 %v2554
        %v2556 = vlaneseq
        %v2557 = vshrl.u32 %v2556, 7
        %v2558 = vsub.s32 %v2555, %v2557
        %v2559 = vrot.slane %v2545, %v2558
        %v2560 = vcombine.high %v2537, 0.0
        %v2561 = vcombine.high %v2544, 0.0
        %v2562 = vcombine.high %v2552, 0.0
        %v2563 = vcombine.high %v2559, 0.0
        %v2564 = vcombine.high %v2481, 0.0
        %v2566 = vunpack.c.l.s4 1983009808
        %v2567 = vunpack.c.0.s8 %v2566
        %v2568 = vlaneseq
        %v2569 = vshrl.u32 %v2568, 7
        %v2570 = vsub.s32 %v2567, %v2569
        %v2571 = vrot.slane %v2481, %v2570
        %v2573 = vunpack.c.l.s4 1983009808
        %v2574 = vunpack.c.0.s8 %v2573
        %v2575 = vlaneseq
        %v2576 = vshrl.u32 %v2575, 7
        %v2577 = vsub.s32 %v2574, %v2576
        %v2578 = vrot.slane %v2564, %v2577
        %v2579 = vcombine.high %v2571, 0.0
        %v2581 = vunpack.c.l.s4 1934713408
        %v2582 = vunpack.c.0.s8 %v2581
        %v2583 = vlaneseq
        %v2584 = vshrl.u32 %v2583, 7
        %v2585 = vsub.s32 %v2582, %v2584
        %v2586 = vrot.slane %v2571, %v2585
        %v2588 = vunpack.c.l.s4 1934713408
        %v2589 = vunpack.c.0.s8 %v2588
        %v2590 = vlaneseq
        %v2591 = vshrl.u32 %v2590, 7
        %v2592 = vsub.s32 %v2589, %v2591
        %v2593 = vrot.slane %v2579, %v2592
        %v2594 = vcombine.high %v2578, 0.0
        %v2596 = vunpack.c.l.s4 1934713408
        %v2597 = vunpack.c.0.s8 %v2596
        %v2598 = vlaneseq
        %v2599 = vshrl.u32 %v2598, 7
        %v2600 = vsub.s32 %v2597, %v2599
        %v2601 = vrot.slane %v2578, %v2600
        %v2603 = vunpack.c.l.s4 1934713408
        %v2604 = vunpack.c.0.s8 %v2603
        %v2605 = vlaneseq
        %v2606 = vshrl.u32 %v2605, 7
        %v2607 = vsub.s32 %v2604, %v2606
        %v2608 = vrot.slane %v2594, %v2607
        %v2609 = vcombine.high %v2586, 0.0
        %v2610 = vcombine.high %v2593, 0.0
        %v2611 = vcombine.high %v2601, 0.0
        %v2612 = vcombine.high %v2608, 0.0
        %v2613 = vcombine.high %v2488, 0.0
        %v2615 = vunpack.c.l.s4 1983009808
        %v2616 = vunpack.c.0.s8 %v2615
        %v2617 = vlaneseq
        %v2618 = vshrl.u32 %v2617, 7
        %v2619 = vsub.s32 %v2616, %v2618
        %v2620 = vrot.slane %v2488, %v2619
        %v2622 = vunpack.c.l.s4 1983009808
        %v2623 = vunpack.c.0.s8 %v2622
        %v2624 = vlaneseq
        %v2625 = vshrl.u32 %v2624, 7
        %v2626 = vsub.s32 %v2623, %v2625
        %v2627 = vrot.slane %v2613, %v2626
        %v2628 = vcombine.high %v2620, 0.0
        %v2630 = vunpack.c.l.s4 1934713408
        %v2631 = vunpack.c.0.s8 %v2630
        %v2632 = vlaneseq
        %v2633 = vshrl.u32 %v2632, 7
        %v2634 = vsub.s32 %v2631, %v2633
        %v2635 = vrot.slane %v2620, %v2634
        %v2637 = vunpack.c.l.s4 1934713408
        %v2638 = vunpack.c.0.s8 %v2637
        %v2639 = vlaneseq
        %v2640 = vshrl.u32 %v2639, 7
        %v2641 = vsub.s32 %v2638, %v2640
        %v2642 = vrot.slane %v2628, %v2641
        %v2643 = vcombine.high %v2627, 0.0
        %v2645 = vunpack.c.l.s4 1934713408
        %v2646 = vunpack.c.0.s8 %v2645
        %v2647 = vlaneseq
        %v2648 = vshrl.u32 %v2647, 7
        %v2649 = vsub.s32 %v2646, %v2648
        %v2650 = vrot.slane %v2627, %v2649
        %v2652 = vunpack.c.l.s4 1934713408
        %v2653 = vunpack.c.0.s8 %v2652
        %v2654 = vlaneseq
        %v2655 = vshrl.u32 %v2654, 7
        %v2656 = vsub.s32 %v2653, %v2655
        %v2657 = vrot.slane %v2643, %v2656
        %v2658 = vcombine.high %v2635, 0.0
        %v2659 = vcombine.high %v2642, 0.0
        %v2660 = vcombine.high %v2650, 0.0
        %v2661 = vcombine.high %v2657, 0.0
        %v2662 = vcombine.high %v2492, 0.0
        %v2664 = vunpack.c.l.s4 1983009808
        %v2665 = vunpack.c.0.s8 %v2664
        %v2666 = vlaneseq
        %v2667 = vshrl.u32 %v2666, 7
        %v2668 = vsub.s32 %v2665, %v2667
        %v2669 = vrot.slane %v2492, %v2668
        %v2671 = vunpack.c.l.s4 1983009808
        %v2672 = vunpack.c.0.s8 %v2671
        %v2673 = vlaneseq
        %v2674 = vshrl.u32 %v2673, 7
        %v2675 = vsub.s32 %v2672, %v2674
        %v2676 = vrot.slane %v2662, %v2675
        %v2677 = vcombine.high %v2669, 0.0
        %v2679 = vunpack.c.l.s4 1934713408
        %v2680 = vunpack.c.0.s8 %v2679
        %v2681 = vlaneseq
        %v2682 = vshrl.u32 %v2681, 7
        %v2683 = vsub.s32 %v2680, %v2682
        %v2684 = vrot.slane %v2669, %v2683
        %v2686 = vunpack.c.l.s4 1934713408
        %v2687 = vunpack.c.0.s8 %v2686
        %v2688 = vlaneseq
        %v2689 = vshrl.u32 %v2688, 7
        %v2690 = vsub.s32 %v2687, %v2689
        %v2691 = vrot.slane %v2677, %v2690
        %v2692 = vcombine.high %v2676, 0.0
        %v2694 = vunpack.c.l.s4 1934713408
        %v2695 = vunpack.c.0.s8 %v2694
        %v2696 = vlaneseq
        %v2697 = vshrl.u32 %v2696, 7
        %v2698 = vsub.s32 %v2695, %v2697
        %v2699 = vrot.slane %v2676, %v2698
        %v2701 = vunpack.c.l.s4 1934713408
        %v2702 = vunpack.c.0.s8 %v2701
        %v2703 = vlaneseq
        %v2704 = vshrl.u32 %v2703, 7
        %v2705 = vsub.s32 %v2702, %v2704
        %v2706 = vrot.slane %v2692, %v2705
        %v2707 = vcombine.high %v2684, 0.0
        %v2708 = vcombine.high %v2691, 0.0
        %v2709 = vcombine.high %v2699, 0.0
        %v2710 = vcombine.high %v2706, 0.0
        %v2711 = vcombine.high %v2499, 0.0
        %v2713 = vunpack.c.l.s4 1983009808
        %v2714 = vunpack.c.0.s8 %v2713
        %v2715 = vlaneseq
        %v2716 = vshrl.u32 %v2715, 7
        %v2717 = vsub.s32 %v2714, %v2716
        %v2718 = vrot.slane %v2499, %v2717
        %v2720 = vunpack.c.l.s4 1983009808
        %v2721 = vunpack.c.0.s8 %v2720
        %v2722 = vlaneseq
        %v2723 = vshrl.u32 %v2722, 7
        %v2724 = vsub.s32 %v2721, %v2723
        %v2725 = vrot.slane %v2711, %v2724
        %v2726 = vcombine.high %v2718, 0.0
        %v2728 = vunpack.c.l.s4 1934713408
        %v2729 = vunpack.c.0.s8 %v2728
        %v2730 = vlaneseq
        %v2731 = vshrl.u32 %v2730, 7
        %v2732 = vsub.s32 %v2729, %v2731
        %v2733 = vrot.slane %v2718, %v2732
        %v2735 = vunpack.c.l.s4 1934713408
        %v2736 = vunpack.c.0.s8 %v2735
        %v2737 = vlaneseq
        %v2738 = vshrl.u32 %v2737, 7
        %v2739 = vsub.s32 %v2736, %v2738
        %v2740 = vrot.slane %v2726, %v2739
        %v2741 = vcombine.high %v2725, 0.0
        %v2743 = vunpack.c.l.s4 1934713408
        %v2744 = vunpack.c.0.s8 %v2743
        %v2745 = vlaneseq
        %v2746 = vshrl.u32 %v2745, 7
        %v2747 = vsub.s32 %v2744, %v2746
        %v2748 = vrot.slane %v2725, %v2747
        %v2750 = vunpack.c.l.s4 1934713408
        %v2751 = vunpack.c.0.s8 %v2750
        %v2752 = vlaneseq
        %v2753 = vshrl.u32 %v2752, 7
        %v2754 = vsub.s32 %v2751, %v2753
        %v2755 = vrot.slane %v2741, %v2754
        %v2756 = vcombine.high %v2733, 0.0
        %v2757 = vcombine.high %v2740, 0.0
        %v2758 = vcombine.high %v2748, 0.0
        %v2759 = vcombine.high %v2755, 0.0
        %v2760 = vcombine.high %v2503, 0.0
        %v2762 = vunpack.c.l.s4 1983009808
        %v2763 = vunpack.c.0.s8 %v2762
        %v2764 = vlaneseq
        %v2765 = vshrl.u32 %v2764, 7
        %v2766 = vsub.s32 %v2763, %v2765
        %v2767 = vrot.slane %v2503, %v2766
        %v2769 = vunpack.c.l.s4 1983009808
        %v2770 = vunpack.c.0.s8 %v2769
        %v2771 = vlaneseq
        %v2772 = vshrl.u32 %v2771, 7
        %v2773 = vsub.s32 %v2770, %v2772
        %v2774 = vrot.slane %v2760, %v2773
        %v2775 = vcombine.high %v2767, 0.0
        %v2777 = vunpack.c.l.s4 1934713408
        %v2778 = vunpack.c.0.s8 %v2777
        %v2779 = vlaneseq
        %v2780 = vshrl.u32 %v2779, 7
        %v2781 = vsub.s32 %v2778, %v2780
        %v2782 = vrot.slane %v2767, %v2781
        %v2784 = vunpack.c.l.s4 1934713408
        %v2785 = vunpack.c.0.s8 %v2784
        %v2786 = vlaneseq
        %v2787 = vshrl.u32 %v2786, 7
        %v2788 = vsub.s32 %v2785, %v2787
        %v2789 = vrot.slane %v2775, %v2788
        %v2790 = vcombine.high %v2774, 0.0
        %v2792 = vunpack.c.l.s4 1934713408
        %v2793 = vunpack.c.0.s8 %v2792
        %v2794 = vlaneseq
        %v2795 = vshrl.u32 %v2794, 7
        %v2796 = vsub.s32 %v2793, %v2795
        %v2797 = vrot.slane %v2774, %v2796
        %v2799 = vunpack.c.l.s4 1934713408
        %v2800 = vunpack.c.0.s8 %v2799
        %v2801 = vlaneseq
        %v2802 = vshrl.u32 %v2801, 7
        %v2803 = vsub.s32 %v2800, %v2802
        %v2804 = vrot.slane %v2790, %v2803
        %v2805 = vcombine.high %v2782, 0.0
        %v2806 = vcombine.high %v2789, 0.0
        %v2807 = vcombine.high %v2797, 0.0
        %v2808 = vcombine.high %v2804, 0.0
        %v2809 = vcombine.high %v2510, 0.0
        %v2811 = vunpack.c.l.s4 1983009808
        %v2812 = vunpack.c.0.s8 %v2811
        %v2813 = vlaneseq
        %v2814 = vshrl.u32 %v2813, 7
        %v2815 = vsub.s32 %v2812, %v2814
        %v2816 = vrot.slane %v2510, %v2815
        %v2818 = vunpack.c.l.s4 1983009808
        %v2819 = vunpack.c.0.s8 %v2818
        %v2820 = vlaneseq
        %v2821 = vshrl.u32 %v2820, 7
        %v2822 = vsub.s32 %v2819, %v2821
        %v2823 = vrot.slane %v2809, %v2822
        %v2824 = vcombine.high %v2816, 0.0
        %v2826 = vunpack.c.l.s4 1934713408
        %v2827 = vunpack.c.0.s8 %v2826
        %v2828 = vlaneseq
        %v2829 = vshrl.u32 %v2828, 7
        %v2830 = vsub.s32 %v2827, %v2829
        %v2831 = vrot.slane %v2816, %v2830
        %v2833 = vunpack.c.l.s4 1934713408
        %v2834 = vunpack.c.0.s8 %v2833
        %v2835 = vlaneseq
        %v2836 = vshrl.u32 %v2835, 7
        %v2837 = vsub.s32 %v2834, %v2836
        %v2838 = vrot.slane %v2824, %v2837
        %v2839 = vcombine.high %v2823, 0.0
        %v2841 = vunpack.c.l.s4 1934713408
        %v2842 = vunpack.c.0.s8 %v2841
        %v2843 = vlaneseq
        %v2844 = vshrl.u32 %v2843, 7
        %v2845 = vsub.s32 %v2842, %v2844
        %v2846 = vrot.slane %v2823, %v2845
        %v2848 = vunpack.c.l.s4 1934713408
        %v2849 = vunpack.c.0.s8 %v2848
        %v2850 = vlaneseq
        %v2851 = vshrl.u32 %v2850, 7
        %v2852 = vsub.s32 %v2849, %v2851
        %v2853 = vrot.slane %v2839, %v2852
        %v2854 = vcombine.high %v2831, 0.0
        %v2855 = vcombine.high %v2838, 0.0
        %v2856 = vcombine.high %v2846, 0.0
        %v2857 = vcombine.high %v2853, 0.0
        %v2858 = vcombine.high %v2514, 0.0
        %v2860 = vunpack.c.l.s4 1983009808
        %v2861 = vunpack.c.0.s8 %v2860
        %v2862 = vlaneseq
        %v2863 = vshrl.u32 %v2862, 7
        %v2864 = vsub.s32 %v2861, %v2863
        %v2865 = vrot.slane %v2514, %v2864
        %v2867 = vunpack.c.l.s4 1983009808
        %v2868 = vunpack.c.0.s8 %v2867
        %v2869 = vlaneseq
        %v2870 = vshrl.u32 %v2869, 7
        %v2871 = vsub.s32 %v2868, %v2870
        %v2872 = vrot.slane %v2858, %v2871
        %v2873 = vcombine.high %v2865, 0.0
        %v2875 = vunpack.c.l.s4 1934713408
        %v2876 = vunpack.c.0.s8 %v2875
        %v2877 = vlaneseq
        %v2878 = vshrl.u32 %v2877, 7
        %v2879 = vsub.s32 %v2876, %v2878
        %v2880 = vrot.slane %v2865, %v2879
        %v2882 = vunpack.c.l.s4 1934713408
        %v2883 = vunpack.c.0.s8 %v2882
        %v2884 = vlaneseq
        %v2885 = vshrl.u32 %v2884, 7
        %v2886 = vsub.s32 %v2883, %v2885
        %v2887 = vrot.slane %v2873, %v2886
        %v2888 = vcombine.high %v2872, 0.0
        %v2890 = vunpack.c.l.s4 1934713408
        %v2891 = vunpack.c.0.s8 %v2890
        %v2892 = vlaneseq
        %v2893 = vshrl.u32 %v2892, 7
        %v2894 = vsub.s32 %v2891, %v2893
        %v2895 = vrot.slane %v2872, %v2894
        %v2897 = vunpack.c.l.s4 1934713408
        %v2898 = vunpack.c.0.s8 %v2897
        %v2899 = vlaneseq
        %v2900 = vshrl.u32 %v2899, 7
        %v2901 = vsub.s32 %v2898, %v2900
        %v2902 = vrot.slane %v2888, %v2901
        %v2903 = vcombine.high %v2880, 0.0
        %v2904 = vcombine.high %v2887, 0.0
        %v2905 = vcombine.high %v2895, 0.0
        %v2906 = vcombine.high %v2902, 0.0
        %2911 = vrot.lane.b32.xlu0 %v2560, 2
        %v2912 = vpop.permute.xlu0 %2911
        %2913 = vrot.lane.b32.xlu0 %v2658, 2
        %v2914 = vpop.permute.xlu0 %2913
        %2915 = vrot.lane.b32.xlu0 %v2756, 2
        %v2916 = vpop.permute.xlu0 %2915
        %2917 = vrot.lane.b32.xlu0 %v2854, 2
        %v2918 = vpop.permute.xlu0 %2917
        %2927 = vrot.lane.b32.xlu0 %v2544, 4
        %v2928 = vpop.permute.xlu0 %2927
        %2929 = vrot.lane.b32.xlu0 %v2642, 4
        %v2930 = vpop.permute.xlu0 %2929
        %2931 = vrot.lane.b32.xlu0 %v2740, 4
        %v2932 = vpop.permute.xlu0 %2931
        %2933 = vrot.lane.b32.xlu0 %v2838, 4
        %v2934 = vpop.permute.xlu0 %2933
        %2943 = vrot.lane.b32.xlu0 %v2561, 6
        %v2944 = vpop.permute.xlu0 %2943
        %2945 = vrot.lane.b32.xlu0 %v2659, 6
        %v2946 = vpop.permute.xlu0 %2945
        %2947 = vrot.lane.b32.xlu0 %v2757, 6
        %v2948 = vpop.permute.xlu0 %2947
        %2949 = vrot.lane.b32.xlu0 %v2855, 6
        %v2950 = vpop.permute.xlu0 %2949
        %2959 = vrot.lane.b32.xlu0 %v2552, 8
        %v2960 = vpop.permute.xlu0 %2959
        %2961 = vrot.lane.b32.xlu0 %v2650, 8
        %v2962 = vpop.permute.xlu0 %2961
        %2963 = vrot.lane.b32.xlu0 %v2748, 8
        %v2964 = vpop.permute.xlu0 %2963
        %2965 = vrot.lane.b32.xlu0 %v2846, 8
        %v2966 = vpop.permute.xlu0 %2965
        %2975 = vrot.lane.b32.xlu0 %v2562, 10
        %v2976 = vpop.permute.xlu0 %2975
        %2977 = vrot.lane.b32.xlu0 %v2660, 10
        %v2978 = vpop.permute.xlu0 %2977
        %2979 = vrot.lane.b32.xlu0 %v2758, 10
        %v2980 = vpop.permute.xlu0 %2979
        %2981 = vrot.lane.b32.xlu0 %v2856, 10
        %v2982 = vpop.permute.xlu0 %2981
        %2991 = vrot.lane.b32.xlu0 %v2559, 12
        %v2992 = vpop.permute.xlu0 %2991
        %2993 = vrot.lane.b32.xlu0 %v2657, 12
        %v2994 = vpop.permute.xlu0 %2993
        %2995 = vrot.lane.b32.xlu0 %v2755, 12
        %v2996 = vpop.permute.xlu0 %2995
        %2997 = vrot.lane.b32.xlu0 %v2853, 12
        %v2998 = vpop.permute.xlu0 %2997
        %3007 = vrot.lane.b32.xlu0 %v2563, 14
        %v3008 = vpop.permute.xlu0 %3007
        %3009 = vrot.lane.b32.xlu0 %v2661, 14
        %v3010 = vpop.permute.xlu0 %3009
        %3011 = vrot.lane.b32.xlu0 %v2759, 14
        %v3012 = vpop.permute.xlu0 %3011
        %3013 = vrot.lane.b32.xlu0 %v2857, 14
        %v3014 = vpop.permute.xlu0 %3013
        %3023 = vrot.lane.b32.xlu0 %v2586, 16
        %v3024 = vpop.permute.xlu0 %3023
        %3025 = vrot.lane.b32.xlu0 %v2684, 16
        %v3026 = vpop.permute.xlu0 %3025
        %3027 = vrot.lane.b32.xlu0 %v2782, 16
        %v3028 = vpop.permute.xlu0 %3027
        %3029 = vrot.lane.b32.xlu0 %v2880, 16
        %v3030 = vpop.permute.xlu0 %3029
        %3039 = vrot.lane.b32.xlu0 %v2609, 18
        %v3040 = vpop.permute.xlu0 %3039
        %3041 = vrot.lane.b32.xlu0 %v2707, 18
        %v3042 = vpop.permute.xlu0 %3041
        %3043 = vrot.lane.b32.xlu0 %v2805, 18
        %v3044 = vpop.permute.xlu0 %3043
        %3045 = vrot.lane.b32.xlu0 %v2903, 18
        %v3046 = vpop.permute.xlu0 %3045
        %3055 = vrot.lane.b32.xlu0 %v2593, 20
        %v3056 = vpop.permute.xlu0 %3055
        %3057 = vrot.lane.b32.xlu0 %v2691, 20
        %v3058 = vpop.permute.xlu0 %3057
        %3059 = vrot.lane.b32.xlu0 %v2789, 20
        %v3060 = vpop.permute.xlu0 %3059
        %3061 = vrot.lane.b32.xlu0 %v2887, 20
        %v3062 = vpop.permute.xlu0 %3061
        %3071 = vrot.lane.b32.xlu0 %v2610, 22
        %v3072 = vpop.permute.xlu0 %3071
        %3073 = vrot.lane.b32.xlu0 %v2708, 22
        %v3074 = vpop.permute.xlu0 %3073
        %3075 = vrot.lane.b32.xlu0 %v2806, 22
        %v3076 = vpop.permute.xlu0 %3075
        %3077 = vrot.lane.b32.xlu0 %v2904, 22
        %v3078 = vpop.permute.xlu0 %3077
        %3087 = vrot.lane.b32.xlu0 %v2601, 24
        %v3088 = vpop.permute.xlu0 %3087
        %3089 = vrot.lane.b32.xlu0 %v2699, 24
        %v3090 = vpop.permute.xlu0 %3089
        %3091 = vrot.lane.b32.xlu0 %v2797, 24
        %v3092 = vpop.permute.xlu0 %3091
        %3093 = vrot.lane.b32.xlu0 %v2895, 24
        %v3094 = vpop.permute.xlu0 %3093
        %3103 = vrot.lane.b32.xlu0 %v2611, 26
        %v3104 = vpop.permute.xlu0 %3103
        %3105 = vrot.lane.b32.xlu0 %v2709, 26
        %v3106 = vpop.permute.xlu0 %3105
        %3107 = vrot.lane.b32.xlu0 %v2807, 26
        %v3108 = vpop.permute.xlu0 %3107
        %3109 = vrot.lane.b32.xlu0 %v2905, 26
        %v3110 = vpop.permute.xlu0 %3109
        %3119 = vrot.lane.b32.xlu0 %v2608, 28
        %v3120 = vpop.permute.xlu0 %3119
        %3121 = vrot.lane.b32.xlu0 %v2706, 28
        %v3122 = vpop.permute.xlu0 %3121
        %3123 = vrot.lane.b32.xlu0 %v2804, 28
        %v3124 = vpop.permute.xlu0 %3123
        %3125 = vrot.lane.b32.xlu0 %v2902, 28
        %v3126 = vpop.permute.xlu0 %3125
        %3135 = vrot.lane.b32.xlu0 %v2612, 30
        %v3136 = vpop.permute.xlu0 %3135
        %3137 = vrot.lane.b32.xlu0 %v2710, 30
        %v3138 = vpop.permute.xlu0 %3137
        %3139 = vrot.lane.b32.xlu0 %v2808, 30
        %v3140 = vpop.permute.xlu0 %3139
        %3141 = vrot.lane.b32.xlu0 %v2906, 30
        %v3142 = vpop.permute.xlu0 %3141
        %v3147 = vsel %vm851, %v2537, %v2912
        %v3148 = vsel %vm851, %v2635, %v2914
        %v3149 = vsel %vm851, %v2733, %v2916
        %v3150 = vsel %vm851, %v2831, %v2918
        %v3151 = vsel %vm856, %v3147, %v2928
        %v3152 = vsel %vm856, %v3148, %v2930
        %v3153 = vsel %vm856, %v3149, %v2932
        %v3154 = vsel %vm856, %v3150, %v2934
        %v3155 = vsel %vm861, %v3151, %v2944
        %v3156 = vsel %vm861, %v3152, %v2946
        %v3157 = vsel %vm861, %v3153, %v2948
        %v3158 = vsel %vm861, %v3154, %v2950
        %v3159 = vsel %vm866, %v3155, %v2960
        %v3160 = vsel %vm866, %v3156, %v2962
        %v3161 = vsel %vm866, %v3157, %v2964
        %v3162 = vsel %vm866, %v3158, %v2966
        %v3163 = vsel %vm871, %v3159, %v2976
        %v3164 = vsel %vm871, %v3160, %v2978
        %v3165 = vsel %vm871, %v3161, %v2980
        %v3166 = vsel %vm871, %v3162, %v2982
        %v3167 = vsel %vm876, %v3163, %v2992
        %v3168 = vsel %vm876, %v3164, %v2994
        %v3169 = vsel %vm876, %v3165, %v2996
        %v3170 = vsel %vm876, %v3166, %v2998
        %v3171 = vsel %vm881, %v3167, %v3008
        %v3172 = vsel %vm881, %v3168, %v3010
        %v3173 = vsel %vm881, %v3169, %v3012
        %v3174 = vsel %vm881, %v3170, %v3014
        %v3175 = vsel %vm886, %v3171, %v3024
        %v3176 = vsel %vm886, %v3172, %v3026
        %v3177 = vsel %vm886, %v3173, %v3028
        %v3178 = vsel %vm886, %v3174, %v3030
        %v3179 = vsel %vm891, %v3175, %v3040
        %v3180 = vsel %vm891, %v3176, %v3042
        %v3181 = vsel %vm891, %v3177, %v3044
        %v3182 = vsel %vm891, %v3178, %v3046
        %v3183 = vsel %vm896, %v3179, %v3056
        %v3184 = vsel %vm896, %v3180, %v3058
        %v3185 = vsel %vm896, %v3181, %v3060
        %v3186 = vsel %vm896, %v3182, %v3062
        %v3187 = vsel %vm901, %v3183, %v3072
        %v3188 = vsel %vm901, %v3184, %v3074
        %v3189 = vsel %vm901, %v3185, %v3076
        %v3190 = vsel %vm901, %v3186, %v3078
        %v3191 = vsel %vm906, %v3187, %v3088
        %v3192 = vsel %vm906, %v3188, %v3090
        %v3193 = vsel %vm906, %v3189, %v3092
        %v3194 = vsel %vm906, %v3190, %v3094
        %v3195 = vsel %vm911, %v3191, %v3104
        %v3196 = vsel %vm911, %v3192, %v3106
        %v3197 = vsel %vm911, %v3193, %v3108
        %v3198 = vsel %vm911, %v3194, %v3110
        %v3199 = vsel %vm916, %v3195, %v3120
        %v3200 = vsel %vm916, %v3196, %v3122
        %v3201 = vsel %vm916, %v3197, %v3124
        %v3202 = vsel %vm916, %v3198, %v3126
        %v3203 = vsel %vm921, %v3199, %v3136
        %v3204 = vsel %vm921, %v3200, %v3138
        %v3205 = vsel %vm921, %v3201, %v3140
        %v3206 = vsel %vm921, %v3202, %v3142
        %v3207 = vlaneseq
        %v3208 = vshrl.u32 %v3207, 7
        %v3209 = vsub.s32 0, %v3208
        %v3210 = vrot.slane %v3203, %v3209
        %v3211 = vlaneseq
        %v3212 = vshrl.u32 %v3211, 7
        %v3213 = vsub.s32 0, %v3212
        %v3214 = vrot.slane %v3204, %v3213
        %v3215 = vlaneseq
        %v3216 = vshrl.u32 %v3215, 7
        %v3217 = vsub.s32 0, %v3216
        %v3218 = vrot.slane %v3205, %v3217
        %v3219 = vlaneseq
        %v3220 = vshrl.u32 %v3219, 7
        %v3221 = vsub.s32 0, %v3220
        %v3222 = vrot.slane %v3206, %v3221
        %3223 = vst.msk [vmem:[%s166 + $0x6] sm:$0x3] %vm942, %v3210
        %3224 = vst.msk [vmem:[%s166 + $0x26] sm:$0x3] %vm942, %v3214
        %3225 = vst.msk [vmem:[%s166 + $0x46] sm:$0x3] %vm942, %v3218
        %3226 = vst.msk [vmem:[%s166 + $0x66] sm:$0x3] %vm942, %v3222
        %v3227 = vld [vmem:[%s148 + $0x4] sm:$0x1]
        %v3228 = vld [vmem:[%s148 + $0x14] sm:$0x1]
        %v3229 = vld [vmem:[%s148 + $0x24] sm:$0x1]
        %v3230 = vld [vmem:[%s148 + $0x34] sm:$0x1]
        %v3231 = vlaneseq
        %v3232 = vshrl.u32 %v3231, 7
        %v3233 = vsub.s32 0, %v3232
        %v3234 = vrot.slane %v3227, %v3233
        %3236 = vbcast.lane.b32.xlu0 %v3234, 256
        %v3237 = vpop.permute.xlu0 %3236
        %s3239 = sor.u32 256, 8
        %3240 = vbcast.lane.b32.xlu0 %v3234, %s3239
        %v3241 = vpop.permute.xlu0 %3240
        %v3242 = vlaneseq
        %v3243 = vshrl.u32 %v3242, 7
        %v3244 = vsub.s32 0, %v3243
        %v3245 = vrot.slane %v3228, %v3244
        %3247 = vbcast.lane.b32.xlu0 %v3245, 256
        %v3248 = vpop.permute.xlu0 %3247
        %s3250 = sor.u32 256, 8
        %3251 = vbcast.lane.b32.xlu0 %v3245, %s3250
        %v3252 = vpop.permute.xlu0 %3251
        %v3253 = vlaneseq
        %v3254 = vshrl.u32 %v3253, 7
        %v3255 = vsub.s32 0, %v3254
        %v3256 = vrot.slane %v3229, %v3255
        %3258 = vbcast.lane.b32.xlu0 %v3256, 256
        %v3259 = vpop.permute.xlu0 %3258
        %s3261 = sor.u32 256, 8
        %3262 = vbcast.lane.b32.xlu0 %v3256, %s3261
        %v3263 = vpop.permute.xlu0 %3262
        %v3264 = vlaneseq
        %v3265 = vshrl.u32 %v3264, 7
        %v3266 = vsub.s32 0, %v3265
        %v3267 = vrot.slane %v3230, %v3266
        %3269 = vbcast.lane.b32.xlu0 %v3267, 256
        %v3270 = vpop.permute.xlu0 %3269
        %s3272 = sor.u32 256, 8
        %3273 = vbcast.lane.b32.xlu0 %v3267, %s3272
        %v3274 = vpop.permute.xlu0 %3273
        %v3275 = vcombine.high %v3237, 0.0
        %v3277 = vunpack.c.l.s4 1983009808
        %v3278 = vunpack.c.0.s8 %v3277
        %v3279 = vlaneseq
        %v3280 = vshrl.u32 %v3279, 7
        %v3281 = vsub.s32 %v3278, %v3280
        %v3282 = vrot.slane %v3237, %v3281
        %v3284 = vunpack.c.l.s4 1983009808
        %v3285 = vunpack.c.0.s8 %v3284
        %v3286 = vlaneseq
        %v3287 = vshrl.u32 %v3286, 7
        %v3288 = vsub.s32 %v3285, %v3287
        %v3289 = vrot.slane %v3275, %v3288
        %v3290 = vcombine.high %v3282, 0.0
        %v3292 = vunpack.c.l.s4 1934713408
        %v3293 = vunpack.c.0.s8 %v3292
        %v3294 = vlaneseq
        %v3295 = vshrl.u32 %v3294, 7
        %v3296 = vsub.s32 %v3293, %v3295
        %v3297 = vrot.slane %v3282, %v3296
        %v3299 = vunpack.c.l.s4 1934713408
        %v3300 = vunpack.c.0.s8 %v3299
        %v3301 = vlaneseq
        %v3302 = vshrl.u32 %v3301, 7
        %v3303 = vsub.s32 %v3300, %v3302
        %v3304 = vrot.slane %v3290, %v3303
        %v3305 = vcombine.high %v3289, 0.0
        %v3307 = vunpack.c.l.s4 1934713408
        %v3308 = vunpack.c.0.s8 %v3307
        %v3309 = vlaneseq
        %v3310 = vshrl.u32 %v3309, 7
        %v3311 = vsub.s32 %v3308, %v3310
        %v3312 = vrot.slane %v3289, %v3311
        %v3314 = vunpack.c.l.s4 1934713408
        %v3315 = vunpack.c.0.s8 %v3314
        %v3316 = vlaneseq
        %v3317 = vshrl.u32 %v3316, 7
        %v3318 = vsub.s32 %v3315, %v3317
        %v3319 = vrot.slane %v3305, %v3318
        %v3320 = vcombine.high %v3297, 0.0
        %v3321 = vcombine.high %v3304, 0.0
        %v3322 = vcombine.high %v3312, 0.0
        %v3323 = vcombine.high %v3319, 0.0
        %v3324 = vcombine.high %v3241, 0.0
        %v3326 = vunpack.c.l.s4 1983009808
        %v3327 = vunpack.c.0.s8 %v3326
        %v3328 = vlaneseq
        %v3329 = vshrl.u32 %v3328, 7
        %v3330 = vsub.s32 %v3327, %v3329
        %v3331 = vrot.slane %v3241, %v3330
        %v3333 = vunpack.c.l.s4 1983009808
        %v3334 = vunpack.c.0.s8 %v3333
        %v3335 = vlaneseq
        %v3336 = vshrl.u32 %v3335, 7
        %v3337 = vsub.s32 %v3334, %v3336
        %v3338 = vrot.slane %v3324, %v3337
        %v3339 = vcombine.high %v3331, 0.0
        %v3341 = vunpack.c.l.s4 1934713408
        %v3342 = vunpack.c.0.s8 %v3341
        %v3343 = vlaneseq
        %v3344 = vshrl.u32 %v3343, 7
        %v3345 = vsub.s32 %v3342, %v3344
        %v3346 = vrot.slane %v3331, %v3345
        %v3348 = vunpack.c.l.s4 1934713408
        %v3349 = vunpack.c.0.s8 %v3348
        %v3350 = vlaneseq
        %v3351 = vshrl.u32 %v3350, 7
        %v3352 = vsub.s32 %v3349, %v3351
        %v3353 = vrot.slane %v3339, %v3352
        %v3354 = vcombine.high %v3338, 0.0
        %v3356 = vunpack.c.l.s4 1934713408
        %v3357 = vunpack.c.0.s8 %v3356
        %v3358 = vlaneseq
        %v3359 = vshrl.u32 %v3358, 7
        %v3360 = vsub.s32 %v3357, %v3359
        %v3361 = vrot.slane %v3338, %v3360
        %v3363 = vunpack.c.l.s4 1934713408
        %v3364 = vunpack.c.0.s8 %v3363
        %v3365 = vlaneseq
        %v3366 = vshrl.u32 %v3365, 7
        %v3367 = vsub.s32 %v3364, %v3366
        %v3368 = vrot.slane %v3354, %v3367
        %v3369 = vcombine.high %v3346, 0.0
        %v3370 = vcombine.high %v3353, 0.0
        %v3371 = vcombine.high %v3361, 0.0
        %v3372 = vcombine.high %v3368, 0.0
        %v3373 = vcombine.high %v3248, 0.0
        %v3375 = vunpack.c.l.s4 1983009808
        %v3376 = vunpack.c.0.s8 %v3375
        %v3377 = vlaneseq
        %v3378 = vshrl.u32 %v3377, 7
        %v3379 = vsub.s32 %v3376, %v3378
        %v3380 = vrot.slane %v3248, %v3379
        %v3382 = vunpack.c.l.s4 1983009808
        %v3383 = vunpack.c.0.s8 %v3382
        %v3384 = vlaneseq
        %v3385 = vshrl.u32 %v3384, 7
        %v3386 = vsub.s32 %v3383, %v3385
        %v3387 = vrot.slane %v3373, %v3386
        %v3388 = vcombine.high %v3380, 0.0
        %v3390 = vunpack.c.l.s4 1934713408
        %v3391 = vunpack.c.0.s8 %v3390
        %v3392 = vlaneseq
        %v3393 = vshrl.u32 %v3392, 7
        %v3394 = vsub.s32 %v3391, %v3393
        %v3395 = vrot.slane %v3380, %v3394
        %v3397 = vunpack.c.l.s4 1934713408
        %v3398 = vunpack.c.0.s8 %v3397
        %v3399 = vlaneseq
        %v3400 = vshrl.u32 %v3399, 7
        %v3401 = vsub.s32 %v3398, %v3400
        %v3402 = vrot.slane %v3388, %v3401
        %v3403 = vcombine.high %v3387, 0.0
        %v3405 = vunpack.c.l.s4 1934713408
        %v3406 = vunpack.c.0.s8 %v3405
        %v3407 = vlaneseq
        %v3408 = vshrl.u32 %v3407, 7
        %v3409 = vsub.s32 %v3406, %v3408
        %v3410 = vrot.slane %v3387, %v3409
        %v3412 = vunpack.c.l.s4 1934713408
        %v3413 = vunpack.c.0.s8 %v3412
        %v3414 = vlaneseq
        %v3415 = vshrl.u32 %v3414, 7
        %v3416 = vsub.s32 %v3413, %v3415
        %v3417 = vrot.slane %v3403, %v3416
        %v3418 = vcombine.high %v3395, 0.0
        %v3419 = vcombine.high %v3402, 0.0
        %v3420 = vcombine.high %v3410, 0.0
        %v3421 = vcombine.high %v3417, 0.0
        %v3422 = vcombine.high %v3252, 0.0
        %v3424 = vunpack.c.l.s4 1983009808
        %v3425 = vunpack.c.0.s8 %v3424
        %v3426 = vlaneseq
        %v3427 = vshrl.u32 %v3426, 7
        %v3428 = vsub.s32 %v3425, %v3427
        %v3429 = vrot.slane %v3252, %v3428
        %v3431 = vunpack.c.l.s4 1983009808
        %v3432 = vunpack.c.0.s8 %v3431
        %v3433 = vlaneseq
        %v3434 = vshrl.u32 %v3433, 7
        %v3435 = vsub.s32 %v3432, %v3434
        %v3436 = vrot.slane %v3422, %v3435
        %v3437 = vcombine.high %v3429, 0.0
        %v3439 = vunpack.c.l.s4 1934713408
        %v3440 = vunpack.c.0.s8 %v3439
        %v3441 = vlaneseq
        %v3442 = vshrl.u32 %v3441, 7
        %v3443 = vsub.s32 %v3440, %v3442
        %v3444 = vrot.slane %v3429, %v3443
        %v3446 = vunpack.c.l.s4 1934713408
        %v3447 = vunpack.c.0.s8 %v3446
        %v3448 = vlaneseq
        %v3449 = vshrl.u32 %v3448, 7
        %v3450 = vsub.s32 %v3447, %v3449
        %v3451 = vrot.slane %v3437, %v3450
        %v3452 = vcombine.high %v3436, 0.0
        %v3454 = vunpack.c.l.s4 1934713408
        %v3455 = vunpack.c.0.s8 %v3454
        %v3456 = vlaneseq
        %v3457 = vshrl.u32 %v3456, 7
        %v3458 = vsub.s32 %v3455, %v3457
        %v3459 = vrot.slane %v3436, %v3458
        %v3461 = vunpack.c.l.s4 1934713408
        %v3462 = vunpack.c.0.s8 %v3461
        %v3463 = vlaneseq
        %v3464 = vshrl.u32 %v3463, 7
        %v3465 = vsub.s32 %v3462, %v3464
        %v3466 = vrot.slane %v3452, %v3465
        %v3467 = vcombine.high %v3444, 0.0
        %v3468 = vcombine.high %v3451, 0.0
        %v3469 = vcombine.high %v3459, 0.0
        %v3470 = vcombine.high %v3466, 0.0
        %v3471 = vcombine.high %v3259, 0.0
        %v3473 = vunpack.c.l.s4 1983009808
        %v3474 = vunpack.c.0.s8 %v3473
        %v3475 = vlaneseq
        %v3476 = vshrl.u32 %v3475, 7
        %v3477 = vsub.s32 %v3474, %v3476
        %v3478 = vrot.slane %v3259, %v3477
        %v3480 = vunpack.c.l.s4 1983009808
        %v3481 = vunpack.c.0.s8 %v3480
        %v3482 = vlaneseq
        %v3483 = vshrl.u32 %v3482, 7
        %v3484 = vsub.s32 %v3481, %v3483
        %v3485 = vrot.slane %v3471, %v3484
        %v3486 = vcombine.high %v3478, 0.0
        %v3488 = vunpack.c.l.s4 1934713408
        %v3489 = vunpack.c.0.s8 %v3488
        %v3490 = vlaneseq
        %v3491 = vshrl.u32 %v3490, 7
        %v3492 = vsub.s32 %v3489, %v3491
        %v3493 = vrot.slane %v3478, %v3492
        %v3495 = vunpack.c.l.s4 1934713408
        %v3496 = vunpack.c.0.s8 %v3495
        %v3497 = vlaneseq
        %v3498 = vshrl.u32 %v3497, 7
        %v3499 = vsub.s32 %v3496, %v3498
        %v3500 = vrot.slane %v3486, %v3499
        %v3501 = vcombine.high %v3485, 0.0
        %v3503 = vunpack.c.l.s4 1934713408
        %v3504 = vunpack.c.0.s8 %v3503
        %v3505 = vlaneseq
        %v3506 = vshrl.u32 %v3505, 7
        %v3507 = vsub.s32 %v3504, %v3506
        %v3508 = vrot.slane %v3485, %v3507
        %v3510 = vunpack.c.l.s4 1934713408
        %v3511 = vunpack.c.0.s8 %v3510
        %v3512 = vlaneseq
        %v3513 = vshrl.u32 %v3512, 7
        %v3514 = vsub.s32 %v3511, %v3513
        %v3515 = vrot.slane %v3501, %v3514
        %v3516 = vcombine.high %v3493, 0.0
        %v3517 = vcombine.high %v3500, 0.0
        %v3518 = vcombine.high %v3508, 0.0
        %v3519 = vcombine.high %v3515, 0.0
        %v3520 = vcombine.high %v3263, 0.0
        %v3522 = vunpack.c.l.s4 1983009808
        %v3523 = vunpack.c.0.s8 %v3522
        %v3524 = vlaneseq
        %v3525 = vshrl.u32 %v3524, 7
        %v3526 = vsub.s32 %v3523, %v3525
        %v3527 = vrot.slane %v3263, %v3526
        %v3529 = vunpack.c.l.s4 1983009808
        %v3530 = vunpack.c.0.s8 %v3529
        %v3531 = vlaneseq
        %v3532 = vshrl.u32 %v3531, 7
        %v3533 = vsub.s32 %v3530, %v3532
        %v3534 = vrot.slane %v3520, %v3533
        %v3535 = vcombine.high %v3527, 0.0
        %v3537 = vunpack.c.l.s4 1934713408
        %v3538 = vunpack.c.0.s8 %v3537
        %v3539 = vlaneseq
        %v3540 = vshrl.u32 %v3539, 7
        %v3541 = vsub.s32 %v3538, %v3540
        %v3542 = vrot.slane %v3527, %v3541
        %v3544 = vunpack.c.l.s4 1934713408
        %v3545 = vunpack.c.0.s8 %v3544
        %v3546 = vlaneseq
        %v3547 = vshrl.u32 %v3546, 7
        %v3548 = vsub.s32 %v3545, %v3547
        %v3549 = vrot.slane %v3535, %v3548
        %v3550 = vcombine.high %v3534, 0.0
        %v3552 = vunpack.c.l.s4 1934713408
        %v3553 = vunpack.c.0.s8 %v3552
        %v3554 = vlaneseq
        %v3555 = vshrl.u32 %v3554, 7
        %v3556 = vsub.s32 %v3553, %v3555
        %v3557 = vrot.slane %v3534, %v3556
        %v3559 = vunpack.c.l.s4 1934713408
        %v3560 = vunpack.c.0.s8 %v3559
        %v3561 = vlaneseq
        %v3562 = vshrl.u32 %v3561, 7
        %v3563 = vsub.s32 %v3560, %v3562
        %v3564 = vrot.slane %v3550, %v3563
        %v3565 = vcombine.high %v3542, 0.0
        %v3566 = vcombine.high %v3549, 0.0
        %v3567 = vcombine.high %v3557, 0.0
        %v3568 = vcombine.high %v3564, 0.0
        %v3569 = vcombine.high %v3270, 0.0
        %v3571 = vunpack.c.l.s4 1983009808
        %v3572 = vunpack.c.0.s8 %v3571
        %v3573 = vlaneseq
        %v3574 = vshrl.u32 %v3573, 7
        %v3575 = vsub.s32 %v3572, %v3574
        %v3576 = vrot.slane %v3270, %v3575
        %v3578 = vunpack.c.l.s4 1983009808
        %v3579 = vunpack.c.0.s8 %v3578
        %v3580 = vlaneseq
        %v3581 = vshrl.u32 %v3580, 7
        %v3582 = vsub.s32 %v3579, %v3581
        %v3583 = vrot.slane %v3569, %v3582
        %v3584 = vcombine.high %v3576, 0.0
        %v3586 = vunpack.c.l.s4 1934713408
        %v3587 = vunpack.c.0.s8 %v3586
        %v3588 = vlaneseq
        %v3589 = vshrl.u32 %v3588, 7
        %v3590 = vsub.s32 %v3587, %v3589
        %v3591 = vrot.slane %v3576, %v3590
        %v3593 = vunpack.c.l.s4 1934713408
        %v3594 = vunpack.c.0.s8 %v3593
        %v3595 = vlaneseq
        %v3596 = vshrl.u32 %v3595, 7
        %v3597 = vsub.s32 %v3594, %v3596
        %v3598 = vrot.slane %v3584, %v3597
        %v3599 = vcombine.high %v3583, 0.0
        %v3601 = vunpack.c.l.s4 1934713408
        %v3602 = vunpack.c.0.s8 %v3601
        %v3603 = vlaneseq
        %v3604 = vshrl.u32 %v3603, 7
        %v3605 = vsub.s32 %v3602, %v3604
        %v3606 = vrot.slane %v3583, %v3605
        %v3608 = vunpack.c.l.s4 1934713408
        %v3609 = vunpack.c.0.s8 %v3608
        %v3610 = vlaneseq
        %v3611 = vshrl.u32 %v3610, 7
        %v3612 = vsub.s32 %v3609, %v3611
        %v3613 = vrot.slane %v3599, %v3612
        %v3614 = vcombine.high %v3591, 0.0
        %v3615 = vcombine.high %v3598, 0.0
        %v3616 = vcombine.high %v3606, 0.0
        %v3617 = vcombine.high %v3613, 0.0
        %v3618 = vcombine.high %v3274, 0.0
        %v3620 = vunpack.c.l.s4 1983009808
        %v3621 = vunpack.c.0.s8 %v3620
        %v3622 = vlaneseq
        %v3623 = vshrl.u32 %v3622, 7
        %v3624 = vsub.s32 %v3621, %v3623
        %v3625 = vrot.slane %v3274, %v3624
        %v3627 = vunpack.c.l.s4 1983009808
        %v3628 = vunpack.c.0.s8 %v3627
        %v3629 = vlaneseq
        %v3630 = vshrl.u32 %v3629, 7
        %v3631 = vsub.s32 %v3628, %v3630
        %v3632 = vrot.slane %v3618, %v3631
        %v3633 = vcombine.high %v3625, 0.0
        %v3635 = vunpack.c.l.s4 1934713408
        %v3636 = vunpack.c.0.s8 %v3635
        %v3637 = vlaneseq
        %v3638 = vshrl.u32 %v3637, 7
        %v3639 = vsub.s32 %v3636, %v3638
        %v3640 = vrot.slane %v3625, %v3639
        %v3642 = vunpack.c.l.s4 1934713408
        %v3643 = vunpack.c.0.s8 %v3642
        %v3644 = vlaneseq
        %v3645 = vshrl.u32 %v3644, 7
        %v3646 = vsub.s32 %v3643, %v3645
        %v3647 = vrot.slane %v3633, %v3646
        %v3648 = vcombine.high %v3632, 0.0
        %v3650 = vunpack.c.l.s4 1934713408
        %v3651 = vunpack.c.0.s8 %v3650
        %v3652 = vlaneseq
        %v3653 = vshrl.u32 %v3652, 7
        %v3654 = vsub.s32 %v3651, %v3653
        %v3655 = vrot.slane %v3632, %v3654
        %v3657 = vunpack.c.l.s4 1934713408
        %v3658 = vunpack.c.0.s8 %v3657
        %v3659 = vlaneseq
        %v3660 = vshrl.u32 %v3659, 7
        %v3661 = vsub.s32 %v3658, %v3660
        %v3662 = vrot.slane %v3648, %v3661
        %v3663 = vcombine.high %v3640, 0.0
        %v3664 = vcombine.high %v3647, 0.0
        %v3665 = vcombine.high %v3655, 0.0
        %v3666 = vcombine.high %v3662, 0.0
        %3671 = vrot.lane.b32.xlu0 %v3320, 2
        %v3672 = vpop.permute.xlu0 %3671
        %3673 = vrot.lane.b32.xlu0 %v3418, 2
        %v3674 = vpop.permute.xlu0 %3673
        %3675 = vrot.lane.b32.xlu0 %v3516, 2
        %v3676 = vpop.permute.xlu0 %3675
        %3677 = vrot.lane.b32.xlu0 %v3614, 2
        %v3678 = vpop.permute.xlu0 %3677
        %3687 = vrot.lane.b32.xlu0 %v3304, 4
        %v3688 = vpop.permute.xlu0 %3687
        %3689 = vrot.lane.b32.xlu0 %v3402, 4
        %v3690 = vpop.permute.xlu0 %3689
        %3691 = vrot.lane.b32.xlu0 %v3500, 4
        %v3692 = vpop.permute.xlu0 %3691
        %3693 = vrot.lane.b32.xlu0 %v3598, 4
        %v3694 = vpop.permute.xlu0 %3693
        %3703 = vrot.lane.b32.xlu0 %v3321, 6
        %v3704 = vpop.permute.xlu0 %3703
        %3705 = vrot.lane.b32.xlu0 %v3419, 6
        %v3706 = vpop.permute.xlu0 %3705
        %3707 = vrot.lane.b32.xlu0 %v3517, 6
        %v3708 = vpop.permute.xlu0 %3707
        %3709 = vrot.lane.b32.xlu0 %v3615, 6
        %v3710 = vpop.permute.xlu0 %3709
        %3719 = vrot.lane.b32.xlu0 %v3312, 8
        %v3720 = vpop.permute.xlu0 %3719
        %3721 = vrot.lane.b32.xlu0 %v3410, 8
        %v3722 = vpop.permute.xlu0 %3721
        %3723 = vrot.lane.b32.xlu0 %v3508, 8
        %v3724 = vpop.permute.xlu0 %3723
        %3725 = vrot.lane.b32.xlu0 %v3606, 8
        %v3726 = vpop.permute.xlu0 %3725
        %3735 = vrot.lane.b32.xlu0 %v3322, 10
        %v3736 = vpop.permute.xlu0 %3735
        %3737 = vrot.lane.b32.xlu0 %v3420, 10
        %v3738 = vpop.permute.xlu0 %3737
        %3739 = vrot.lane.b32.xlu0 %v3518, 10
        %v3740 = vpop.permute.xlu0 %3739
        %3741 = vrot.lane.b32.xlu0 %v3616, 10
        %v3742 = vpop.permute.xlu0 %3741
        %3751 = vrot.lane.b32.xlu0 %v3319, 12
        %v3752 = vpop.permute.xlu0 %3751
        %3753 = vrot.lane.b32.xlu0 %v3417, 12
        %v3754 = vpop.permute.xlu0 %3753
        %3755 = vrot.lane.b32.xlu0 %v3515, 12
        %v3756 = vpop.permute.xlu0 %3755
        %3757 = vrot.lane.b32.xlu0 %v3613, 12
        %v3758 = vpop.permute.xlu0 %3757
        %3767 = vrot.lane.b32.xlu0 %v3323, 14
        %v3768 = vpop.permute.xlu0 %3767
        %3769 = vrot.lane.b32.xlu0 %v3421, 14
        %v3770 = vpop.permute.xlu0 %3769
        %3771 = vrot.lane.b32.xlu0 %v3519, 14
        %v3772 = vpop.permute.xlu0 %3771
        %3773 = vrot.lane.b32.xlu0 %v3617, 14
        %v3774 = vpop.permute.xlu0 %3773
        %3783 = vrot.lane.b32.xlu0 %v3346, 16
        %v3784 = vpop.permute.xlu0 %3783
        %3785 = vrot.lane.b32.xlu0 %v3444, 16
        %v3786 = vpop.permute.xlu0 %3785
        %3787 = vrot.lane.b32.xlu0 %v3542, 16
        %v3788 = vpop.permute.xlu0 %3787
        %3789 = vrot.lane.b32.xlu0 %v3640, 16
        %v3790 = vpop.permute.xlu0 %3789
        %3799 = vrot.lane.b32.xlu0 %v3369, 18
        %v3800 = vpop.permute.xlu0 %3799
        %3801 = vrot.lane.b32.xlu0 %v3467, 18
        %v3802 = vpop.permute.xlu0 %3801
        %3803 = vrot.lane.b32.xlu0 %v3565, 18
        %v3804 = vpop.permute.xlu0 %3803
        %3805 = vrot.lane.b32.xlu0 %v3663, 18
        %v3806 = vpop.permute.xlu0 %3805
        %3815 = vrot.lane.b32.xlu0 %v3353, 20
        %v3816 = vpop.permute.xlu0 %3815
        %3817 = vrot.lane.b32.xlu0 %v3451, 20
        %v3818 = vpop.permute.xlu0 %3817
        %3819 = vrot.lane.b32.xlu0 %v3549, 20
        %v3820 = vpop.permute.xlu0 %3819
        %3821 = vrot.lane.b32.xlu0 %v3647, 20
        %v3822 = vpop.permute.xlu0 %3821
        %3831 = vrot.lane.b32.xlu0 %v3370, 22
        %v3832 = vpop.permute.xlu0 %3831
        %3833 = vrot.lane.b32.xlu0 %v3468, 22
        %v3834 = vpop.permute.xlu0 %3833
        %3835 = vrot.lane.b32.xlu0 %v3566, 22
        %v3836 = vpop.permute.xlu0 %3835
        %3837 = vrot.lane.b32.xlu0 %v3664, 22
        %v3838 = vpop.permute.xlu0 %3837
        %3847 = vrot.lane.b32.xlu0 %v3361, 24
        %v3848 = vpop.permute.xlu0 %3847
        %3849 = vrot.lane.b32.xlu0 %v3459, 24
        %v3850 = vpop.permute.xlu0 %3849
        %3851 = vrot.lane.b32.xlu0 %v3557, 24
        %v3852 = vpop.permute.xlu0 %3851
        %3853 = vrot.lane.b32.xlu0 %v3655, 24
        %v3854 = vpop.permute.xlu0 %3853
        %3863 = vrot.lane.b32.xlu0 %v3371, 26
        %v3864 = vpop.permute.xlu0 %3863
        %3865 = vrot.lane.b32.xlu0 %v3469, 26
        %v3866 = vpop.permute.xlu0 %3865
        %3867 = vrot.lane.b32.xlu0 %v3567, 26
        %v3868 = vpop.permute.xlu0 %3867
        %3869 = vrot.lane.b32.xlu0 %v3665, 26
        %v3870 = vpop.permute.xlu0 %3869
        %3879 = vrot.lane.b32.xlu0 %v3368, 28
        %v3880 = vpop.permute.xlu0 %3879
        %3881 = vrot.lane.b32.xlu0 %v3466, 28
        %v3882 = vpop.permute.xlu0 %3881
        %3883 = vrot.lane.b32.xlu0 %v3564, 28
        %v3884 = vpop.permute.xlu0 %3883
        %3885 = vrot.lane.b32.xlu0 %v3662, 28
        %v3886 = vpop.permute.xlu0 %3885
        %3895 = vrot.lane.b32.xlu0 %v3372, 30
        %v3896 = vpop.permute.xlu0 %3895
        %3897 = vrot.lane.b32.xlu0 %v3470, 30
        %v3898 = vpop.permute.xlu0 %3897
        %3899 = vrot.lane.b32.xlu0 %v3568, 30
        %v3900 = vpop.permute.xlu0 %3899
        %3901 = vrot.lane.b32.xlu0 %v3666, 30
        %v3902 = vpop.permute.xlu0 %3901
        %v3907 = vsel %vm851, %v3297, %v3672
        %v3908 = vsel %vm851, %v3395, %v3674
        %v3909 = vsel %vm851, %v3493, %v3676
        %v3910 = vsel %vm851, %v3591, %v3678
        %v3911 = vsel %vm856, %v3907, %v3688
        %v3912 = vsel %vm856, %v3908, %v3690
        %v3913 = vsel %vm856, %v3909, %v3692
        %v3914 = vsel %vm856, %v3910, %v3694
        %v3915 = vsel %vm861, %v3911, %v3704
        %v3916 = vsel %vm861, %v3912, %v3706
        %v3917 = vsel %vm861, %v3913, %v3708
        %v3918 = vsel %vm861, %v3914, %v3710
        %v3919 = vsel %vm866, %v3915, %v3720
        %v3920 = vsel %vm866, %v3916, %v3722
        %v3921 = vsel %vm866, %v3917, %v3724
        %v3922 = vsel %vm866, %v3918, %v3726
        %v3923 = vsel %vm871, %v3919, %v3736
        %v3924 = vsel %vm871, %v3920, %v3738
        %v3925 = vsel %vm871, %v3921, %v3740
        %v3926 = vsel %vm871, %v3922, %v3742
        %v3927 = vsel %vm876, %v3923, %v3752
        %v3928 = vsel %vm876, %v3924, %v3754
        %v3929 = vsel %vm876, %v3925, %v3756
        %v3930 = vsel %vm876, %v3926, %v3758
        %v3931 = vsel %vm881, %v3927, %v3768
        %v3932 = vsel %vm881, %v3928, %v3770
        %v3933 = vsel %vm881, %v3929, %v3772
        %v3934 = vsel %vm881, %v3930, %v3774
        %v3935 = vsel %vm886, %v3931, %v3784
        %v3936 = vsel %vm886, %v3932, %v3786
        %v3937 = vsel %vm886, %v3933, %v3788
        %v3938 = vsel %vm886, %v3934, %v3790
        %v3939 = vsel %vm891, %v3935, %v3800
        %v3940 = vsel %vm891, %v3936, %v3802
        %v3941 = vsel %vm891, %v3937, %v3804
        %v3942 = vsel %vm891, %v3938, %v3806
        %v3943 = vsel %vm896, %v3939, %v3816
        %v3944 = vsel %vm896, %v3940, %v3818
        %v3945 = vsel %vm896, %v3941, %v3820
        %v3946 = vsel %vm896, %v3942, %v3822
        %v3947 = vsel %vm901, %v3943, %v3832
        %v3948 = vsel %vm901, %v3944, %v3834
        %v3949 = vsel %vm901, %v3945, %v3836
        %v3950 = vsel %vm901, %v3946, %v3838
        %v3951 = vsel %vm906, %v3947, %v3848
        %v3952 = vsel %vm906, %v3948, %v3850
        %v3953 = vsel %vm906, %v3949, %v3852
        %v3954 = vsel %vm906, %v3950, %v3854
        %v3955 = vsel %vm911, %v3951, %v3864
        %v3956 = vsel %vm911, %v3952, %v3866
        %v3957 = vsel %vm911, %v3953, %v3868
        %v3958 = vsel %vm911, %v3954, %v3870
        %v3959 = vsel %vm916, %v3955, %v3880
        %v3960 = vsel %vm916, %v3956, %v3882
        %v3961 = vsel %vm916, %v3957, %v3884
        %v3962 = vsel %vm916, %v3958, %v3886
        %v3963 = vsel %vm921, %v3959, %v3896
        %v3964 = vsel %vm921, %v3960, %v3898
        %v3965 = vsel %vm921, %v3961, %v3900
        %v3966 = vsel %vm921, %v3962, %v3902
        %v3967 = vlaneseq
        %v3968 = vshrl.u32 %v3967, 7
        %v3969 = vsub.s32 0, %v3968
        %v3970 = vrot.slane %v3963, %v3969
        %v3971 = vlaneseq
        %v3972 = vshrl.u32 %v3971, 7
        %v3973 = vsub.s32 0, %v3972
        %v3974 = vrot.slane %v3964, %v3973
        %v3975 = vlaneseq
        %v3976 = vshrl.u32 %v3975, 7
        %v3977 = vsub.s32 0, %v3976
        %v3978 = vrot.slane %v3965, %v3977
        %v3979 = vlaneseq
        %v3980 = vshrl.u32 %v3979, 7
        %v3981 = vsub.s32 0, %v3980
        %v3982 = vrot.slane %v3966, %v3981
        %3983 = vst.msk [vmem:[%s166 + $0x8] sm:$0x3] %vm942, %v3970
        %3984 = vst.msk [vmem:[%s166 + $0x28] sm:$0x3] %vm942, %v3974
        %3985 = vst.msk [vmem:[%s166 + $0x48] sm:$0x3] %vm942, %v3978
        %3986 = vst.msk [vmem:[%s166 + $0x68] sm:$0x3] %vm942, %v3982
        %v3987 = vld [vmem:[%s148 + $0x5] sm:$0x1]
        %v3988 = vld [vmem:[%s148 + $0x15] sm:$0x1]
        %v3989 = vld [vmem:[%s148 + $0x25] sm:$0x1]
        %v3990 = vld [vmem:[%s148 + $0x35] sm:$0x1]
        %v3991 = vlaneseq
        %v3992 = vshrl.u32 %v3991, 7
        %v3993 = vsub.s32 0, %v3992
        %v3994 = vrot.slane %v3987, %v3993
        %3996 = vbcast.lane.b32.xlu0 %v3994, 256
        %v3997 = vpop.permute.xlu0 %3996
        %s3999 = sor.u32 256, 8
        %4000 = vbcast.lane.b32.xlu0 %v3994, %s3999
        %v4001 = vpop.permute.xlu0 %4000
        %v4002 = vlaneseq
        %v4003 = vshrl.u32 %v4002, 7
        %v4004 = vsub.s32 0, %v4003
        %v4005 = vrot.slane %v3988, %v4004
        %4007 = vbcast.lane.b32.xlu0 %v4005, 256
        %v4008 = vpop.permute.xlu0 %4007
        %s4010 = sor.u32 256, 8
        %4011 = vbcast.lane.b32.xlu0 %v4005, %s4010
        %v4012 = vpop.permute.xlu0 %4011
        %v4013 = vlaneseq
        %v4014 = vshrl.u32 %v4013, 7
        %v4015 = vsub.s32 0, %v4014
        %v4016 = vrot.slane %v3989, %v4015
        %4018 = vbcast.lane.b32.xlu0 %v4016, 256
        %v4019 = vpop.permute.xlu0 %4018
        %s4021 = sor.u32 256, 8
        %4022 = vbcast.lane.b32.xlu0 %v4016, %s4021
        %v4023 = vpop.permute.xlu0 %4022
        %v4024 = vlaneseq
        %v4025 = vshrl.u32 %v4024, 7
        %v4026 = vsub.s32 0, %v4025
        %v4027 = vrot.slane %v3990, %v4026
        %4029 = vbcast.lane.b32.xlu0 %v4027, 256
        %v4030 = vpop.permute.xlu0 %4029
        %s4032 = sor.u32 256, 8
        %4033 = vbcast.lane.b32.xlu0 %v4027, %s4032
        %v4034 = vpop.permute.xlu0 %4033
        %v4035 = vcombine.high %v3997, 0.0
        %v4037 = vunpack.c.l.s4 1983009808
        %v4038 = vunpack.c.0.s8 %v4037
        %v4039 = vlaneseq
        %v4040 = vshrl.u32 %v4039, 7
        %v4041 = vsub.s32 %v4038, %v4040
        %v4042 = vrot.slane %v3997, %v4041
        %v4044 = vunpack.c.l.s4 1983009808
        %v4045 = vunpack.c.0.s8 %v4044
        %v4046 = vlaneseq
        %v4047 = vshrl.u32 %v4046, 7
        %v4048 = vsub.s32 %v4045, %v4047
        %v4049 = vrot.slane %v4035, %v4048
        %v4050 = vcombine.high %v4042, 0.0
        %v4052 = vunpack.c.l.s4 1934713408
        %v4053 = vunpack.c.0.s8 %v4052
        %v4054 = vlaneseq
        %v4055 = vshrl.u32 %v4054, 7
        %v4056 = vsub.s32 %v4053, %v4055
        %v4057 = vrot.slane %v4042, %v4056
        %v4059 = vunpack.c.l.s4 1934713408
        %v4060 = vunpack.c.0.s8 %v4059
        %v4061 = vlaneseq
        %v4062 = vshrl.u32 %v4061, 7
        %v4063 = vsub.s32 %v4060, %v4062
        %v4064 = vrot.slane %v4050, %v4063
        %v4065 = vcombine.high %v4049, 0.0
        %v4067 = vunpack.c.l.s4 1934713408
        %v4068 = vunpack.c.0.s8 %v4067
        %v4069 = vlaneseq
        %v4070 = vshrl.u32 %v4069, 7
        %v4071 = vsub.s32 %v4068, %v4070
        %v4072 = vrot.slane %v4049, %v4071
        %v4074 = vunpack.c.l.s4 1934713408
        %v4075 = vunpack.c.0.s8 %v4074
        %v4076 = vlaneseq
        %v4077 = vshrl.u32 %v4076, 7
        %v4078 = vsub.s32 %v4075, %v4077
        %v4079 = vrot.slane %v4065, %v4078
        %v4080 = vcombine.high %v4057, 0.0
        %v4081 = vcombine.high %v4064, 0.0
        %v4082 = vcombine.high %v4072, 0.0
        %v4083 = vcombine.high %v4079, 0.0
        %v4084 = vcombine.high %v4001, 0.0
        %v4086 = vunpack.c.l.s4 1983009808
        %v4087 = vunpack.c.0.s8 %v4086
        %v4088 = vlaneseq
        %v4089 = vshrl.u32 %v4088, 7
        %v4090 = vsub.s32 %v4087, %v4089
        %v4091 = vrot.slane %v4001, %v4090
        %v4093 = vunpack.c.l.s4 1983009808
        %v4094 = vunpack.c.0.s8 %v4093
        %v4095 = vlaneseq
        %v4096 = vshrl.u32 %v4095, 7
        %v4097 = vsub.s32 %v4094, %v4096
        %v4098 = vrot.slane %v4084, %v4097
        %v4099 = vcombine.high %v4091, 0.0
        %v4101 = vunpack.c.l.s4 1934713408
        %v4102 = vunpack.c.0.s8 %v4101
        %v4103 = vlaneseq
        %v4104 = vshrl.u32 %v4103, 7
        %v4105 = vsub.s32 %v4102, %v4104
        %v4106 = vrot.slane %v4091, %v4105
        %v4108 = vunpack.c.l.s4 1934713408
        %v4109 = vunpack.c.0.s8 %v4108
        %v4110 = vlaneseq
        %v4111 = vshrl.u32 %v4110, 7
        %v4112 = vsub.s32 %v4109, %v4111
        %v4113 = vrot.slane %v4099, %v4112
        %v4114 = vcombine.high %v4098, 0.0
        %v4116 = vunpack.c.l.s4 1934713408
        %v4117 = vunpack.c.0.s8 %v4116
        %v4118 = vlaneseq
        %v4119 = vshrl.u32 %v4118, 7
        %v4120 = vsub.s32 %v4117, %v4119
        %v4121 = vrot.slane %v4098, %v4120
        %v4123 = vunpack.c.l.s4 1934713408
        %v4124 = vunpack.c.0.s8 %v4123
        %v4125 = vlaneseq
        %v4126 = vshrl.u32 %v4125, 7
        %v4127 = vsub.s32 %v4124, %v4126
        %v4128 = vrot.slane %v4114, %v4127
        %v4129 = vcombine.high %v4106, 0.0
        %v4130 = vcombine.high %v4113, 0.0
        %v4131 = vcombine.high %v4121, 0.0
        %v4132 = vcombine.high %v4128, 0.0
        %v4133 = vcombine.high %v4008, 0.0
        %v4135 = vunpack.c.l.s4 1983009808
        %v4136 = vunpack.c.0.s8 %v4135
        %v4137 = vlaneseq
        %v4138 = vshrl.u32 %v4137, 7
        %v4139 = vsub.s32 %v4136, %v4138
        %v4140 = vrot.slane %v4008, %v4139
        %v4142 = vunpack.c.l.s4 1983009808
        %v4143 = vunpack.c.0.s8 %v4142
        %v4144 = vlaneseq
        %v4145 = vshrl.u32 %v4144, 7
        %v4146 = vsub.s32 %v4143, %v4145
        %v4147 = vrot.slane %v4133, %v4146
        %v4148 = vcombine.high %v4140, 0.0
        %v4150 = vunpack.c.l.s4 1934713408
        %v4151 = vunpack.c.0.s8 %v4150
        %v4152 = vlaneseq
        %v4153 = vshrl.u32 %v4152, 7
        %v4154 = vsub.s32 %v4151, %v4153
        %v4155 = vrot.slane %v4140, %v4154
        %v4157 = vunpack.c.l.s4 1934713408
        %v4158 = vunpack.c.0.s8 %v4157
        %v4159 = vlaneseq
        %v4160 = vshrl.u32 %v4159, 7
        %v4161 = vsub.s32 %v4158, %v4160
        %v4162 = vrot.slane %v4148, %v4161
        %v4163 = vcombine.high %v4147, 0.0
        %v4165 = vunpack.c.l.s4 1934713408
        %v4166 = vunpack.c.0.s8 %v4165
        %v4167 = vlaneseq
        %v4168 = vshrl.u32 %v4167, 7
        %v4169 = vsub.s32 %v4166, %v4168
        %v4170 = vrot.slane %v4147, %v4169
        %v4172 = vunpack.c.l.s4 1934713408
        %v4173 = vunpack.c.0.s8 %v4172
        %v4174 = vlaneseq
        %v4175 = vshrl.u32 %v4174, 7
        %v4176 = vsub.s32 %v4173, %v4175
        %v4177 = vrot.slane %v4163, %v4176
        %v4178 = vcombine.high %v4155, 0.0
        %v4179 = vcombine.high %v4162, 0.0
        %v4180 = vcombine.high %v4170, 0.0
        %v4181 = vcombine.high %v4177, 0.0
        %v4182 = vcombine.high %v4012, 0.0
        %v4184 = vunpack.c.l.s4 1983009808
        %v4185 = vunpack.c.0.s8 %v4184
        %v4186 = vlaneseq
        %v4187 = vshrl.u32 %v4186, 7
        %v4188 = vsub.s32 %v4185, %v4187
        %v4189 = vrot.slane %v4012, %v4188
        %v4191 = vunpack.c.l.s4 1983009808
        %v4192 = vunpack.c.0.s8 %v4191
        %v4193 = vlaneseq
        %v4194 = vshrl.u32 %v4193, 7
        %v4195 = vsub.s32 %v4192, %v4194
        %v4196 = vrot.slane %v4182, %v4195
        %v4197 = vcombine.high %v4189, 0.0
        %v4199 = vunpack.c.l.s4 1934713408
        %v4200 = vunpack.c.0.s8 %v4199
        %v4201 = vlaneseq
        %v4202 = vshrl.u32 %v4201, 7
        %v4203 = vsub.s32 %v4200, %v4202
        %v4204 = vrot.slane %v4189, %v4203
        %v4206 = vunpack.c.l.s4 1934713408
        %v4207 = vunpack.c.0.s8 %v4206
        %v4208 = vlaneseq
        %v4209 = vshrl.u32 %v4208, 7
        %v4210 = vsub.s32 %v4207, %v4209
        %v4211 = vrot.slane %v4197, %v4210
        %v4212 = vcombine.high %v4196, 0.0
        %v4214 = vunpack.c.l.s4 1934713408
        %v4215 = vunpack.c.0.s8 %v4214
        %v4216 = vlaneseq
        %v4217 = vshrl.u32 %v4216, 7
        %v4218 = vsub.s32 %v4215, %v4217
        %v4219 = vrot.slane %v4196, %v4218
        %v4221 = vunpack.c.l.s4 1934713408
        %v4222 = vunpack.c.0.s8 %v4221
        %v4223 = vlaneseq
        %v4224 = vshrl.u32 %v4223, 7
        %v4225 = vsub.s32 %v4222, %v4224
        %v4226 = vrot.slane %v4212, %v4225
        %v4227 = vcombine.high %v4204, 0.0
        %v4228 = vcombine.high %v4211, 0.0
        %v4229 = vcombine.high %v4219, 0.0
        %v4230 = vcombine.high %v4226, 0.0
        %v4231 = vcombine.high %v4019, 0.0
        %v4233 = vunpack.c.l.s4 1983009808
        %v4234 = vunpack.c.0.s8 %v4233
        %v4235 = vlaneseq
        %v4236 = vshrl.u32 %v4235, 7
        %v4237 = vsub.s32 %v4234, %v4236
        %v4238 = vrot.slane %v4019, %v4237
        %v4240 = vunpack.c.l.s4 1983009808
        %v4241 = vunpack.c.0.s8 %v4240
        %v4242 = vlaneseq
        %v4243 = vshrl.u32 %v4242, 7
        %v4244 = vsub.s32 %v4241, %v4243
        %v4245 = vrot.slane %v4231, %v4244
        %v4246 = vcombine.high %v4238, 0.0
        %v4248 = vunpack.c.l.s4 1934713408
        %v4249 = vunpack.c.0.s8 %v4248
        %v4250 = vlaneseq
        %v4251 = vshrl.u32 %v4250, 7
        %v4252 = vsub.s32 %v4249, %v4251
        %v4253 = vrot.slane %v4238, %v4252
        %v4255 = vunpack.c.l.s4 1934713408
        %v4256 = vunpack.c.0.s8 %v4255
        %v4257 = vlaneseq
        %v4258 = vshrl.u32 %v4257, 7
        %v4259 = vsub.s32 %v4256, %v4258
        %v4260 = vrot.slane %v4246, %v4259
        %v4261 = vcombine.high %v4245, 0.0
        %v4263 = vunpack.c.l.s4 1934713408
        %v4264 = vunpack.c.0.s8 %v4263
        %v4265 = vlaneseq
        %v4266 = vshrl.u32 %v4265, 7
        %v4267 = vsub.s32 %v4264, %v4266
        %v4268 = vrot.slane %v4245, %v4267
        %v4270 = vunpack.c.l.s4 1934713408
        %v4271 = vunpack.c.0.s8 %v4270
        %v4272 = vlaneseq
        %v4273 = vshrl.u32 %v4272, 7
        %v4274 = vsub.s32 %v4271, %v4273
        %v4275 = vrot.slane %v4261, %v4274
        %v4276 = vcombine.high %v4253, 0.0
        %v4277 = vcombine.high %v4260, 0.0
        %v4278 = vcombine.high %v4268, 0.0
        %v4279 = vcombine.high %v4275, 0.0
        %v4280 = vcombine.high %v4023, 0.0
        %v4282 = vunpack.c.l.s4 1983009808
        %v4283 = vunpack.c.0.s8 %v4282
        %v4284 = vlaneseq
        %v4285 = vshrl.u32 %v4284, 7
        %v4286 = vsub.s32 %v4283, %v4285
        %v4287 = vrot.slane %v4023, %v4286
        %v4289 = vunpack.c.l.s4 1983009808
        %v4290 = vunpack.c.0.s8 %v4289
        %v4291 = vlaneseq
        %v4292 = vshrl.u32 %v4291, 7
        %v4293 = vsub.s32 %v4290, %v4292
        %v4294 = vrot.slane %v4280, %v4293
        %v4295 = vcombine.high %v4287, 0.0
        %v4297 = vunpack.c.l.s4 1934713408
        %v4298 = vunpack.c.0.s8 %v4297
        %v4299 = vlaneseq
        %v4300 = vshrl.u32 %v4299, 7
        %v4301 = vsub.s32 %v4298, %v4300
        %v4302 = vrot.slane %v4287, %v4301
        %v4304 = vunpack.c.l.s4 1934713408
        %v4305 = vunpack.c.0.s8 %v4304
        %v4306 = vlaneseq
        %v4307 = vshrl.u32 %v4306, 7
        %v4308 = vsub.s32 %v4305, %v4307
        %v4309 = vrot.slane %v4295, %v4308
        %v4310 = vcombine.high %v4294, 0.0
        %v4312 = vunpack.c.l.s4 1934713408
        %v4313 = vunpack.c.0.s8 %v4312
        %v4314 = vlaneseq
        %v4315 = vshrl.u32 %v4314, 7
        %v4316 = vsub.s32 %v4313, %v4315
        %v4317 = vrot.slane %v4294, %v4316
        %v4319 = vunpack.c.l.s4 1934713408
        %v4320 = vunpack.c.0.s8 %v4319
        %v4321 = vlaneseq
        %v4322 = vshrl.u32 %v4321, 7
        %v4323 = vsub.s32 %v4320, %v4322
        %v4324 = vrot.slane %v4310, %v4323
        %v4325 = vcombine.high %v4302, 0.0
        %v4326 = vcombine.high %v4309, 0.0
        %v4327 = vcombine.high %v4317, 0.0
        %v4328 = vcombine.high %v4324, 0.0
        %v4329 = vcombine.high %v4030, 0.0
        %v4331 = vunpack.c.l.s4 1983009808
        %v4332 = vunpack.c.0.s8 %v4331
        %v4333 = vlaneseq
        %v4334 = vshrl.u32 %v4333, 7
        %v4335 = vsub.s32 %v4332, %v4334
        %v4336 = vrot.slane %v4030, %v4335
        %v4338 = vunpack.c.l.s4 1983009808
        %v4339 = vunpack.c.0.s8 %v4338
        %v4340 = vlaneseq
        %v4341 = vshrl.u32 %v4340, 7
        %v4342 = vsub.s32 %v4339, %v4341
        %v4343 = vrot.slane %v4329, %v4342
        %v4344 = vcombine.high %v4336, 0.0
        %v4346 = vunpack.c.l.s4 1934713408
        %v4347 = vunpack.c.0.s8 %v4346
        %v4348 = vlaneseq
        %v4349 = vshrl.u32 %v4348, 7
        %v4350 = vsub.s32 %v4347, %v4349
        %v4351 = vrot.slane %v4336, %v4350
        %v4353 = vunpack.c.l.s4 1934713408
        %v4354 = vunpack.c.0.s8 %v4353
        %v4355 = vlaneseq
        %v4356 = vshrl.u32 %v4355, 7
        %v4357 = vsub.s32 %v4354, %v4356
        %v4358 = vrot.slane %v4344, %v4357
        %v4359 = vcombine.high %v4343, 0.0
        %v4361 = vunpack.c.l.s4 1934713408
        %v4362 = vunpack.c.0.s8 %v4361
        %v4363 = vlaneseq
        %v4364 = vshrl.u32 %v4363, 7
        %v4365 = vsub.s32 %v4362, %v4364
        %v4366 = vrot.slane %v4343, %v4365
        %v4368 = vunpack.c.l.s4 1934713408
        %v4369 = vunpack.c.0.s8 %v4368
        %v4370 = vlaneseq
        %v4371 = vshrl.u32 %v4370, 7
        %v4372 = vsub.s32 %v4369, %v4371
        %v4373 = vrot.slane %v4359, %v4372
        %v4374 = vcombine.high %v4351, 0.0
        %v4375 = vcombine.high %v4358, 0.0
        %v4376 = vcombine.high %v4366, 0.0
        %v4377 = vcombine.high %v4373, 0.0
        %v4378 = vcombine.high %v4034, 0.0
        %v4380 = vunpack.c.l.s4 1983009808
        %v4381 = vunpack.c.0.s8 %v4380
        %v4382 = vlaneseq
        %v4383 = vshrl.u32 %v4382, 7
        %v4384 = vsub.s32 %v4381, %v4383
        %v4385 = vrot.slane %v4034, %v4384
        %v4387 = vunpack.c.l.s4 1983009808
        %v4388 = vunpack.c.0.s8 %v4387
        %v4389 = vlaneseq
        %v4390 = vshrl.u32 %v4389, 7
        %v4391 = vsub.s32 %v4388, %v4390
        %v4392 = vrot.slane %v4378, %v4391
        %v4393 = vcombine.high %v4385, 0.0
        %v4395 = vunpack.c.l.s4 1934713408
        %v4396 = vunpack.c.0.s8 %v4395
        %v4397 = vlaneseq
        %v4398 = vshrl.u32 %v4397, 7
        %v4399 = vsub.s32 %v4396, %v4398
        %v4400 = vrot.slane %v4385, %v4399
        %v4402 = vunpack.c.l.s4 1934713408
        %v4403 = vunpack.c.0.s8 %v4402
        %v4404 = vlaneseq
        %v4405 = vshrl.u32 %v4404, 7
        %v4406 = vsub.s32 %v4403, %v4405
        %v4407 = vrot.slane %v4393, %v4406
        %v4408 = vcombine.high %v4392, 0.0
        %v4410 = vunpack.c.l.s4 1934713408
        %v4411 = vunpack.c.0.s8 %v4410
        %v4412 = vlaneseq
        %v4413 = vshrl.u32 %v4412, 7
        %v4414 = vsub.s32 %v4411, %v4413
        %v4415 = vrot.slane %v4392, %v4414
        %v4417 = vunpack.c.l.s4 1934713408
        %v4418 = vunpack.c.0.s8 %v4417
        %v4419 = vlaneseq
        %v4420 = vshrl.u32 %v4419, 7
        %v4421 = vsub.s32 %v4418, %v4420
        %v4422 = vrot.slane %v4408, %v4421
        %v4423 = vcombine.high %v4400, 0.0
        %v4424 = vcombine.high %v4407, 0.0
        %v4425 = vcombine.high %v4415, 0.0
        %v4426 = vcombine.high %v4422, 0.0
        %4431 = vrot.lane.b32.xlu0 %v4080, 2
        %v4432 = vpop.permute.xlu0 %4431
        %4433 = vrot.lane.b32.xlu0 %v4178, 2
        %v4434 = vpop.permute.xlu0 %4433
        %4435 = vrot.lane.b32.xlu0 %v4276, 2
        %v4436 = vpop.permute.xlu0 %4435
        %4437 = vrot.lane.b32.xlu0 %v4374, 2
        %v4438 = vpop.permute.xlu0 %4437
        %4447 = vrot.lane.b32.xlu0 %v4064, 4
        %v4448 = vpop.permute.xlu0 %4447
        %4449 = vrot.lane.b32.xlu0 %v4162, 4
        %v4450 = vpop.permute.xlu0 %4449
        %4451 = vrot.lane.b32.xlu0 %v4260, 4
        %v4452 = vpop.permute.xlu0 %4451
        %4453 = vrot.lane.b32.xlu0 %v4358, 4
        %v4454 = vpop.permute.xlu0 %4453
        %4463 = vrot.lane.b32.xlu0 %v4081, 6
        %v4464 = vpop.permute.xlu0 %4463
        %4465 = vrot.lane.b32.xlu0 %v4179, 6
        %v4466 = vpop.permute.xlu0 %4465
        %4467 = vrot.lane.b32.xlu0 %v4277, 6
        %v4468 = vpop.permute.xlu0 %4467
        %4469 = vrot.lane.b32.xlu0 %v4375, 6
        %v4470 = vpop.permute.xlu0 %4469
        %4479 = vrot.lane.b32.xlu0 %v4072, 8
        %v4480 = vpop.permute.xlu0 %4479
        %4481 = vrot.lane.b32.xlu0 %v4170, 8
        %v4482 = vpop.permute.xlu0 %4481
        %4483 = vrot.lane.b32.xlu0 %v4268, 8
        %v4484 = vpop.permute.xlu0 %4483
        %4485 = vrot.lane.b32.xlu0 %v4366, 8
        %v4486 = vpop.permute.xlu0 %4485
        %4495 = vrot.lane.b32.xlu0 %v4082, 10
        %v4496 = vpop.permute.xlu0 %4495
        %4497 = vrot.lane.b32.xlu0 %v4180, 10
        %v4498 = vpop.permute.xlu0 %4497
        %4499 = vrot.lane.b32.xlu0 %v4278, 10
        %v4500 = vpop.permute.xlu0 %4499
        %4501 = vrot.lane.b32.xlu0 %v4376, 10
        %v4502 = vpop.permute.xlu0 %4501
        %4511 = vrot.lane.b32.xlu0 %v4079, 12
        %v4512 = vpop.permute.xlu0 %4511
        %4513 = vrot.lane.b32.xlu0 %v4177, 12
        %v4514 = vpop.permute.xlu0 %4513
        %4515 = vrot.lane.b32.xlu0 %v4275, 12
        %v4516 = vpop.permute.xlu0 %4515
        %4517 = vrot.lane.b32.xlu0 %v4373, 12
        %v4518 = vpop.permute.xlu0 %4517
        %4527 = vrot.lane.b32.xlu0 %v4083, 14
        %v4528 = vpop.permute.xlu0 %4527
        %4529 = vrot.lane.b32.xlu0 %v4181, 14
        %v4530 = vpop.permute.xlu0 %4529
        %4531 = vrot.lane.b32.xlu0 %v4279, 14
        %v4532 = vpop.permute.xlu0 %4531
        %4533 = vrot.lane.b32.xlu0 %v4377, 14
        %v4534 = vpop.permute.xlu0 %4533
        %4543 = vrot.lane.b32.xlu0 %v4106, 16
        %v4544 = vpop.permute.xlu0 %4543
        %4545 = vrot.lane.b32.xlu0 %v4204, 16
        %v4546 = vpop.permute.xlu0 %4545
        %4547 = vrot.lane.b32.xlu0 %v4302, 16
        %v4548 = vpop.permute.xlu0 %4547
        %4549 = vrot.lane.b32.xlu0 %v4400, 16
        %v4550 = vpop.permute.xlu0 %4549
        %4559 = vrot.lane.b32.xlu0 %v4129, 18
        %v4560 = vpop.permute.xlu0 %4559
        %4561 = vrot.lane.b32.xlu0 %v4227, 18
        %v4562 = vpop.permute.xlu0 %4561
        %4563 = vrot.lane.b32.xlu0 %v4325, 18
        %v4564 = vpop.permute.xlu0 %4563
        %4565 = vrot.lane.b32.xlu0 %v4423, 18
        %v4566 = vpop.permute.xlu0 %4565
        %4575 = vrot.lane.b32.xlu0 %v4113, 20
        %v4576 = vpop.permute.xlu0 %4575
        %4577 = vrot.lane.b32.xlu0 %v4211, 20
        %v4578 = vpop.permute.xlu0 %4577
        %4579 = vrot.lane.b32.xlu0 %v4309, 20
        %v4580 = vpop.permute.xlu0 %4579
        %4581 = vrot.lane.b32.xlu0 %v4407, 20
        %v4582 = vpop.permute.xlu0 %4581
        %4591 = vrot.lane.b32.xlu0 %v4130, 22
        %v4592 = vpop.permute.xlu0 %4591
        %4593 = vrot.lane.b32.xlu0 %v4228, 22
        %v4594 = vpop.permute.xlu0 %4593
        %4595 = vrot.lane.b32.xlu0 %v4326, 22
        %v4596 = vpop.permute.xlu0 %4595
        %4597 = vrot.lane.b32.xlu0 %v4424, 22
        %v4598 = vpop.permute.xlu0 %4597
        %4607 = vrot.lane.b32.xlu0 %v4121, 24
        %v4608 = vpop.permute.xlu0 %4607
        %4609 = vrot.lane.b32.xlu0 %v4219, 24
        %v4610 = vpop.permute.xlu0 %4609
        %4611 = vrot.lane.b32.xlu0 %v4317, 24
        %v4612 = vpop.permute.xlu0 %4611
        %4613 = vrot.lane.b32.xlu0 %v4415, 24
        %v4614 = vpop.permute.xlu0 %4613
        %4623 = vrot.lane.b32.xlu0 %v4131, 26
        %v4624 = vpop.permute.xlu0 %4623
        %4625 = vrot.lane.b32.xlu0 %v4229, 26
        %v4626 = vpop.permute.xlu0 %4625
        %4627 = vrot.lane.b32.xlu0 %v4327, 26
        %v4628 = vpop.permute.xlu0 %4627
        %4629 = vrot.lane.b32.xlu0 %v4425, 26
        %v4630 = vpop.permute.xlu0 %4629
        %4639 = vrot.lane.b32.xlu0 %v4128, 28
        %v4640 = vpop.permute.xlu0 %4639
        %4641 = vrot.lane.b32.xlu0 %v4226, 28
        %v4642 = vpop.permute.xlu0 %4641
        %4643 = vrot.lane.b32.xlu0 %v4324, 28
        %v4644 = vpop.permute.xlu0 %4643
        %4645 = vrot.lane.b32.xlu0 %v4422, 28
        %v4646 = vpop.permute.xlu0 %4645
        %4655 = vrot.lane.b32.xlu0 %v4132, 30
        %v4656 = vpop.permute.xlu0 %4655
        %4657 = vrot.lane.b32.xlu0 %v4230, 30
        %v4658 = vpop.permute.xlu0 %4657
        %4659 = vrot.lane.b32.xlu0 %v4328, 30
        %v4660 = vpop.permute.xlu0 %4659
        %4661 = vrot.lane.b32.xlu0 %v4426, 30
        %v4662 = vpop.permute.xlu0 %4661
        %v4667 = vsel %vm851, %v4057, %v4432
        %v4668 = vsel %vm851, %v4155, %v4434
        %v4669 = vsel %vm851, %v4253, %v4436
        %v4670 = vsel %vm851, %v4351, %v4438
        %v4671 = vsel %vm856, %v4667, %v4448
        %v4672 = vsel %vm856, %v4668, %v4450
        %v4673 = vsel %vm856, %v4669, %v4452
        %v4674 = vsel %vm856, %v4670, %v4454
        %v4675 = vsel %vm861, %v4671, %v4464
        %v4676 = vsel %vm861, %v4672, %v4466
        %v4677 = vsel %vm861, %v4673, %v4468
        %v4678 = vsel %vm861, %v4674, %v4470
        %v4679 = vsel %vm866, %v4675, %v4480
        %v4680 = vsel %vm866, %v4676, %v4482
        %v4681 = vsel %vm866, %v4677, %v4484
        %v4682 = vsel %vm866, %v4678, %v4486
        %v4683 = vsel %vm871, %v4679, %v4496
        %v4684 = vsel %vm871, %v4680, %v4498
        %v4685 = vsel %vm871, %v4681, %v4500
        %v4686 = vsel %vm871, %v4682, %v4502
        %v4687 = vsel %vm876, %v4683, %v4512
        %v4688 = vsel %vm876, %v4684, %v4514
        %v4689 = vsel %vm876, %v4685, %v4516
        %v4690 = vsel %vm876, %v4686, %v4518
        %v4691 = vsel %vm881, %v4687, %v4528
        %v4692 = vsel %vm881, %v4688, %v4530
        %v4693 = vsel %vm881, %v4689, %v4532
        %v4694 = vsel %vm881, %v4690, %v4534
        %v4695 = vsel %vm886, %v4691, %v4544
        %v4696 = vsel %vm886, %v4692, %v4546
        %v4697 = vsel %vm886, %v4693, %v4548
        %v4698 = vsel %vm886, %v4694, %v4550
        %v4699 = vsel %vm891, %v4695, %v4560
        %v4700 = vsel %vm891, %v4696, %v4562
        %v4701 = vsel %vm891, %v4697, %v4564
        %v4702 = vsel %vm891, %v4698, %v4566
        %v4703 = vsel %vm896, %v4699, %v4576
        %v4704 = vsel %vm896, %v4700, %v4578
        %v4705 = vsel %vm896, %v4701, %v4580
        %v4706 = vsel %vm896, %v4702, %v4582
        %v4707 = vsel %vm901, %v4703, %v4592
        %v4708 = vsel %vm901, %v4704, %v4594
        %v4709 = vsel %vm901, %v4705, %v4596
        %v4710 = vsel %vm901, %v4706, %v4598
        %v4711 = vsel %vm906, %v4707, %v4608
        %v4712 = vsel %vm906, %v4708, %v4610
        %v4713 = vsel %vm906, %v4709, %v4612
        %v4714 = vsel %vm906, %v4710, %v4614
        %v4715 = vsel %vm911, %v4711, %v4624
        %v4716 = vsel %vm911, %v4712, %v4626
        %v4717 = vsel %vm911, %v4713, %v4628
        %v4718 = vsel %vm911, %v4714, %v4630
        %v4719 = vsel %vm916, %v4715, %v4640
        %v4720 = vsel %vm916, %v4716, %v4642
        %v4721 = vsel %vm916, %v4717, %v4644
        %v4722 = vsel %vm916, %v4718, %v4646
        %v4723 = vsel %vm921, %v4719, %v4656
        %v4724 = vsel %vm921, %v4720, %v4658
        %v4725 = vsel %vm921, %v4721, %v4660
        %v4726 = vsel %vm921, %v4722, %v4662
        %v4727 = vlaneseq
        %v4728 = vshrl.u32 %v4727, 7
        %v4729 = vsub.s32 0, %v4728
        %v4730 = vrot.slane %v4723, %v4729
        %v4731 = vlaneseq
        %v4732 = vshrl.u32 %v4731, 7
        %v4733 = vsub.s32 0, %v4732
        %v4734 = vrot.slane %v4724, %v4733
        %v4735 = vlaneseq
        %v4736 = vshrl.u32 %v4735, 7
        %v4737 = vsub.s32 0, %v4736
        %v4738 = vrot.slane %v4725, %v4737
        %v4739 = vlaneseq
        %v4740 = vshrl.u32 %v4739, 7
        %v4741 = vsub.s32 0, %v4740
        %v4742 = vrot.slane %v4726, %v4741
        %4743 = vst.msk [vmem:[%s166 + $0xa] sm:$0x3] %vm942, %v4730
        %4744 = vst.msk [vmem:[%s166 + $0x2a] sm:$0x3] %vm942, %v4734
        %4745 = vst.msk [vmem:[%s166 + $0x4a] sm:$0x3] %vm942, %v4738
        %4746 = vst.msk [vmem:[%s166 + $0x6a] sm:$0x3] %vm942, %v4742
        %v4747 = vld [vmem:[%s148 + $0x6] sm:$0x1]
        %v4748 = vld [vmem:[%s148 + $0x16] sm:$0x1]
        %v4749 = vld [vmem:[%s148 + $0x26] sm:$0x1]
        %v4750 = vld [vmem:[%s148 + $0x36] sm:$0x1]
        %v4751 = vlaneseq
        %v4752 = vshrl.u32 %v4751, 7
        %v4753 = vsub.s32 0, %v4752
        %v4754 = vrot.slane %v4747, %v4753
        %4756 = vbcast.lane.b32.xlu0 %v4754, 256
        %v4757 = vpop.permute.xlu0 %4756
        %s4759 = sor.u32 256, 8
        %4760 = vbcast.lane.b32.xlu0 %v4754, %s4759
        %v4761 = vpop.permute.xlu0 %4760
        %v4762 = vlaneseq
        %v4763 = vshrl.u32 %v4762, 7
        %v4764 = vsub.s32 0, %v4763
        %v4765 = vrot.slane %v4748, %v4764
        %4767 = vbcast.lane.b32.xlu0 %v4765, 256
        %v4768 = vpop.permute.xlu0 %4767
        %s4770 = sor.u32 256, 8
        %4771 = vbcast.lane.b32.xlu0 %v4765, %s4770
        %v4772 = vpop.permute.xlu0 %4771
        %v4773 = vlaneseq
        %v4774 = vshrl.u32 %v4773, 7
        %v4775 = vsub.s32 0, %v4774
        %v4776 = vrot.slane %v4749, %v4775
        %4778 = vbcast.lane.b32.xlu0 %v4776, 256
        %v4779 = vpop.permute.xlu0 %4778
        %s4781 = sor.u32 256, 8
        %4782 = vbcast.lane.b32.xlu0 %v4776, %s4781
        %v4783 = vpop.permute.xlu0 %4782
        %v4784 = vlaneseq
        %v4785 = vshrl.u32 %v4784, 7
        %v4786 = vsub.s32 0, %v4785
        %v4787 = vrot.slane %v4750, %v4786
        %4789 = vbcast.lane.b32.xlu0 %v4787, 256
        %v4790 = vpop.permute.xlu0 %4789
        %s4792 = sor.u32 256, 8
        %4793 = vbcast.lane.b32.xlu0 %v4787, %s4792
        %v4794 = vpop.permute.xlu0 %4793
        %v4795 = vcombine.high %v4757, 0.0
        %v4797 = vunpack.c.l.s4 1983009808
        %v4798 = vunpack.c.0.s8 %v4797
        %v4799 = vlaneseq
        %v4800 = vshrl.u32 %v4799, 7
        %v4801 = vsub.s32 %v4798, %v4800
        %v4802 = vrot.slane %v4757, %v4801
        %v4804 = vunpack.c.l.s4 1983009808
        %v4805 = vunpack.c.0.s8 %v4804
        %v4806 = vlaneseq
        %v4807 = vshrl.u32 %v4806, 7
        %v4808 = vsub.s32 %v4805, %v4807
        %v4809 = vrot.slane %v4795, %v4808
        %v4810 = vcombine.high %v4802, 0.0
        %v4812 = vunpack.c.l.s4 1934713408
        %v4813 = vunpack.c.0.s8 %v4812
        %v4814 = vlaneseq
        %v4815 = vshrl.u32 %v4814, 7
        %v4816 = vsub.s32 %v4813, %v4815
        %v4817 = vrot.slane %v4802, %v4816
        %v4819 = vunpack.c.l.s4 1934713408
        %v4820 = vunpack.c.0.s8 %v4819
        %v4821 = vlaneseq
        %v4822 = vshrl.u32 %v4821, 7
        %v4823 = vsub.s32 %v4820, %v4822
        %v4824 = vrot.slane %v4810, %v4823
        %v4825 = vcombine.high %v4809, 0.0
        %v4827 = vunpack.c.l.s4 1934713408
        %v4828 = vunpack.c.0.s8 %v4827
        %v4829 = vlaneseq
        %v4830 = vshrl.u32 %v4829, 7
        %v4831 = vsub.s32 %v4828, %v4830
        %v4832 = vrot.slane %v4809, %v4831
        %v4834 = vunpack.c.l.s4 1934713408
        %v4835 = vunpack.c.0.s8 %v4834
        %v4836 = vlaneseq
        %v4837 = vshrl.u32 %v4836, 7
        %v4838 = vsub.s32 %v4835, %v4837
        %v4839 = vrot.slane %v4825, %v4838
        %v4840 = vcombine.high %v4817, 0.0
        %v4841 = vcombine.high %v4824, 0.0
        %v4842 = vcombine.high %v4832, 0.0
        %v4843 = vcombine.high %v4839, 0.0
        %v4844 = vcombine.high %v4761, 0.0
        %v4846 = vunpack.c.l.s4 1983009808
        %v4847 = vunpack.c.0.s8 %v4846
        %v4848 = vlaneseq
        %v4849 = vshrl.u32 %v4848, 7
        %v4850 = vsub.s32 %v4847, %v4849
        %v4851 = vrot.slane %v4761, %v4850
        %v4853 = vunpack.c.l.s4 1983009808
        %v4854 = vunpack.c.0.s8 %v4853
        %v4855 = vlaneseq
        %v4856 = vshrl.u32 %v4855, 7
        %v4857 = vsub.s32 %v4854, %v4856
        %v4858 = vrot.slane %v4844, %v4857
        %v4859 = vcombine.high %v4851, 0.0
        %v4861 = vunpack.c.l.s4 1934713408
        %v4862 = vunpack.c.0.s8 %v4861
        %v4863 = vlaneseq
        %v4864 = vshrl.u32 %v4863, 7
        %v4865 = vsub.s32 %v4862, %v4864
        %v4866 = vrot.slane %v4851, %v4865
        %v4868 = vunpack.c.l.s4 1934713408
        %v4869 = vunpack.c.0.s8 %v4868
        %v4870 = vlaneseq
        %v4871 = vshrl.u32 %v4870, 7
        %v4872 = vsub.s32 %v4869, %v4871
        %v4873 = vrot.slane %v4859, %v4872
        %v4874 = vcombine.high %v4858, 0.0
        %v4876 = vunpack.c.l.s4 1934713408
        %v4877 = vunpack.c.0.s8 %v4876
        %v4878 = vlaneseq
        %v4879 = vshrl.u32 %v4878, 7
        %v4880 = vsub.s32 %v4877, %v4879
        %v4881 = vrot.slane %v4858, %v4880
        %v4883 = vunpack.c.l.s4 1934713408
        %v4884 = vunpack.c.0.s8 %v4883
        %v4885 = vlaneseq
        %v4886 = vshrl.u32 %v4885, 7
        %v4887 = vsub.s32 %v4884, %v4886
        %v4888 = vrot.slane %v4874, %v4887
        %v4889 = vcombine.high %v4866, 0.0
        %v4890 = vcombine.high %v4873, 0.0
        %v4891 = vcombine.high %v4881, 0.0
        %v4892 = vcombine.high %v4888, 0.0
        %v4893 = vcombine.high %v4768, 0.0
        %v4895 = vunpack.c.l.s4 1983009808
        %v4896 = vunpack.c.0.s8 %v4895
        %v4897 = vlaneseq
        %v4898 = vshrl.u32 %v4897, 7
        %v4899 = vsub.s32 %v4896, %v4898
        %v4900 = vrot.slane %v4768, %v4899
        %v4902 = vunpack.c.l.s4 1983009808
        %v4903 = vunpack.c.0.s8 %v4902
        %v4904 = vlaneseq
        %v4905 = vshrl.u32 %v4904, 7
        %v4906 = vsub.s32 %v4903, %v4905
        %v4907 = vrot.slane %v4893, %v4906
        %v4908 = vcombine.high %v4900, 0.0
        %v4910 = vunpack.c.l.s4 1934713408
        %v4911 = vunpack.c.0.s8 %v4910
        %v4912 = vlaneseq
        %v4913 = vshrl.u32 %v4912, 7
        %v4914 = vsub.s32 %v4911, %v4913
        %v4915 = vrot.slane %v4900, %v4914
        %v4917 = vunpack.c.l.s4 1934713408
        %v4918 = vunpack.c.0.s8 %v4917
        %v4919 = vlaneseq
        %v4920 = vshrl.u32 %v4919, 7
        %v4921 = vsub.s32 %v4918, %v4920
        %v4922 = vrot.slane %v4908, %v4921
        %v4923 = vcombine.high %v4907, 0.0
        %v4925 = vunpack.c.l.s4 1934713408
        %v4926 = vunpack.c.0.s8 %v4925
        %v4927 = vlaneseq
        %v4928 = vshrl.u32 %v4927, 7
        %v4929 = vsub.s32 %v4926, %v4928
        %v4930 = vrot.slane %v4907, %v4929
        %v4932 = vunpack.c.l.s4 1934713408
        %v4933 = vunpack.c.0.s8 %v4932
        %v4934 = vlaneseq
        %v4935 = vshrl.u32 %v4934, 7
        %v4936 = vsub.s32 %v4933, %v4935
        %v4937 = vrot.slane %v4923, %v4936
        %v4938 = vcombine.high %v4915, 0.0
        %v4939 = vcombine.high %v4922, 0.0
        %v4940 = vcombine.high %v4930, 0.0
        %v4941 = vcombine.high %v4937, 0.0
        %v4942 = vcombine.high %v4772, 0.0
        %v4944 = vunpack.c.l.s4 1983009808
        %v4945 = vunpack.c.0.s8 %v4944
        %v4946 = vlaneseq
        %v4947 = vshrl.u32 %v4946, 7
        %v4948 = vsub.s32 %v4945, %v4947
        %v4949 = vrot.slane %v4772, %v4948
        %v4951 = vunpack.c.l.s4 1983009808
        %v4952 = vunpack.c.0.s8 %v4951
        %v4953 = vlaneseq
        %v4954 = vshrl.u32 %v4953, 7
        %v4955 = vsub.s32 %v4952, %v4954
        %v4956 = vrot.slane %v4942, %v4955
        %v4957 = vcombine.high %v4949, 0.0
        %v4959 = vunpack.c.l.s4 1934713408
        %v4960 = vunpack.c.0.s8 %v4959
        %v4961 = vlaneseq
        %v4962 = vshrl.u32 %v4961, 7
        %v4963 = vsub.s32 %v4960, %v4962
        %v4964 = vrot.slane %v4949, %v4963
        %v4966 = vunpack.c.l.s4 1934713408
        %v4967 = vunpack.c.0.s8 %v4966
        %v4968 = vlaneseq
        %v4969 = vshrl.u32 %v4968, 7
        %v4970 = vsub.s32 %v4967, %v4969
        %v4971 = vrot.slane %v4957, %v4970
        %v4972 = vcombine.high %v4956, 0.0
        %v4974 = vunpack.c.l.s4 1934713408
        %v4975 = vunpack.c.0.s8 %v4974
        %v4976 = vlaneseq
        %v4977 = vshrl.u32 %v4976, 7
        %v4978 = vsub.s32 %v4975, %v4977
        %v4979 = vrot.slane %v4956, %v4978
        %v4981 = vunpack.c.l.s4 1934713408
        %v4982 = vunpack.c.0.s8 %v4981
        %v4983 = vlaneseq
        %v4984 = vshrl.u32 %v4983, 7
        %v4985 = vsub.s32 %v4982, %v4984
        %v4986 = vrot.slane %v4972, %v4985
        %v4987 = vcombine.high %v4964, 0.0
        %v4988 = vcombine.high %v4971, 0.0
        %v4989 = vcombine.high %v4979, 0.0
        %v4990 = vcombine.high %v4986, 0.0
        %v4991 = vcombine.high %v4779, 0.0
        %v4993 = vunpack.c.l.s4 1983009808
        %v4994 = vunpack.c.0.s8 %v4993
        %v4995 = vlaneseq
        %v4996 = vshrl.u32 %v4995, 7
        %v4997 = vsub.s32 %v4994, %v4996
        %v4998 = vrot.slane %v4779, %v4997
        %v5000 = vunpack.c.l.s4 1983009808
        %v5001 = vunpack.c.0.s8 %v5000
        %v5002 = vlaneseq
        %v5003 = vshrl.u32 %v5002, 7
        %v5004 = vsub.s32 %v5001, %v5003
        %v5005 = vrot.slane %v4991, %v5004
        %v5006 = vcombine.high %v4998, 0.0
        %v5008 = vunpack.c.l.s4 1934713408
        %v5009 = vunpack.c.0.s8 %v5008
        %v5010 = vlaneseq
        %v5011 = vshrl.u32 %v5010, 7
        %v5012 = vsub.s32 %v5009, %v5011
        %v5013 = vrot.slane %v4998, %v5012
        %v5015 = vunpack.c.l.s4 1934713408
        %v5016 = vunpack.c.0.s8 %v5015
        %v5017 = vlaneseq
        %v5018 = vshrl.u32 %v5017, 7
        %v5019 = vsub.s32 %v5016, %v5018
        %v5020 = vrot.slane %v5006, %v5019
        %v5021 = vcombine.high %v5005, 0.0
        %v5023 = vunpack.c.l.s4 1934713408
        %v5024 = vunpack.c.0.s8 %v5023
        %v5025 = vlaneseq
        %v5026 = vshrl.u32 %v5025, 7
        %v5027 = vsub.s32 %v5024, %v5026
        %v5028 = vrot.slane %v5005, %v5027
        %v5030 = vunpack.c.l.s4 1934713408
        %v5031 = vunpack.c.0.s8 %v5030
        %v5032 = vlaneseq
        %v5033 = vshrl.u32 %v5032, 7
        %v5034 = vsub.s32 %v5031, %v5033
        %v5035 = vrot.slane %v5021, %v5034
        %v5036 = vcombine.high %v5013, 0.0
        %v5037 = vcombine.high %v5020, 0.0
        %v5038 = vcombine.high %v5028, 0.0
        %v5039 = vcombine.high %v5035, 0.0
        %v5040 = vcombine.high %v4783, 0.0
        %v5042 = vunpack.c.l.s4 1983009808
        %v5043 = vunpack.c.0.s8 %v5042
        %v5044 = vlaneseq
        %v5045 = vshrl.u32 %v5044, 7
        %v5046 = vsub.s32 %v5043, %v5045
        %v5047 = vrot.slane %v4783, %v5046
        %v5049 = vunpack.c.l.s4 1983009808
        %v5050 = vunpack.c.0.s8 %v5049
        %v5051 = vlaneseq
        %v5052 = vshrl.u32 %v5051, 7
        %v5053 = vsub.s32 %v5050, %v5052
        %v5054 = vrot.slane %v5040, %v5053
        %v5055 = vcombine.high %v5047, 0.0
        %v5057 = vunpack.c.l.s4 1934713408
        %v5058 = vunpack.c.0.s8 %v5057
        %v5059 = vlaneseq
        %v5060 = vshrl.u32 %v5059, 7
        %v5061 = vsub.s32 %v5058, %v5060
        %v5062 = vrot.slane %v5047, %v5061
        %v5064 = vunpack.c.l.s4 1934713408
        %v5065 = vunpack.c.0.s8 %v5064
        %v5066 = vlaneseq
        %v5067 = vshrl.u32 %v5066, 7
        %v5068 = vsub.s32 %v5065, %v5067
        %v5069 = vrot.slane %v5055, %v5068
        %v5070 = vcombine.high %v5054, 0.0
        %v5072 = vunpack.c.l.s4 1934713408
        %v5073 = vunpack.c.0.s8 %v5072
        %v5074 = vlaneseq
        %v5075 = vshrl.u32 %v5074, 7
        %v5076 = vsub.s32 %v5073, %v5075
        %v5077 = vrot.slane %v5054, %v5076
        %v5079 = vunpack.c.l.s4 1934713408
        %v5080 = vunpack.c.0.s8 %v5079
        %v5081 = vlaneseq
        %v5082 = vshrl.u32 %v5081, 7
        %v5083 = vsub.s32 %v5080, %v5082
        %v5084 = vrot.slane %v5070, %v5083
        %v5085 = vcombine.high %v5062, 0.0
        %v5086 = vcombine.high %v5069, 0.0
        %v5087 = vcombine.high %v5077, 0.0
        %v5088 = vcombine.high %v5084, 0.0
        %v5089 = vcombine.high %v4790, 0.0
        %v5091 = vunpack.c.l.s4 1983009808
        %v5092 = vunpack.c.0.s8 %v5091
        %v5093 = vlaneseq
        %v5094 = vshrl.u32 %v5093, 7
        %v5095 = vsub.s32 %v5092, %v5094
        %v5096 = vrot.slane %v4790, %v5095
        %v5098 = vunpack.c.l.s4 1983009808
        %v5099 = vunpack.c.0.s8 %v5098
        %v5100 = vlaneseq
        %v5101 = vshrl.u32 %v5100, 7
        %v5102 = vsub.s32 %v5099, %v5101
        %v5103 = vrot.slane %v5089, %v5102
        %v5104 = vcombine.high %v5096, 0.0
        %v5106 = vunpack.c.l.s4 1934713408
        %v5107 = vunpack.c.0.s8 %v5106
        %v5108 = vlaneseq
        %v5109 = vshrl.u32 %v5108, 7
        %v5110 = vsub.s32 %v5107, %v5109
        %v5111 = vrot.slane %v5096, %v5110
        %v5113 = vunpack.c.l.s4 1934713408
        %v5114 = vunpack.c.0.s8 %v5113
        %v5115 = vlaneseq
        %v5116 = vshrl.u32 %v5115, 7
        %v5117 = vsub.s32 %v5114, %v5116
        %v5118 = vrot.slane %v5104, %v5117
        %v5119 = vcombine.high %v5103, 0.0
        %v5121 = vunpack.c.l.s4 1934713408
        %v5122 = vunpack.c.0.s8 %v5121
        %v5123 = vlaneseq
        %v5124 = vshrl.u32 %v5123, 7
        %v5125 = vsub.s32 %v5122, %v5124
        %v5126 = vrot.slane %v5103, %v5125
        %v5128 = vunpack.c.l.s4 1934713408
        %v5129 = vunpack.c.0.s8 %v5128
        %v5130 = vlaneseq
        %v5131 = vshrl.u32 %v5130, 7
        %v5132 = vsub.s32 %v5129, %v5131
        %v5133 = vrot.slane %v5119, %v5132
        %v5134 = vcombine.high %v5111, 0.0
        %v5135 = vcombine.high %v5118, 0.0
        %v5136 = vcombine.high %v5126, 0.0
        %v5137 = vcombine.high %v5133, 0.0
        %v5138 = vcombine.high %v4794, 0.0
        %v5140 = vunpack.c.l.s4 1983009808
        %v5141 = vunpack.c.0.s8 %v5140
        %v5142 = vlaneseq
        %v5143 = vshrl.u32 %v5142, 7
        %v5144 = vsub.s32 %v5141, %v5143
        %v5145 = vrot.slane %v4794, %v5144
        %v5147 = vunpack.c.l.s4 1983009808
        %v5148 = vunpack.c.0.s8 %v5147
        %v5149 = vlaneseq
        %v5150 = vshrl.u32 %v5149, 7
        %v5151 = vsub.s32 %v5148, %v5150
        %v5152 = vrot.slane %v5138, %v5151
        %v5153 = vcombine.high %v5145, 0.0
        %v5155 = vunpack.c.l.s4 1934713408
        %v5156 = vunpack.c.0.s8 %v5155
        %v5157 = vlaneseq
        %v5158 = vshrl.u32 %v5157, 7
        %v5159 = vsub.s32 %v5156, %v5158
        %v5160 = vrot.slane %v5145, %v5159
        %v5162 = vunpack.c.l.s4 1934713408
        %v5163 = vunpack.c.0.s8 %v5162
        %v5164 = vlaneseq
        %v5165 = vshrl.u32 %v5164, 7
        %v5166 = vsub.s32 %v5163, %v5165
        %v5167 = vrot.slane %v5153, %v5166
        %v5168 = vcombine.high %v5152, 0.0
        %v5170 = vunpack.c.l.s4 1934713408
        %v5171 = vunpack.c.0.s8 %v5170
        %v5172 = vlaneseq
        %v5173 = vshrl.u32 %v5172, 7
        %v5174 = vsub.s32 %v5171, %v5173
        %v5175 = vrot.slane %v5152, %v5174
        %v5177 = vunpack.c.l.s4 1934713408
        %v5178 = vunpack.c.0.s8 %v5177
        %v5179 = vlaneseq
        %v5180 = vshrl.u32 %v5179, 7
        %v5181 = vsub.s32 %v5178, %v5180
        %v5182 = vrot.slane %v5168, %v5181
        %v5183 = vcombine.high %v5160, 0.0
        %v5184 = vcombine.high %v5167, 0.0
        %v5185 = vcombine.high %v5175, 0.0
        %v5186 = vcombine.high %v5182, 0.0
        %5191 = vrot.lane.b32.xlu0 %v4840, 2
        %v5192 = vpop.permute.xlu0 %5191
        %5193 = vrot.lane.b32.xlu0 %v4938, 2
        %v5194 = vpop.permute.xlu0 %5193
        %5195 = vrot.lane.b32.xlu0 %v5036, 2
        %v5196 = vpop.permute.xlu0 %5195
        %5197 = vrot.lane.b32.xlu0 %v5134, 2
        %v5198 = vpop.permute.xlu0 %5197
        %5207 = vrot.lane.b32.xlu0 %v4824, 4
        %v5208 = vpop.permute.xlu0 %5207
        %5209 = vrot.lane.b32.xlu0 %v4922, 4
        %v5210 = vpop.permute.xlu0 %5209
        %5211 = vrot.lane.b32.xlu0 %v5020, 4
        %v5212 = vpop.permute.xlu0 %5211
        %5213 = vrot.lane.b32.xlu0 %v5118, 4
        %v5214 = vpop.permute.xlu0 %5213
        %5223 = vrot.lane.b32.xlu0 %v4841, 6
        %v5224 = vpop.permute.xlu0 %5223
        %5225 = vrot.lane.b32.xlu0 %v4939, 6
        %v5226 = vpop.permute.xlu0 %5225
        %5227 = vrot.lane.b32.xlu0 %v5037, 6
        %v5228 = vpop.permute.xlu0 %5227
        %5229 = vrot.lane.b32.xlu0 %v5135, 6
        %v5230 = vpop.permute.xlu0 %5229
        %5239 = vrot.lane.b32.xlu0 %v4832, 8
        %v5240 = vpop.permute.xlu0 %5239
        %5241 = vrot.lane.b32.xlu0 %v4930, 8
        %v5242 = vpop.permute.xlu0 %5241
        %5243 = vrot.lane.b32.xlu0 %v5028, 8
        %v5244 = vpop.permute.xlu0 %5243
        %5245 = vrot.lane.b32.xlu0 %v5126, 8
        %v5246 = vpop.permute.xlu0 %5245
        %5255 = vrot.lane.b32.xlu0 %v4842, 10
        %v5256 = vpop.permute.xlu0 %5255
        %5257 = vrot.lane.b32.xlu0 %v4940, 10
        %v5258 = vpop.permute.xlu0 %5257
        %5259 = vrot.lane.b32.xlu0 %v5038, 10
        %v5260 = vpop.permute.xlu0 %5259
        %5261 = vrot.lane.b32.xlu0 %v5136, 10
        %v5262 = vpop.permute.xlu0 %5261
        %5271 = vrot.lane.b32.xlu0 %v4839, 12
        %v5272 = vpop.permute.xlu0 %5271
        %5273 = vrot.lane.b32.xlu0 %v4937, 12
        %v5274 = vpop.permute.xlu0 %5273
        %5275 = vrot.lane.b32.xlu0 %v5035, 12
        %v5276 = vpop.permute.xlu0 %5275
        %5277 = vrot.lane.b32.xlu0 %v5133, 12
        %v5278 = vpop.permute.xlu0 %5277
        %5287 = vrot.lane.b32.xlu0 %v4843, 14
        %v5288 = vpop.permute.xlu0 %5287
        %5289 = vrot.lane.b32.xlu0 %v4941, 14
        %v5290 = vpop.permute.xlu0 %5289
        %5291 = vrot.lane.b32.xlu0 %v5039, 14
        %v5292 = vpop.permute.xlu0 %5291
        %5293 = vrot.lane.b32.xlu0 %v5137, 14
        %v5294 = vpop.permute.xlu0 %5293
        %5303 = vrot.lane.b32.xlu0 %v4866, 16
        %v5304 = vpop.permute.xlu0 %5303
        %5305 = vrot.lane.b32.xlu0 %v4964, 16
        %v5306 = vpop.permute.xlu0 %5305
        %5307 = vrot.lane.b32.xlu0 %v5062, 16
        %v5308 = vpop.permute.xlu0 %5307
        %5309 = vrot.lane.b32.xlu0 %v5160, 16
        %v5310 = vpop.permute.xlu0 %5309
        %5319 = vrot.lane.b32.xlu0 %v4889, 18
        %v5320 = vpop.permute.xlu0 %5319
        %5321 = vrot.lane.b32.xlu0 %v4987, 18
        %v5322 = vpop.permute.xlu0 %5321
        %5323 = vrot.lane.b32.xlu0 %v5085, 18
        %v5324 = vpop.permute.xlu0 %5323
        %5325 = vrot.lane.b32.xlu0 %v5183, 18
        %v5326 = vpop.permute.xlu0 %5325
        %5335 = vrot.lane.b32.xlu0 %v4873, 20
        %v5336 = vpop.permute.xlu0 %5335
        %5337 = vrot.lane.b32.xlu0 %v4971, 20
        %v5338 = vpop.permute.xlu0 %5337
        %5339 = vrot.lane.b32.xlu0 %v5069, 20
        %v5340 = vpop.permute.xlu0 %5339
        %5341 = vrot.lane.b32.xlu0 %v5167, 20
        %v5342 = vpop.permute.xlu0 %5341
        %5351 = vrot.lane.b32.xlu0 %v4890, 22
        %v5352 = vpop.permute.xlu0 %5351
        %5353 = vrot.lane.b32.xlu0 %v4988, 22
        %v5354 = vpop.permute.xlu0 %5353
        %5355 = vrot.lane.b32.xlu0 %v5086, 22
        %v5356 = vpop.permute.xlu0 %5355
        %5357 = vrot.lane.b32.xlu0 %v5184, 22
        %v5358 = vpop.permute.xlu0 %5357
        %5367 = vrot.lane.b32.xlu0 %v4881, 24
        %v5368 = vpop.permute.xlu0 %5367
        %5369 = vrot.lane.b32.xlu0 %v4979, 24
        %v5370 = vpop.permute.xlu0 %5369
        %5371 = vrot.lane.b32.xlu0 %v5077, 24
        %v5372 = vpop.permute.xlu0 %5371
        %5373 = vrot.lane.b32.xlu0 %v5175, 24
        %v5374 = vpop.permute.xlu0 %5373
        %5383 = vrot.lane.b32.xlu0 %v4891, 26
        %v5384 = vpop.permute.xlu0 %5383
        %5385 = vrot.lane.b32.xlu0 %v4989, 26
        %v5386 = vpop.permute.xlu0 %5385
        %5387 = vrot.lane.b32.xlu0 %v5087, 26
        %v5388 = vpop.permute.xlu0 %5387
        %5389 = vrot.lane.b32.xlu0 %v5185, 26
        %v5390 = vpop.permute.xlu0 %5389
        %5399 = vrot.lane.b32.xlu0 %v4888, 28
        %v5400 = vpop.permute.xlu0 %5399
        %5401 = vrot.lane.b32.xlu0 %v4986, 28
        %v5402 = vpop.permute.xlu0 %5401
        %5403 = vrot.lane.b32.xlu0 %v5084, 28
        %v5404 = vpop.permute.xlu0 %5403
        %5405 = vrot.lane.b32.xlu0 %v5182, 28
        %v5406 = vpop.permute.xlu0 %5405
        %5415 = vrot.lane.b32.xlu0 %v4892, 30
        %v5416 = vpop.permute.xlu0 %5415
        %5417 = vrot.lane.b32.xlu0 %v4990, 30
        %v5418 = vpop.permute.xlu0 %5417
        %5419 = vrot.lane.b32.xlu0 %v5088, 30
        %v5420 = vpop.permute.xlu0 %5419
        %5421 = vrot.lane.b32.xlu0 %v5186, 30
        %v5422 = vpop.permute.xlu0 %5421
        %v5427 = vsel %vm851, %v4817, %v5192
        %v5428 = vsel %vm851, %v4915, %v5194
        %v5429 = vsel %vm851, %v5013, %v5196
        %v5430 = vsel %vm851, %v5111, %v5198
        %v5431 = vsel %vm856, %v5427, %v5208
        %v5432 = vsel %vm856, %v5428, %v5210
        %v5433 = vsel %vm856, %v5429, %v5212
        %v5434 = vsel %vm856, %v5430, %v5214
        %v5435 = vsel %vm861, %v5431, %v5224
        %v5436 = vsel %vm861, %v5432, %v5226
        %v5437 = vsel %vm861, %v5433, %v5228
        %v5438 = vsel %vm861, %v5434, %v5230
        %v5439 = vsel %vm866, %v5435, %v5240
        %v5440 = vsel %vm866, %v5436, %v5242
        %v5441 = vsel %vm866, %v5437, %v5244
        %v5442 = vsel %vm866, %v5438, %v5246
        %v5443 = vsel %vm871, %v5439, %v5256
        %v5444 = vsel %vm871, %v5440, %v5258
        %v5445 = vsel %vm871, %v5441, %v5260
        %v5446 = vsel %vm871, %v5442, %v5262
        %v5447 = vsel %vm876, %v5443, %v5272
        %v5448 = vsel %vm876, %v5444, %v5274
        %v5449 = vsel %vm876, %v5445, %v5276
        %v5450 = vsel %vm876, %v5446, %v5278
        %v5451 = vsel %vm881, %v5447, %v5288
        %v5452 = vsel %vm881, %v5448, %v5290
        %v5453 = vsel %vm881, %v5449, %v5292
        %v5454 = vsel %vm881, %v5450, %v5294
        %v5455 = vsel %vm886, %v5451, %v5304
        %v5456 = vsel %vm886, %v5452, %v5306
        %v5457 = vsel %vm886, %v5453, %v5308
        %v5458 = vsel %vm886, %v5454, %v5310
        %v5459 = vsel %vm891, %v5455, %v5320
        %v5460 = vsel %vm891, %v5456, %v5322
        %v5461 = vsel %vm891, %v5457, %v5324
        %v5462 = vsel %vm891, %v5458, %v5326
        %v5463 = vsel %vm896, %v5459, %v5336
        %v5464 = vsel %vm896, %v5460, %v5338
        %v5465 = vsel %vm896, %v5461, %v5340
        %v5466 = vsel %vm896, %v5462, %v5342
        %v5467 = vsel %vm901, %v5463, %v5352
        %v5468 = vsel %vm901, %v5464, %v5354
        %v5469 = vsel %vm901, %v5465, %v5356
        %v5470 = vsel %vm901, %v5466, %v5358
        %v5471 = vsel %vm906, %v5467, %v5368
        %v5472 = vsel %vm906, %v5468, %v5370
        %v5473 = vsel %vm906, %v5469, %v5372
        %v5474 = vsel %vm906, %v5470, %v5374
        %v5475 = vsel %vm911, %v5471, %v5384
        %v5476 = vsel %vm911, %v5472, %v5386
        %v5477 = vsel %vm911, %v5473, %v5388
        %v5478 = vsel %vm911, %v5474, %v5390
        %v5479 = vsel %vm916, %v5475, %v5400
        %v5480 = vsel %vm916, %v5476, %v5402
        %v5481 = vsel %vm916, %v5477, %v5404
        %v5482 = vsel %vm916, %v5478, %v5406
        %v5483 = vsel %vm921, %v5479, %v5416
        %v5484 = vsel %vm921, %v5480, %v5418
        %v5485 = vsel %vm921, %v5481, %v5420
        %v5486 = vsel %vm921, %v5482, %v5422
        %v5487 = vlaneseq
        %v5488 = vshrl.u32 %v5487, 7
        %v5489 = vsub.s32 0, %v5488
        %v5490 = vrot.slane %v5483, %v5489
        %v5491 = vlaneseq
        %v5492 = vshrl.u32 %v5491, 7
        %v5493 = vsub.s32 0, %v5492
        %v5494 = vrot.slane %v5484, %v5493
        %v5495 = vlaneseq
        %v5496 = vshrl.u32 %v5495, 7
        %v5497 = vsub.s32 0, %v5496
        %v5498 = vrot.slane %v5485, %v5497
        %v5499 = vlaneseq
        %v5500 = vshrl.u32 %v5499, 7
        %v5501 = vsub.s32 0, %v5500
        %v5502 = vrot.slane %v5486, %v5501
        %5503 = vst.msk [vmem:[%s166 + $0xc] sm:$0x3] %vm942, %v5490
        %5504 = vst.msk [vmem:[%s166 + $0x2c] sm:$0x3] %vm942, %v5494
        %5505 = vst.msk [vmem:[%s166 + $0x4c] sm:$0x3] %vm942, %v5498
        %5506 = vst.msk [vmem:[%s166 + $0x6c] sm:$0x3] %vm942, %v5502
        %v5507 = vld [vmem:[%s148 + $0x7] sm:$0x1]
        %v5508 = vld [vmem:[%s148 + $0x17] sm:$0x1]
        %v5509 = vld [vmem:[%s148 + $0x27] sm:$0x1]
        %v5510 = vld [vmem:[%s148 + $0x37] sm:$0x1]
        %v5511 = vlaneseq
        %v5512 = vshrl.u32 %v5511, 7
        %v5513 = vsub.s32 0, %v5512
        %v5514 = vrot.slane %v5507, %v5513
        %5516 = vbcast.lane.b32.xlu0 %v5514, 256
        %v5517 = vpop.permute.xlu0 %5516
        %s5519 = sor.u32 256, 8
        %5520 = vbcast.lane.b32.xlu0 %v5514, %s5519
        %v5521 = vpop.permute.xlu0 %5520
        %v5522 = vlaneseq
        %v5523 = vshrl.u32 %v5522, 7
        %v5524 = vsub.s32 0, %v5523
        %v5525 = vrot.slane %v5508, %v5524
        %5527 = vbcast.lane.b32.xlu0 %v5525, 256
        %v5528 = vpop.permute.xlu0 %5527
        %s5530 = sor.u32 256, 8
        %5531 = vbcast.lane.b32.xlu0 %v5525, %s5530
        %v5532 = vpop.permute.xlu0 %5531
        %v5533 = vlaneseq
        %v5534 = vshrl.u32 %v5533, 7
        %v5535 = vsub.s32 0, %v5534
        %v5536 = vrot.slane %v5509, %v5535
        %5538 = vbcast.lane.b32.xlu0 %v5536, 256
        %v5539 = vpop.permute.xlu0 %5538
        %s5541 = sor.u32 256, 8
        %5542 = vbcast.lane.b32.xlu0 %v5536, %s5541
        %v5543 = vpop.permute.xlu0 %5542
        %v5544 = vlaneseq
        %v5545 = vshrl.u32 %v5544, 7
        %v5546 = vsub.s32 0, %v5545
        %v5547 = vrot.slane %v5510, %v5546
        %5549 = vbcast.lane.b32.xlu0 %v5547, 256
        %v5550 = vpop.permute.xlu0 %5549
        %s5552 = sor.u32 256, 8
        %5553 = vbcast.lane.b32.xlu0 %v5547, %s5552
        %v5554 = vpop.permute.xlu0 %5553
        %v5555 = vcombine.high %v5517, 0.0
        %v5557 = vunpack.c.l.s4 1983009808
        %v5558 = vunpack.c.0.s8 %v5557
        %v5559 = vlaneseq
        %v5560 = vshrl.u32 %v5559, 7
        %v5561 = vsub.s32 %v5558, %v5560
        %v5562 = vrot.slane %v5517, %v5561
        %v5564 = vunpack.c.l.s4 1983009808
        %v5565 = vunpack.c.0.s8 %v5564
        %v5566 = vlaneseq
        %v5567 = vshrl.u32 %v5566, 7
        %v5568 = vsub.s32 %v5565, %v5567
        %v5569 = vrot.slane %v5555, %v5568
        %v5570 = vcombine.high %v5562, 0.0
        %v5572 = vunpack.c.l.s4 1934713408
        %v5573 = vunpack.c.0.s8 %v5572
        %v5574 = vlaneseq
        %v5575 = vshrl.u32 %v5574, 7
        %v5576 = vsub.s32 %v5573, %v5575
        %v5577 = vrot.slane %v5562, %v5576
        %v5579 = vunpack.c.l.s4 1934713408
        %v5580 = vunpack.c.0.s8 %v5579
        %v5581 = vlaneseq
        %v5582 = vshrl.u32 %v5581, 7
        %v5583 = vsub.s32 %v5580, %v5582
        %v5584 = vrot.slane %v5570, %v5583
        %v5585 = vcombine.high %v5569, 0.0
        %v5587 = vunpack.c.l.s4 1934713408
        %v5588 = vunpack.c.0.s8 %v5587
        %v5589 = vlaneseq
        %v5590 = vshrl.u32 %v5589, 7
        %v5591 = vsub.s32 %v5588, %v5590
        %v5592 = vrot.slane %v5569, %v5591
        %v5594 = vunpack.c.l.s4 1934713408
        %v5595 = vunpack.c.0.s8 %v5594
        %v5596 = vlaneseq
        %v5597 = vshrl.u32 %v5596, 7
        %v5598 = vsub.s32 %v5595, %v5597
        %v5599 = vrot.slane %v5585, %v5598
        %v5600 = vcombine.high %v5577, 0.0
        %v5601 = vcombine.high %v5584, 0.0
        %v5602 = vcombine.high %v5592, 0.0
        %v5603 = vcombine.high %v5599, 0.0
        %v5604 = vcombine.high %v5521, 0.0
        %v5606 = vunpack.c.l.s4 1983009808
        %v5607 = vunpack.c.0.s8 %v5606
        %v5608 = vlaneseq
        %v5609 = vshrl.u32 %v5608, 7
        %v5610 = vsub.s32 %v5607, %v5609
        %v5611 = vrot.slane %v5521, %v5610
        %v5613 = vunpack.c.l.s4 1983009808
        %v5614 = vunpack.c.0.s8 %v5613
        %v5615 = vlaneseq
        %v5616 = vshrl.u32 %v5615, 7
        %v5617 = vsub.s32 %v5614, %v5616
        %v5618 = vrot.slane %v5604, %v5617
        %v5619 = vcombine.high %v5611, 0.0
        %v5621 = vunpack.c.l.s4 1934713408
        %v5622 = vunpack.c.0.s8 %v5621
        %v5623 = vlaneseq
        %v5624 = vshrl.u32 %v5623, 7
        %v5625 = vsub.s32 %v5622, %v5624
        %v5626 = vrot.slane %v5611, %v5625
        %v5628 = vunpack.c.l.s4 1934713408
        %v5629 = vunpack.c.0.s8 %v5628
        %v5630 = vlaneseq
        %v5631 = vshrl.u32 %v5630, 7
        %v5632 = vsub.s32 %v5629, %v5631
        %v5633 = vrot.slane %v5619, %v5632
        %v5634 = vcombine.high %v5618, 0.0
        %v5636 = vunpack.c.l.s4 1934713408
        %v5637 = vunpack.c.0.s8 %v5636
        %v5638 = vlaneseq
        %v5639 = vshrl.u32 %v5638, 7
        %v5640 = vsub.s32 %v5637, %v5639
        %v5641 = vrot.slane %v5618, %v5640
        %v5643 = vunpack.c.l.s4 1934713408
        %v5644 = vunpack.c.0.s8 %v5643
        %v5645 = vlaneseq
        %v5646 = vshrl.u32 %v5645, 7
        %v5647 = vsub.s32 %v5644, %v5646
        %v5648 = vrot.slane %v5634, %v5647
        %v5649 = vcombine.high %v5626, 0.0
        %v5650 = vcombine.high %v5633, 0.0
        %v5651 = vcombine.high %v5641, 0.0
        %v5652 = vcombine.high %v5648, 0.0
        %v5653 = vcombine.high %v5528, 0.0
        %v5655 = vunpack.c.l.s4 1983009808
        %v5656 = vunpack.c.0.s8 %v5655
        %v5657 = vlaneseq
        %v5658 = vshrl.u32 %v5657, 7
        %v5659 = vsub.s32 %v5656, %v5658
        %v5660 = vrot.slane %v5528, %v5659
        %v5662 = vunpack.c.l.s4 1983009808
        %v5663 = vunpack.c.0.s8 %v5662
        %v5664 = vlaneseq
        %v5665 = vshrl.u32 %v5664, 7
        %v5666 = vsub.s32 %v5663, %v5665
        %v5667 = vrot.slane %v5653, %v5666
        %v5668 = vcombine.high %v5660, 0.0
        %v5670 = vunpack.c.l.s4 1934713408
        %v5671 = vunpack.c.0.s8 %v5670
        %v5672 = vlaneseq
        %v5673 = vshrl.u32 %v5672, 7
        %v5674 = vsub.s32 %v5671, %v5673
        %v5675 = vrot.slane %v5660, %v5674
        %v5677 = vunpack.c.l.s4 1934713408
        %v5678 = vunpack.c.0.s8 %v5677
        %v5679 = vlaneseq
        %v5680 = vshrl.u32 %v5679, 7
        %v5681 = vsub.s32 %v5678, %v5680
        %v5682 = vrot.slane %v5668, %v5681
        %v5683 = vcombine.high %v5667, 0.0
        %v5685 = vunpack.c.l.s4 1934713408
        %v5686 = vunpack.c.0.s8 %v5685
        %v5687 = vlaneseq
        %v5688 = vshrl.u32 %v5687, 7
        %v5689 = vsub.s32 %v5686, %v5688
        %v5690 = vrot.slane %v5667, %v5689
        %v5692 = vunpack.c.l.s4 1934713408
        %v5693 = vunpack.c.0.s8 %v5692
        %v5694 = vlaneseq
        %v5695 = vshrl.u32 %v5694, 7
        %v5696 = vsub.s32 %v5693, %v5695
        %v5697 = vrot.slane %v5683, %v5696
        %v5698 = vcombine.high %v5675, 0.0
        %v5699 = vcombine.high %v5682, 0.0
        %v5700 = vcombine.high %v5690, 0.0
        %v5701 = vcombine.high %v5697, 0.0
        %v5702 = vcombine.high %v5532, 0.0
        %v5704 = vunpack.c.l.s4 1983009808
        %v5705 = vunpack.c.0.s8 %v5704
        %v5706 = vlaneseq
        %v5707 = vshrl.u32 %v5706, 7
        %v5708 = vsub.s32 %v5705, %v5707
        %v5709 = vrot.slane %v5532, %v5708
        %v5711 = vunpack.c.l.s4 1983009808
        %v5712 = vunpack.c.0.s8 %v5711
        %v5713 = vlaneseq
        %v5714 = vshrl.u32 %v5713, 7
        %v5715 = vsub.s32 %v5712, %v5714
        %v5716 = vrot.slane %v5702, %v5715
        %v5717 = vcombine.high %v5709, 0.0
        %v5719 = vunpack.c.l.s4 1934713408
        %v5720 = vunpack.c.0.s8 %v5719
        %v5721 = vlaneseq
        %v5722 = vshrl.u32 %v5721, 7
        %v5723 = vsub.s32 %v5720, %v5722
        %v5724 = vrot.slane %v5709, %v5723
        %v5726 = vunpack.c.l.s4 1934713408
        %v5727 = vunpack.c.0.s8 %v5726
        %v5728 = vlaneseq
        %v5729 = vshrl.u32 %v5728, 7
        %v5730 = vsub.s32 %v5727, %v5729
        %v5731 = vrot.slane %v5717, %v5730
        %v5732 = vcombine.high %v5716, 0.0
        %v5734 = vunpack.c.l.s4 1934713408
        %v5735 = vunpack.c.0.s8 %v5734
        %v5736 = vlaneseq
        %v5737 = vshrl.u32 %v5736, 7
        %v5738 = vsub.s32 %v5735, %v5737
        %v5739 = vrot.slane %v5716, %v5738
        %v5741 = vunpack.c.l.s4 1934713408
        %v5742 = vunpack.c.0.s8 %v5741
        %v5743 = vlaneseq
        %v5744 = vshrl.u32 %v5743, 7
        %v5745 = vsub.s32 %v5742, %v5744
        %v5746 = vrot.slane %v5732, %v5745
        %v5747 = vcombine.high %v5724, 0.0
        %v5748 = vcombine.high %v5731, 0.0
        %v5749 = vcombine.high %v5739, 0.0
        %v5750 = vcombine.high %v5746, 0.0
        %v5751 = vcombine.high %v5539, 0.0
        %v5753 = vunpack.c.l.s4 1983009808
        %v5754 = vunpack.c.0.s8 %v5753
        %v5755 = vlaneseq
        %v5756 = vshrl.u32 %v5755, 7
        %v5757 = vsub.s32 %v5754, %v5756
        %v5758 = vrot.slane %v5539, %v5757
        %v5760 = vunpack.c.l.s4 1983009808
        %v5761 = vunpack.c.0.s8 %v5760
        %v5762 = vlaneseq
        %v5763 = vshrl.u32 %v5762, 7
        %v5764 = vsub.s32 %v5761, %v5763
        %v5765 = vrot.slane %v5751, %v5764
        %v5766 = vcombine.high %v5758, 0.0
        %v5768 = vunpack.c.l.s4 1934713408
        %v5769 = vunpack.c.0.s8 %v5768
        %v5770 = vlaneseq
        %v5771 = vshrl.u32 %v5770, 7
        %v5772 = vsub.s32 %v5769, %v5771
        %v5773 = vrot.slane %v5758, %v5772
        %v5775 = vunpack.c.l.s4 1934713408
        %v5776 = vunpack.c.0.s8 %v5775
        %v5777 = vlaneseq
        %v5778 = vshrl.u32 %v5777, 7
        %v5779 = vsub.s32 %v5776, %v5778
        %v5780 = vrot.slane %v5766, %v5779
        %v5781 = vcombine.high %v5765, 0.0
        %v5783 = vunpack.c.l.s4 1934713408
        %v5784 = vunpack.c.0.s8 %v5783
        %v5785 = vlaneseq
        %v5786 = vshrl.u32 %v5785, 7
        %v5787 = vsub.s32 %v5784, %v5786
        %v5788 = vrot.slane %v5765, %v5787
        %v5790 = vunpack.c.l.s4 1934713408
        %v5791 = vunpack.c.0.s8 %v5790
        %v5792 = vlaneseq
        %v5793 = vshrl.u32 %v5792, 7
        %v5794 = vsub.s32 %v5791, %v5793
        %v5795 = vrot.slane %v5781, %v5794
        %v5796 = vcombine.high %v5773, 0.0
        %v5797 = vcombine.high %v5780, 0.0
        %v5798 = vcombine.high %v5788, 0.0
        %v5799 = vcombine.high %v5795, 0.0
        %v5800 = vcombine.high %v5543, 0.0
        %v5802 = vunpack.c.l.s4 1983009808
        %v5803 = vunpack.c.0.s8 %v5802
        %v5804 = vlaneseq
        %v5805 = vshrl.u32 %v5804, 7
        %v5806 = vsub.s32 %v5803, %v5805
        %v5807 = vrot.slane %v5543, %v5806
        %v5809 = vunpack.c.l.s4 1983009808
        %v5810 = vunpack.c.0.s8 %v5809
        %v5811 = vlaneseq
        %v5812 = vshrl.u32 %v5811, 7
        %v5813 = vsub.s32 %v5810, %v5812
        %v5814 = vrot.slane %v5800, %v5813
        %v5815 = vcombine.high %v5807, 0.0
        %v5817 = vunpack.c.l.s4 1934713408
        %v5818 = vunpack.c.0.s8 %v5817
        %v5819 = vlaneseq
        %v5820 = vshrl.u32 %v5819, 7
        %v5821 = vsub.s32 %v5818, %v5820
        %v5822 = vrot.slane %v5807, %v5821
        %v5824 = vunpack.c.l.s4 1934713408
        %v5825 = vunpack.c.0.s8 %v5824
        %v5826 = vlaneseq
        %v5827 = vshrl.u32 %v5826, 7
        %v5828 = vsub.s32 %v5825, %v5827
        %v5829 = vrot.slane %v5815, %v5828
        %v5830 = vcombine.high %v5814, 0.0
        %v5832 = vunpack.c.l.s4 1934713408
        %v5833 = vunpack.c.0.s8 %v5832
        %v5834 = vlaneseq
        %v5835 = vshrl.u32 %v5834, 7
        %v5836 = vsub.s32 %v5833, %v5835
        %v5837 = vrot.slane %v5814, %v5836
        %v5839 = vunpack.c.l.s4 1934713408
        %v5840 = vunpack.c.0.s8 %v5839
        %v5841 = vlaneseq
        %v5842 = vshrl.u32 %v5841, 7
        %v5843 = vsub.s32 %v5840, %v5842
        %v5844 = vrot.slane %v5830, %v5843
        %v5845 = vcombine.high %v5822, 0.0
        %v5846 = vcombine.high %v5829, 0.0
        %v5847 = vcombine.high %v5837, 0.0
        %v5848 = vcombine.high %v5844, 0.0
        %v5849 = vcombine.high %v5550, 0.0
        %v5851 = vunpack.c.l.s4 1983009808
        %v5852 = vunpack.c.0.s8 %v5851
        %v5853 = vlaneseq
        %v5854 = vshrl.u32 %v5853, 7
        %v5855 = vsub.s32 %v5852, %v5854
        %v5856 = vrot.slane %v5550, %v5855
        %v5858 = vunpack.c.l.s4 1983009808
        %v5859 = vunpack.c.0.s8 %v5858
        %v5860 = vlaneseq
        %v5861 = vshrl.u32 %v5860, 7
        %v5862 = vsub.s32 %v5859, %v5861
        %v5863 = vrot.slane %v5849, %v5862
        %v5864 = vcombine.high %v5856, 0.0
        %v5866 = vunpack.c.l.s4 1934713408
        %v5867 = vunpack.c.0.s8 %v5866
        %v5868 = vlaneseq
        %v5869 = vshrl.u32 %v5868, 7
        %v5870 = vsub.s32 %v5867, %v5869
        %v5871 = vrot.slane %v5856, %v5870
        %v5873 = vunpack.c.l.s4 1934713408
        %v5874 = vunpack.c.0.s8 %v5873
        %v5875 = vlaneseq
        %v5876 = vshrl.u32 %v5875, 7
        %v5877 = vsub.s32 %v5874, %v5876
        %v5878 = vrot.slane %v5864, %v5877
        %v5879 = vcombine.high %v5863, 0.0
        %v5881 = vunpack.c.l.s4 1934713408
        %v5882 = vunpack.c.0.s8 %v5881
        %v5883 = vlaneseq
        %v5884 = vshrl.u32 %v5883, 7
        %v5885 = vsub.s32 %v5882, %v5884
        %v5886 = vrot.slane %v5863, %v5885
        %v5888 = vunpack.c.l.s4 1934713408
        %v5889 = vunpack.c.0.s8 %v5888
        %v5890 = vlaneseq
        %v5891 = vshrl.u32 %v5890, 7
        %v5892 = vsub.s32 %v5889, %v5891
        %v5893 = vrot.slane %v5879, %v5892
        %v5894 = vcombine.high %v5871, 0.0
        %v5895 = vcombine.high %v5878, 0.0
        %v5896 = vcombine.high %v5886, 0.0
        %v5897 = vcombine.high %v5893, 0.0
        %v5898 = vcombine.high %v5554, 0.0
        %v5900 = vunpack.c.l.s4 1983009808
        %v5901 = vunpack.c.0.s8 %v5900
        %v5902 = vlaneseq
        %v5903 = vshrl.u32 %v5902, 7
        %v5904 = vsub.s32 %v5901, %v5903
        %v5905 = vrot.slane %v5554, %v5904
        %v5907 = vunpack.c.l.s4 1983009808
        %v5908 = vunpack.c.0.s8 %v5907
        %v5909 = vlaneseq
        %v5910 = vshrl.u32 %v5909, 7
        %v5911 = vsub.s32 %v5908, %v5910
        %v5912 = vrot.slane %v5898, %v5911
        %v5913 = vcombine.high %v5905, 0.0
        %v5915 = vunpack.c.l.s4 1934713408
        %v5916 = vunpack.c.0.s8 %v5915
        %v5917 = vlaneseq
        %v5918 = vshrl.u32 %v5917, 7
        %v5919 = vsub.s32 %v5916, %v5918
        %v5920 = vrot.slane %v5905, %v5919
        %v5922 = vunpack.c.l.s4 1934713408
        %v5923 = vunpack.c.0.s8 %v5922
        %v5924 = vlaneseq
        %v5925 = vshrl.u32 %v5924, 7
        %v5926 = vsub.s32 %v5923, %v5925
        %v5927 = vrot.slane %v5913, %v5926
        %v5928 = vcombine.high %v5912, 0.0
        %v5930 = vunpack.c.l.s4 1934713408
        %v5931 = vunpack.c.0.s8 %v5930
        %v5932 = vlaneseq
        %v5933 = vshrl.u32 %v5932, 7
        %v5934 = vsub.s32 %v5931, %v5933
        %v5935 = vrot.slane %v5912, %v5934
        %v5937 = vunpack.c.l.s4 1934713408
        %v5938 = vunpack.c.0.s8 %v5937
        %v5939 = vlaneseq
        %v5940 = vshrl.u32 %v5939, 7
        %v5941 = vsub.s32 %v5938, %v5940
        %v5942 = vrot.slane %v5928, %v5941
        %v5943 = vcombine.high %v5920, 0.0
        %v5944 = vcombine.high %v5927, 0.0
        %v5945 = vcombine.high %v5935, 0.0
        %v5946 = vcombine.high %v5942, 0.0
        %5951 = vrot.lane.b32.xlu0 %v5600, 2
        %v5952 = vpop.permute.xlu0 %5951
        %5953 = vrot.lane.b32.xlu0 %v5698, 2
        %v5954 = vpop.permute.xlu0 %5953
        %5955 = vrot.lane.b32.xlu0 %v5796, 2
        %v5956 = vpop.permute.xlu0 %5955
        %5957 = vrot.lane.b32.xlu0 %v5894, 2
        %v5958 = vpop.permute.xlu0 %5957
        %5967 = vrot.lane.b32.xlu0 %v5584, 4
        %v5968 = vpop.permute.xlu0 %5967
        %5969 = vrot.lane.b32.xlu0 %v5682, 4
        %v5970 = vpop.permute.xlu0 %5969
        %5971 = vrot.lane.b32.xlu0 %v5780, 4
        %v5972 = vpop.permute.xlu0 %5971
        %5973 = vrot.lane.b32.xlu0 %v5878, 4
        %v5974 = vpop.permute.xlu0 %5973
        %5983 = vrot.lane.b32.xlu0 %v5601, 6
        %v5984 = vpop.permute.xlu0 %5983
        %5985 = vrot.lane.b32.xlu0 %v5699, 6
        %v5986 = vpop.permute.xlu0 %5985
        %5987 = vrot.lane.b32.xlu0 %v5797, 6
        %v5988 = vpop.permute.xlu0 %5987
        %5989 = vrot.lane.b32.xlu0 %v5895, 6
        %v5990 = vpop.permute.xlu0 %5989
        %5999 = vrot.lane.b32.xlu0 %v5592, 8
        %v6000 = vpop.permute.xlu0 %5999
        %6001 = vrot.lane.b32.xlu0 %v5690, 8
        %v6002 = vpop.permute.xlu0 %6001
        %6003 = vrot.lane.b32.xlu0 %v5788, 8
        %v6004 = vpop.permute.xlu0 %6003
        %6005 = vrot.lane.b32.xlu0 %v5886, 8
        %v6006 = vpop.permute.xlu0 %6005
        %6015 = vrot.lane.b32.xlu0 %v5602, 10
        %v6016 = vpop.permute.xlu0 %6015
        %6017 = vrot.lane.b32.xlu0 %v5700, 10
        %v6018 = vpop.permute.xlu0 %6017
        %6019 = vrot.lane.b32.xlu0 %v5798, 10
        %v6020 = vpop.permute.xlu0 %6019
        %6021 = vrot.lane.b32.xlu0 %v5896, 10
        %v6022 = vpop.permute.xlu0 %6021
        %6031 = vrot.lane.b32.xlu0 %v5599, 12
        %v6032 = vpop.permute.xlu0 %6031
        %6033 = vrot.lane.b32.xlu0 %v5697, 12
        %v6034 = vpop.permute.xlu0 %6033
        %6035 = vrot.lane.b32.xlu0 %v5795, 12
        %v6036 = vpop.permute.xlu0 %6035
        %6037 = vrot.lane.b32.xlu0 %v5893, 12
        %v6038 = vpop.permute.xlu0 %6037
        %6047 = vrot.lane.b32.xlu0 %v5603, 14
        %v6048 = vpop.permute.xlu0 %6047
        %6049 = vrot.lane.b32.xlu0 %v5701, 14
        %v6050 = vpop.permute.xlu0 %6049
        %6051 = vrot.lane.b32.xlu0 %v5799, 14
        %v6052 = vpop.permute.xlu0 %6051
        %6053 = vrot.lane.b32.xlu0 %v5897, 14
        %v6054 = vpop.permute.xlu0 %6053
        %6063 = vrot.lane.b32.xlu0 %v5626, 16
        %v6064 = vpop.permute.xlu0 %6063
        %6065 = vrot.lane.b32.xlu0 %v5724, 16
        %v6066 = vpop.permute.xlu0 %6065
        %6067 = vrot.lane.b32.xlu0 %v5822, 16
        %v6068 = vpop.permute.xlu0 %6067
        %6069 = vrot.lane.b32.xlu0 %v5920, 16
        %v6070 = vpop.permute.xlu0 %6069
        %6079 = vrot.lane.b32.xlu0 %v5649, 18
        %v6080 = vpop.permute.xlu0 %6079
        %6081 = vrot.lane.b32.xlu0 %v5747, 18
        %v6082 = vpop.permute.xlu0 %6081
        %6083 = vrot.lane.b32.xlu0 %v5845, 18
        %v6084 = vpop.permute.xlu0 %6083
        %6085 = vrot.lane.b32.xlu0 %v5943, 18
        %v6086 = vpop.permute.xlu0 %6085
        %6095 = vrot.lane.b32.xlu0 %v5633, 20
        %v6096 = vpop.permute.xlu0 %6095
        %6097 = vrot.lane.b32.xlu0 %v5731, 20
        %v6098 = vpop.permute.xlu0 %6097
        %6099 = vrot.lane.b32.xlu0 %v5829, 20
        %v6100 = vpop.permute.xlu0 %6099
        %6101 = vrot.lane.b32.xlu0 %v5927, 20
        %v6102 = vpop.permute.xlu0 %6101
        %6111 = vrot.lane.b32.xlu0 %v5650, 22
        %v6112 = vpop.permute.xlu0 %6111
        %6113 = vrot.lane.b32.xlu0 %v5748, 22
        %v6114 = vpop.permute.xlu0 %6113
        %6115 = vrot.lane.b32.xlu0 %v5846, 22
        %v6116 = vpop.permute.xlu0 %6115
        %6117 = vrot.lane.b32.xlu0 %v5944, 22
        %v6118 = vpop.permute.xlu0 %6117
        %6127 = vrot.lane.b32.xlu0 %v5641, 24
        %v6128 = vpop.permute.xlu0 %6127
        %6129 = vrot.lane.b32.xlu0 %v5739, 24
        %v6130 = vpop.permute.xlu0 %6129
        %6131 = vrot.lane.b32.xlu0 %v5837, 24
        %v6132 = vpop.permute.xlu0 %6131
        %6133 = vrot.lane.b32.xlu0 %v5935, 24
        %v6134 = vpop.permute.xlu0 %6133
        %6143 = vrot.lane.b32.xlu0 %v5651, 26
        %v6144 = vpop.permute.xlu0 %6143
        %6145 = vrot.lane.b32.xlu0 %v5749, 26
        %v6146 = vpop.permute.xlu0 %6145
        %6147 = vrot.lane.b32.xlu0 %v5847, 26
        %v6148 = vpop.permute.xlu0 %6147
        %6149 = vrot.lane.b32.xlu0 %v5945, 26
        %v6150 = vpop.permute.xlu0 %6149
        %6159 = vrot.lane.b32.xlu0 %v5648, 28
        %v6160 = vpop.permute.xlu0 %6159
        %6161 = vrot.lane.b32.xlu0 %v5746, 28
        %v6162 = vpop.permute.xlu0 %6161
        %6163 = vrot.lane.b32.xlu0 %v5844, 28
        %v6164 = vpop.permute.xlu0 %6163
        %6165 = vrot.lane.b32.xlu0 %v5942, 28
        %v6166 = vpop.permute.xlu0 %6165
        %6175 = vrot.lane.b32.xlu0 %v5652, 30
        %v6176 = vpop.permute.xlu0 %6175
        %6177 = vrot.lane.b32.xlu0 %v5750, 30
        %v6178 = vpop.permute.xlu0 %6177
        %6179 = vrot.lane.b32.xlu0 %v5848, 30
        %v6180 = vpop.permute.xlu0 %6179
        %6181 = vrot.lane.b32.xlu0 %v5946, 30
        %v6182 = vpop.permute.xlu0 %6181
        %v6187 = vsel %vm851, %v5577, %v5952
        %v6188 = vsel %vm851, %v5675, %v5954
        %v6189 = vsel %vm851, %v5773, %v5956
        %v6190 = vsel %vm851, %v5871, %v5958
        %v6191 = vsel %vm856, %v6187, %v5968
        %v6192 = vsel %vm856, %v6188, %v5970
        %v6193 = vsel %vm856, %v6189, %v5972
        %v6194 = vsel %vm856, %v6190, %v5974
        %v6195 = vsel %vm861, %v6191, %v5984
        %v6196 = vsel %vm861, %v6192, %v5986
        %v6197 = vsel %vm861, %v6193, %v5988
        %v6198 = vsel %vm861, %v6194, %v5990
        %v6199 = vsel %vm866, %v6195, %v6000
        %v6200 = vsel %vm866, %v6196, %v6002
        %v6201 = vsel %vm866, %v6197, %v6004
        %v6202 = vsel %vm866, %v6198, %v6006
        %v6203 = vsel %vm871, %v6199, %v6016
        %v6204 = vsel %vm871, %v6200, %v6018
        %v6205 = vsel %vm871, %v6201, %v6020
        %v6206 = vsel %vm871, %v6202, %v6022
        %v6207 = vsel %vm876, %v6203, %v6032
        %v6208 = vsel %vm876, %v6204, %v6034
        %v6209 = vsel %vm876, %v6205, %v6036
        %v6210 = vsel %vm876, %v6206, %v6038
        %v6211 = vsel %vm881, %v6207, %v6048
        %v6212 = vsel %vm881, %v6208, %v6050
        %v6213 = vsel %vm881, %v6209, %v6052
        %v6214 = vsel %vm881, %v6210, %v6054
        %v6215 = vsel %vm886, %v6211, %v6064
        %v6216 = vsel %vm886, %v6212, %v6066
        %v6217 = vsel %vm886, %v6213, %v6068
        %v6218 = vsel %vm886, %v6214, %v6070
        %v6219 = vsel %vm891, %v6215, %v6080
        %v6220 = vsel %vm891, %v6216, %v6082
        %v6221 = vsel %vm891, %v6217, %v6084
        %v6222 = vsel %vm891, %v6218, %v6086
        %v6223 = vsel %vm896, %v6219, %v6096
        %v6224 = vsel %vm896, %v6220, %v6098
        %v6225 = vsel %vm896, %v6221, %v6100
        %v6226 = vsel %vm896, %v6222, %v6102
        %v6227 = vsel %vm901, %v6223, %v6112
        %v6228 = vsel %vm901, %v6224, %v6114
        %v6229 = vsel %vm901, %v6225, %v6116
        %v6230 = vsel %vm901, %v6226, %v6118
        %v6231 = vsel %vm906, %v6227, %v6128
        %v6232 = vsel %vm906, %v6228, %v6130
        %v6233 = vsel %vm906, %v6229, %v6132
        %v6234 = vsel %vm906, %v6230, %v6134
        %v6235 = vsel %vm911, %v6231, %v6144
        %v6236 = vsel %vm911, %v6232, %v6146
        %v6237 = vsel %vm911, %v6233, %v6148
        %v6238 = vsel %vm911, %v6234, %v6150
        %v6239 = vsel %vm916, %v6235, %v6160
        %v6240 = vsel %vm916, %v6236, %v6162
        %v6241 = vsel %vm916, %v6237, %v6164
        %v6242 = vsel %vm916, %v6238, %v6166
        %v6243 = vsel %vm921, %v6239, %v6176
        %v6244 = vsel %vm921, %v6240, %v6178
        %v6245 = vsel %vm921, %v6241, %v6180
        %v6246 = vsel %vm921, %v6242, %v6182
        %v6247 = vlaneseq
        %v6248 = vshrl.u32 %v6247, 7
        %v6249 = vsub.s32 0, %v6248
        %v6250 = vrot.slane %v6243, %v6249
        %v6251 = vlaneseq
        %v6252 = vshrl.u32 %v6251, 7
        %v6253 = vsub.s32 0, %v6252
        %v6254 = vrot.slane %v6244, %v6253
        %v6255 = vlaneseq
        %v6256 = vshrl.u32 %v6255, 7
        %v6257 = vsub.s32 0, %v6256
        %v6258 = vrot.slane %v6245, %v6257
        %v6259 = vlaneseq
        %v6260 = vshrl.u32 %v6259, 7
        %v6261 = vsub.s32 0, %v6260
        %v6262 = vrot.slane %v6246, %v6261
        %6263 = vst.msk [vmem:[%s166 + $0xe] sm:$0x3] %vm942, %v6250
        %6264 = vst.msk [vmem:[%s166 + $0x2e] sm:$0x3] %vm942, %v6254
        %6265 = vst.msk [vmem:[%s166 + $0x4e] sm:$0x3] %vm942, %v6258
        %6266 = vst.msk [vmem:[%s166 + $0x6e] sm:$0x3] %vm942, %v6262
        %v6267 = vld [vmem:[%s148 + $0x8] sm:$0x1]
        %v6268 = vld [vmem:[%s148 + $0x18] sm:$0x1]
        %v6269 = vld [vmem:[%s148 + $0x28] sm:$0x1]
        %v6270 = vld [vmem:[%s148 + $0x38] sm:$0x1]
        %v6271 = vlaneseq
        %v6272 = vshrl.u32 %v6271, 7
        %v6273 = vsub.s32 0, %v6272
        %v6274 = vrot.slane %v6267, %v6273
        %6276 = vbcast.lane.b32.xlu0 %v6274, 256
        %v6277 = vpop.permute.xlu0 %6276
        %s6279 = sor.u32 256, 8
        %6280 = vbcast.lane.b32.xlu0 %v6274, %s6279
        %v6281 = vpop.permute.xlu0 %6280
        %v6282 = vlaneseq
        %v6283 = vshrl.u32 %v6282, 7
        %v6284 = vsub.s32 0, %v6283
        %v6285 = vrot.slane %v6268, %v6284
        %6287 = vbcast.lane.b32.xlu0 %v6285, 256
        %v6288 = vpop.permute.xlu0 %6287
        %s6290 = sor.u32 256, 8
        %6291 = vbcast.lane.b32.xlu0 %v6285, %s6290
        %v6292 = vpop.permute.xlu0 %6291
        %v6293 = vlaneseq
        %v6294 = vshrl.u32 %v6293, 7
        %v6295 = vsub.s32 0, %v6294
        %v6296 = vrot.slane %v6269, %v6295
        %6298 = vbcast.lane.b32.xlu0 %v6296, 256
        %v6299 = vpop.permute.xlu0 %6298
        %s6301 = sor.u32 256, 8
        %6302 = vbcast.lane.b32.xlu0 %v6296, %s6301
        %v6303 = vpop.permute.xlu0 %6302
        %v6304 = vlaneseq
        %v6305 = vshrl.u32 %v6304, 7
        %v6306 = vsub.s32 0, %v6305
        %v6307 = vrot.slane %v6270, %v6306
        %6309 = vbcast.lane.b32.xlu0 %v6307, 256
        %v6310 = vpop.permute.xlu0 %6309
        %s6312 = sor.u32 256, 8
        %6313 = vbcast.lane.b32.xlu0 %v6307, %s6312
        %v6314 = vpop.permute.xlu0 %6313
        %v6315 = vcombine.high %v6277, 0.0
        %v6317 = vunpack.c.l.s4 1983009808
        %v6318 = vunpack.c.0.s8 %v6317
        %v6319 = vlaneseq
        %v6320 = vshrl.u32 %v6319, 7
        %v6321 = vsub.s32 %v6318, %v6320
        %v6322 = vrot.slane %v6277, %v6321
        %v6324 = vunpack.c.l.s4 1983009808
        %v6325 = vunpack.c.0.s8 %v6324
        %v6326 = vlaneseq
        %v6327 = vshrl.u32 %v6326, 7
        %v6328 = vsub.s32 %v6325, %v6327
        %v6329 = vrot.slane %v6315, %v6328
        %v6330 = vcombine.high %v6322, 0.0
        %v6332 = vunpack.c.l.s4 1934713408
        %v6333 = vunpack.c.0.s8 %v6332
        %v6334 = vlaneseq
        %v6335 = vshrl.u32 %v6334, 7
        %v6336 = vsub.s32 %v6333, %v6335
        %v6337 = vrot.slane %v6322, %v6336
        %v6339 = vunpack.c.l.s4 1934713408
        %v6340 = vunpack.c.0.s8 %v6339
        %v6341 = vlaneseq
        %v6342 = vshrl.u32 %v6341, 7
        %v6343 = vsub.s32 %v6340, %v6342
        %v6344 = vrot.slane %v6330, %v6343
        %v6345 = vcombine.high %v6329, 0.0
        %v6347 = vunpack.c.l.s4 1934713408
        %v6348 = vunpack.c.0.s8 %v6347
        %v6349 = vlaneseq
        %v6350 = vshrl.u32 %v6349, 7
        %v6351 = vsub.s32 %v6348, %v6350
        %v6352 = vrot.slane %v6329, %v6351
        %v6354 = vunpack.c.l.s4 1934713408
        %v6355 = vunpack.c.0.s8 %v6354
        %v6356 = vlaneseq
        %v6357 = vshrl.u32 %v6356, 7
        %v6358 = vsub.s32 %v6355, %v6357
        %v6359 = vrot.slane %v6345, %v6358
        %v6360 = vcombine.high %v6337, 0.0
        %v6361 = vcombine.high %v6344, 0.0
        %v6362 = vcombine.high %v6352, 0.0
        %v6363 = vcombine.high %v6359, 0.0
        %v6364 = vcombine.high %v6281, 0.0
        %v6366 = vunpack.c.l.s4 1983009808
        %v6367 = vunpack.c.0.s8 %v6366
        %v6368 = vlaneseq
        %v6369 = vshrl.u32 %v6368, 7
        %v6370 = vsub.s32 %v6367, %v6369
        %v6371 = vrot.slane %v6281, %v6370
        %v6373 = vunpack.c.l.s4 1983009808
        %v6374 = vunpack.c.0.s8 %v6373
        %v6375 = vlaneseq
        %v6376 = vshrl.u32 %v6375, 7
        %v6377 = vsub.s32 %v6374, %v6376
        %v6378 = vrot.slane %v6364, %v6377
        %v6379 = vcombine.high %v6371, 0.0
        %v6381 = vunpack.c.l.s4 1934713408
        %v6382 = vunpack.c.0.s8 %v6381
        %v6383 = vlaneseq
        %v6384 = vshrl.u32 %v6383, 7
        %v6385 = vsub.s32 %v6382, %v6384
        %v6386 = vrot.slane %v6371, %v6385
        %v6388 = vunpack.c.l.s4 1934713408
        %v6389 = vunpack.c.0.s8 %v6388
        %v6390 = vlaneseq
        %v6391 = vshrl.u32 %v6390, 7
        %v6392 = vsub.s32 %v6389, %v6391
        %v6393 = vrot.slane %v6379, %v6392
        %v6394 = vcombine.high %v6378, 0.0
        %v6396 = vunpack.c.l.s4 1934713408
        %v6397 = vunpack.c.0.s8 %v6396
        %v6398 = vlaneseq
        %v6399 = vshrl.u32 %v6398, 7
        %v6400 = vsub.s32 %v6397, %v6399
        %v6401 = vrot.slane %v6378, %v6400
        %v6403 = vunpack.c.l.s4 1934713408
        %v6404 = vunpack.c.0.s8 %v6403
        %v6405 = vlaneseq
        %v6406 = vshrl.u32 %v6405, 7
        %v6407 = vsub.s32 %v6404, %v6406
        %v6408 = vrot.slane %v6394, %v6407
        %v6409 = vcombine.high %v6386, 0.0
        %v6410 = vcombine.high %v6393, 0.0
        %v6411 = vcombine.high %v6401, 0.0
        %v6412 = vcombine.high %v6408, 0.0
        %v6413 = vcombine.high %v6288, 0.0
        %v6415 = vunpack.c.l.s4 1983009808
        %v6416 = vunpack.c.0.s8 %v6415
        %v6417 = vlaneseq
        %v6418 = vshrl.u32 %v6417, 7
        %v6419 = vsub.s32 %v6416, %v6418
        %v6420 = vrot.slane %v6288, %v6419
        %v6422 = vunpack.c.l.s4 1983009808
        %v6423 = vunpack.c.0.s8 %v6422
        %v6424 = vlaneseq
        %v6425 = vshrl.u32 %v6424, 7
        %v6426 = vsub.s32 %v6423, %v6425
        %v6427 = vrot.slane %v6413, %v6426
        %v6428 = vcombine.high %v6420, 0.0
        %v6430 = vunpack.c.l.s4 1934713408
        %v6431 = vunpack.c.0.s8 %v6430
        %v6432 = vlaneseq
        %v6433 = vshrl.u32 %v6432, 7
        %v6434 = vsub.s32 %v6431, %v6433
        %v6435 = vrot.slane %v6420, %v6434
        %v6437 = vunpack.c.l.s4 1934713408
        %v6438 = vunpack.c.0.s8 %v6437
        %v6439 = vlaneseq
        %v6440 = vshrl.u32 %v6439, 7
        %v6441 = vsub.s32 %v6438, %v6440
        %v6442 = vrot.slane %v6428, %v6441
        %v6443 = vcombine.high %v6427, 0.0
        %v6445 = vunpack.c.l.s4 1934713408
        %v6446 = vunpack.c.0.s8 %v6445
        %v6447 = vlaneseq
        %v6448 = vshrl.u32 %v6447, 7
        %v6449 = vsub.s32 %v6446, %v6448
        %v6450 = vrot.slane %v6427, %v6449
        %v6452 = vunpack.c.l.s4 1934713408
        %v6453 = vunpack.c.0.s8 %v6452
        %v6454 = vlaneseq
        %v6455 = vshrl.u32 %v6454, 7
        %v6456 = vsub.s32 %v6453, %v6455
        %v6457 = vrot.slane %v6443, %v6456
        %v6458 = vcombine.high %v6435, 0.0
        %v6459 = vcombine.high %v6442, 0.0
        %v6460 = vcombine.high %v6450, 0.0
        %v6461 = vcombine.high %v6457, 0.0
        %v6462 = vcombine.high %v6292, 0.0
        %v6464 = vunpack.c.l.s4 1983009808
        %v6465 = vunpack.c.0.s8 %v6464
        %v6466 = vlaneseq
        %v6467 = vshrl.u32 %v6466, 7
        %v6468 = vsub.s32 %v6465, %v6467
        %v6469 = vrot.slane %v6292, %v6468
        %v6471 = vunpack.c.l.s4 1983009808
        %v6472 = vunpack.c.0.s8 %v6471
        %v6473 = vlaneseq
        %v6474 = vshrl.u32 %v6473, 7
        %v6475 = vsub.s32 %v6472, %v6474
        %v6476 = vrot.slane %v6462, %v6475
        %v6477 = vcombine.high %v6469, 0.0
        %v6479 = vunpack.c.l.s4 1934713408
        %v6480 = vunpack.c.0.s8 %v6479
        %v6481 = vlaneseq
        %v6482 = vshrl.u32 %v6481, 7
        %v6483 = vsub.s32 %v6480, %v6482
        %v6484 = vrot.slane %v6469, %v6483
        %v6486 = vunpack.c.l.s4 1934713408
        %v6487 = vunpack.c.0.s8 %v6486
        %v6488 = vlaneseq
        %v6489 = vshrl.u32 %v6488, 7
        %v6490 = vsub.s32 %v6487, %v6489
        %v6491 = vrot.slane %v6477, %v6490
        %v6492 = vcombine.high %v6476, 0.0
        %v6494 = vunpack.c.l.s4 1934713408
        %v6495 = vunpack.c.0.s8 %v6494
        %v6496 = vlaneseq
        %v6497 = vshrl.u32 %v6496, 7
        %v6498 = vsub.s32 %v6495, %v6497
        %v6499 = vrot.slane %v6476, %v6498
        %v6501 = vunpack.c.l.s4 1934713408
        %v6502 = vunpack.c.0.s8 %v6501
        %v6503 = vlaneseq
        %v6504 = vshrl.u32 %v6503, 7
        %v6505 = vsub.s32 %v6502, %v6504
        %v6506 = vrot.slane %v6492, %v6505
        %v6507 = vcombine.high %v6484, 0.0
        %v6508 = vcombine.high %v6491, 0.0
        %v6509 = vcombine.high %v6499, 0.0
        %v6510 = vcombine.high %v6506, 0.0
        %v6511 = vcombine.high %v6299, 0.0
        %v6513 = vunpack.c.l.s4 1983009808
        %v6514 = vunpack.c.0.s8 %v6513
        %v6515 = vlaneseq
        %v6516 = vshrl.u32 %v6515, 7
        %v6517 = vsub.s32 %v6514, %v6516
        %v6518 = vrot.slane %v6299, %v6517
        %v6520 = vunpack.c.l.s4 1983009808
        %v6521 = vunpack.c.0.s8 %v6520
        %v6522 = vlaneseq
        %v6523 = vshrl.u32 %v6522, 7
        %v6524 = vsub.s32 %v6521, %v6523
        %v6525 = vrot.slane %v6511, %v6524
        %v6526 = vcombine.high %v6518, 0.0
        %v6528 = vunpack.c.l.s4 1934713408
        %v6529 = vunpack.c.0.s8 %v6528
        %v6530 = vlaneseq
        %v6531 = vshrl.u32 %v6530, 7
        %v6532 = vsub.s32 %v6529, %v6531
        %v6533 = vrot.slane %v6518, %v6532
        %v6535 = vunpack.c.l.s4 1934713408
        %v6536 = vunpack.c.0.s8 %v6535
        %v6537 = vlaneseq
        %v6538 = vshrl.u32 %v6537, 7
        %v6539 = vsub.s32 %v6536, %v6538
        %v6540 = vrot.slane %v6526, %v6539
        %v6541 = vcombine.high %v6525, 0.0
        %v6543 = vunpack.c.l.s4 1934713408
        %v6544 = vunpack.c.0.s8 %v6543
        %v6545 = vlaneseq
        %v6546 = vshrl.u32 %v6545, 7
        %v6547 = vsub.s32 %v6544, %v6546
        %v6548 = vrot.slane %v6525, %v6547
        %v6550 = vunpack.c.l.s4 1934713408
        %v6551 = vunpack.c.0.s8 %v6550
        %v6552 = vlaneseq
        %v6553 = vshrl.u32 %v6552, 7
        %v6554 = vsub.s32 %v6551, %v6553
        %v6555 = vrot.slane %v6541, %v6554
        %v6556 = vcombine.high %v6533, 0.0
        %v6557 = vcombine.high %v6540, 0.0
        %v6558 = vcombine.high %v6548, 0.0
        %v6559 = vcombine.high %v6555, 0.0
        %v6560 = vcombine.high %v6303, 0.0
        %v6562 = vunpack.c.l.s4 1983009808
        %v6563 = vunpack.c.0.s8 %v6562
        %v6564 = vlaneseq
        %v6565 = vshrl.u32 %v6564, 7
        %v6566 = vsub.s32 %v6563, %v6565
        %v6567 = vrot.slane %v6303, %v6566
        %v6569 = vunpack.c.l.s4 1983009808
        %v6570 = vunpack.c.0.s8 %v6569
        %v6571 = vlaneseq
        %v6572 = vshrl.u32 %v6571, 7
        %v6573 = vsub.s32 %v6570, %v6572
        %v6574 = vrot.slane %v6560, %v6573
        %v6575 = vcombine.high %v6567, 0.0
        %v6577 = vunpack.c.l.s4 1934713408
        %v6578 = vunpack.c.0.s8 %v6577
        %v6579 = vlaneseq
        %v6580 = vshrl.u32 %v6579, 7
        %v6581 = vsub.s32 %v6578, %v6580
        %v6582 = vrot.slane %v6567, %v6581
        %v6584 = vunpack.c.l.s4 1934713408
        %v6585 = vunpack.c.0.s8 %v6584
        %v6586 = vlaneseq
        %v6587 = vshrl.u32 %v6586, 7
        %v6588 = vsub.s32 %v6585, %v6587
        %v6589 = vrot.slane %v6575, %v6588
        %v6590 = vcombine.high %v6574, 0.0
        %v6592 = vunpack.c.l.s4 1934713408
        %v6593 = vunpack.c.0.s8 %v6592
        %v6594 = vlaneseq
        %v6595 = vshrl.u32 %v6594, 7
        %v6596 = vsub.s32 %v6593, %v6595
        %v6597 = vrot.slane %v6574, %v6596
        %v6599 = vunpack.c.l.s4 1934713408
        %v6600 = vunpack.c.0.s8 %v6599
        %v6601 = vlaneseq
        %v6602 = vshrl.u32 %v6601, 7
        %v6603 = vsub.s32 %v6600, %v6602
        %v6604 = vrot.slane %v6590, %v6603
        %v6605 = vcombine.high %v6582, 0.0
        %v6606 = vcombine.high %v6589, 0.0
        %v6607 = vcombine.high %v6597, 0.0
        %v6608 = vcombine.high %v6604, 0.0
        %v6609 = vcombine.high %v6310, 0.0
        %v6611 = vunpack.c.l.s4 1983009808
        %v6612 = vunpack.c.0.s8 %v6611
        %v6613 = vlaneseq
        %v6614 = vshrl.u32 %v6613, 7
        %v6615 = vsub.s32 %v6612, %v6614
        %v6616 = vrot.slane %v6310, %v6615
        %v6618 = vunpack.c.l.s4 1983009808
        %v6619 = vunpack.c.0.s8 %v6618
        %v6620 = vlaneseq
        %v6621 = vshrl.u32 %v6620, 7
        %v6622 = vsub.s32 %v6619, %v6621
        %v6623 = vrot.slane %v6609, %v6622
        %v6624 = vcombine.high %v6616, 0.0
        %v6626 = vunpack.c.l.s4 1934713408
        %v6627 = vunpack.c.0.s8 %v6626
        %v6628 = vlaneseq
        %v6629 = vshrl.u32 %v6628, 7
        %v6630 = vsub.s32 %v6627, %v6629
        %v6631 = vrot.slane %v6616, %v6630
        %v6633 = vunpack.c.l.s4 1934713408
        %v6634 = vunpack.c.0.s8 %v6633
        %v6635 = vlaneseq
        %v6636 = vshrl.u32 %v6635, 7
        %v6637 = vsub.s32 %v6634, %v6636
        %v6638 = vrot.slane %v6624, %v6637
        %v6639 = vcombine.high %v6623, 0.0
        %v6641 = vunpack.c.l.s4 1934713408
        %v6642 = vunpack.c.0.s8 %v6641
        %v6643 = vlaneseq
        %v6644 = vshrl.u32 %v6643, 7
        %v6645 = vsub.s32 %v6642, %v6644
        %v6646 = vrot.slane %v6623, %v6645
        %v6648 = vunpack.c.l.s4 1934713408
        %v6649 = vunpack.c.0.s8 %v6648
        %v6650 = vlaneseq
        %v6651 = vshrl.u32 %v6650, 7
        %v6652 = vsub.s32 %v6649, %v6651
        %v6653 = vrot.slane %v6639, %v6652
        %v6654 = vcombine.high %v6631, 0.0
        %v6655 = vcombine.high %v6638, 0.0
        %v6656 = vcombine.high %v6646, 0.0
        %v6657 = vcombine.high %v6653, 0.0
        %v6658 = vcombine.high %v6314, 0.0
        %v6660 = vunpack.c.l.s4 1983009808
        %v6661 = vunpack.c.0.s8 %v6660
        %v6662 = vlaneseq
        %v6663 = vshrl.u32 %v6662, 7
        %v6664 = vsub.s32 %v6661, %v6663
        %v6665 = vrot.slane %v6314, %v6664
        %v6667 = vunpack.c.l.s4 1983009808
        %v6668 = vunpack.c.0.s8 %v6667
        %v6669 = vlaneseq
        %v6670 = vshrl.u32 %v6669, 7
        %v6671 = vsub.s32 %v6668, %v6670
        %v6672 = vrot.slane %v6658, %v6671
        %v6673 = vcombine.high %v6665, 0.0
        %v6675 = vunpack.c.l.s4 1934713408
        %v6676 = vunpack.c.0.s8 %v6675
        %v6677 = vlaneseq
        %v6678 = vshrl.u32 %v6677, 7
        %v6679 = vsub.s32 %v6676, %v6678
        %v6680 = vrot.slane %v6665, %v6679
        %v6682 = vunpack.c.l.s4 1934713408
        %v6683 = vunpack.c.0.s8 %v6682
        %v6684 = vlaneseq
        %v6685 = vshrl.u32 %v6684, 7
        %v6686 = vsub.s32 %v6683, %v6685
        %v6687 = vrot.slane %v6673, %v6686
        %v6688 = vcombine.high %v6672, 0.0
        %v6690 = vunpack.c.l.s4 1934713408
        %v6691 = vunpack.c.0.s8 %v6690
        %v6692 = vlaneseq
        %v6693 = vshrl.u32 %v6692, 7
        %v6694 = vsub.s32 %v6691, %v6693
        %v6695 = vrot.slane %v6672, %v6694
        %v6697 = vunpack.c.l.s4 1934713408
        %v6698 = vunpack.c.0.s8 %v6697
        %v6699 = vlaneseq
        %v6700 = vshrl.u32 %v6699, 7
        %v6701 = vsub.s32 %v6698, %v6700
        %v6702 = vrot.slane %v6688, %v6701
        %v6703 = vcombine.high %v6680, 0.0
        %v6704 = vcombine.high %v6687, 0.0
        %v6705 = vcombine.high %v6695, 0.0
        %v6706 = vcombine.high %v6702, 0.0
        %6711 = vrot.lane.b32.xlu0 %v6360, 2
        %v6712 = vpop.permute.xlu0 %6711
        %6713 = vrot.lane.b32.xlu0 %v6458, 2
        %v6714 = vpop.permute.xlu0 %6713
        %6715 = vrot.lane.b32.xlu0 %v6556, 2
        %v6716 = vpop.permute.xlu0 %6715
        %6717 = vrot.lane.b32.xlu0 %v6654, 2
        %v6718 = vpop.permute.xlu0 %6717
        %6727 = vrot.lane.b32.xlu0 %v6344, 4
        %v6728 = vpop.permute.xlu0 %6727
        %6729 = vrot.lane.b32.xlu0 %v6442, 4
        %v6730 = vpop.permute.xlu0 %6729
        %6731 = vrot.lane.b32.xlu0 %v6540, 4
        %v6732 = vpop.permute.xlu0 %6731
        %6733 = vrot.lane.b32.xlu0 %v6638, 4
        %v6734 = vpop.permute.xlu0 %6733
        %6743 = vrot.lane.b32.xlu0 %v6361, 6
        %v6744 = vpop.permute.xlu0 %6743
        %6745 = vrot.lane.b32.xlu0 %v6459, 6
        %v6746 = vpop.permute.xlu0 %6745
        %6747 = vrot.lane.b32.xlu0 %v6557, 6
        %v6748 = vpop.permute.xlu0 %6747
        %6749 = vrot.lane.b32.xlu0 %v6655, 6
        %v6750 = vpop.permute.xlu0 %6749
        %6759 = vrot.lane.b32.xlu0 %v6352, 8
        %v6760 = vpop.permute.xlu0 %6759
        %6761 = vrot.lane.b32.xlu0 %v6450, 8
        %v6762 = vpop.permute.xlu0 %6761
        %6763 = vrot.lane.b32.xlu0 %v6548, 8
        %v6764 = vpop.permute.xlu0 %6763
        %6765 = vrot.lane.b32.xlu0 %v6646, 8
        %v6766 = vpop.permute.xlu0 %6765
        %6775 = vrot.lane.b32.xlu0 %v6362, 10
        %v6776 = vpop.permute.xlu0 %6775
        %6777 = vrot.lane.b32.xlu0 %v6460, 10
        %v6778 = vpop.permute.xlu0 %6777
        %6779 = vrot.lane.b32.xlu0 %v6558, 10
        %v6780 = vpop.permute.xlu0 %6779
        %6781 = vrot.lane.b32.xlu0 %v6656, 10
        %v6782 = vpop.permute.xlu0 %6781
        %6791 = vrot.lane.b32.xlu0 %v6359, 12
        %v6792 = vpop.permute.xlu0 %6791
        %6793 = vrot.lane.b32.xlu0 %v6457, 12
        %v6794 = vpop.permute.xlu0 %6793
        %6795 = vrot.lane.b32.xlu0 %v6555, 12
        %v6796 = vpop.permute.xlu0 %6795
        %6797 = vrot.lane.b32.xlu0 %v6653, 12
        %v6798 = vpop.permute.xlu0 %6797
        %6807 = vrot.lane.b32.xlu0 %v6363, 14
        %v6808 = vpop.permute.xlu0 %6807
        %6809 = vrot.lane.b32.xlu0 %v6461, 14
        %v6810 = vpop.permute.xlu0 %6809
        %6811 = vrot.lane.b32.xlu0 %v6559, 14
        %v6812 = vpop.permute.xlu0 %6811
        %6813 = vrot.lane.b32.xlu0 %v6657, 14
        %v6814 = vpop.permute.xlu0 %6813
        %6823 = vrot.lane.b32.xlu0 %v6386, 16
        %v6824 = vpop.permute.xlu0 %6823
        %6825 = vrot.lane.b32.xlu0 %v6484, 16
        %v6826 = vpop.permute.xlu0 %6825
        %6827 = vrot.lane.b32.xlu0 %v6582, 16
        %v6828 = vpop.permute.xlu0 %6827
        %6829 = vrot.lane.b32.xlu0 %v6680, 16
        %v6830 = vpop.permute.xlu0 %6829
        %6839 = vrot.lane.b32.xlu0 %v6409, 18
        %v6840 = vpop.permute.xlu0 %6839
        %6841 = vrot.lane.b32.xlu0 %v6507, 18
        %v6842 = vpop.permute.xlu0 %6841
        %6843 = vrot.lane.b32.xlu0 %v6605, 18
        %v6844 = vpop.permute.xlu0 %6843
        %6845 = vrot.lane.b32.xlu0 %v6703, 18
        %v6846 = vpop.permute.xlu0 %6845
        %6855 = vrot.lane.b32.xlu0 %v6393, 20
        %v6856 = vpop.permute.xlu0 %6855
        %6857 = vrot.lane.b32.xlu0 %v6491, 20
        %v6858 = vpop.permute.xlu0 %6857
        %6859 = vrot.lane.b32.xlu0 %v6589, 20
        %v6860 = vpop.permute.xlu0 %6859
        %6861 = vrot.lane.b32.xlu0 %v6687, 20
        %v6862 = vpop.permute.xlu0 %6861
        %6871 = vrot.lane.b32.xlu0 %v6410, 22
        %v6872 = vpop.permute.xlu0 %6871
        %6873 = vrot.lane.b32.xlu0 %v6508, 22
        %v6874 = vpop.permute.xlu0 %6873
        %6875 = vrot.lane.b32.xlu0 %v6606, 22
        %v6876 = vpop.permute.xlu0 %6875
        %6877 = vrot.lane.b32.xlu0 %v6704, 22
        %v6878 = vpop.permute.xlu0 %6877
        %6887 = vrot.lane.b32.xlu0 %v6401, 24
        %v6888 = vpop.permute.xlu0 %6887
        %6889 = vrot.lane.b32.xlu0 %v6499, 24
        %v6890 = vpop.permute.xlu0 %6889
        %6891 = vrot.lane.b32.xlu0 %v6597, 24
        %v6892 = vpop.permute.xlu0 %6891
        %6893 = vrot.lane.b32.xlu0 %v6695, 24
        %v6894 = vpop.permute.xlu0 %6893
        %6903 = vrot.lane.b32.xlu0 %v6411, 26
        %v6904 = vpop.permute.xlu0 %6903
        %6905 = vrot.lane.b32.xlu0 %v6509, 26
        %v6906 = vpop.permute.xlu0 %6905
        %6907 = vrot.lane.b32.xlu0 %v6607, 26
        %v6908 = vpop.permute.xlu0 %6907
        %6909 = vrot.lane.b32.xlu0 %v6705, 26
        %v6910 = vpop.permute.xlu0 %6909
        %6919 = vrot.lane.b32.xlu0 %v6408, 28
        %v6920 = vpop.permute.xlu0 %6919
        %6921 = vrot.lane.b32.xlu0 %v6506, 28
        %v6922 = vpop.permute.xlu0 %6921
        %6923 = vrot.lane.b32.xlu0 %v6604, 28
        %v6924 = vpop.permute.xlu0 %6923
        %6925 = vrot.lane.b32.xlu0 %v6702, 28
        %v6926 = vpop.permute.xlu0 %6925
        %6935 = vrot.lane.b32.xlu0 %v6412, 30
        %v6936 = vpop.permute.xlu0 %6935
        %6937 = vrot.lane.b32.xlu0 %v6510, 30
        %v6938 = vpop.permute.xlu0 %6937
        %6939 = vrot.lane.b32.xlu0 %v6608, 30
        %v6940 = vpop.permute.xlu0 %6939
        %6941 = vrot.lane.b32.xlu0 %v6706, 30
        %v6942 = vpop.permute.xlu0 %6941
        %v6947 = vsel %vm851, %v6337, %v6712
        %v6948 = vsel %vm851, %v6435, %v6714
        %v6949 = vsel %vm851, %v6533, %v6716
        %v6950 = vsel %vm851, %v6631, %v6718
        %v6951 = vsel %vm856, %v6947, %v6728
        %v6952 = vsel %vm856, %v6948, %v6730
        %v6953 = vsel %vm856, %v6949, %v6732
        %v6954 = vsel %vm856, %v6950, %v6734
        %v6955 = vsel %vm861, %v6951, %v6744
        %v6956 = vsel %vm861, %v6952, %v6746
        %v6957 = vsel %vm861, %v6953, %v6748
        %v6958 = vsel %vm861, %v6954, %v6750
        %v6959 = vsel %vm866, %v6955, %v6760
        %v6960 = vsel %vm866, %v6956, %v6762
        %v6961 = vsel %vm866, %v6957, %v6764
        %v6962 = vsel %vm866, %v6958, %v6766
        %v6963 = vsel %vm871, %v6959, %v6776
        %v6964 = vsel %vm871, %v6960, %v6778
        %v6965 = vsel %vm871, %v6961, %v6780
        %v6966 = vsel %vm871, %v6962, %v6782
        %v6967 = vsel %vm876, %v6963, %v6792
        %v6968 = vsel %vm876, %v6964, %v6794
        %v6969 = vsel %vm876, %v6965, %v6796
        %v6970 = vsel %vm876, %v6966, %v6798
        %v6971 = vsel %vm881, %v6967, %v6808
        %v6972 = vsel %vm881, %v6968, %v6810
        %v6973 = vsel %vm881, %v6969, %v6812
        %v6974 = vsel %vm881, %v6970, %v6814
        %v6975 = vsel %vm886, %v6971, %v6824
        %v6976 = vsel %vm886, %v6972, %v6826
        %v6977 = vsel %vm886, %v6973, %v6828
        %v6978 = vsel %vm886, %v6974, %v6830
        %v6979 = vsel %vm891, %v6975, %v6840
        %v6980 = vsel %vm891, %v6976, %v6842
        %v6981 = vsel %vm891, %v6977, %v6844
        %v6982 = vsel %vm891, %v6978, %v6846
        %v6983 = vsel %vm896, %v6979, %v6856
        %v6984 = vsel %vm896, %v6980, %v6858
        %v6985 = vsel %vm896, %v6981, %v6860
        %v6986 = vsel %vm896, %v6982, %v6862
        %v6987 = vsel %vm901, %v6983, %v6872
        %v6988 = vsel %vm901, %v6984, %v6874
        %v6989 = vsel %vm901, %v6985, %v6876
        %v6990 = vsel %vm901, %v6986, %v6878
        %v6991 = vsel %vm906, %v6987, %v6888
        %v6992 = vsel %vm906, %v6988, %v6890
        %v6993 = vsel %vm906, %v6989, %v6892
        %v6994 = vsel %vm906, %v6990, %v6894
        %v6995 = vsel %vm911, %v6991, %v6904
        %v6996 = vsel %vm911, %v6992, %v6906
        %v6997 = vsel %vm911, %v6993, %v6908
        %v6998 = vsel %vm911, %v6994, %v6910
        %v6999 = vsel %vm916, %v6995, %v6920
        %v7000 = vsel %vm916, %v6996, %v6922
        %v7001 = vsel %vm916, %v6997, %v6924
        %v7002 = vsel %vm916, %v6998, %v6926
        %v7003 = vsel %vm921, %v6999, %v6936
        %v7004 = vsel %vm921, %v7000, %v6938
        %v7005 = vsel %vm921, %v7001, %v6940
        %v7006 = vsel %vm921, %v7002, %v6942
        %v7007 = vlaneseq
        %v7008 = vshrl.u32 %v7007, 7
        %v7009 = vsub.s32 0, %v7008
        %v7010 = vrot.slane %v7003, %v7009
        %v7011 = vlaneseq
        %v7012 = vshrl.u32 %v7011, 7
        %v7013 = vsub.s32 0, %v7012
        %v7014 = vrot.slane %v7004, %v7013
        %v7015 = vlaneseq
        %v7016 = vshrl.u32 %v7015, 7
        %v7017 = vsub.s32 0, %v7016
        %v7018 = vrot.slane %v7005, %v7017
        %v7019 = vlaneseq
        %v7020 = vshrl.u32 %v7019, 7
        %v7021 = vsub.s32 0, %v7020
        %v7022 = vrot.slane %v7006, %v7021
        %7023 = vst.msk [vmem:[%s166 + $0x10] sm:$0x3] %vm942, %v7010
        %7024 = vst.msk [vmem:[%s166 + $0x30] sm:$0x3] %vm942, %v7014
        %7025 = vst.msk [vmem:[%s166 + $0x50] sm:$0x3] %vm942, %v7018
        %7026 = vst.msk [vmem:[%s166 + $0x70] sm:$0x3] %vm942, %v7022
        %v7027 = vld [vmem:[%s148 + $0x9] sm:$0x1]
        %v7028 = vld [vmem:[%s148 + $0x19] sm:$0x1]
        %v7029 = vld [vmem:[%s148 + $0x29] sm:$0x1]
        %v7030 = vld [vmem:[%s148 + $0x39] sm:$0x1]
        %v7031 = vlaneseq
        %v7032 = vshrl.u32 %v7031, 7
        %v7033 = vsub.s32 0, %v7032
        %v7034 = vrot.slane %v7027, %v7033
        %7036 = vbcast.lane.b32.xlu0 %v7034, 256
        %v7037 = vpop.permute.xlu0 %7036
        %s7039 = sor.u32 256, 8
        %7040 = vbcast.lane.b32.xlu0 %v7034, %s7039
        %v7041 = vpop.permute.xlu0 %7040
        %v7042 = vlaneseq
        %v7043 = vshrl.u32 %v7042, 7
        %v7044 = vsub.s32 0, %v7043
        %v7045 = vrot.slane %v7028, %v7044
        %7047 = vbcast.lane.b32.xlu0 %v7045, 256
        %v7048 = vpop.permute.xlu0 %7047
        %s7050 = sor.u32 256, 8
        %7051 = vbcast.lane.b32.xlu0 %v7045, %s7050
        %v7052 = vpop.permute.xlu0 %7051
        %v7053 = vlaneseq
        %v7054 = vshrl.u32 %v7053, 7
        %v7055 = vsub.s32 0, %v7054
        %v7056 = vrot.slane %v7029, %v7055
        %7058 = vbcast.lane.b32.xlu0 %v7056, 256
        %v7059 = vpop.permute.xlu0 %7058
        %s7061 = sor.u32 256, 8
        %7062 = vbcast.lane.b32.xlu0 %v7056, %s7061
        %v7063 = vpop.permute.xlu0 %7062
        %v7064 = vlaneseq
        %v7065 = vshrl.u32 %v7064, 7
        %v7066 = vsub.s32 0, %v7065
        %v7067 = vrot.slane %v7030, %v7066
        %7069 = vbcast.lane.b32.xlu0 %v7067, 256
        %v7070 = vpop.permute.xlu0 %7069
        %s7072 = sor.u32 256, 8
        %7073 = vbcast.lane.b32.xlu0 %v7067, %s7072
        %v7074 = vpop.permute.xlu0 %7073
        %v7075 = vcombine.high %v7037, 0.0
        %v7077 = vunpack.c.l.s4 1983009808
        %v7078 = vunpack.c.0.s8 %v7077
        %v7079 = vlaneseq
        %v7080 = vshrl.u32 %v7079, 7
        %v7081 = vsub.s32 %v7078, %v7080
        %v7082 = vrot.slane %v7037, %v7081
        %v7084 = vunpack.c.l.s4 1983009808
        %v7085 = vunpack.c.0.s8 %v7084
        %v7086 = vlaneseq
        %v7087 = vshrl.u32 %v7086, 7
        %v7088 = vsub.s32 %v7085, %v7087
        %v7089 = vrot.slane %v7075, %v7088
        %v7090 = vcombine.high %v7082, 0.0
        %v7092 = vunpack.c.l.s4 1934713408
        %v7093 = vunpack.c.0.s8 %v7092
        %v7094 = vlaneseq
        %v7095 = vshrl.u32 %v7094, 7
        %v7096 = vsub.s32 %v7093, %v7095
        %v7097 = vrot.slane %v7082, %v7096
        %v7099 = vunpack.c.l.s4 1934713408
        %v7100 = vunpack.c.0.s8 %v7099
        %v7101 = vlaneseq
        %v7102 = vshrl.u32 %v7101, 7
        %v7103 = vsub.s32 %v7100, %v7102
        %v7104 = vrot.slane %v7090, %v7103
        %v7105 = vcombine.high %v7089, 0.0
        %v7107 = vunpack.c.l.s4 1934713408
        %v7108 = vunpack.c.0.s8 %v7107
        %v7109 = vlaneseq
        %v7110 = vshrl.u32 %v7109, 7
        %v7111 = vsub.s32 %v7108, %v7110
        %v7112 = vrot.slane %v7089, %v7111
        %v7114 = vunpack.c.l.s4 1934713408
        %v7115 = vunpack.c.0.s8 %v7114
        %v7116 = vlaneseq
        %v7117 = vshrl.u32 %v7116, 7
        %v7118 = vsub.s32 %v7115, %v7117
        %v7119 = vrot.slane %v7105, %v7118
        %v7120 = vcombine.high %v7097, 0.0
        %v7121 = vcombine.high %v7104, 0.0
        %v7122 = vcombine.high %v7112, 0.0
        %v7123 = vcombine.high %v7119, 0.0
        %v7124 = vcombine.high %v7041, 0.0
        %v7126 = vunpack.c.l.s4 1983009808
        %v7127 = vunpack.c.0.s8 %v7126
        %v7128 = vlaneseq
        %v7129 = vshrl.u32 %v7128, 7
        %v7130 = vsub.s32 %v7127, %v7129
        %v7131 = vrot.slane %v7041, %v7130
        %v7133 = vunpack.c.l.s4 1983009808
        %v7134 = vunpack.c.0.s8 %v7133
        %v7135 = vlaneseq
        %v7136 = vshrl.u32 %v7135, 7
        %v7137 = vsub.s32 %v7134, %v7136
        %v7138 = vrot.slane %v7124, %v7137
        %v7139 = vcombine.high %v7131, 0.0
        %v7141 = vunpack.c.l.s4 1934713408
        %v7142 = vunpack.c.0.s8 %v7141
        %v7143 = vlaneseq
        %v7144 = vshrl.u32 %v7143, 7
        %v7145 = vsub.s32 %v7142, %v7144
        %v7146 = vrot.slane %v7131, %v7145
        %v7148 = vunpack.c.l.s4 1934713408
        %v7149 = vunpack.c.0.s8 %v7148
        %v7150 = vlaneseq
        %v7151 = vshrl.u32 %v7150, 7
        %v7152 = vsub.s32 %v7149, %v7151
        %v7153 = vrot.slane %v7139, %v7152
        %v7154 = vcombine.high %v7138, 0.0
        %v7156 = vunpack.c.l.s4 1934713408
        %v7157 = vunpack.c.0.s8 %v7156
        %v7158 = vlaneseq
        %v7159 = vshrl.u32 %v7158, 7
        %v7160 = vsub.s32 %v7157, %v7159
        %v7161 = vrot.slane %v7138, %v7160
        %v7163 = vunpack.c.l.s4 1934713408
        %v7164 = vunpack.c.0.s8 %v7163
        %v7165 = vlaneseq
        %v7166 = vshrl.u32 %v7165, 7
        %v7167 = vsub.s32 %v7164, %v7166
        %v7168 = vrot.slane %v7154, %v7167
        %v7169 = vcombine.high %v7146, 0.0
        %v7170 = vcombine.high %v7153, 0.0
        %v7171 = vcombine.high %v7161, 0.0
        %v7172 = vcombine.high %v7168, 0.0
        %v7173 = vcombine.high %v7048, 0.0
        %v7175 = vunpack.c.l.s4 1983009808
        %v7176 = vunpack.c.0.s8 %v7175
        %v7177 = vlaneseq
        %v7178 = vshrl.u32 %v7177, 7
        %v7179 = vsub.s32 %v7176, %v7178
        %v7180 = vrot.slane %v7048, %v7179
        %v7182 = vunpack.c.l.s4 1983009808
        %v7183 = vunpack.c.0.s8 %v7182
        %v7184 = vlaneseq
        %v7185 = vshrl.u32 %v7184, 7
        %v7186 = vsub.s32 %v7183, %v7185
        %v7187 = vrot.slane %v7173, %v7186
        %v7188 = vcombine.high %v7180, 0.0
        %v7190 = vunpack.c.l.s4 1934713408
        %v7191 = vunpack.c.0.s8 %v7190
        %v7192 = vlaneseq
        %v7193 = vshrl.u32 %v7192, 7
        %v7194 = vsub.s32 %v7191, %v7193
        %v7195 = vrot.slane %v7180, %v7194
        %v7197 = vunpack.c.l.s4 1934713408
        %v7198 = vunpack.c.0.s8 %v7197
        %v7199 = vlaneseq
        %v7200 = vshrl.u32 %v7199, 7
        %v7201 = vsub.s32 %v7198, %v7200
        %v7202 = vrot.slane %v7188, %v7201
        %v7203 = vcombine.high %v7187, 0.0
        %v7205 = vunpack.c.l.s4 1934713408
        %v7206 = vunpack.c.0.s8 %v7205
        %v7207 = vlaneseq
        %v7208 = vshrl.u32 %v7207, 7
        %v7209 = vsub.s32 %v7206, %v7208
        %v7210 = vrot.slane %v7187, %v7209
        %v7212 = vunpack.c.l.s4 1934713408
        %v7213 = vunpack.c.0.s8 %v7212
        %v7214 = vlaneseq
        %v7215 = vshrl.u32 %v7214, 7
        %v7216 = vsub.s32 %v7213, %v7215
        %v7217 = vrot.slane %v7203, %v7216
        %v7218 = vcombine.high %v7195, 0.0
        %v7219 = vcombine.high %v7202, 0.0
        %v7220 = vcombine.high %v7210, 0.0
        %v7221 = vcombine.high %v7217, 0.0
        %v7222 = vcombine.high %v7052, 0.0
        %v7224 = vunpack.c.l.s4 1983009808
        %v7225 = vunpack.c.0.s8 %v7224
        %v7226 = vlaneseq
        %v7227 = vshrl.u32 %v7226, 7
        %v7228 = vsub.s32 %v7225, %v7227
        %v7229 = vrot.slane %v7052, %v7228
        %v7231 = vunpack.c.l.s4 1983009808
        %v7232 = vunpack.c.0.s8 %v7231
        %v7233 = vlaneseq
        %v7234 = vshrl.u32 %v7233, 7
        %v7235 = vsub.s32 %v7232, %v7234
        %v7236 = vrot.slane %v7222, %v7235
        %v7237 = vcombine.high %v7229, 0.0
        %v7239 = vunpack.c.l.s4 1934713408
        %v7240 = vunpack.c.0.s8 %v7239
        %v7241 = vlaneseq
        %v7242 = vshrl.u32 %v7241, 7
        %v7243 = vsub.s32 %v7240, %v7242
        %v7244 = vrot.slane %v7229, %v7243
        %v7246 = vunpack.c.l.s4 1934713408
        %v7247 = vunpack.c.0.s8 %v7246
        %v7248 = vlaneseq
        %v7249 = vshrl.u32 %v7248, 7
        %v7250 = vsub.s32 %v7247, %v7249
        %v7251 = vrot.slane %v7237, %v7250
        %v7252 = vcombine.high %v7236, 0.0
        %v7254 = vunpack.c.l.s4 1934713408
        %v7255 = vunpack.c.0.s8 %v7254
        %v7256 = vlaneseq
        %v7257 = vshrl.u32 %v7256, 7
        %v7258 = vsub.s32 %v7255, %v7257
        %v7259 = vrot.slane %v7236, %v7258
        %v7261 = vunpack.c.l.s4 1934713408
        %v7262 = vunpack.c.0.s8 %v7261
        %v7263 = vlaneseq
        %v7264 = vshrl.u32 %v7263, 7
        %v7265 = vsub.s32 %v7262, %v7264
        %v7266 = vrot.slane %v7252, %v7265
        %v7267 = vcombine.high %v7244, 0.0
        %v7268 = vcombine.high %v7251, 0.0
        %v7269 = vcombine.high %v7259, 0.0
        %v7270 = vcombine.high %v7266, 0.0
        %v7271 = vcombine.high %v7059, 0.0
        %v7273 = vunpack.c.l.s4 1983009808
        %v7274 = vunpack.c.0.s8 %v7273
        %v7275 = vlaneseq
        %v7276 = vshrl.u32 %v7275, 7
        %v7277 = vsub.s32 %v7274, %v7276
        %v7278 = vrot.slane %v7059, %v7277
        %v7280 = vunpack.c.l.s4 1983009808
        %v7281 = vunpack.c.0.s8 %v7280
        %v7282 = vlaneseq
        %v7283 = vshrl.u32 %v7282, 7
        %v7284 = vsub.s32 %v7281, %v7283
        %v7285 = vrot.slane %v7271, %v7284
        %v7286 = vcombine.high %v7278, 0.0
        %v7288 = vunpack.c.l.s4 1934713408
        %v7289 = vunpack.c.0.s8 %v7288
        %v7290 = vlaneseq
        %v7291 = vshrl.u32 %v7290, 7
        %v7292 = vsub.s32 %v7289, %v7291
        %v7293 = vrot.slane %v7278, %v7292
        %v7295 = vunpack.c.l.s4 1934713408
        %v7296 = vunpack.c.0.s8 %v7295
        %v7297 = vlaneseq
        %v7298 = vshrl.u32 %v7297, 7
        %v7299 = vsub.s32 %v7296, %v7298
        %v7300 = vrot.slane %v7286, %v7299
        %v7301 = vcombine.high %v7285, 0.0
        %v7303 = vunpack.c.l.s4 1934713408
        %v7304 = vunpack.c.0.s8 %v7303
        %v7305 = vlaneseq
        %v7306 = vshrl.u32 %v7305, 7
        %v7307 = vsub.s32 %v7304, %v7306
        %v7308 = vrot.slane %v7285, %v7307
        %v7310 = vunpack.c.l.s4 1934713408
        %v7311 = vunpack.c.0.s8 %v7310
        %v7312 = vlaneseq
        %v7313 = vshrl.u32 %v7312, 7
        %v7314 = vsub.s32 %v7311, %v7313
        %v7315 = vrot.slane %v7301, %v7314
        %v7316 = vcombine.high %v7293, 0.0
        %v7317 = vcombine.high %v7300, 0.0
        %v7318 = vcombine.high %v7308, 0.0
        %v7319 = vcombine.high %v7315, 0.0
        %v7320 = vcombine.high %v7063, 0.0
        %v7322 = vunpack.c.l.s4 1983009808
        %v7323 = vunpack.c.0.s8 %v7322
        %v7324 = vlaneseq
        %v7325 = vshrl.u32 %v7324, 7
        %v7326 = vsub.s32 %v7323, %v7325
        %v7327 = vrot.slane %v7063, %v7326
        %v7329 = vunpack.c.l.s4 1983009808
        %v7330 = vunpack.c.0.s8 %v7329
        %v7331 = vlaneseq
        %v7332 = vshrl.u32 %v7331, 7
        %v7333 = vsub.s32 %v7330, %v7332
        %v7334 = vrot.slane %v7320, %v7333
        %v7335 = vcombine.high %v7327, 0.0
        %v7337 = vunpack.c.l.s4 1934713408
        %v7338 = vunpack.c.0.s8 %v7337
        %v7339 = vlaneseq
        %v7340 = vshrl.u32 %v7339, 7
        %v7341 = vsub.s32 %v7338, %v7340
        %v7342 = vrot.slane %v7327, %v7341
        %v7344 = vunpack.c.l.s4 1934713408
        %v7345 = vunpack.c.0.s8 %v7344
        %v7346 = vlaneseq
        %v7347 = vshrl.u32 %v7346, 7
        %v7348 = vsub.s32 %v7345, %v7347
        %v7349 = vrot.slane %v7335, %v7348
        %v7350 = vcombine.high %v7334, 0.0
        %v7352 = vunpack.c.l.s4 1934713408
        %v7353 = vunpack.c.0.s8 %v7352
        %v7354 = vlaneseq
        %v7355 = vshrl.u32 %v7354, 7
        %v7356 = vsub.s32 %v7353, %v7355
        %v7357 = vrot.slane %v7334, %v7356
        %v7359 = vunpack.c.l.s4 1934713408
        %v7360 = vunpack.c.0.s8 %v7359
        %v7361 = vlaneseq
        %v7362 = vshrl.u32 %v7361, 7
        %v7363 = vsub.s32 %v7360, %v7362
        %v7364 = vrot.slane %v7350, %v7363
        %v7365 = vcombine.high %v7342, 0.0
        %v7366 = vcombine.high %v7349, 0.0
        %v7367 = vcombine.high %v7357, 0.0
        %v7368 = vcombine.high %v7364, 0.0
        %v7369 = vcombine.high %v7070, 0.0
        %v7371 = vunpack.c.l.s4 1983009808
        %v7372 = vunpack.c.0.s8 %v7371
        %v7373 = vlaneseq
        %v7374 = vshrl.u32 %v7373, 7
        %v7375 = vsub.s32 %v7372, %v7374
        %v7376 = vrot.slane %v7070, %v7375
        %v7378 = vunpack.c.l.s4 1983009808
        %v7379 = vunpack.c.0.s8 %v7378
        %v7380 = vlaneseq
        %v7381 = vshrl.u32 %v7380, 7
        %v7382 = vsub.s32 %v7379, %v7381
        %v7383 = vrot.slane %v7369, %v7382
        %v7384 = vcombine.high %v7376, 0.0
        %v7386 = vunpack.c.l.s4 1934713408
        %v7387 = vunpack.c.0.s8 %v7386
        %v7388 = vlaneseq
        %v7389 = vshrl.u32 %v7388, 7
        %v7390 = vsub.s32 %v7387, %v7389
        %v7391 = vrot.slane %v7376, %v7390
        %v7393 = vunpack.c.l.s4 1934713408
        %v7394 = vunpack.c.0.s8 %v7393
        %v7395 = vlaneseq
        %v7396 = vshrl.u32 %v7395, 7
        %v7397 = vsub.s32 %v7394, %v7396
        %v7398 = vrot.slane %v7384, %v7397
        %v7399 = vcombine.high %v7383, 0.0
        %v7401 = vunpack.c.l.s4 1934713408
        %v7402 = vunpack.c.0.s8 %v7401
        %v7403 = vlaneseq
        %v7404 = vshrl.u32 %v7403, 7
        %v7405 = vsub.s32 %v7402, %v7404
        %v7406 = vrot.slane %v7383, %v7405
        %v7408 = vunpack.c.l.s4 1934713408
        %v7409 = vunpack.c.0.s8 %v7408
        %v7410 = vlaneseq
        %v7411 = vshrl.u32 %v7410, 7
        %v7412 = vsub.s32 %v7409, %v7411
        %v7413 = vrot.slane %v7399, %v7412
        %v7414 = vcombine.high %v7391, 0.0
        %v7415 = vcombine.high %v7398, 0.0
        %v7416 = vcombine.high %v7406, 0.0
        %v7417 = vcombine.high %v7413, 0.0
        %v7418 = vcombine.high %v7074, 0.0
        %v7420 = vunpack.c.l.s4 1983009808
        %v7421 = vunpack.c.0.s8 %v7420
        %v7422 = vlaneseq
        %v7423 = vshrl.u32 %v7422, 7
        %v7424 = vsub.s32 %v7421, %v7423
        %v7425 = vrot.slane %v7074, %v7424
        %v7427 = vunpack.c.l.s4 1983009808
        %v7428 = vunpack.c.0.s8 %v7427
        %v7429 = vlaneseq
        %v7430 = vshrl.u32 %v7429, 7
        %v7431 = vsub.s32 %v7428, %v7430
        %v7432 = vrot.slane %v7418, %v7431
        %v7433 = vcombine.high %v7425, 0.0
        %v7435 = vunpack.c.l.s4 1934713408
        %v7436 = vunpack.c.0.s8 %v7435
        %v7437 = vlaneseq
        %v7438 = vshrl.u32 %v7437, 7
        %v7439 = vsub.s32 %v7436, %v7438
        %v7440 = vrot.slane %v7425, %v7439
        %v7442 = vunpack.c.l.s4 1934713408
        %v7443 = vunpack.c.0.s8 %v7442
        %v7444 = vlaneseq
        %v7445 = vshrl.u32 %v7444, 7
        %v7446 = vsub.s32 %v7443, %v7445
        %v7447 = vrot.slane %v7433, %v7446
        %v7448 = vcombine.high %v7432, 0.0
        %v7450 = vunpack.c.l.s4 1934713408
        %v7451 = vunpack.c.0.s8 %v7450
        %v7452 = vlaneseq
        %v7453 = vshrl.u32 %v7452, 7
        %v7454 = vsub.s32 %v7451, %v7453
        %v7455 = vrot.slane %v7432, %v7454
        %v7457 = vunpack.c.l.s4 1934713408
        %v7458 = vunpack.c.0.s8 %v7457
        %v7459 = vlaneseq
        %v7460 = vshrl.u32 %v7459, 7
        %v7461 = vsub.s32 %v7458, %v7460
        %v7462 = vrot.slane %v7448, %v7461
        %v7463 = vcombine.high %v7440, 0.0
        %v7464 = vcombine.high %v7447, 0.0
        %v7465 = vcombine.high %v7455, 0.0
        %v7466 = vcombine.high %v7462, 0.0
        %7471 = vrot.lane.b32.xlu0 %v7120, 2
        %v7472 = vpop.permute.xlu0 %7471
        %7473 = vrot.lane.b32.xlu0 %v7218, 2
        %v7474 = vpop.permute.xlu0 %7473
        %7475 = vrot.lane.b32.xlu0 %v7316, 2
        %v7476 = vpop.permute.xlu0 %7475
        %7477 = vrot.lane.b32.xlu0 %v7414, 2
        %v7478 = vpop.permute.xlu0 %7477
        %7487 = vrot.lane.b32.xlu0 %v7104, 4
        %v7488 = vpop.permute.xlu0 %7487
        %7489 = vrot.lane.b32.xlu0 %v7202, 4
        %v7490 = vpop.permute.xlu0 %7489
        %7491 = vrot.lane.b32.xlu0 %v7300, 4
        %v7492 = vpop.permute.xlu0 %7491
        %7493 = vrot.lane.b32.xlu0 %v7398, 4
        %v7494 = vpop.permute.xlu0 %7493
        %7503 = vrot.lane.b32.xlu0 %v7121, 6
        %v7504 = vpop.permute.xlu0 %7503
        %7505 = vrot.lane.b32.xlu0 %v7219, 6
        %v7506 = vpop.permute.xlu0 %7505
        %7507 = vrot.lane.b32.xlu0 %v7317, 6
        %v7508 = vpop.permute.xlu0 %7507
        %7509 = vrot.lane.b32.xlu0 %v7415, 6
        %v7510 = vpop.permute.xlu0 %7509
        %7519 = vrot.lane.b32.xlu0 %v7112, 8
        %v7520 = vpop.permute.xlu0 %7519
        %7521 = vrot.lane.b32.xlu0 %v7210, 8
        %v7522 = vpop.permute.xlu0 %7521
        %7523 = vrot.lane.b32.xlu0 %v7308, 8
        %v7524 = vpop.permute.xlu0 %7523
        %7525 = vrot.lane.b32.xlu0 %v7406, 8
        %v7526 = vpop.permute.xlu0 %7525
        %7535 = vrot.lane.b32.xlu0 %v7122, 10
        %v7536 = vpop.permute.xlu0 %7535
        %7537 = vrot.lane.b32.xlu0 %v7220, 10
        %v7538 = vpop.permute.xlu0 %7537
        %7539 = vrot.lane.b32.xlu0 %v7318, 10
        %v7540 = vpop.permute.xlu0 %7539
        %7541 = vrot.lane.b32.xlu0 %v7416, 10
        %v7542 = vpop.permute.xlu0 %7541
        %7551 = vrot.lane.b32.xlu0 %v7119, 12
        %v7552 = vpop.permute.xlu0 %7551
        %7553 = vrot.lane.b32.xlu0 %v7217, 12
        %v7554 = vpop.permute.xlu0 %7553
        %7555 = vrot.lane.b32.xlu0 %v7315, 12
        %v7556 = vpop.permute.xlu0 %7555
        %7557 = vrot.lane.b32.xlu0 %v7413, 12
        %v7558 = vpop.permute.xlu0 %7557
        %7567 = vrot.lane.b32.xlu0 %v7123, 14
        %v7568 = vpop.permute.xlu0 %7567
        %7569 = vrot.lane.b32.xlu0 %v7221, 14
        %v7570 = vpop.permute.xlu0 %7569
        %7571 = vrot.lane.b32.xlu0 %v7319, 14
        %v7572 = vpop.permute.xlu0 %7571
        %7573 = vrot.lane.b32.xlu0 %v7417, 14
        %v7574 = vpop.permute.xlu0 %7573
        %7583 = vrot.lane.b32.xlu0 %v7146, 16
        %v7584 = vpop.permute.xlu0 %7583
        %7585 = vrot.lane.b32.xlu0 %v7244, 16
        %v7586 = vpop.permute.xlu0 %7585
        %7587 = vrot.lane.b32.xlu0 %v7342, 16
        %v7588 = vpop.permute.xlu0 %7587
        %7589 = vrot.lane.b32.xlu0 %v7440, 16
        %v7590 = vpop.permute.xlu0 %7589
        %7599 = vrot.lane.b32.xlu0 %v7169, 18
        %v7600 = vpop.permute.xlu0 %7599
        %7601 = vrot.lane.b32.xlu0 %v7267, 18
        %v7602 = vpop.permute.xlu0 %7601
        %7603 = vrot.lane.b32.xlu0 %v7365, 18
        %v7604 = vpop.permute.xlu0 %7603
        %7605 = vrot.lane.b32.xlu0 %v7463, 18
        %v7606 = vpop.permute.xlu0 %7605
        %7615 = vrot.lane.b32.xlu0 %v7153, 20
        %v7616 = vpop.permute.xlu0 %7615
        %7617 = vrot.lane.b32.xlu0 %v7251, 20
        %v7618 = vpop.permute.xlu0 %7617
        %7619 = vrot.lane.b32.xlu0 %v7349, 20
        %v7620 = vpop.permute.xlu0 %7619
        %7621 = vrot.lane.b32.xlu0 %v7447, 20
        %v7622 = vpop.permute.xlu0 %7621
        %7631 = vrot.lane.b32.xlu0 %v7170, 22
        %v7632 = vpop.permute.xlu0 %7631
        %7633 = vrot.lane.b32.xlu0 %v7268, 22
        %v7634 = vpop.permute.xlu0 %7633
        %7635 = vrot.lane.b32.xlu0 %v7366, 22
        %v7636 = vpop.permute.xlu0 %7635
        %7637 = vrot.lane.b32.xlu0 %v7464, 22
        %v7638 = vpop.permute.xlu0 %7637
        %7647 = vrot.lane.b32.xlu0 %v7161, 24
        %v7648 = vpop.permute.xlu0 %7647
        %7649 = vrot.lane.b32.xlu0 %v7259, 24
        %v7650 = vpop.permute.xlu0 %7649
        %7651 = vrot.lane.b32.xlu0 %v7357, 24
        %v7652 = vpop.permute.xlu0 %7651
        %7653 = vrot.lane.b32.xlu0 %v7455, 24
        %v7654 = vpop.permute.xlu0 %7653
        %7663 = vrot.lane.b32.xlu0 %v7171, 26
        %v7664 = vpop.permute.xlu0 %7663
        %7665 = vrot.lane.b32.xlu0 %v7269, 26
        %v7666 = vpop.permute.xlu0 %7665
        %7667 = vrot.lane.b32.xlu0 %v7367, 26
        %v7668 = vpop.permute.xlu0 %7667
        %7669 = vrot.lane.b32.xlu0 %v7465, 26
        %v7670 = vpop.permute.xlu0 %7669
        %7679 = vrot.lane.b32.xlu0 %v7168, 28
        %v7680 = vpop.permute.xlu0 %7679
        %7681 = vrot.lane.b32.xlu0 %v7266, 28
        %v7682 = vpop.permute.xlu0 %7681
        %7683 = vrot.lane.b32.xlu0 %v7364, 28
        %v7684 = vpop.permute.xlu0 %7683
        %7685 = vrot.lane.b32.xlu0 %v7462, 28
        %v7686 = vpop.permute.xlu0 %7685
        %7695 = vrot.lane.b32.xlu0 %v7172, 30
        %v7696 = vpop.permute.xlu0 %7695
        %7697 = vrot.lane.b32.xlu0 %v7270, 30
        %v7698 = vpop.permute.xlu0 %7697
        %7699 = vrot.lane.b32.xlu0 %v7368, 30
        %v7700 = vpop.permute.xlu0 %7699
        %7701 = vrot.lane.b32.xlu0 %v7466, 30
        %v7702 = vpop.permute.xlu0 %7701
        %v7707 = vsel %vm851, %v7097, %v7472
        %v7708 = vsel %vm851, %v7195, %v7474
        %v7709 = vsel %vm851, %v7293, %v7476
        %v7710 = vsel %vm851, %v7391, %v7478
        %v7711 = vsel %vm856, %v7707, %v7488
        %v7712 = vsel %vm856, %v7708, %v7490
        %v7713 = vsel %vm856, %v7709, %v7492
        %v7714 = vsel %vm856, %v7710, %v7494
        %v7715 = vsel %vm861, %v7711, %v7504
        %v7716 = vsel %vm861, %v7712, %v7506
        %v7717 = vsel %vm861, %v7713, %v7508
        %v7718 = vsel %vm861, %v7714, %v7510
        %v7719 = vsel %vm866, %v7715, %v7520
        %v7720 = vsel %vm866, %v7716, %v7522
        %v7721 = vsel %vm866, %v7717, %v7524
        %v7722 = vsel %vm866, %v7718, %v7526
        %v7723 = vsel %vm871, %v7719, %v7536
        %v7724 = vsel %vm871, %v7720, %v7538
        %v7725 = vsel %vm871, %v7721, %v7540
        %v7726 = vsel %vm871, %v7722, %v7542
        %v7727 = vsel %vm876, %v7723, %v7552
        %v7728 = vsel %vm876, %v7724, %v7554
        %v7729 = vsel %vm876, %v7725, %v7556
        %v7730 = vsel %vm876, %v7726, %v7558
        %v7731 = vsel %vm881, %v7727, %v7568
        %v7732 = vsel %vm881, %v7728, %v7570
        %v7733 = vsel %vm881, %v7729, %v7572
        %v7734 = vsel %vm881, %v7730, %v7574
        %v7735 = vsel %vm886, %v7731, %v7584
        %v7736 = vsel %vm886, %v7732, %v7586
        %v7737 = vsel %vm886, %v7733, %v7588
        %v7738 = vsel %vm886, %v7734, %v7590
        %v7739 = vsel %vm891, %v7735, %v7600
        %v7740 = vsel %vm891, %v7736, %v7602
        %v7741 = vsel %vm891, %v7737, %v7604
        %v7742 = vsel %vm891, %v7738, %v7606
        %v7743 = vsel %vm896, %v7739, %v7616
        %v7744 = vsel %vm896, %v7740, %v7618
        %v7745 = vsel %vm896, %v7741, %v7620
        %v7746 = vsel %vm896, %v7742, %v7622
        %v7747 = vsel %vm901, %v7743, %v7632
        %v7748 = vsel %vm901, %v7744, %v7634
        %v7749 = vsel %vm901, %v7745, %v7636
        %v7750 = vsel %vm901, %v7746, %v7638
        %v7751 = vsel %vm906, %v7747, %v7648
        %v7752 = vsel %vm906, %v7748, %v7650
        %v7753 = vsel %vm906, %v7749, %v7652
        %v7754 = vsel %vm906, %v7750, %v7654
        %v7755 = vsel %vm911, %v7751, %v7664
        %v7756 = vsel %vm911, %v7752, %v7666
        %v7757 = vsel %vm911, %v7753, %v7668
        %v7758 = vsel %vm911, %v7754, %v7670
        %v7759 = vsel %vm916, %v7755, %v7680
        %v7760 = vsel %vm916, %v7756, %v7682
        %v7761 = vsel %vm916, %v7757, %v7684
        %v7762 = vsel %vm916, %v7758, %v7686
        %v7763 = vsel %vm921, %v7759, %v7696
        %v7764 = vsel %vm921, %v7760, %v7698
        %v7765 = vsel %vm921, %v7761, %v7700
        %v7766 = vsel %vm921, %v7762, %v7702
        %v7767 = vlaneseq
        %v7768 = vshrl.u32 %v7767, 7
        %v7769 = vsub.s32 0, %v7768
        %v7770 = vrot.slane %v7763, %v7769
        %v7771 = vlaneseq
        %v7772 = vshrl.u32 %v7771, 7
        %v7773 = vsub.s32 0, %v7772
        %v7774 = vrot.slane %v7764, %v7773
        %v7775 = vlaneseq
        %v7776 = vshrl.u32 %v7775, 7
        %v7777 = vsub.s32 0, %v7776
        %v7778 = vrot.slane %v7765, %v7777
        %v7779 = vlaneseq
        %v7780 = vshrl.u32 %v7779, 7
        %v7781 = vsub.s32 0, %v7780
        %v7782 = vrot.slane %v7766, %v7781
        %7783 = vst.msk [vmem:[%s166 + $0x12] sm:$0x3] %vm942, %v7770
        %7784 = vst.msk [vmem:[%s166 + $0x32] sm:$0x3] %vm942, %v7774
        %7785 = vst.msk [vmem:[%s166 + $0x52] sm:$0x3] %vm942, %v7778
        %7786 = vst.msk [vmem:[%s166 + $0x72] sm:$0x3] %vm942, %v7782
        %v7787 = vld [vmem:[%s148 + $0xa] sm:$0x1]
        %v7788 = vld [vmem:[%s148 + $0x1a] sm:$0x1]
        %v7789 = vld [vmem:[%s148 + $0x2a] sm:$0x1]
        %v7790 = vld [vmem:[%s148 + $0x3a] sm:$0x1]
        %v7791 = vlaneseq
        %v7792 = vshrl.u32 %v7791, 7
        %v7793 = vsub.s32 0, %v7792
        %v7794 = vrot.slane %v7787, %v7793
        %7796 = vbcast.lane.b32.xlu0 %v7794, 256
        %v7797 = vpop.permute.xlu0 %7796
        %s7799 = sor.u32 256, 8
        %7800 = vbcast.lane.b32.xlu0 %v7794, %s7799
        %v7801 = vpop.permute.xlu0 %7800
        %v7802 = vlaneseq
        %v7803 = vshrl.u32 %v7802, 7
        %v7804 = vsub.s32 0, %v7803
        %v7805 = vrot.slane %v7788, %v7804
        %7807 = vbcast.lane.b32.xlu0 %v7805, 256
        %v7808 = vpop.permute.xlu0 %7807
        %s7810 = sor.u32 256, 8
        %7811 = vbcast.lane.b32.xlu0 %v7805, %s7810
        %v7812 = vpop.permute.xlu0 %7811
        %v7813 = vlaneseq
        %v7814 = vshrl.u32 %v7813, 7
        %v7815 = vsub.s32 0, %v7814
        %v7816 = vrot.slane %v7789, %v7815
        %7818 = vbcast.lane.b32.xlu0 %v7816, 256
        %v7819 = vpop.permute.xlu0 %7818
        %s7821 = sor.u32 256, 8
        %7822 = vbcast.lane.b32.xlu0 %v7816, %s7821
        %v7823 = vpop.permute.xlu0 %7822
        %v7824 = vlaneseq
        %v7825 = vshrl.u32 %v7824, 7
        %v7826 = vsub.s32 0, %v7825
        %v7827 = vrot.slane %v7790, %v7826
        %7829 = vbcast.lane.b32.xlu0 %v7827, 256
        %v7830 = vpop.permute.xlu0 %7829
        %s7832 = sor.u32 256, 8
        %7833 = vbcast.lane.b32.xlu0 %v7827, %s7832
        %v7834 = vpop.permute.xlu0 %7833
        %v7835 = vcombine.high %v7797, 0.0
        %v7837 = vunpack.c.l.s4 1983009808
        %v7838 = vunpack.c.0.s8 %v7837
        %v7839 = vlaneseq
        %v7840 = vshrl.u32 %v7839, 7
        %v7841 = vsub.s32 %v7838, %v7840
        %v7842 = vrot.slane %v7797, %v7841
        %v7844 = vunpack.c.l.s4 1983009808
        %v7845 = vunpack.c.0.s8 %v7844
        %v7846 = vlaneseq
        %v7847 = vshrl.u32 %v7846, 7
        %v7848 = vsub.s32 %v7845, %v7847
        %v7849 = vrot.slane %v7835, %v7848
        %v7850 = vcombine.high %v7842, 0.0
        %v7852 = vunpack.c.l.s4 1934713408
        %v7853 = vunpack.c.0.s8 %v7852
        %v7854 = vlaneseq
        %v7855 = vshrl.u32 %v7854, 7
        %v7856 = vsub.s32 %v7853, %v7855
        %v7857 = vrot.slane %v7842, %v7856
        %v7859 = vunpack.c.l.s4 1934713408
        %v7860 = vunpack.c.0.s8 %v7859
        %v7861 = vlaneseq
        %v7862 = vshrl.u32 %v7861, 7
        %v7863 = vsub.s32 %v7860, %v7862
        %v7864 = vrot.slane %v7850, %v7863
        %v7865 = vcombine.high %v7849, 0.0
        %v7867 = vunpack.c.l.s4 1934713408
        %v7868 = vunpack.c.0.s8 %v7867
        %v7869 = vlaneseq
        %v7870 = vshrl.u32 %v7869, 7
        %v7871 = vsub.s32 %v7868, %v7870
        %v7872 = vrot.slane %v7849, %v7871
        %v7874 = vunpack.c.l.s4 1934713408
        %v7875 = vunpack.c.0.s8 %v7874
        %v7876 = vlaneseq
        %v7877 = vshrl.u32 %v7876, 7
        %v7878 = vsub.s32 %v7875, %v7877
        %v7879 = vrot.slane %v7865, %v7878
        %v7880 = vcombine.high %v7857, 0.0
        %v7881 = vcombine.high %v7864, 0.0
        %v7882 = vcombine.high %v7872, 0.0
        %v7883 = vcombine.high %v7879, 0.0
        %v7884 = vcombine.high %v7801, 0.0
        %v7886 = vunpack.c.l.s4 1983009808
        %v7887 = vunpack.c.0.s8 %v7886
        %v7888 = vlaneseq
        %v7889 = vshrl.u32 %v7888, 7
        %v7890 = vsub.s32 %v7887, %v7889
        %v7891 = vrot.slane %v7801, %v7890
        %v7893 = vunpack.c.l.s4 1983009808
        %v7894 = vunpack.c.0.s8 %v7893
        %v7895 = vlaneseq
        %v7896 = vshrl.u32 %v7895, 7
        %v7897 = vsub.s32 %v7894, %v7896
        %v7898 = vrot.slane %v7884, %v7897
        %v7899 = vcombine.high %v7891, 0.0
        %v7901 = vunpack.c.l.s4 1934713408
        %v7902 = vunpack.c.0.s8 %v7901
        %v7903 = vlaneseq
        %v7904 = vshrl.u32 %v7903, 7
        %v7905 = vsub.s32 %v7902, %v7904
        %v7906 = vrot.slane %v7891, %v7905
        %v7908 = vunpack.c.l.s4 1934713408
        %v7909 = vunpack.c.0.s8 %v7908
        %v7910 = vlaneseq
        %v7911 = vshrl.u32 %v7910, 7
        %v7912 = vsub.s32 %v7909, %v7911
        %v7913 = vrot.slane %v7899, %v7912
        %v7914 = vcombine.high %v7898, 0.0
        %v7916 = vunpack.c.l.s4 1934713408
        %v7917 = vunpack.c.0.s8 %v7916
        %v7918 = vlaneseq
        %v7919 = vshrl.u32 %v7918, 7
        %v7920 = vsub.s32 %v7917, %v7919
        %v7921 = vrot.slane %v7898, %v7920
        %v7923 = vunpack.c.l.s4 1934713408
        %v7924 = vunpack.c.0.s8 %v7923
        %v7925 = vlaneseq
        %v7926 = vshrl.u32 %v7925, 7
        %v7927 = vsub.s32 %v7924, %v7926
        %v7928 = vrot.slane %v7914, %v7927
        %v7929 = vcombine.high %v7906, 0.0
        %v7930 = vcombine.high %v7913, 0.0
        %v7931 = vcombine.high %v7921, 0.0
        %v7932 = vcombine.high %v7928, 0.0
        %v7933 = vcombine.high %v7808, 0.0
        %v7935 = vunpack.c.l.s4 1983009808
        %v7936 = vunpack.c.0.s8 %v7935
        %v7937 = vlaneseq
        %v7938 = vshrl.u32 %v7937, 7
        %v7939 = vsub.s32 %v7936, %v7938
        %v7940 = vrot.slane %v7808, %v7939
        %v7942 = vunpack.c.l.s4 1983009808
        %v7943 = vunpack.c.0.s8 %v7942
        %v7944 = vlaneseq
        %v7945 = vshrl.u32 %v7944, 7
        %v7946 = vsub.s32 %v7943, %v7945
        %v7947 = vrot.slane %v7933, %v7946
        %v7948 = vcombine.high %v7940, 0.0
        %v7950 = vunpack.c.l.s4 1934713408
        %v7951 = vunpack.c.0.s8 %v7950
        %v7952 = vlaneseq
        %v7953 = vshrl.u32 %v7952, 7
        %v7954 = vsub.s32 %v7951, %v7953
        %v7955 = vrot.slane %v7940, %v7954
        %v7957 = vunpack.c.l.s4 1934713408
        %v7958 = vunpack.c.0.s8 %v7957
        %v7959 = vlaneseq
        %v7960 = vshrl.u32 %v7959, 7
        %v7961 = vsub.s32 %v7958, %v7960
        %v7962 = vrot.slane %v7948, %v7961
        %v7963 = vcombine.high %v7947, 0.0
        %v7965 = vunpack.c.l.s4 1934713408
        %v7966 = vunpack.c.0.s8 %v7965
        %v7967 = vlaneseq
        %v7968 = vshrl.u32 %v7967, 7
        %v7969 = vsub.s32 %v7966, %v7968
        %v7970 = vrot.slane %v7947, %v7969
        %v7972 = vunpack.c.l.s4 1934713408
        %v7973 = vunpack.c.0.s8 %v7972
        %v7974 = vlaneseq
        %v7975 = vshrl.u32 %v7974, 7
        %v7976 = vsub.s32 %v7973, %v7975
        %v7977 = vrot.slane %v7963, %v7976
        %v7978 = vcombine.high %v7955, 0.0
        %v7979 = vcombine.high %v7962, 0.0
        %v7980 = vcombine.high %v7970, 0.0
        %v7981 = vcombine.high %v7977, 0.0
        %v7982 = vcombine.high %v7812, 0.0
        %v7984 = vunpack.c.l.s4 1983009808
        %v7985 = vunpack.c.0.s8 %v7984
        %v7986 = vlaneseq
        %v7987 = vshrl.u32 %v7986, 7
        %v7988 = vsub.s32 %v7985, %v7987
        %v7989 = vrot.slane %v7812, %v7988
        %v7991 = vunpack.c.l.s4 1983009808
        %v7992 = vunpack.c.0.s8 %v7991
        %v7993 = vlaneseq
        %v7994 = vshrl.u32 %v7993, 7
        %v7995 = vsub.s32 %v7992, %v7994
        %v7996 = vrot.slane %v7982, %v7995
        %v7997 = vcombine.high %v7989, 0.0
        %v7999 = vunpack.c.l.s4 1934713408
        %v8000 = vunpack.c.0.s8 %v7999
        %v8001 = vlaneseq
        %v8002 = vshrl.u32 %v8001, 7
        %v8003 = vsub.s32 %v8000, %v8002
        %v8004 = vrot.slane %v7989, %v8003
        %v8006 = vunpack.c.l.s4 1934713408
        %v8007 = vunpack.c.0.s8 %v8006
        %v8008 = vlaneseq
        %v8009 = vshrl.u32 %v8008, 7
        %v8010 = vsub.s32 %v8007, %v8009
        %v8011 = vrot.slane %v7997, %v8010
        %v8012 = vcombine.high %v7996, 0.0
        %v8014 = vunpack.c.l.s4 1934713408
        %v8015 = vunpack.c.0.s8 %v8014
        %v8016 = vlaneseq
        %v8017 = vshrl.u32 %v8016, 7
        %v8018 = vsub.s32 %v8015, %v8017
        %v8019 = vrot.slane %v7996, %v8018
        %v8021 = vunpack.c.l.s4 1934713408
        %v8022 = vunpack.c.0.s8 %v8021
        %v8023 = vlaneseq
        %v8024 = vshrl.u32 %v8023, 7
        %v8025 = vsub.s32 %v8022, %v8024
        %v8026 = vrot.slane %v8012, %v8025
        %v8027 = vcombine.high %v8004, 0.0
        %v8028 = vcombine.high %v8011, 0.0
        %v8029 = vcombine.high %v8019, 0.0
        %v8030 = vcombine.high %v8026, 0.0
        %v8031 = vcombine.high %v7819, 0.0
        %v8033 = vunpack.c.l.s4 1983009808
        %v8034 = vunpack.c.0.s8 %v8033
        %v8035 = vlaneseq
        %v8036 = vshrl.u32 %v8035, 7
        %v8037 = vsub.s32 %v8034, %v8036
        %v8038 = vrot.slane %v7819, %v8037
        %v8040 = vunpack.c.l.s4 1983009808
        %v8041 = vunpack.c.0.s8 %v8040
        %v8042 = vlaneseq
        %v8043 = vshrl.u32 %v8042, 7
        %v8044 = vsub.s32 %v8041, %v8043
        %v8045 = vrot.slane %v8031, %v8044
        %v8046 = vcombine.high %v8038, 0.0
        %v8048 = vunpack.c.l.s4 1934713408
        %v8049 = vunpack.c.0.s8 %v8048
        %v8050 = vlaneseq
        %v8051 = vshrl.u32 %v8050, 7
        %v8052 = vsub.s32 %v8049, %v8051
        %v8053 = vrot.slane %v8038, %v8052
        %v8055 = vunpack.c.l.s4 1934713408
        %v8056 = vunpack.c.0.s8 %v8055
        %v8057 = vlaneseq
        %v8058 = vshrl.u32 %v8057, 7
        %v8059 = vsub.s32 %v8056, %v8058
        %v8060 = vrot.slane %v8046, %v8059
        %v8061 = vcombine.high %v8045, 0.0
        %v8063 = vunpack.c.l.s4 1934713408
        %v8064 = vunpack.c.0.s8 %v8063
        %v8065 = vlaneseq
        %v8066 = vshrl.u32 %v8065, 7
        %v8067 = vsub.s32 %v8064, %v8066
        %v8068 = vrot.slane %v8045, %v8067
        %v8070 = vunpack.c.l.s4 1934713408
        %v8071 = vunpack.c.0.s8 %v8070
        %v8072 = vlaneseq
        %v8073 = vshrl.u32 %v8072, 7
        %v8074 = vsub.s32 %v8071, %v8073
        %v8075 = vrot.slane %v8061, %v8074
        %v8076 = vcombine.high %v8053, 0.0
        %v8077 = vcombine.high %v8060, 0.0
        %v8078 = vcombine.high %v8068, 0.0
        %v8079 = vcombine.high %v8075, 0.0
        %v8080 = vcombine.high %v7823, 0.0
        %v8082 = vunpack.c.l.s4 1983009808
        %v8083 = vunpack.c.0.s8 %v8082
        %v8084 = vlaneseq
        %v8085 = vshrl.u32 %v8084, 7
        %v8086 = vsub.s32 %v8083, %v8085
        %v8087 = vrot.slane %v7823, %v8086
        %v8089 = vunpack.c.l.s4 1983009808
        %v8090 = vunpack.c.0.s8 %v8089
        %v8091 = vlaneseq
        %v8092 = vshrl.u32 %v8091, 7
        %v8093 = vsub.s32 %v8090, %v8092
        %v8094 = vrot.slane %v8080, %v8093
        %v8095 = vcombine.high %v8087, 0.0
        %v8097 = vunpack.c.l.s4 1934713408
        %v8098 = vunpack.c.0.s8 %v8097
        %v8099 = vlaneseq
        %v8100 = vshrl.u32 %v8099, 7
        %v8101 = vsub.s32 %v8098, %v8100
        %v8102 = vrot.slane %v8087, %v8101
        %v8104 = vunpack.c.l.s4 1934713408
        %v8105 = vunpack.c.0.s8 %v8104
        %v8106 = vlaneseq
        %v8107 = vshrl.u32 %v8106, 7
        %v8108 = vsub.s32 %v8105, %v8107
        %v8109 = vrot.slane %v8095, %v8108
        %v8110 = vcombine.high %v8094, 0.0
        %v8112 = vunpack.c.l.s4 1934713408
        %v8113 = vunpack.c.0.s8 %v8112
        %v8114 = vlaneseq
        %v8115 = vshrl.u32 %v8114, 7
        %v8116 = vsub.s32 %v8113, %v8115
        %v8117 = vrot.slane %v8094, %v8116
        %v8119 = vunpack.c.l.s4 1934713408
        %v8120 = vunpack.c.0.s8 %v8119
        %v8121 = vlaneseq
        %v8122 = vshrl.u32 %v8121, 7
        %v8123 = vsub.s32 %v8120, %v8122
        %v8124 = vrot.slane %v8110, %v8123
        %v8125 = vcombine.high %v8102, 0.0
        %v8126 = vcombine.high %v8109, 0.0
        %v8127 = vcombine.high %v8117, 0.0
        %v8128 = vcombine.high %v8124, 0.0
        %v8129 = vcombine.high %v7830, 0.0
        %v8131 = vunpack.c.l.s4 1983009808
        %v8132 = vunpack.c.0.s8 %v8131
        %v8133 = vlaneseq
        %v8134 = vshrl.u32 %v8133, 7
        %v8135 = vsub.s32 %v8132, %v8134
        %v8136 = vrot.slane %v7830, %v8135
        %v8138 = vunpack.c.l.s4 1983009808
        %v8139 = vunpack.c.0.s8 %v8138
        %v8140 = vlaneseq
        %v8141 = vshrl.u32 %v8140, 7
        %v8142 = vsub.s32 %v8139, %v8141
        %v8143 = vrot.slane %v8129, %v8142
        %v8144 = vcombine.high %v8136, 0.0
        %v8146 = vunpack.c.l.s4 1934713408
        %v8147 = vunpack.c.0.s8 %v8146
        %v8148 = vlaneseq
        %v8149 = vshrl.u32 %v8148, 7
        %v8150 = vsub.s32 %v8147, %v8149
        %v8151 = vrot.slane %v8136, %v8150
        %v8153 = vunpack.c.l.s4 1934713408
        %v8154 = vunpack.c.0.s8 %v8153
        %v8155 = vlaneseq
        %v8156 = vshrl.u32 %v8155, 7
        %v8157 = vsub.s32 %v8154, %v8156
        %v8158 = vrot.slane %v8144, %v8157
        %v8159 = vcombine.high %v8143, 0.0
        %v8161 = vunpack.c.l.s4 1934713408
        %v8162 = vunpack.c.0.s8 %v8161
        %v8163 = vlaneseq
        %v8164 = vshrl.u32 %v8163, 7
        %v8165 = vsub.s32 %v8162, %v8164
        %v8166 = vrot.slane %v8143, %v8165
        %v8168 = vunpack.c.l.s4 1934713408
        %v8169 = vunpack.c.0.s8 %v8168
        %v8170 = vlaneseq
        %v8171 = vshrl.u32 %v8170, 7
        %v8172 = vsub.s32 %v8169, %v8171
        %v8173 = vrot.slane %v8159, %v8172
        %v8174 = vcombine.high %v8151, 0.0
        %v8175 = vcombine.high %v8158, 0.0
        %v8176 = vcombine.high %v8166, 0.0
        %v8177 = vcombine.high %v8173, 0.0
        %v8178 = vcombine.high %v7834, 0.0
        %v8180 = vunpack.c.l.s4 1983009808
        %v8181 = vunpack.c.0.s8 %v8180
        %v8182 = vlaneseq
        %v8183 = vshrl.u32 %v8182, 7
        %v8184 = vsub.s32 %v8181, %v8183
        %v8185 = vrot.slane %v7834, %v8184
        %v8187 = vunpack.c.l.s4 1983009808
        %v8188 = vunpack.c.0.s8 %v8187
        %v8189 = vlaneseq
        %v8190 = vshrl.u32 %v8189, 7
        %v8191 = vsub.s32 %v8188, %v8190
        %v8192 = vrot.slane %v8178, %v8191
        %v8193 = vcombine.high %v8185, 0.0
        %v8195 = vunpack.c.l.s4 1934713408
        %v8196 = vunpack.c.0.s8 %v8195
        %v8197 = vlaneseq
        %v8198 = vshrl.u32 %v8197, 7
        %v8199 = vsub.s32 %v8196, %v8198
        %v8200 = vrot.slane %v8185, %v8199
        %v8202 = vunpack.c.l.s4 1934713408
        %v8203 = vunpack.c.0.s8 %v8202
        %v8204 = vlaneseq
        %v8205 = vshrl.u32 %v8204, 7
        %v8206 = vsub.s32 %v8203, %v8205
        %v8207 = vrot.slane %v8193, %v8206
        %v8208 = vcombine.high %v8192, 0.0
        %v8210 = vunpack.c.l.s4 1934713408
        %v8211 = vunpack.c.0.s8 %v8210
        %v8212 = vlaneseq
        %v8213 = vshrl.u32 %v8212, 7
        %v8214 = vsub.s32 %v8211, %v8213
        %v8215 = vrot.slane %v8192, %v8214
        %v8217 = vunpack.c.l.s4 1934713408
        %v8218 = vunpack.c.0.s8 %v8217
        %v8219 = vlaneseq
        %v8220 = vshrl.u32 %v8219, 7
        %v8221 = vsub.s32 %v8218, %v8220
        %v8222 = vrot.slane %v8208, %v8221
        %v8223 = vcombine.high %v8200, 0.0
        %v8224 = vcombine.high %v8207, 0.0
        %v8225 = vcombine.high %v8215, 0.0
        %v8226 = vcombine.high %v8222, 0.0
        %8231 = vrot.lane.b32.xlu0 %v7880, 2
        %v8232 = vpop.permute.xlu0 %8231
        %8233 = vrot.lane.b32.xlu0 %v7978, 2
        %v8234 = vpop.permute.xlu0 %8233
        %8235 = vrot.lane.b32.xlu0 %v8076, 2
        %v8236 = vpop.permute.xlu0 %8235
        %8237 = vrot.lane.b32.xlu0 %v8174, 2
        %v8238 = vpop.permute.xlu0 %8237
        %8247 = vrot.lane.b32.xlu0 %v7864, 4
        %v8248 = vpop.permute.xlu0 %8247
        %8249 = vrot.lane.b32.xlu0 %v7962, 4
        %v8250 = vpop.permute.xlu0 %8249
        %8251 = vrot.lane.b32.xlu0 %v8060, 4
        %v8252 = vpop.permute.xlu0 %8251
        %8253 = vrot.lane.b32.xlu0 %v8158, 4
        %v8254 = vpop.permute.xlu0 %8253
        %8263 = vrot.lane.b32.xlu0 %v7881, 6
        %v8264 = vpop.permute.xlu0 %8263
        %8265 = vrot.lane.b32.xlu0 %v7979, 6
        %v8266 = vpop.permute.xlu0 %8265
        %8267 = vrot.lane.b32.xlu0 %v8077, 6
        %v8268 = vpop.permute.xlu0 %8267
        %8269 = vrot.lane.b32.xlu0 %v8175, 6
        %v8270 = vpop.permute.xlu0 %8269
        %8279 = vrot.lane.b32.xlu0 %v7872, 8
        %v8280 = vpop.permute.xlu0 %8279
        %8281 = vrot.lane.b32.xlu0 %v7970, 8
        %v8282 = vpop.permute.xlu0 %8281
        %8283 = vrot.lane.b32.xlu0 %v8068, 8
        %v8284 = vpop.permute.xlu0 %8283
        %8285 = vrot.lane.b32.xlu0 %v8166, 8
        %v8286 = vpop.permute.xlu0 %8285
        %8295 = vrot.lane.b32.xlu0 %v7882, 10
        %v8296 = vpop.permute.xlu0 %8295
        %8297 = vrot.lane.b32.xlu0 %v7980, 10
        %v8298 = vpop.permute.xlu0 %8297
        %8299 = vrot.lane.b32.xlu0 %v8078, 10
        %v8300 = vpop.permute.xlu0 %8299
        %8301 = vrot.lane.b32.xlu0 %v8176, 10
        %v8302 = vpop.permute.xlu0 %8301
        %8311 = vrot.lane.b32.xlu0 %v7879, 12
        %v8312 = vpop.permute.xlu0 %8311
        %8313 = vrot.lane.b32.xlu0 %v7977, 12
        %v8314 = vpop.permute.xlu0 %8313
        %8315 = vrot.lane.b32.xlu0 %v8075, 12
        %v8316 = vpop.permute.xlu0 %8315
        %8317 = vrot.lane.b32.xlu0 %v8173, 12
        %v8318 = vpop.permute.xlu0 %8317
        %8327 = vrot.lane.b32.xlu0 %v7883, 14
        %v8328 = vpop.permute.xlu0 %8327
        %8329 = vrot.lane.b32.xlu0 %v7981, 14
        %v8330 = vpop.permute.xlu0 %8329
        %8331 = vrot.lane.b32.xlu0 %v8079, 14
        %v8332 = vpop.permute.xlu0 %8331
        %8333 = vrot.lane.b32.xlu0 %v8177, 14
        %v8334 = vpop.permute.xlu0 %8333
        %8343 = vrot.lane.b32.xlu0 %v7906, 16
        %v8344 = vpop.permute.xlu0 %8343
        %8345 = vrot.lane.b32.xlu0 %v8004, 16
        %v8346 = vpop.permute.xlu0 %8345
        %8347 = vrot.lane.b32.xlu0 %v8102, 16
        %v8348 = vpop.permute.xlu0 %8347
        %8349 = vrot.lane.b32.xlu0 %v8200, 16
        %v8350 = vpop.permute.xlu0 %8349
        %8359 = vrot.lane.b32.xlu0 %v7929, 18
        %v8360 = vpop.permute.xlu0 %8359
        %8361 = vrot.lane.b32.xlu0 %v8027, 18
        %v8362 = vpop.permute.xlu0 %8361
        %8363 = vrot.lane.b32.xlu0 %v8125, 18
        %v8364 = vpop.permute.xlu0 %8363
        %8365 = vrot.lane.b32.xlu0 %v8223, 18
        %v8366 = vpop.permute.xlu0 %8365
        %8375 = vrot.lane.b32.xlu0 %v7913, 20
        %v8376 = vpop.permute.xlu0 %8375
        %8377 = vrot.lane.b32.xlu0 %v8011, 20
        %v8378 = vpop.permute.xlu0 %8377
        %8379 = vrot.lane.b32.xlu0 %v8109, 20
        %v8380 = vpop.permute.xlu0 %8379
        %8381 = vrot.lane.b32.xlu0 %v8207, 20
        %v8382 = vpop.permute.xlu0 %8381
        %8391 = vrot.lane.b32.xlu0 %v7930, 22
        %v8392 = vpop.permute.xlu0 %8391
        %8393 = vrot.lane.b32.xlu0 %v8028, 22
        %v8394 = vpop.permute.xlu0 %8393
        %8395 = vrot.lane.b32.xlu0 %v8126, 22
        %v8396 = vpop.permute.xlu0 %8395
        %8397 = vrot.lane.b32.xlu0 %v8224, 22
        %v8398 = vpop.permute.xlu0 %8397
        %8407 = vrot.lane.b32.xlu0 %v7921, 24
        %v8408 = vpop.permute.xlu0 %8407
        %8409 = vrot.lane.b32.xlu0 %v8019, 24
        %v8410 = vpop.permute.xlu0 %8409
        %8411 = vrot.lane.b32.xlu0 %v8117, 24
        %v8412 = vpop.permute.xlu0 %8411
        %8413 = vrot.lane.b32.xlu0 %v8215, 24
        %v8414 = vpop.permute.xlu0 %8413
        %8423 = vrot.lane.b32.xlu0 %v7931, 26
        %v8424 = vpop.permute.xlu0 %8423
        %8425 = vrot.lane.b32.xlu0 %v8029, 26
        %v8426 = vpop.permute.xlu0 %8425
        %8427 = vrot.lane.b32.xlu0 %v8127, 26
        %v8428 = vpop.permute.xlu0 %8427
        %8429 = vrot.lane.b32.xlu0 %v8225, 26
        %v8430 = vpop.permute.xlu0 %8429
        %8439 = vrot.lane.b32.xlu0 %v7928, 28
        %v8440 = vpop.permute.xlu0 %8439
        %8441 = vrot.lane.b32.xlu0 %v8026, 28
        %v8442 = vpop.permute.xlu0 %8441
        %8443 = vrot.lane.b32.xlu0 %v8124, 28
        %v8444 = vpop.permute.xlu0 %8443
        %8445 = vrot.lane.b32.xlu0 %v8222, 28
        %v8446 = vpop.permute.xlu0 %8445
        %8455 = vrot.lane.b32.xlu0 %v7932, 30
        %v8456 = vpop.permute.xlu0 %8455
        %8457 = vrot.lane.b32.xlu0 %v8030, 30
        %v8458 = vpop.permute.xlu0 %8457
        %8459 = vrot.lane.b32.xlu0 %v8128, 30
        %v8460 = vpop.permute.xlu0 %8459
        %8461 = vrot.lane.b32.xlu0 %v8226, 30
        %v8462 = vpop.permute.xlu0 %8461
        %v8467 = vsel %vm851, %v7857, %v8232
        %v8468 = vsel %vm851, %v7955, %v8234
        %v8469 = vsel %vm851, %v8053, %v8236
        %v8470 = vsel %vm851, %v8151, %v8238
        %v8471 = vsel %vm856, %v8467, %v8248
        %v8472 = vsel %vm856, %v8468, %v8250
        %v8473 = vsel %vm856, %v8469, %v8252
        %v8474 = vsel %vm856, %v8470, %v8254
        %v8475 = vsel %vm861, %v8471, %v8264
        %v8476 = vsel %vm861, %v8472, %v8266
        %v8477 = vsel %vm861, %v8473, %v8268
        %v8478 = vsel %vm861, %v8474, %v8270
        %v8479 = vsel %vm866, %v8475, %v8280
        %v8480 = vsel %vm866, %v8476, %v8282
        %v8481 = vsel %vm866, %v8477, %v8284
        %v8482 = vsel %vm866, %v8478, %v8286
        %v8483 = vsel %vm871, %v8479, %v8296
        %v8484 = vsel %vm871, %v8480, %v8298
        %v8485 = vsel %vm871, %v8481, %v8300
        %v8486 = vsel %vm871, %v8482, %v8302
        %v8487 = vsel %vm876, %v8483, %v8312
        %v8488 = vsel %vm876, %v8484, %v8314
        %v8489 = vsel %vm876, %v8485, %v8316
        %v8490 = vsel %vm876, %v8486, %v8318
        %v8491 = vsel %vm881, %v8487, %v8328
        %v8492 = vsel %vm881, %v8488, %v8330
        %v8493 = vsel %vm881, %v8489, %v8332
        %v8494 = vsel %vm881, %v8490, %v8334
        %v8495 = vsel %vm886, %v8491, %v8344
        %v8496 = vsel %vm886, %v8492, %v8346
        %v8497 = vsel %vm886, %v8493, %v8348
        %v8498 = vsel %vm886, %v8494, %v8350
        %v8499 = vsel %vm891, %v8495, %v8360
        %v8500 = vsel %vm891, %v8496, %v8362
        %v8501 = vsel %vm891, %v8497, %v8364
        %v8502 = vsel %vm891, %v8498, %v8366
        %v8503 = vsel %vm896, %v8499, %v8376
        %v8504 = vsel %vm896, %v8500, %v8378
        %v8505 = vsel %vm896, %v8501, %v8380
        %v8506 = vsel %vm896, %v8502, %v8382
        %v8507 = vsel %vm901, %v8503, %v8392
        %v8508 = vsel %vm901, %v8504, %v8394
        %v8509 = vsel %vm901, %v8505, %v8396
        %v8510 = vsel %vm901, %v8506, %v8398
        %v8511 = vsel %vm906, %v8507, %v8408
        %v8512 = vsel %vm906, %v8508, %v8410
        %v8513 = vsel %vm906, %v8509, %v8412
        %v8514 = vsel %vm906, %v8510, %v8414
        %v8515 = vsel %vm911, %v8511, %v8424
        %v8516 = vsel %vm911, %v8512, %v8426
        %v8517 = vsel %vm911, %v8513, %v8428
        %v8518 = vsel %vm911, %v8514, %v8430
        %v8519 = vsel %vm916, %v8515, %v8440
        %v8520 = vsel %vm916, %v8516, %v8442
        %v8521 = vsel %vm916, %v8517, %v8444
        %v8522 = vsel %vm916, %v8518, %v8446
        %v8523 = vsel %vm921, %v8519, %v8456
        %v8524 = vsel %vm921, %v8520, %v8458
        %v8525 = vsel %vm921, %v8521, %v8460
        %v8526 = vsel %vm921, %v8522, %v8462
        %v8527 = vlaneseq
        %v8528 = vshrl.u32 %v8527, 7
        %v8529 = vsub.s32 0, %v8528
        %v8530 = vrot.slane %v8523, %v8529
        %v8531 = vlaneseq
        %v8532 = vshrl.u32 %v8531, 7
        %v8533 = vsub.s32 0, %v8532
        %v8534 = vrot.slane %v8524, %v8533
        %v8535 = vlaneseq
        %v8536 = vshrl.u32 %v8535, 7
        %v8537 = vsub.s32 0, %v8536
        %v8538 = vrot.slane %v8525, %v8537
        %v8539 = vlaneseq
        %v8540 = vshrl.u32 %v8539, 7
        %v8541 = vsub.s32 0, %v8540
        %v8542 = vrot.slane %v8526, %v8541
        %8543 = vst.msk [vmem:[%s166 + $0x14] sm:$0x3] %vm942, %v8530
        %8544 = vst.msk [vmem:[%s166 + $0x34] sm:$0x3] %vm942, %v8534
        %8545 = vst.msk [vmem:[%s166 + $0x54] sm:$0x3] %vm942, %v8538
        %8546 = vst.msk [vmem:[%s166 + $0x74] sm:$0x3] %vm942, %v8542
        %v8547 = vld [vmem:[%s148 + $0xb] sm:$0x1]
        %v8548 = vld [vmem:[%s148 + $0x1b] sm:$0x1]
        %v8549 = vld [vmem:[%s148 + $0x2b] sm:$0x1]
        %v8550 = vld [vmem:[%s148 + $0x3b] sm:$0x1]
        %v8551 = vlaneseq
        %v8552 = vshrl.u32 %v8551, 7
        %v8553 = vsub.s32 0, %v8552
        %v8554 = vrot.slane %v8547, %v8553
        %8556 = vbcast.lane.b32.xlu0 %v8554, 256
        %v8557 = vpop.permute.xlu0 %8556
        %s8559 = sor.u32 256, 8
        %8560 = vbcast.lane.b32.xlu0 %v8554, %s8559
        %v8561 = vpop.permute.xlu0 %8560
        %v8562 = vlaneseq
        %v8563 = vshrl.u32 %v8562, 7
        %v8564 = vsub.s32 0, %v8563
        %v8565 = vrot.slane %v8548, %v8564
        %8567 = vbcast.lane.b32.xlu0 %v8565, 256
        %v8568 = vpop.permute.xlu0 %8567
        %s8570 = sor.u32 256, 8
        %8571 = vbcast.lane.b32.xlu0 %v8565, %s8570
        %v8572 = vpop.permute.xlu0 %8571
        %v8573 = vlaneseq
        %v8574 = vshrl.u32 %v8573, 7
        %v8575 = vsub.s32 0, %v8574
        %v8576 = vrot.slane %v8549, %v8575
        %8578 = vbcast.lane.b32.xlu0 %v8576, 256
        %v8579 = vpop.permute.xlu0 %8578
        %s8581 = sor.u32 256, 8
        %8582 = vbcast.lane.b32.xlu0 %v8576, %s8581
        %v8583 = vpop.permute.xlu0 %8582
        %v8584 = vlaneseq
        %v8585 = vshrl.u32 %v8584, 7
        %v8586 = vsub.s32 0, %v8585
        %v8587 = vrot.slane %v8550, %v8586
        %8589 = vbcast.lane.b32.xlu0 %v8587, 256
        %v8590 = vpop.permute.xlu0 %8589
        %s8592 = sor.u32 256, 8
        %8593 = vbcast.lane.b32.xlu0 %v8587, %s8592
        %v8594 = vpop.permute.xlu0 %8593
        %v8595 = vcombine.high %v8557, 0.0
        %v8597 = vunpack.c.l.s4 1983009808
        %v8598 = vunpack.c.0.s8 %v8597
        %v8599 = vlaneseq
        %v8600 = vshrl.u32 %v8599, 7
        %v8601 = vsub.s32 %v8598, %v8600
        %v8602 = vrot.slane %v8557, %v8601
        %v8604 = vunpack.c.l.s4 1983009808
        %v8605 = vunpack.c.0.s8 %v8604
        %v8606 = vlaneseq
        %v8607 = vshrl.u32 %v8606, 7
        %v8608 = vsub.s32 %v8605, %v8607
        %v8609 = vrot.slane %v8595, %v8608
        %v8610 = vcombine.high %v8602, 0.0
        %v8612 = vunpack.c.l.s4 1934713408
        %v8613 = vunpack.c.0.s8 %v8612
        %v8614 = vlaneseq
        %v8615 = vshrl.u32 %v8614, 7
        %v8616 = vsub.s32 %v8613, %v8615
        %v8617 = vrot.slane %v8602, %v8616
        %v8619 = vunpack.c.l.s4 1934713408
        %v8620 = vunpack.c.0.s8 %v8619
        %v8621 = vlaneseq
        %v8622 = vshrl.u32 %v8621, 7
        %v8623 = vsub.s32 %v8620, %v8622
        %v8624 = vrot.slane %v8610, %v8623
        %v8625 = vcombine.high %v8609, 0.0
        %v8627 = vunpack.c.l.s4 1934713408
        %v8628 = vunpack.c.0.s8 %v8627
        %v8629 = vlaneseq
        %v8630 = vshrl.u32 %v8629, 7
        %v8631 = vsub.s32 %v8628, %v8630
        %v8632 = vrot.slane %v8609, %v8631
        %v8634 = vunpack.c.l.s4 1934713408
        %v8635 = vunpack.c.0.s8 %v8634
        %v8636 = vlaneseq
        %v8637 = vshrl.u32 %v8636, 7
        %v8638 = vsub.s32 %v8635, %v8637
        %v8639 = vrot.slane %v8625, %v8638
        %v8640 = vcombine.high %v8617, 0.0
        %v8641 = vcombine.high %v8624, 0.0
        %v8642 = vcombine.high %v8632, 0.0
        %v8643 = vcombine.high %v8639, 0.0
        %v8644 = vcombine.high %v8561, 0.0
        %v8646 = vunpack.c.l.s4 1983009808
        %v8647 = vunpack.c.0.s8 %v8646
        %v8648 = vlaneseq
        %v8649 = vshrl.u32 %v8648, 7
        %v8650 = vsub.s32 %v8647, %v8649
        %v8651 = vrot.slane %v8561, %v8650
        %v8653 = vunpack.c.l.s4 1983009808
        %v8654 = vunpack.c.0.s8 %v8653
        %v8655 = vlaneseq
        %v8656 = vshrl.u32 %v8655, 7
        %v8657 = vsub.s32 %v8654, %v8656
        %v8658 = vrot.slane %v8644, %v8657
        %v8659 = vcombine.high %v8651, 0.0
        %v8661 = vunpack.c.l.s4 1934713408
        %v8662 = vunpack.c.0.s8 %v8661
        %v8663 = vlaneseq
        %v8664 = vshrl.u32 %v8663, 7
        %v8665 = vsub.s32 %v8662, %v8664
        %v8666 = vrot.slane %v8651, %v8665
        %v8668 = vunpack.c.l.s4 1934713408
        %v8669 = vunpack.c.0.s8 %v8668
        %v8670 = vlaneseq
        %v8671 = vshrl.u32 %v8670, 7
        %v8672 = vsub.s32 %v8669, %v8671
        %v8673 = vrot.slane %v8659, %v8672
        %v8674 = vcombine.high %v8658, 0.0
        %v8676 = vunpack.c.l.s4 1934713408
        %v8677 = vunpack.c.0.s8 %v8676
        %v8678 = vlaneseq
        %v8679 = vshrl.u32 %v8678, 7
        %v8680 = vsub.s32 %v8677, %v8679
        %v8681 = vrot.slane %v8658, %v8680
        %v8683 = vunpack.c.l.s4 1934713408
        %v8684 = vunpack.c.0.s8 %v8683
        %v8685 = vlaneseq
        %v8686 = vshrl.u32 %v8685, 7
        %v8687 = vsub.s32 %v8684, %v8686
        %v8688 = vrot.slane %v8674, %v8687
        %v8689 = vcombine.high %v8666, 0.0
        %v8690 = vcombine.high %v8673, 0.0
        %v8691 = vcombine.high %v8681, 0.0
        %v8692 = vcombine.high %v8688, 0.0
        %v8693 = vcombine.high %v8568, 0.0
        %v8695 = vunpack.c.l.s4 1983009808
        %v8696 = vunpack.c.0.s8 %v8695
        %v8697 = vlaneseq
        %v8698 = vshrl.u32 %v8697, 7
        %v8699 = vsub.s32 %v8696, %v8698
        %v8700 = vrot.slane %v8568, %v8699
        %v8702 = vunpack.c.l.s4 1983009808
        %v8703 = vunpack.c.0.s8 %v8702
        %v8704 = vlaneseq
        %v8705 = vshrl.u32 %v8704, 7
        %v8706 = vsub.s32 %v8703, %v8705
        %v8707 = vrot.slane %v8693, %v8706
        %v8708 = vcombine.high %v8700, 0.0
        %v8710 = vunpack.c.l.s4 1934713408
        %v8711 = vunpack.c.0.s8 %v8710
        %v8712 = vlaneseq
        %v8713 = vshrl.u32 %v8712, 7
        %v8714 = vsub.s32 %v8711, %v8713
        %v8715 = vrot.slane %v8700, %v8714
        %v8717 = vunpack.c.l.s4 1934713408
        %v8718 = vunpack.c.0.s8 %v8717
        %v8719 = vlaneseq
        %v8720 = vshrl.u32 %v8719, 7
        %v8721 = vsub.s32 %v8718, %v8720
        %v8722 = vrot.slane %v8708, %v8721
        %v8723 = vcombine.high %v8707, 0.0
        %v8725 = vunpack.c.l.s4 1934713408
        %v8726 = vunpack.c.0.s8 %v8725
        %v8727 = vlaneseq
        %v8728 = vshrl.u32 %v8727, 7
        %v8729 = vsub.s32 %v8726, %v8728
        %v8730 = vrot.slane %v8707, %v8729
        %v8732 = vunpack.c.l.s4 1934713408
        %v8733 = vunpack.c.0.s8 %v8732
        %v8734 = vlaneseq
        %v8735 = vshrl.u32 %v8734, 7
        %v8736 = vsub.s32 %v8733, %v8735
        %v8737 = vrot.slane %v8723, %v8736
        %v8738 = vcombine.high %v8715, 0.0
        %v8739 = vcombine.high %v8722, 0.0
        %v8740 = vcombine.high %v8730, 0.0
        %v8741 = vcombine.high %v8737, 0.0
        %v8742 = vcombine.high %v8572, 0.0
        %v8744 = vunpack.c.l.s4 1983009808
        %v8745 = vunpack.c.0.s8 %v8744
        %v8746 = vlaneseq
        %v8747 = vshrl.u32 %v8746, 7
        %v8748 = vsub.s32 %v8745, %v8747
        %v8749 = vrot.slane %v8572, %v8748
        %v8751 = vunpack.c.l.s4 1983009808
        %v8752 = vunpack.c.0.s8 %v8751
        %v8753 = vlaneseq
        %v8754 = vshrl.u32 %v8753, 7
        %v8755 = vsub.s32 %v8752, %v8754
        %v8756 = vrot.slane %v8742, %v8755
        %v8757 = vcombine.high %v8749, 0.0
        %v8759 = vunpack.c.l.s4 1934713408
        %v8760 = vunpack.c.0.s8 %v8759
        %v8761 = vlaneseq
        %v8762 = vshrl.u32 %v8761, 7
        %v8763 = vsub.s32 %v8760, %v8762
        %v8764 = vrot.slane %v8749, %v8763
        %v8766 = vunpack.c.l.s4 1934713408
        %v8767 = vunpack.c.0.s8 %v8766
        %v8768 = vlaneseq
        %v8769 = vshrl.u32 %v8768, 7
        %v8770 = vsub.s32 %v8767, %v8769
        %v8771 = vrot.slane %v8757, %v8770
        %v8772 = vcombine.high %v8756, 0.0
        %v8774 = vunpack.c.l.s4 1934713408
        %v8775 = vunpack.c.0.s8 %v8774
        %v8776 = vlaneseq
        %v8777 = vshrl.u32 %v8776, 7
        %v8778 = vsub.s32 %v8775, %v8777
        %v8779 = vrot.slane %v8756, %v8778
        %v8781 = vunpack.c.l.s4 1934713408
        %v8782 = vunpack.c.0.s8 %v8781
        %v8783 = vlaneseq
        %v8784 = vshrl.u32 %v8783, 7
        %v8785 = vsub.s32 %v8782, %v8784
        %v8786 = vrot.slane %v8772, %v8785
        %v8787 = vcombine.high %v8764, 0.0
        %v8788 = vcombine.high %v8771, 0.0
        %v8789 = vcombine.high %v8779, 0.0
        %v8790 = vcombine.high %v8786, 0.0
        %v8791 = vcombine.high %v8579, 0.0
        %v8793 = vunpack.c.l.s4 1983009808
        %v8794 = vunpack.c.0.s8 %v8793
        %v8795 = vlaneseq
        %v8796 = vshrl.u32 %v8795, 7
        %v8797 = vsub.s32 %v8794, %v8796
        %v8798 = vrot.slane %v8579, %v8797
        %v8800 = vunpack.c.l.s4 1983009808
        %v8801 = vunpack.c.0.s8 %v8800
        %v8802 = vlaneseq
        %v8803 = vshrl.u32 %v8802, 7
        %v8804 = vsub.s32 %v8801, %v8803
        %v8805 = vrot.slane %v8791, %v8804
        %v8806 = vcombine.high %v8798, 0.0
        %v8808 = vunpack.c.l.s4 1934713408
        %v8809 = vunpack.c.0.s8 %v8808
        %v8810 = vlaneseq
        %v8811 = vshrl.u32 %v8810, 7
        %v8812 = vsub.s32 %v8809, %v8811
        %v8813 = vrot.slane %v8798, %v8812
        %v8815 = vunpack.c.l.s4 1934713408
        %v8816 = vunpack.c.0.s8 %v8815
        %v8817 = vlaneseq
        %v8818 = vshrl.u32 %v8817, 7
        %v8819 = vsub.s32 %v8816, %v8818
        %v8820 = vrot.slane %v8806, %v8819
        %v8821 = vcombine.high %v8805, 0.0
        %v8823 = vunpack.c.l.s4 1934713408
        %v8824 = vunpack.c.0.s8 %v8823
        %v8825 = vlaneseq
        %v8826 = vshrl.u32 %v8825, 7
        %v8827 = vsub.s32 %v8824, %v8826
        %v8828 = vrot.slane %v8805, %v8827
        %v8830 = vunpack.c.l.s4 1934713408
        %v8831 = vunpack.c.0.s8 %v8830
        %v8832 = vlaneseq
        %v8833 = vshrl.u32 %v8832, 7
        %v8834 = vsub.s32 %v8831, %v8833
        %v8835 = vrot.slane %v8821, %v8834
        %v8836 = vcombine.high %v8813, 0.0
        %v8837 = vcombine.high %v8820, 0.0
        %v8838 = vcombine.high %v8828, 0.0
        %v8839 = vcombine.high %v8835, 0.0
        %v8840 = vcombine.high %v8583, 0.0
        %v8842 = vunpack.c.l.s4 1983009808
        %v8843 = vunpack.c.0.s8 %v8842
        %v8844 = vlaneseq
        %v8845 = vshrl.u32 %v8844, 7
        %v8846 = vsub.s32 %v8843, %v8845
        %v8847 = vrot.slane %v8583, %v8846
        %v8849 = vunpack.c.l.s4 1983009808
        %v8850 = vunpack.c.0.s8 %v8849
        %v8851 = vlaneseq
        %v8852 = vshrl.u32 %v8851, 7
        %v8853 = vsub.s32 %v8850, %v8852
        %v8854 = vrot.slane %v8840, %v8853
        %v8855 = vcombine.high %v8847, 0.0
        %v8857 = vunpack.c.l.s4 1934713408
        %v8858 = vunpack.c.0.s8 %v8857
        %v8859 = vlaneseq
        %v8860 = vshrl.u32 %v8859, 7
        %v8861 = vsub.s32 %v8858, %v8860
        %v8862 = vrot.slane %v8847, %v8861
        %v8864 = vunpack.c.l.s4 1934713408
        %v8865 = vunpack.c.0.s8 %v8864
        %v8866 = vlaneseq
        %v8867 = vshrl.u32 %v8866, 7
        %v8868 = vsub.s32 %v8865, %v8867
        %v8869 = vrot.slane %v8855, %v8868
        %v8870 = vcombine.high %v8854, 0.0
        %v8872 = vunpack.c.l.s4 1934713408
        %v8873 = vunpack.c.0.s8 %v8872
        %v8874 = vlaneseq
        %v8875 = vshrl.u32 %v8874, 7
        %v8876 = vsub.s32 %v8873, %v8875
        %v8877 = vrot.slane %v8854, %v8876
        %v8879 = vunpack.c.l.s4 1934713408
        %v8880 = vunpack.c.0.s8 %v8879
        %v8881 = vlaneseq
        %v8882 = vshrl.u32 %v8881, 7
        %v8883 = vsub.s32 %v8880, %v8882
        %v8884 = vrot.slane %v8870, %v8883
        %v8885 = vcombine.high %v8862, 0.0
        %v8886 = vcombine.high %v8869, 0.0
        %v8887 = vcombine.high %v8877, 0.0
        %v8888 = vcombine.high %v8884, 0.0
        %v8889 = vcombine.high %v8590, 0.0
        %v8891 = vunpack.c.l.s4 1983009808
        %v8892 = vunpack.c.0.s8 %v8891
        %v8893 = vlaneseq
        %v8894 = vshrl.u32 %v8893, 7
        %v8895 = vsub.s32 %v8892, %v8894
        %v8896 = vrot.slane %v8590, %v8895
        %v8898 = vunpack.c.l.s4 1983009808
        %v8899 = vunpack.c.0.s8 %v8898
        %v8900 = vlaneseq
        %v8901 = vshrl.u32 %v8900, 7
        %v8902 = vsub.s32 %v8899, %v8901
        %v8903 = vrot.slane %v8889, %v8902
        %v8904 = vcombine.high %v8896, 0.0
        %v8906 = vunpack.c.l.s4 1934713408
        %v8907 = vunpack.c.0.s8 %v8906
        %v8908 = vlaneseq
        %v8909 = vshrl.u32 %v8908, 7
        %v8910 = vsub.s32 %v8907, %v8909
        %v8911 = vrot.slane %v8896, %v8910
        %v8913 = vunpack.c.l.s4 1934713408
        %v8914 = vunpack.c.0.s8 %v8913
        %v8915 = vlaneseq
        %v8916 = vshrl.u32 %v8915, 7
        %v8917 = vsub.s32 %v8914, %v8916
        %v8918 = vrot.slane %v8904, %v8917
        %v8919 = vcombine.high %v8903, 0.0
        %v8921 = vunpack.c.l.s4 1934713408
        %v8922 = vunpack.c.0.s8 %v8921
        %v8923 = vlaneseq
        %v8924 = vshrl.u32 %v8923, 7
        %v8925 = vsub.s32 %v8922, %v8924
        %v8926 = vrot.slane %v8903, %v8925
        %v8928 = vunpack.c.l.s4 1934713408
        %v8929 = vunpack.c.0.s8 %v8928
        %v8930 = vlaneseq
        %v8931 = vshrl.u32 %v8930, 7
        %v8932 = vsub.s32 %v8929, %v8931
        %v8933 = vrot.slane %v8919, %v8932
        %v8934 = vcombine.high %v8911, 0.0
        %v8935 = vcombine.high %v8918, 0.0
        %v8936 = vcombine.high %v8926, 0.0
        %v8937 = vcombine.high %v8933, 0.0
        %v8938 = vcombine.high %v8594, 0.0
        %v8940 = vunpack.c.l.s4 1983009808
        %v8941 = vunpack.c.0.s8 %v8940
        %v8942 = vlaneseq
        %v8943 = vshrl.u32 %v8942, 7
        %v8944 = vsub.s32 %v8941, %v8943
        %v8945 = vrot.slane %v8594, %v8944
        %v8947 = vunpack.c.l.s4 1983009808
        %v8948 = vunpack.c.0.s8 %v8947
        %v8949 = vlaneseq
        %v8950 = vshrl.u32 %v8949, 7
        %v8951 = vsub.s32 %v8948, %v8950
        %v8952 = vrot.slane %v8938, %v8951
        %v8953 = vcombine.high %v8945, 0.0
        %v8955 = vunpack.c.l.s4 1934713408
        %v8956 = vunpack.c.0.s8 %v8955
        %v8957 = vlaneseq
        %v8958 = vshrl.u32 %v8957, 7
        %v8959 = vsub.s32 %v8956, %v8958
        %v8960 = vrot.slane %v8945, %v8959
        %v8962 = vunpack.c.l.s4 1934713408
        %v8963 = vunpack.c.0.s8 %v8962
        %v8964 = vlaneseq
        %v8965 = vshrl.u32 %v8964, 7
        %v8966 = vsub.s32 %v8963, %v8965
        %v8967 = vrot.slane %v8953, %v8966
        %v8968 = vcombine.high %v8952, 0.0
        %v8970 = vunpack.c.l.s4 1934713408
        %v8971 = vunpack.c.0.s8 %v8970
        %v8972 = vlaneseq
        %v8973 = vshrl.u32 %v8972, 7
        %v8974 = vsub.s32 %v8971, %v8973
        %v8975 = vrot.slane %v8952, %v8974
        %v8977 = vunpack.c.l.s4 1934713408
        %v8978 = vunpack.c.0.s8 %v8977
        %v8979 = vlaneseq
        %v8980 = vshrl.u32 %v8979, 7
        %v8981 = vsub.s32 %v8978, %v8980
        %v8982 = vrot.slane %v8968, %v8981
        %v8983 = vcombine.high %v8960, 0.0
        %v8984 = vcombine.high %v8967, 0.0
        %v8985 = vcombine.high %v8975, 0.0
        %v8986 = vcombine.high %v8982, 0.0
        %8991 = vrot.lane.b32.xlu0 %v8640, 2
        %v8992 = vpop.permute.xlu0 %8991
        %8993 = vrot.lane.b32.xlu0 %v8738, 2
        %v8994 = vpop.permute.xlu0 %8993
        %8995 = vrot.lane.b32.xlu0 %v8836, 2
        %v8996 = vpop.permute.xlu0 %8995
        %8997 = vrot.lane.b32.xlu0 %v8934, 2
        %v8998 = vpop.permute.xlu0 %8997
        %9007 = vrot.lane.b32.xlu0 %v8624, 4
        %v9008 = vpop.permute.xlu0 %9007
        %9009 = vrot.lane.b32.xlu0 %v8722, 4
        %v9010 = vpop.permute.xlu0 %9009
        %9011 = vrot.lane.b32.xlu0 %v8820, 4
        %v9012 = vpop.permute.xlu0 %9011
        %9013 = vrot.lane.b32.xlu0 %v8918, 4
        %v9014 = vpop.permute.xlu0 %9013
        %9023 = vrot.lane.b32.xlu0 %v8641, 6
        %v9024 = vpop.permute.xlu0 %9023
        %9025 = vrot.lane.b32.xlu0 %v8739, 6
        %v9026 = vpop.permute.xlu0 %9025
        %9027 = vrot.lane.b32.xlu0 %v8837, 6
        %v9028 = vpop.permute.xlu0 %9027
        %9029 = vrot.lane.b32.xlu0 %v8935, 6
        %v9030 = vpop.permute.xlu0 %9029
        %9039 = vrot.lane.b32.xlu0 %v8632, 8
        %v9040 = vpop.permute.xlu0 %9039
        %9041 = vrot.lane.b32.xlu0 %v8730, 8
        %v9042 = vpop.permute.xlu0 %9041
        %9043 = vrot.lane.b32.xlu0 %v8828, 8
        %v9044 = vpop.permute.xlu0 %9043
        %9045 = vrot.lane.b32.xlu0 %v8926, 8
        %v9046 = vpop.permute.xlu0 %9045
        %9055 = vrot.lane.b32.xlu0 %v8642, 10
        %v9056 = vpop.permute.xlu0 %9055
        %9057 = vrot.lane.b32.xlu0 %v8740, 10
        %v9058 = vpop.permute.xlu0 %9057
        %9059 = vrot.lane.b32.xlu0 %v8838, 10
        %v9060 = vpop.permute.xlu0 %9059
        %9061 = vrot.lane.b32.xlu0 %v8936, 10
        %v9062 = vpop.permute.xlu0 %9061
        %9071 = vrot.lane.b32.xlu0 %v8639, 12
        %v9072 = vpop.permute.xlu0 %9071
        %9073 = vrot.lane.b32.xlu0 %v8737, 12
        %v9074 = vpop.permute.xlu0 %9073
        %9075 = vrot.lane.b32.xlu0 %v8835, 12
        %v9076 = vpop.permute.xlu0 %9075
        %9077 = vrot.lane.b32.xlu0 %v8933, 12
        %v9078 = vpop.permute.xlu0 %9077
        %9087 = vrot.lane.b32.xlu0 %v8643, 14
        %v9088 = vpop.permute.xlu0 %9087
        %9089 = vrot.lane.b32.xlu0 %v8741, 14
        %v9090 = vpop.permute.xlu0 %9089
        %9091 = vrot.lane.b32.xlu0 %v8839, 14
        %v9092 = vpop.permute.xlu0 %9091
        %9093 = vrot.lane.b32.xlu0 %v8937, 14
        %v9094 = vpop.permute.xlu0 %9093
        %9103 = vrot.lane.b32.xlu0 %v8666, 16
        %v9104 = vpop.permute.xlu0 %9103
        %9105 = vrot.lane.b32.xlu0 %v8764, 16
        %v9106 = vpop.permute.xlu0 %9105
        %9107 = vrot.lane.b32.xlu0 %v8862, 16
        %v9108 = vpop.permute.xlu0 %9107
        %9109 = vrot.lane.b32.xlu0 %v8960, 16
        %v9110 = vpop.permute.xlu0 %9109
        %9119 = vrot.lane.b32.xlu0 %v8689, 18
        %v9120 = vpop.permute.xlu0 %9119
        %9121 = vrot.lane.b32.xlu0 %v8787, 18
        %v9122 = vpop.permute.xlu0 %9121
        %9123 = vrot.lane.b32.xlu0 %v8885, 18
        %v9124 = vpop.permute.xlu0 %9123
        %9125 = vrot.lane.b32.xlu0 %v8983, 18
        %v9126 = vpop.permute.xlu0 %9125
        %9135 = vrot.lane.b32.xlu0 %v8673, 20
        %v9136 = vpop.permute.xlu0 %9135
        %9137 = vrot.lane.b32.xlu0 %v8771, 20
        %v9138 = vpop.permute.xlu0 %9137
        %9139 = vrot.lane.b32.xlu0 %v8869, 20
        %v9140 = vpop.permute.xlu0 %9139
        %9141 = vrot.lane.b32.xlu0 %v8967, 20
        %v9142 = vpop.permute.xlu0 %9141
        %9151 = vrot.lane.b32.xlu0 %v8690, 22
        %v9152 = vpop.permute.xlu0 %9151
        %9153 = vrot.lane.b32.xlu0 %v8788, 22
        %v9154 = vpop.permute.xlu0 %9153
        %9155 = vrot.lane.b32.xlu0 %v8886, 22
        %v9156 = vpop.permute.xlu0 %9155
        %9157 = vrot.lane.b32.xlu0 %v8984, 22
        %v9158 = vpop.permute.xlu0 %9157
        %9167 = vrot.lane.b32.xlu0 %v8681, 24
        %v9168 = vpop.permute.xlu0 %9167
        %9169 = vrot.lane.b32.xlu0 %v8779, 24
        %v9170 = vpop.permute.xlu0 %9169
        %9171 = vrot.lane.b32.xlu0 %v8877, 24
        %v9172 = vpop.permute.xlu0 %9171
        %9173 = vrot.lane.b32.xlu0 %v8975, 24
        %v9174 = vpop.permute.xlu0 %9173
        %9183 = vrot.lane.b32.xlu0 %v8691, 26
        %v9184 = vpop.permute.xlu0 %9183
        %9185 = vrot.lane.b32.xlu0 %v8789, 26
        %v9186 = vpop.permute.xlu0 %9185
        %9187 = vrot.lane.b32.xlu0 %v8887, 26
        %v9188 = vpop.permute.xlu0 %9187
        %9189 = vrot.lane.b32.xlu0 %v8985, 26
        %v9190 = vpop.permute.xlu0 %9189
        %9199 = vrot.lane.b32.xlu0 %v8688, 28
        %v9200 = vpop.permute.xlu0 %9199
        %9201 = vrot.lane.b32.xlu0 %v8786, 28
        %v9202 = vpop.permute.xlu0 %9201
        %9203 = vrot.lane.b32.xlu0 %v8884, 28
        %v9204 = vpop.permute.xlu0 %9203
        %9205 = vrot.lane.b32.xlu0 %v8982, 28
        %v9206 = vpop.permute.xlu0 %9205
        %9215 = vrot.lane.b32.xlu0 %v8692, 30
        %v9216 = vpop.permute.xlu0 %9215
        %9217 = vrot.lane.b32.xlu0 %v8790, 30
        %v9218 = vpop.permute.xlu0 %9217
        %9219 = vrot.lane.b32.xlu0 %v8888, 30
        %v9220 = vpop.permute.xlu0 %9219
        %9221 = vrot.lane.b32.xlu0 %v8986, 30
        %v9222 = vpop.permute.xlu0 %9221
        %v9227 = vsel %vm851, %v8617, %v8992
        %v9228 = vsel %vm851, %v8715, %v8994
        %v9229 = vsel %vm851, %v8813, %v8996
        %v9230 = vsel %vm851, %v8911, %v8998
        %v9231 = vsel %vm856, %v9227, %v9008
        %v9232 = vsel %vm856, %v9228, %v9010
        %v9233 = vsel %vm856, %v9229, %v9012
        %v9234 = vsel %vm856, %v9230, %v9014
        %v9235 = vsel %vm861, %v9231, %v9024
        %v9236 = vsel %vm861, %v9232, %v9026
        %v9237 = vsel %vm861, %v9233, %v9028
        %v9238 = vsel %vm861, %v9234, %v9030
        %v9239 = vsel %vm866, %v9235, %v9040
        %v9240 = vsel %vm866, %v9236, %v9042
        %v9241 = vsel %vm866, %v9237, %v9044
        %v9242 = vsel %vm866, %v9238, %v9046
        %v9243 = vsel %vm871, %v9239, %v9056
        %v9244 = vsel %vm871, %v9240, %v9058
        %v9245 = vsel %vm871, %v9241, %v9060
        %v9246 = vsel %vm871, %v9242, %v9062
        %v9247 = vsel %vm876, %v9243, %v9072
        %v9248 = vsel %vm876, %v9244, %v9074
        %v9249 = vsel %vm876, %v9245, %v9076
        %v9250 = vsel %vm876, %v9246, %v9078
        %v9251 = vsel %vm881, %v9247, %v9088
        %v9252 = vsel %vm881, %v9248, %v9090
        %v9253 = vsel %vm881, %v9249, %v9092
        %v9254 = vsel %vm881, %v9250, %v9094
        %v9255 = vsel %vm886, %v9251, %v9104
        %v9256 = vsel %vm886, %v9252, %v9106
        %v9257 = vsel %vm886, %v9253, %v9108
        %v9258 = vsel %vm886, %v9254, %v9110
        %v9259 = vsel %vm891, %v9255, %v9120
        %v9260 = vsel %vm891, %v9256, %v9122
        %v9261 = vsel %vm891, %v9257, %v9124
        %v9262 = vsel %vm891, %v9258, %v9126
        %v9263 = vsel %vm896, %v9259, %v9136
        %v9264 = vsel %vm896, %v9260, %v9138
        %v9265 = vsel %vm896, %v9261, %v9140
        %v9266 = vsel %vm896, %v9262, %v9142
        %v9267 = vsel %vm901, %v9263, %v9152
        %v9268 = vsel %vm901, %v9264, %v9154
        %v9269 = vsel %vm901, %v9265, %v9156
        %v9270 = vsel %vm901, %v9266, %v9158
        %v9271 = vsel %vm906, %v9267, %v9168
        %v9272 = vsel %vm906, %v9268, %v9170
        %v9273 = vsel %vm906, %v9269, %v9172
        %v9274 = vsel %vm906, %v9270, %v9174
        %v9275 = vsel %vm911, %v9271, %v9184
        %v9276 = vsel %vm911, %v9272, %v9186
        %v9277 = vsel %vm911, %v9273, %v9188
        %v9278 = vsel %vm911, %v9274, %v9190
        %v9279 = vsel %vm916, %v9275, %v9200
        %v9280 = vsel %vm916, %v9276, %v9202
        %v9281 = vsel %vm916, %v9277, %v9204
        %v9282 = vsel %vm916, %v9278, %v9206
        %v9283 = vsel %vm921, %v9279, %v9216
        %v9284 = vsel %vm921, %v9280, %v9218
        %v9285 = vsel %vm921, %v9281, %v9220
        %v9286 = vsel %vm921, %v9282, %v9222
        %v9287 = vlaneseq
        %v9288 = vshrl.u32 %v9287, 7
        %v9289 = vsub.s32 0, %v9288
        %v9290 = vrot.slane %v9283, %v9289
        %v9291 = vlaneseq
        %v9292 = vshrl.u32 %v9291, 7
        %v9293 = vsub.s32 0, %v9292
        %v9294 = vrot.slane %v9284, %v9293
        %v9295 = vlaneseq
        %v9296 = vshrl.u32 %v9295, 7
        %v9297 = vsub.s32 0, %v9296
        %v9298 = vrot.slane %v9285, %v9297
        %v9299 = vlaneseq
        %v9300 = vshrl.u32 %v9299, 7
        %v9301 = vsub.s32 0, %v9300
        %v9302 = vrot.slane %v9286, %v9301
        %9303 = vst.msk [vmem:[%s166 + $0x16] sm:$0x3] %vm942, %v9290
        %9304 = vst.msk [vmem:[%s166 + $0x36] sm:$0x3] %vm942, %v9294
        %9305 = vst.msk [vmem:[%s166 + $0x56] sm:$0x3] %vm942, %v9298
        %9306 = vst.msk [vmem:[%s166 + $0x76] sm:$0x3] %vm942, %v9302
        %v9307 = vld [vmem:[%s148 + $0xc] sm:$0x1]
        %v9308 = vld [vmem:[%s148 + $0x1c] sm:$0x1]
        %v9309 = vld [vmem:[%s148 + $0x2c] sm:$0x1]
        %v9310 = vld [vmem:[%s148 + $0x3c] sm:$0x1]
        %v9311 = vlaneseq
        %v9312 = vshrl.u32 %v9311, 7
        %v9313 = vsub.s32 0, %v9312
        %v9314 = vrot.slane %v9307, %v9313
        %9316 = vbcast.lane.b32.xlu0 %v9314, 256
        %v9317 = vpop.permute.xlu0 %9316
        %s9319 = sor.u32 256, 8
        %9320 = vbcast.lane.b32.xlu0 %v9314, %s9319
        %v9321 = vpop.permute.xlu0 %9320
        %v9322 = vlaneseq
        %v9323 = vshrl.u32 %v9322, 7
        %v9324 = vsub.s32 0, %v9323
        %v9325 = vrot.slane %v9308, %v9324
        %9327 = vbcast.lane.b32.xlu0 %v9325, 256
        %v9328 = vpop.permute.xlu0 %9327
        %s9330 = sor.u32 256, 8
        %9331 = vbcast.lane.b32.xlu0 %v9325, %s9330
        %v9332 = vpop.permute.xlu0 %9331
        %v9333 = vlaneseq
        %v9334 = vshrl.u32 %v9333, 7
        %v9335 = vsub.s32 0, %v9334
        %v9336 = vrot.slane %v9309, %v9335
        %9338 = vbcast.lane.b32.xlu0 %v9336, 256
        %v9339 = vpop.permute.xlu0 %9338
        %s9341 = sor.u32 256, 8
        %9342 = vbcast.lane.b32.xlu0 %v9336, %s9341
        %v9343 = vpop.permute.xlu0 %9342
        %v9344 = vlaneseq
        %v9345 = vshrl.u32 %v9344, 7
        %v9346 = vsub.s32 0, %v9345
        %v9347 = vrot.slane %v9310, %v9346
        %9349 = vbcast.lane.b32.xlu0 %v9347, 256
        %v9350 = vpop.permute.xlu0 %9349
        %s9352 = sor.u32 256, 8
        %9353 = vbcast.lane.b32.xlu0 %v9347, %s9352
        %v9354 = vpop.permute.xlu0 %9353
        %v9355 = vcombine.high %v9317, 0.0
        %v9357 = vunpack.c.l.s4 1983009808
        %v9358 = vunpack.c.0.s8 %v9357
        %v9359 = vlaneseq
        %v9360 = vshrl.u32 %v9359, 7
        %v9361 = vsub.s32 %v9358, %v9360
        %v9362 = vrot.slane %v9317, %v9361
        %v9364 = vunpack.c.l.s4 1983009808
        %v9365 = vunpack.c.0.s8 %v9364
        %v9366 = vlaneseq
        %v9367 = vshrl.u32 %v9366, 7
        %v9368 = vsub.s32 %v9365, %v9367
        %v9369 = vrot.slane %v9355, %v9368
        %v9370 = vcombine.high %v9362, 0.0
        %v9372 = vunpack.c.l.s4 1934713408
        %v9373 = vunpack.c.0.s8 %v9372
        %v9374 = vlaneseq
        %v9375 = vshrl.u32 %v9374, 7
        %v9376 = vsub.s32 %v9373, %v9375
        %v9377 = vrot.slane %v9362, %v9376
        %v9379 = vunpack.c.l.s4 1934713408
        %v9380 = vunpack.c.0.s8 %v9379
        %v9381 = vlaneseq
        %v9382 = vshrl.u32 %v9381, 7
        %v9383 = vsub.s32 %v9380, %v9382
        %v9384 = vrot.slane %v9370, %v9383
        %v9385 = vcombine.high %v9369, 0.0
        %v9387 = vunpack.c.l.s4 1934713408
        %v9388 = vunpack.c.0.s8 %v9387
        %v9389 = vlaneseq
        %v9390 = vshrl.u32 %v9389, 7
        %v9391 = vsub.s32 %v9388, %v9390
        %v9392 = vrot.slane %v9369, %v9391
        %v9394 = vunpack.c.l.s4 1934713408
        %v9395 = vunpack.c.0.s8 %v9394
        %v9396 = vlaneseq
        %v9397 = vshrl.u32 %v9396, 7
        %v9398 = vsub.s32 %v9395, %v9397
        %v9399 = vrot.slane %v9385, %v9398
        %v9400 = vcombine.high %v9377, 0.0
        %v9401 = vcombine.high %v9384, 0.0
        %v9402 = vcombine.high %v9392, 0.0
        %v9403 = vcombine.high %v9399, 0.0
        %v9404 = vcombine.high %v9321, 0.0
        %v9406 = vunpack.c.l.s4 1983009808
        %v9407 = vunpack.c.0.s8 %v9406
        %v9408 = vlaneseq
        %v9409 = vshrl.u32 %v9408, 7
        %v9410 = vsub.s32 %v9407, %v9409
        %v9411 = vrot.slane %v9321, %v9410
        %v9413 = vunpack.c.l.s4 1983009808
        %v9414 = vunpack.c.0.s8 %v9413
        %v9415 = vlaneseq
        %v9416 = vshrl.u32 %v9415, 7
        %v9417 = vsub.s32 %v9414, %v9416
        %v9418 = vrot.slane %v9404, %v9417
        %v9419 = vcombine.high %v9411, 0.0
        %v9421 = vunpack.c.l.s4 1934713408
        %v9422 = vunpack.c.0.s8 %v9421
        %v9423 = vlaneseq
        %v9424 = vshrl.u32 %v9423, 7
        %v9425 = vsub.s32 %v9422, %v9424
        %v9426 = vrot.slane %v9411, %v9425
        %v9428 = vunpack.c.l.s4 1934713408
        %v9429 = vunpack.c.0.s8 %v9428
        %v9430 = vlaneseq
        %v9431 = vshrl.u32 %v9430, 7
        %v9432 = vsub.s32 %v9429, %v9431
        %v9433 = vrot.slane %v9419, %v9432
        %v9434 = vcombine.high %v9418, 0.0
        %v9436 = vunpack.c.l.s4 1934713408
        %v9437 = vunpack.c.0.s8 %v9436
        %v9438 = vlaneseq
        %v9439 = vshrl.u32 %v9438, 7
        %v9440 = vsub.s32 %v9437, %v9439
        %v9441 = vrot.slane %v9418, %v9440
        %v9443 = vunpack.c.l.s4 1934713408
        %v9444 = vunpack.c.0.s8 %v9443
        %v9445 = vlaneseq
        %v9446 = vshrl.u32 %v9445, 7
        %v9447 = vsub.s32 %v9444, %v9446
        %v9448 = vrot.slane %v9434, %v9447
        %v9449 = vcombine.high %v9426, 0.0
        %v9450 = vcombine.high %v9433, 0.0
        %v9451 = vcombine.high %v9441, 0.0
        %v9452 = vcombine.high %v9448, 0.0
        %v9453 = vcombine.high %v9328, 0.0
        %v9455 = vunpack.c.l.s4 1983009808
        %v9456 = vunpack.c.0.s8 %v9455
        %v9457 = vlaneseq
        %v9458 = vshrl.u32 %v9457, 7
        %v9459 = vsub.s32 %v9456, %v9458
        %v9460 = vrot.slane %v9328, %v9459
        %v9462 = vunpack.c.l.s4 1983009808
        %v9463 = vunpack.c.0.s8 %v9462
        %v9464 = vlaneseq
        %v9465 = vshrl.u32 %v9464, 7
        %v9466 = vsub.s32 %v9463, %v9465
        %v9467 = vrot.slane %v9453, %v9466
        %v9468 = vcombine.high %v9460, 0.0
        %v9470 = vunpack.c.l.s4 1934713408
        %v9471 = vunpack.c.0.s8 %v9470
        %v9472 = vlaneseq
        %v9473 = vshrl.u32 %v9472, 7
        %v9474 = vsub.s32 %v9471, %v9473
        %v9475 = vrot.slane %v9460, %v9474
        %v9477 = vunpack.c.l.s4 1934713408
        %v9478 = vunpack.c.0.s8 %v9477
        %v9479 = vlaneseq
        %v9480 = vshrl.u32 %v9479, 7
        %v9481 = vsub.s32 %v9478, %v9480
        %v9482 = vrot.slane %v9468, %v9481
        %v9483 = vcombine.high %v9467, 0.0
        %v9485 = vunpack.c.l.s4 1934713408
        %v9486 = vunpack.c.0.s8 %v9485
        %v9487 = vlaneseq
        %v9488 = vshrl.u32 %v9487, 7
        %v9489 = vsub.s32 %v9486, %v9488
        %v9490 = vrot.slane %v9467, %v9489
        %v9492 = vunpack.c.l.s4 1934713408
        %v9493 = vunpack.c.0.s8 %v9492
        %v9494 = vlaneseq
        %v9495 = vshrl.u32 %v9494, 7
        %v9496 = vsub.s32 %v9493, %v9495
        %v9497 = vrot.slane %v9483, %v9496
        %v9498 = vcombine.high %v9475, 0.0
        %v9499 = vcombine.high %v9482, 0.0
        %v9500 = vcombine.high %v9490, 0.0
        %v9501 = vcombine.high %v9497, 0.0
        %v9502 = vcombine.high %v9332, 0.0
        %v9504 = vunpack.c.l.s4 1983009808
        %v9505 = vunpack.c.0.s8 %v9504
        %v9506 = vlaneseq
        %v9507 = vshrl.u32 %v9506, 7
        %v9508 = vsub.s32 %v9505, %v9507
        %v9509 = vrot.slane %v9332, %v9508
        %v9511 = vunpack.c.l.s4 1983009808
        %v9512 = vunpack.c.0.s8 %v9511
        %v9513 = vlaneseq
        %v9514 = vshrl.u32 %v9513, 7
        %v9515 = vsub.s32 %v9512, %v9514
        %v9516 = vrot.slane %v9502, %v9515
        %v9517 = vcombine.high %v9509, 0.0
        %v9519 = vunpack.c.l.s4 1934713408
        %v9520 = vunpack.c.0.s8 %v9519
        %v9521 = vlaneseq
        %v9522 = vshrl.u32 %v9521, 7
        %v9523 = vsub.s32 %v9520, %v9522
        %v9524 = vrot.slane %v9509, %v9523
        %v9526 = vunpack.c.l.s4 1934713408
        %v9527 = vunpack.c.0.s8 %v9526
        %v9528 = vlaneseq
        %v9529 = vshrl.u32 %v9528, 7
        %v9530 = vsub.s32 %v9527, %v9529
        %v9531 = vrot.slane %v9517, %v9530
        %v9532 = vcombine.high %v9516, 0.0
        %v9534 = vunpack.c.l.s4 1934713408
        %v9535 = vunpack.c.0.s8 %v9534
        %v9536 = vlaneseq
        %v9537 = vshrl.u32 %v9536, 7
        %v9538 = vsub.s32 %v9535, %v9537
        %v9539 = vrot.slane %v9516, %v9538
        %v9541 = vunpack.c.l.s4 1934713408
        %v9542 = vunpack.c.0.s8 %v9541
        %v9543 = vlaneseq
        %v9544 = vshrl.u32 %v9543, 7
        %v9545 = vsub.s32 %v9542, %v9544
        %v9546 = vrot.slane %v9532, %v9545
        %v9547 = vcombine.high %v9524, 0.0
        %v9548 = vcombine.high %v9531, 0.0
        %v9549 = vcombine.high %v9539, 0.0
        %v9550 = vcombine.high %v9546, 0.0
        %v9551 = vcombine.high %v9339, 0.0
        %v9553 = vunpack.c.l.s4 1983009808
        %v9554 = vunpack.c.0.s8 %v9553
        %v9555 = vlaneseq
        %v9556 = vshrl.u32 %v9555, 7
        %v9557 = vsub.s32 %v9554, %v9556
        %v9558 = vrot.slane %v9339, %v9557
        %v9560 = vunpack.c.l.s4 1983009808
        %v9561 = vunpack.c.0.s8 %v9560
        %v9562 = vlaneseq
        %v9563 = vshrl.u32 %v9562, 7
        %v9564 = vsub.s32 %v9561, %v9563
        %v9565 = vrot.slane %v9551, %v9564
        %v9566 = vcombine.high %v9558, 0.0
        %v9568 = vunpack.c.l.s4 1934713408
        %v9569 = vunpack.c.0.s8 %v9568
        %v9570 = vlaneseq
        %v9571 = vshrl.u32 %v9570, 7
        %v9572 = vsub.s32 %v9569, %v9571
        %v9573 = vrot.slane %v9558, %v9572
        %v9575 = vunpack.c.l.s4 1934713408
        %v9576 = vunpack.c.0.s8 %v9575
        %v9577 = vlaneseq
        %v9578 = vshrl.u32 %v9577, 7
        %v9579 = vsub.s32 %v9576, %v9578
        %v9580 = vrot.slane %v9566, %v9579
        %v9581 = vcombine.high %v9565, 0.0
        %v9583 = vunpack.c.l.s4 1934713408
        %v9584 = vunpack.c.0.s8 %v9583
        %v9585 = vlaneseq
        %v9586 = vshrl.u32 %v9585, 7
        %v9587 = vsub.s32 %v9584, %v9586
        %v9588 = vrot.slane %v9565, %v9587
        %v9590 = vunpack.c.l.s4 1934713408
        %v9591 = vunpack.c.0.s8 %v9590
        %v9592 = vlaneseq
        %v9593 = vshrl.u32 %v9592, 7
        %v9594 = vsub.s32 %v9591, %v9593
        %v9595 = vrot.slane %v9581, %v9594
        %v9596 = vcombine.high %v9573, 0.0
        %v9597 = vcombine.high %v9580, 0.0
        %v9598 = vcombine.high %v9588, 0.0
        %v9599 = vcombine.high %v9595, 0.0
        %v9600 = vcombine.high %v9343, 0.0
        %v9602 = vunpack.c.l.s4 1983009808
        %v9603 = vunpack.c.0.s8 %v9602
        %v9604 = vlaneseq
        %v9605 = vshrl.u32 %v9604, 7
        %v9606 = vsub.s32 %v9603, %v9605
        %v9607 = vrot.slane %v9343, %v9606
        %v9609 = vunpack.c.l.s4 1983009808
        %v9610 = vunpack.c.0.s8 %v9609
        %v9611 = vlaneseq
        %v9612 = vshrl.u32 %v9611, 7
        %v9613 = vsub.s32 %v9610, %v9612
        %v9614 = vrot.slane %v9600, %v9613
        %v9615 = vcombine.high %v9607, 0.0
        %v9617 = vunpack.c.l.s4 1934713408
        %v9618 = vunpack.c.0.s8 %v9617
        %v9619 = vlaneseq
        %v9620 = vshrl.u32 %v9619, 7
        %v9621 = vsub.s32 %v9618, %v9620
        %v9622 = vrot.slane %v9607, %v9621
        %v9624 = vunpack.c.l.s4 1934713408
        %v9625 = vunpack.c.0.s8 %v9624
        %v9626 = vlaneseq
        %v9627 = vshrl.u32 %v9626, 7
        %v9628 = vsub.s32 %v9625, %v9627
        %v9629 = vrot.slane %v9615, %v9628
        %v9630 = vcombine.high %v9614, 0.0
        %v9632 = vunpack.c.l.s4 1934713408
        %v9633 = vunpack.c.0.s8 %v9632
        %v9634 = vlaneseq
        %v9635 = vshrl.u32 %v9634, 7
        %v9636 = vsub.s32 %v9633, %v9635
        %v9637 = vrot.slane %v9614, %v9636
        %v9639 = vunpack.c.l.s4 1934713408
        %v9640 = vunpack.c.0.s8 %v9639
        %v9641 = vlaneseq
        %v9642 = vshrl.u32 %v9641, 7
        %v9643 = vsub.s32 %v9640, %v9642
        %v9644 = vrot.slane %v9630, %v9643
        %v9645 = vcombine.high %v9622, 0.0
        %v9646 = vcombine.high %v9629, 0.0
        %v9647 = vcombine.high %v9637, 0.0
        %v9648 = vcombine.high %v9644, 0.0
        %v9649 = vcombine.high %v9350, 0.0
        %v9651 = vunpack.c.l.s4 1983009808
        %v9652 = vunpack.c.0.s8 %v9651
        %v9653 = vlaneseq
        %v9654 = vshrl.u32 %v9653, 7
        %v9655 = vsub.s32 %v9652, %v9654
        %v9656 = vrot.slane %v9350, %v9655
        %v9658 = vunpack.c.l.s4 1983009808
        %v9659 = vunpack.c.0.s8 %v9658
        %v9660 = vlaneseq
        %v9661 = vshrl.u32 %v9660, 7
        %v9662 = vsub.s32 %v9659, %v9661
        %v9663 = vrot.slane %v9649, %v9662
        %v9664 = vcombine.high %v9656, 0.0
        %v9666 = vunpack.c.l.s4 1934713408
        %v9667 = vunpack.c.0.s8 %v9666
        %v9668 = vlaneseq
        %v9669 = vshrl.u32 %v9668, 7
        %v9670 = vsub.s32 %v9667, %v9669
        %v9671 = vrot.slane %v9656, %v9670
        %v9673 = vunpack.c.l.s4 1934713408
        %v9674 = vunpack.c.0.s8 %v9673
        %v9675 = vlaneseq
        %v9676 = vshrl.u32 %v9675, 7
        %v9677 = vsub.s32 %v9674, %v9676
        %v9678 = vrot.slane %v9664, %v9677
        %v9679 = vcombine.high %v9663, 0.0
        %v9681 = vunpack.c.l.s4 1934713408
        %v9682 = vunpack.c.0.s8 %v9681
        %v9683 = vlaneseq
        %v9684 = vshrl.u32 %v9683, 7
        %v9685 = vsub.s32 %v9682, %v9684
        %v9686 = vrot.slane %v9663, %v9685
        %v9688 = vunpack.c.l.s4 1934713408
        %v9689 = vunpack.c.0.s8 %v9688
        %v9690 = vlaneseq
        %v9691 = vshrl.u32 %v9690, 7
        %v9692 = vsub.s32 %v9689, %v9691
        %v9693 = vrot.slane %v9679, %v9692
        %v9694 = vcombine.high %v9671, 0.0
        %v9695 = vcombine.high %v9678, 0.0
        %v9696 = vcombine.high %v9686, 0.0
        %v9697 = vcombine.high %v9693, 0.0
        %v9698 = vcombine.high %v9354, 0.0
        %v9700 = vunpack.c.l.s4 1983009808
        %v9701 = vunpack.c.0.s8 %v9700
        %v9702 = vlaneseq
        %v9703 = vshrl.u32 %v9702, 7
        %v9704 = vsub.s32 %v9701, %v9703
        %v9705 = vrot.slane %v9354, %v9704
        %v9707 = vunpack.c.l.s4 1983009808
        %v9708 = vunpack.c.0.s8 %v9707
        %v9709 = vlaneseq
        %v9710 = vshrl.u32 %v9709, 7
        %v9711 = vsub.s32 %v9708, %v9710
        %v9712 = vrot.slane %v9698, %v9711
        %v9713 = vcombine.high %v9705, 0.0
        %v9715 = vunpack.c.l.s4 1934713408
        %v9716 = vunpack.c.0.s8 %v9715
        %v9717 = vlaneseq
        %v9718 = vshrl.u32 %v9717, 7
        %v9719 = vsub.s32 %v9716, %v9718
        %v9720 = vrot.slane %v9705, %v9719
        %v9722 = vunpack.c.l.s4 1934713408
        %v9723 = vunpack.c.0.s8 %v9722
        %v9724 = vlaneseq
        %v9725 = vshrl.u32 %v9724, 7
        %v9726 = vsub.s32 %v9723, %v9725
        %v9727 = vrot.slane %v9713, %v9726
        %v9728 = vcombine.high %v9712, 0.0
        %v9730 = vunpack.c.l.s4 1934713408
        %v9731 = vunpack.c.0.s8 %v9730
        %v9732 = vlaneseq
        %v9733 = vshrl.u32 %v9732, 7
        %v9734 = vsub.s32 %v9731, %v9733
        %v9735 = vrot.slane %v9712, %v9734
        %v9737 = vunpack.c.l.s4 1934713408
        %v9738 = vunpack.c.0.s8 %v9737
        %v9739 = vlaneseq
        %v9740 = vshrl.u32 %v9739, 7
        %v9741 = vsub.s32 %v9738, %v9740
        %v9742 = vrot.slane %v9728, %v9741
        %v9743 = vcombine.high %v9720, 0.0
        %v9744 = vcombine.high %v9727, 0.0
        %v9745 = vcombine.high %v9735, 0.0
        %v9746 = vcombine.high %v9742, 0.0
        %9751 = vrot.lane.b32.xlu0 %v9400, 2
        %v9752 = vpop.permute.xlu0 %9751
        %9753 = vrot.lane.b32.xlu0 %v9498, 2
        %v9754 = vpop.permute.xlu0 %9753
        %9755 = vrot.lane.b32.xlu0 %v9596, 2
        %v9756 = vpop.permute.xlu0 %9755
        %9757 = vrot.lane.b32.xlu0 %v9694, 2
        %v9758 = vpop.permute.xlu0 %9757
        %9767 = vrot.lane.b32.xlu0 %v9384, 4
        %v9768 = vpop.permute.xlu0 %9767
        %9769 = vrot.lane.b32.xlu0 %v9482, 4
        %v9770 = vpop.permute.xlu0 %9769
        %9771 = vrot.lane.b32.xlu0 %v9580, 4
        %v9772 = vpop.permute.xlu0 %9771
        %9773 = vrot.lane.b32.xlu0 %v9678, 4
        %v9774 = vpop.permute.xlu0 %9773
        %9783 = vrot.lane.b32.xlu0 %v9401, 6
        %v9784 = vpop.permute.xlu0 %9783
        %9785 = vrot.lane.b32.xlu0 %v9499, 6
        %v9786 = vpop.permute.xlu0 %9785
        %9787 = vrot.lane.b32.xlu0 %v9597, 6
        %v9788 = vpop.permute.xlu0 %9787
        %9789 = vrot.lane.b32.xlu0 %v9695, 6
        %v9790 = vpop.permute.xlu0 %9789
        %9799 = vrot.lane.b32.xlu0 %v9392, 8
        %v9800 = vpop.permute.xlu0 %9799
        %9801 = vrot.lane.b32.xlu0 %v9490, 8
        %v9802 = vpop.permute.xlu0 %9801
        %9803 = vrot.lane.b32.xlu0 %v9588, 8
        %v9804 = vpop.permute.xlu0 %9803
        %9805 = vrot.lane.b32.xlu0 %v9686, 8
        %v9806 = vpop.permute.xlu0 %9805
        %9815 = vrot.lane.b32.xlu0 %v9402, 10
        %v9816 = vpop.permute.xlu0 %9815
        %9817 = vrot.lane.b32.xlu0 %v9500, 10
        %v9818 = vpop.permute.xlu0 %9817
        %9819 = vrot.lane.b32.xlu0 %v9598, 10
        %v9820 = vpop.permute.xlu0 %9819
        %9821 = vrot.lane.b32.xlu0 %v9696, 10
        %v9822 = vpop.permute.xlu0 %9821
        %9831 = vrot.lane.b32.xlu0 %v9399, 12
        %v9832 = vpop.permute.xlu0 %9831
        %9833 = vrot.lane.b32.xlu0 %v9497, 12
        %v9834 = vpop.permute.xlu0 %9833
        %9835 = vrot.lane.b32.xlu0 %v9595, 12
        %v9836 = vpop.permute.xlu0 %9835
        %9837 = vrot.lane.b32.xlu0 %v9693, 12
        %v9838 = vpop.permute.xlu0 %9837
        %9847 = vrot.lane.b32.xlu0 %v9403, 14
        %v9848 = vpop.permute.xlu0 %9847
        %9849 = vrot.lane.b32.xlu0 %v9501, 14
        %v9850 = vpop.permute.xlu0 %9849
        %9851 = vrot.lane.b32.xlu0 %v9599, 14
        %v9852 = vpop.permute.xlu0 %9851
        %9853 = vrot.lane.b32.xlu0 %v9697, 14
        %v9854 = vpop.permute.xlu0 %9853
        %9863 = vrot.lane.b32.xlu0 %v9426, 16
        %v9864 = vpop.permute.xlu0 %9863
        %9865 = vrot.lane.b32.xlu0 %v9524, 16
        %v9866 = vpop.permute.xlu0 %9865
        %9867 = vrot.lane.b32.xlu0 %v9622, 16
        %v9868 = vpop.permute.xlu0 %9867
        %9869 = vrot.lane.b32.xlu0 %v9720, 16
        %v9870 = vpop.permute.xlu0 %9869
        %9879 = vrot.lane.b32.xlu0 %v9449, 18
        %v9880 = vpop.permute.xlu0 %9879
        %9881 = vrot.lane.b32.xlu0 %v9547, 18
        %v9882 = vpop.permute.xlu0 %9881
        %9883 = vrot.lane.b32.xlu0 %v9645, 18
        %v9884 = vpop.permute.xlu0 %9883
        %9885 = vrot.lane.b32.xlu0 %v9743, 18
        %v9886 = vpop.permute.xlu0 %9885
        %9895 = vrot.lane.b32.xlu0 %v9433, 20
        %v9896 = vpop.permute.xlu0 %9895
        %9897 = vrot.lane.b32.xlu0 %v9531, 20
        %v9898 = vpop.permute.xlu0 %9897
        %9899 = vrot.lane.b32.xlu0 %v9629, 20
        %v9900 = vpop.permute.xlu0 %9899
        %9901 = vrot.lane.b32.xlu0 %v9727, 20
        %v9902 = vpop.permute.xlu0 %9901
        %9911 = vrot.lane.b32.xlu0 %v9450, 22
        %v9912 = vpop.permute.xlu0 %9911
        %9913 = vrot.lane.b32.xlu0 %v9548, 22
        %v9914 = vpop.permute.xlu0 %9913
        %9915 = vrot.lane.b32.xlu0 %v9646, 22
        %v9916 = vpop.permute.xlu0 %9915
        %9917 = vrot.lane.b32.xlu0 %v9744, 22
        %v9918 = vpop.permute.xlu0 %9917
        %9927 = vrot.lane.b32.xlu0 %v9441, 24
        %v9928 = vpop.permute.xlu0 %9927
        %9929 = vrot.lane.b32.xlu0 %v9539, 24
        %v9930 = vpop.permute.xlu0 %9929
        %9931 = vrot.lane.b32.xlu0 %v9637, 24
        %v9932 = vpop.permute.xlu0 %9931
        %9933 = vrot.lane.b32.xlu0 %v9735, 24
        %v9934 = vpop.permute.xlu0 %9933
        %9943 = vrot.lane.b32.xlu0 %v9451, 26
        %v9944 = vpop.permute.xlu0 %9943
        %9945 = vrot.lane.b32.xlu0 %v9549, 26
        %v9946 = vpop.permute.xlu0 %9945
        %9947 = vrot.lane.b32.xlu0 %v9647, 26
        %v9948 = vpop.permute.xlu0 %9947
        %9949 = vrot.lane.b32.xlu0 %v9745, 26
        %v9950 = vpop.permute.xlu0 %9949
        %9959 = vrot.lane.b32.xlu0 %v9448, 28
        %v9960 = vpop.permute.xlu0 %9959
        %9961 = vrot.lane.b32.xlu0 %v9546, 28
        %v9962 = vpop.permute.xlu0 %9961
        %9963 = vrot.lane.b32.xlu0 %v9644, 28
        %v9964 = vpop.permute.xlu0 %9963
        %9965 = vrot.lane.b32.xlu0 %v9742, 28
        %v9966 = vpop.permute.xlu0 %9965
        %9975 = vrot.lane.b32.xlu0 %v9452, 30
        %v9976 = vpop.permute.xlu0 %9975
        %9977 = vrot.lane.b32.xlu0 %v9550, 30
        %v9978 = vpop.permute.xlu0 %9977
        %9979 = vrot.lane.b32.xlu0 %v9648, 30
        %v9980 = vpop.permute.xlu0 %9979
        %9981 = vrot.lane.b32.xlu0 %v9746, 30
        %v9982 = vpop.permute.xlu0 %9981
        %v9987 = vsel %vm851, %v9377, %v9752
        %v9988 = vsel %vm851, %v9475, %v9754
        %v9989 = vsel %vm851, %v9573, %v9756
        %v9990 = vsel %vm851, %v9671, %v9758
        %v9991 = vsel %vm856, %v9987, %v9768
        %v9992 = vsel %vm856, %v9988, %v9770
        %v9993 = vsel %vm856, %v9989, %v9772
        %v9994 = vsel %vm856, %v9990, %v9774
        %v9995 = vsel %vm861, %v9991, %v9784
        %v9996 = vsel %vm861, %v9992, %v9786
        %v9997 = vsel %vm861, %v9993, %v9788
        %v9998 = vsel %vm861, %v9994, %v9790
        %v9999 = vsel %vm866, %v9995, %v9800
        %v10000 = vsel %vm866, %v9996, %v9802
        %v10001 = vsel %vm866, %v9997, %v9804
        %v10002 = vsel %vm866, %v9998, %v9806
        %v10003 = vsel %vm871, %v9999, %v9816
        %v10004 = vsel %vm871, %v10000, %v9818
        %v10005 = vsel %vm871, %v10001, %v9820
        %v10006 = vsel %vm871, %v10002, %v9822
        %v10007 = vsel %vm876, %v10003, %v9832
        %v10008 = vsel %vm876, %v10004, %v9834
        %v10009 = vsel %vm876, %v10005, %v9836
        %v10010 = vsel %vm876, %v10006, %v9838
        %v10011 = vsel %vm881, %v10007, %v9848
        %v10012 = vsel %vm881, %v10008, %v9850
        %v10013 = vsel %vm881, %v10009, %v9852
        %v10014 = vsel %vm881, %v10010, %v9854
        %v10015 = vsel %vm886, %v10011, %v9864
        %v10016 = vsel %vm886, %v10012, %v9866
        %v10017 = vsel %vm886, %v10013, %v9868
        %v10018 = vsel %vm886, %v10014, %v9870
        %v10019 = vsel %vm891, %v10015, %v9880
        %v10020 = vsel %vm891, %v10016, %v9882
        %v10021 = vsel %vm891, %v10017, %v9884
        %v10022 = vsel %vm891, %v10018, %v9886
        %v10023 = vsel %vm896, %v10019, %v9896
        %v10024 = vsel %vm896, %v10020, %v9898
        %v10025 = vsel %vm896, %v10021, %v9900
        %v10026 = vsel %vm896, %v10022, %v9902
        %v10027 = vsel %vm901, %v10023, %v9912
        %v10028 = vsel %vm901, %v10024, %v9914
        %v10029 = vsel %vm901, %v10025, %v9916
        %v10030 = vsel %vm901, %v10026, %v9918
        %v10031 = vsel %vm906, %v10027, %v9928
        %v10032 = vsel %vm906, %v10028, %v9930
        %v10033 = vsel %vm906, %v10029, %v9932
        %v10034 = vsel %vm906, %v10030, %v9934
        %v10035 = vsel %vm911, %v10031, %v9944
        %v10036 = vsel %vm911, %v10032, %v9946
        %v10037 = vsel %vm911, %v10033, %v9948
        %v10038 = vsel %vm911, %v10034, %v9950
        %v10039 = vsel %vm916, %v10035, %v9960
        %v10040 = vsel %vm916, %v10036, %v9962
        %v10041 = vsel %vm916, %v10037, %v9964
        %v10042 = vsel %vm916, %v10038, %v9966
        %v10043 = vsel %vm921, %v10039, %v9976
        %v10044 = vsel %vm921, %v10040, %v9978
        %v10045 = vsel %vm921, %v10041, %v9980
        %v10046 = vsel %vm921, %v10042, %v9982
        %v10047 = vlaneseq
        %v10048 = vshrl.u32 %v10047, 7
        %v10049 = vsub.s32 0, %v10048
        %v10050 = vrot.slane %v10043, %v10049
        %v10051 = vlaneseq
        %v10052 = vshrl.u32 %v10051, 7
        %v10053 = vsub.s32 0, %v10052
        %v10054 = vrot.slane %v10044, %v10053
        %v10055 = vlaneseq
        %v10056 = vshrl.u32 %v10055, 7
        %v10057 = vsub.s32 0, %v10056
        %v10058 = vrot.slane %v10045, %v10057
        %v10059 = vlaneseq
        %v10060 = vshrl.u32 %v10059, 7
        %v10061 = vsub.s32 0, %v10060
        %v10062 = vrot.slane %v10046, %v10061
        %10063 = vst.msk [vmem:[%s166 + $0x18] sm:$0x3] %vm942, %v10050
        %10064 = vst.msk [vmem:[%s166 + $0x38] sm:$0x3] %vm942, %v10054
        %10065 = vst.msk [vmem:[%s166 + $0x58] sm:$0x3] %vm942, %v10058
        %10066 = vst.msk [vmem:[%s166 + $0x78] sm:$0x3] %vm942, %v10062
        %v10067 = vld [vmem:[%s148 + $0xd] sm:$0x1]
        %v10068 = vld [vmem:[%s148 + $0x1d] sm:$0x1]
        %v10069 = vld [vmem:[%s148 + $0x2d] sm:$0x1]
        %v10070 = vld [vmem:[%s148 + $0x3d] sm:$0x1]
        %v10071 = vlaneseq
        %v10072 = vshrl.u32 %v10071, 7
        %v10073 = vsub.s32 0, %v10072
        %v10074 = vrot.slane %v10067, %v10073
        %10076 = vbcast.lane.b32.xlu0 %v10074, 256
        %v10077 = vpop.permute.xlu0 %10076
        %s10079 = sor.u32 256, 8
        %10080 = vbcast.lane.b32.xlu0 %v10074, %s10079
        %v10081 = vpop.permute.xlu0 %10080
        %v10082 = vlaneseq
        %v10083 = vshrl.u32 %v10082, 7
        %v10084 = vsub.s32 0, %v10083
        %v10085 = vrot.slane %v10068, %v10084
        %10087 = vbcast.lane.b32.xlu0 %v10085, 256
        %v10088 = vpop.permute.xlu0 %10087
        %s10090 = sor.u32 256, 8
        %10091 = vbcast.lane.b32.xlu0 %v10085, %s10090
        %v10092 = vpop.permute.xlu0 %10091
        %v10093 = vlaneseq
        %v10094 = vshrl.u32 %v10093, 7
        %v10095 = vsub.s32 0, %v10094
        %v10096 = vrot.slane %v10069, %v10095
        %10098 = vbcast.lane.b32.xlu0 %v10096, 256
        %v10099 = vpop.permute.xlu0 %10098
        %s10101 = sor.u32 256, 8
        %10102 = vbcast.lane.b32.xlu0 %v10096, %s10101
        %v10103 = vpop.permute.xlu0 %10102
        %v10104 = vlaneseq
        %v10105 = vshrl.u32 %v10104, 7
        %v10106 = vsub.s32 0, %v10105
        %v10107 = vrot.slane %v10070, %v10106
        %10109 = vbcast.lane.b32.xlu0 %v10107, 256
        %v10110 = vpop.permute.xlu0 %10109
        %s10112 = sor.u32 256, 8
        %10113 = vbcast.lane.b32.xlu0 %v10107, %s10112
        %v10114 = vpop.permute.xlu0 %10113
        %v10115 = vcombine.high %v10077, 0.0
        %v10117 = vunpack.c.l.s4 1983009808
        %v10118 = vunpack.c.0.s8 %v10117
        %v10119 = vlaneseq
        %v10120 = vshrl.u32 %v10119, 7
        %v10121 = vsub.s32 %v10118, %v10120
        %v10122 = vrot.slane %v10077, %v10121
        %v10124 = vunpack.c.l.s4 1983009808
        %v10125 = vunpack.c.0.s8 %v10124
        %v10126 = vlaneseq
        %v10127 = vshrl.u32 %v10126, 7
        %v10128 = vsub.s32 %v10125, %v10127
        %v10129 = vrot.slane %v10115, %v10128
        %v10130 = vcombine.high %v10122, 0.0
        %v10132 = vunpack.c.l.s4 1934713408
        %v10133 = vunpack.c.0.s8 %v10132
        %v10134 = vlaneseq
        %v10135 = vshrl.u32 %v10134, 7
        %v10136 = vsub.s32 %v10133, %v10135
        %v10137 = vrot.slane %v10122, %v10136
        %v10139 = vunpack.c.l.s4 1934713408
        %v10140 = vunpack.c.0.s8 %v10139
        %v10141 = vlaneseq
        %v10142 = vshrl.u32 %v10141, 7
        %v10143 = vsub.s32 %v10140, %v10142
        %v10144 = vrot.slane %v10130, %v10143
        %v10145 = vcombine.high %v10129, 0.0
        %v10147 = vunpack.c.l.s4 1934713408
        %v10148 = vunpack.c.0.s8 %v10147
        %v10149 = vlaneseq
        %v10150 = vshrl.u32 %v10149, 7
        %v10151 = vsub.s32 %v10148, %v10150
        %v10152 = vrot.slane %v10129, %v10151
        %v10154 = vunpack.c.l.s4 1934713408
        %v10155 = vunpack.c.0.s8 %v10154
        %v10156 = vlaneseq
        %v10157 = vshrl.u32 %v10156, 7
        %v10158 = vsub.s32 %v10155, %v10157
        %v10159 = vrot.slane %v10145, %v10158
        %v10160 = vcombine.high %v10137, 0.0
        %v10161 = vcombine.high %v10144, 0.0
        %v10162 = vcombine.high %v10152, 0.0
        %v10163 = vcombine.high %v10159, 0.0
        %v10164 = vcombine.high %v10081, 0.0
        %v10166 = vunpack.c.l.s4 1983009808
        %v10167 = vunpack.c.0.s8 %v10166
        %v10168 = vlaneseq
        %v10169 = vshrl.u32 %v10168, 7
        %v10170 = vsub.s32 %v10167, %v10169
        %v10171 = vrot.slane %v10081, %v10170
        %v10173 = vunpack.c.l.s4 1983009808
        %v10174 = vunpack.c.0.s8 %v10173
        %v10175 = vlaneseq
        %v10176 = vshrl.u32 %v10175, 7
        %v10177 = vsub.s32 %v10174, %v10176
        %v10178 = vrot.slane %v10164, %v10177
        %v10179 = vcombine.high %v10171, 0.0
        %v10181 = vunpack.c.l.s4 1934713408
        %v10182 = vunpack.c.0.s8 %v10181
        %v10183 = vlaneseq
        %v10184 = vshrl.u32 %v10183, 7
        %v10185 = vsub.s32 %v10182, %v10184
        %v10186 = vrot.slane %v10171, %v10185
        %v10188 = vunpack.c.l.s4 1934713408
        %v10189 = vunpack.c.0.s8 %v10188
        %v10190 = vlaneseq
        %v10191 = vshrl.u32 %v10190, 7
        %v10192 = vsub.s32 %v10189, %v10191
        %v10193 = vrot.slane %v10179, %v10192
        %v10194 = vcombine.high %v10178, 0.0
        %v10196 = vunpack.c.l.s4 1934713408
        %v10197 = vunpack.c.0.s8 %v10196
        %v10198 = vlaneseq
        %v10199 = vshrl.u32 %v10198, 7
        %v10200 = vsub.s32 %v10197, %v10199
        %v10201 = vrot.slane %v10178, %v10200
        %v10203 = vunpack.c.l.s4 1934713408
        %v10204 = vunpack.c.0.s8 %v10203
        %v10205 = vlaneseq
        %v10206 = vshrl.u32 %v10205, 7
        %v10207 = vsub.s32 %v10204, %v10206
        %v10208 = vrot.slane %v10194, %v10207
        %v10209 = vcombine.high %v10186, 0.0
        %v10210 = vcombine.high %v10193, 0.0
        %v10211 = vcombine.high %v10201, 0.0
        %v10212 = vcombine.high %v10208, 0.0
        %v10213 = vcombine.high %v10088, 0.0
        %v10215 = vunpack.c.l.s4 1983009808
        %v10216 = vunpack.c.0.s8 %v10215
        %v10217 = vlaneseq
        %v10218 = vshrl.u32 %v10217, 7
        %v10219 = vsub.s32 %v10216, %v10218
        %v10220 = vrot.slane %v10088, %v10219
        %v10222 = vunpack.c.l.s4 1983009808
        %v10223 = vunpack.c.0.s8 %v10222
        %v10224 = vlaneseq
        %v10225 = vshrl.u32 %v10224, 7
        %v10226 = vsub.s32 %v10223, %v10225
        %v10227 = vrot.slane %v10213, %v10226
        %v10228 = vcombine.high %v10220, 0.0
        %v10230 = vunpack.c.l.s4 1934713408
        %v10231 = vunpack.c.0.s8 %v10230
        %v10232 = vlaneseq
        %v10233 = vshrl.u32 %v10232, 7
        %v10234 = vsub.s32 %v10231, %v10233
        %v10235 = vrot.slane %v10220, %v10234
        %v10237 = vunpack.c.l.s4 1934713408
        %v10238 = vunpack.c.0.s8 %v10237
        %v10239 = vlaneseq
        %v10240 = vshrl.u32 %v10239, 7
        %v10241 = vsub.s32 %v10238, %v10240
        %v10242 = vrot.slane %v10228, %v10241
        %v10243 = vcombine.high %v10227, 0.0
        %v10245 = vunpack.c.l.s4 1934713408
        %v10246 = vunpack.c.0.s8 %v10245
        %v10247 = vlaneseq
        %v10248 = vshrl.u32 %v10247, 7
        %v10249 = vsub.s32 %v10246, %v10248
        %v10250 = vrot.slane %v10227, %v10249
        %v10252 = vunpack.c.l.s4 1934713408
        %v10253 = vunpack.c.0.s8 %v10252
        %v10254 = vlaneseq
        %v10255 = vshrl.u32 %v10254, 7
        %v10256 = vsub.s32 %v10253, %v10255
        %v10257 = vrot.slane %v10243, %v10256
        %v10258 = vcombine.high %v10235, 0.0
        %v10259 = vcombine.high %v10242, 0.0
        %v10260 = vcombine.high %v10250, 0.0
        %v10261 = vcombine.high %v10257, 0.0
        %v10262 = vcombine.high %v10092, 0.0
        %v10264 = vunpack.c.l.s4 1983009808
        %v10265 = vunpack.c.0.s8 %v10264
        %v10266 = vlaneseq
        %v10267 = vshrl.u32 %v10266, 7
        %v10268 = vsub.s32 %v10265, %v10267
        %v10269 = vrot.slane %v10092, %v10268
        %v10271 = vunpack.c.l.s4 1983009808
        %v10272 = vunpack.c.0.s8 %v10271
        %v10273 = vlaneseq
        %v10274 = vshrl.u32 %v10273, 7
        %v10275 = vsub.s32 %v10272, %v10274
        %v10276 = vrot.slane %v10262, %v10275
        %v10277 = vcombine.high %v10269, 0.0
        %v10279 = vunpack.c.l.s4 1934713408
        %v10280 = vunpack.c.0.s8 %v10279
        %v10281 = vlaneseq
        %v10282 = vshrl.u32 %v10281, 7
        %v10283 = vsub.s32 %v10280, %v10282
        %v10284 = vrot.slane %v10269, %v10283
        %v10286 = vunpack.c.l.s4 1934713408
        %v10287 = vunpack.c.0.s8 %v10286
        %v10288 = vlaneseq
        %v10289 = vshrl.u32 %v10288, 7
        %v10290 = vsub.s32 %v10287, %v10289
        %v10291 = vrot.slane %v10277, %v10290
        %v10292 = vcombine.high %v10276, 0.0
        %v10294 = vunpack.c.l.s4 1934713408
        %v10295 = vunpack.c.0.s8 %v10294
        %v10296 = vlaneseq
        %v10297 = vshrl.u32 %v10296, 7
        %v10298 = vsub.s32 %v10295, %v10297
        %v10299 = vrot.slane %v10276, %v10298
        %v10301 = vunpack.c.l.s4 1934713408
        %v10302 = vunpack.c.0.s8 %v10301
        %v10303 = vlaneseq
        %v10304 = vshrl.u32 %v10303, 7
        %v10305 = vsub.s32 %v10302, %v10304
        %v10306 = vrot.slane %v10292, %v10305
        %v10307 = vcombine.high %v10284, 0.0
        %v10308 = vcombine.high %v10291, 0.0
        %v10309 = vcombine.high %v10299, 0.0
        %v10310 = vcombine.high %v10306, 0.0
        %v10311 = vcombine.high %v10099, 0.0
        %v10313 = vunpack.c.l.s4 1983009808
        %v10314 = vunpack.c.0.s8 %v10313
        %v10315 = vlaneseq
        %v10316 = vshrl.u32 %v10315, 7
        %v10317 = vsub.s32 %v10314, %v10316
        %v10318 = vrot.slane %v10099, %v10317
        %v10320 = vunpack.c.l.s4 1983009808
        %v10321 = vunpack.c.0.s8 %v10320
        %v10322 = vlaneseq
        %v10323 = vshrl.u32 %v10322, 7
        %v10324 = vsub.s32 %v10321, %v10323
        %v10325 = vrot.slane %v10311, %v10324
        %v10326 = vcombine.high %v10318, 0.0
        %v10328 = vunpack.c.l.s4 1934713408
        %v10329 = vunpack.c.0.s8 %v10328
        %v10330 = vlaneseq
        %v10331 = vshrl.u32 %v10330, 7
        %v10332 = vsub.s32 %v10329, %v10331
        %v10333 = vrot.slane %v10318, %v10332
        %v10335 = vunpack.c.l.s4 1934713408
        %v10336 = vunpack.c.0.s8 %v10335
        %v10337 = vlaneseq
        %v10338 = vshrl.u32 %v10337, 7
        %v10339 = vsub.s32 %v10336, %v10338
        %v10340 = vrot.slane %v10326, %v10339
        %v10341 = vcombine.high %v10325, 0.0
        %v10343 = vunpack.c.l.s4 1934713408
        %v10344 = vunpack.c.0.s8 %v10343
        %v10345 = vlaneseq
        %v10346 = vshrl.u32 %v10345, 7
        %v10347 = vsub.s32 %v10344, %v10346
        %v10348 = vrot.slane %v10325, %v10347
        %v10350 = vunpack.c.l.s4 1934713408
        %v10351 = vunpack.c.0.s8 %v10350
        %v10352 = vlaneseq
        %v10353 = vshrl.u32 %v10352, 7
        %v10354 = vsub.s32 %v10351, %v10353
        %v10355 = vrot.slane %v10341, %v10354
        %v10356 = vcombine.high %v10333, 0.0
        %v10357 = vcombine.high %v10340, 0.0
        %v10358 = vcombine.high %v10348, 0.0
        %v10359 = vcombine.high %v10355, 0.0
        %v10360 = vcombine.high %v10103, 0.0
        %v10362 = vunpack.c.l.s4 1983009808
        %v10363 = vunpack.c.0.s8 %v10362
        %v10364 = vlaneseq
        %v10365 = vshrl.u32 %v10364, 7
        %v10366 = vsub.s32 %v10363, %v10365
        %v10367 = vrot.slane %v10103, %v10366
        %v10369 = vunpack.c.l.s4 1983009808
        %v10370 = vunpack.c.0.s8 %v10369
        %v10371 = vlaneseq
        %v10372 = vshrl.u32 %v10371, 7
        %v10373 = vsub.s32 %v10370, %v10372
        %v10374 = vrot.slane %v10360, %v10373
        %v10375 = vcombine.high %v10367, 0.0
        %v10377 = vunpack.c.l.s4 1934713408
        %v10378 = vunpack.c.0.s8 %v10377
        %v10379 = vlaneseq
        %v10380 = vshrl.u32 %v10379, 7
        %v10381 = vsub.s32 %v10378, %v10380
        %v10382 = vrot.slane %v10367, %v10381
        %v10384 = vunpack.c.l.s4 1934713408
        %v10385 = vunpack.c.0.s8 %v10384
        %v10386 = vlaneseq
        %v10387 = vshrl.u32 %v10386, 7
        %v10388 = vsub.s32 %v10385, %v10387
        %v10389 = vrot.slane %v10375, %v10388
        %v10390 = vcombine.high %v10374, 0.0
        %v10392 = vunpack.c.l.s4 1934713408
        %v10393 = vunpack.c.0.s8 %v10392
        %v10394 = vlaneseq
        %v10395 = vshrl.u32 %v10394, 7
        %v10396 = vsub.s32 %v10393, %v10395
        %v10397 = vrot.slane %v10374, %v10396
        %v10399 = vunpack.c.l.s4 1934713408
        %v10400 = vunpack.c.0.s8 %v10399
        %v10401 = vlaneseq
        %v10402 = vshrl.u32 %v10401, 7
        %v10403 = vsub.s32 %v10400, %v10402
        %v10404 = vrot.slane %v10390, %v10403
        %v10405 = vcombine.high %v10382, 0.0
        %v10406 = vcombine.high %v10389, 0.0
        %v10407 = vcombine.high %v10397, 0.0
        %v10408 = vcombine.high %v10404, 0.0
        %v10409 = vcombine.high %v10110, 0.0
        %v10411 = vunpack.c.l.s4 1983009808
        %v10412 = vunpack.c.0.s8 %v10411
        %v10413 = vlaneseq
        %v10414 = vshrl.u32 %v10413, 7
        %v10415 = vsub.s32 %v10412, %v10414
        %v10416 = vrot.slane %v10110, %v10415
        %v10418 = vunpack.c.l.s4 1983009808
        %v10419 = vunpack.c.0.s8 %v10418
        %v10420 = vlaneseq
        %v10421 = vshrl.u32 %v10420, 7
        %v10422 = vsub.s32 %v10419, %v10421
        %v10423 = vrot.slane %v10409, %v10422
        %v10424 = vcombine.high %v10416, 0.0
        %v10426 = vunpack.c.l.s4 1934713408
        %v10427 = vunpack.c.0.s8 %v10426
        %v10428 = vlaneseq
        %v10429 = vshrl.u32 %v10428, 7
        %v10430 = vsub.s32 %v10427, %v10429
        %v10431 = vrot.slane %v10416, %v10430
        %v10433 = vunpack.c.l.s4 1934713408
        %v10434 = vunpack.c.0.s8 %v10433
        %v10435 = vlaneseq
        %v10436 = vshrl.u32 %v10435, 7
        %v10437 = vsub.s32 %v10434, %v10436
        %v10438 = vrot.slane %v10424, %v10437
        %v10439 = vcombine.high %v10423, 0.0
        %v10441 = vunpack.c.l.s4 1934713408
        %v10442 = vunpack.c.0.s8 %v10441
        %v10443 = vlaneseq
        %v10444 = vshrl.u32 %v10443, 7
        %v10445 = vsub.s32 %v10442, %v10444
        %v10446 = vrot.slane %v10423, %v10445
        %v10448 = vunpack.c.l.s4 1934713408
        %v10449 = vunpack.c.0.s8 %v10448
        %v10450 = vlaneseq
        %v10451 = vshrl.u32 %v10450, 7
        %v10452 = vsub.s32 %v10449, %v10451
        %v10453 = vrot.slane %v10439, %v10452
        %v10454 = vcombine.high %v10431, 0.0
        %v10455 = vcombine.high %v10438, 0.0
        %v10456 = vcombine.high %v10446, 0.0
        %v10457 = vcombine.high %v10453, 0.0
        %v10458 = vcombine.high %v10114, 0.0
        %v10460 = vunpack.c.l.s4 1983009808
        %v10461 = vunpack.c.0.s8 %v10460
        %v10462 = vlaneseq
        %v10463 = vshrl.u32 %v10462, 7
        %v10464 = vsub.s32 %v10461, %v10463
        %v10465 = vrot.slane %v10114, %v10464
        %v10467 = vunpack.c.l.s4 1983009808
        %v10468 = vunpack.c.0.s8 %v10467
        %v10469 = vlaneseq
        %v10470 = vshrl.u32 %v10469, 7
        %v10471 = vsub.s32 %v10468, %v10470
        %v10472 = vrot.slane %v10458, %v10471
        %v10473 = vcombine.high %v10465, 0.0
        %v10475 = vunpack.c.l.s4 1934713408
        %v10476 = vunpack.c.0.s8 %v10475
        %v10477 = vlaneseq
        %v10478 = vshrl.u32 %v10477, 7
        %v10479 = vsub.s32 %v10476, %v10478
        %v10480 = vrot.slane %v10465, %v10479
        %v10482 = vunpack.c.l.s4 1934713408
        %v10483 = vunpack.c.0.s8 %v10482
        %v10484 = vlaneseq
        %v10485 = vshrl.u32 %v10484, 7
        %v10486 = vsub.s32 %v10483, %v10485
        %v10487 = vrot.slane %v10473, %v10486
        %v10488 = vcombine.high %v10472, 0.0
        %v10490 = vunpack.c.l.s4 1934713408
        %v10491 = vunpack.c.0.s8 %v10490
        %v10492 = vlaneseq
        %v10493 = vshrl.u32 %v10492, 7
        %v10494 = vsub.s32 %v10491, %v10493
        %v10495 = vrot.slane %v10472, %v10494
        %v10497 = vunpack.c.l.s4 1934713408
        %v10498 = vunpack.c.0.s8 %v10497
        %v10499 = vlaneseq
        %v10500 = vshrl.u32 %v10499, 7
        %v10501 = vsub.s32 %v10498, %v10500
        %v10502 = vrot.slane %v10488, %v10501
        %v10503 = vcombine.high %v10480, 0.0
        %v10504 = vcombine.high %v10487, 0.0
        %v10505 = vcombine.high %v10495, 0.0
        %v10506 = vcombine.high %v10502, 0.0
        %10511 = vrot.lane.b32.xlu0 %v10160, 2
        %v10512 = vpop.permute.xlu0 %10511
        %10513 = vrot.lane.b32.xlu0 %v10258, 2
        %v10514 = vpop.permute.xlu0 %10513
        %10515 = vrot.lane.b32.xlu0 %v10356, 2
        %v10516 = vpop.permute.xlu0 %10515
        %10517 = vrot.lane.b32.xlu0 %v10454, 2
        %v10518 = vpop.permute.xlu0 %10517
        %10527 = vrot.lane.b32.xlu0 %v10144, 4
        %v10528 = vpop.permute.xlu0 %10527
        %10529 = vrot.lane.b32.xlu0 %v10242, 4
        %v10530 = vpop.permute.xlu0 %10529
        %10531 = vrot.lane.b32.xlu0 %v10340, 4
        %v10532 = vpop.permute.xlu0 %10531
        %10533 = vrot.lane.b32.xlu0 %v10438, 4
        %v10534 = vpop.permute.xlu0 %10533
        %10543 = vrot.lane.b32.xlu0 %v10161, 6
        %v10544 = vpop.permute.xlu0 %10543
        %10545 = vrot.lane.b32.xlu0 %v10259, 6
        %v10546 = vpop.permute.xlu0 %10545
        %10547 = vrot.lane.b32.xlu0 %v10357, 6
        %v10548 = vpop.permute.xlu0 %10547
        %10549 = vrot.lane.b32.xlu0 %v10455, 6
        %v10550 = vpop.permute.xlu0 %10549
        %10559 = vrot.lane.b32.xlu0 %v10152, 8
        %v10560 = vpop.permute.xlu0 %10559
        %10561 = vrot.lane.b32.xlu0 %v10250, 8
        %v10562 = vpop.permute.xlu0 %10561
        %10563 = vrot.lane.b32.xlu0 %v10348, 8
        %v10564 = vpop.permute.xlu0 %10563
        %10565 = vrot.lane.b32.xlu0 %v10446, 8
        %v10566 = vpop.permute.xlu0 %10565
        %10575 = vrot.lane.b32.xlu0 %v10162, 10
        %v10576 = vpop.permute.xlu0 %10575
        %10577 = vrot.lane.b32.xlu0 %v10260, 10
        %v10578 = vpop.permute.xlu0 %10577
        %10579 = vrot.lane.b32.xlu0 %v10358, 10
        %v10580 = vpop.permute.xlu0 %10579
        %10581 = vrot.lane.b32.xlu0 %v10456, 10
        %v10582 = vpop.permute.xlu0 %10581
        %10591 = vrot.lane.b32.xlu0 %v10159, 12
        %v10592 = vpop.permute.xlu0 %10591
        %10593 = vrot.lane.b32.xlu0 %v10257, 12
        %v10594 = vpop.permute.xlu0 %10593
        %10595 = vrot.lane.b32.xlu0 %v10355, 12
        %v10596 = vpop.permute.xlu0 %10595
        %10597 = vrot.lane.b32.xlu0 %v10453, 12
        %v10598 = vpop.permute.xlu0 %10597
        %10607 = vrot.lane.b32.xlu0 %v10163, 14
        %v10608 = vpop.permute.xlu0 %10607
        %10609 = vrot.lane.b32.xlu0 %v10261, 14
        %v10610 = vpop.permute.xlu0 %10609
        %10611 = vrot.lane.b32.xlu0 %v10359, 14
        %v10612 = vpop.permute.xlu0 %10611
        %10613 = vrot.lane.b32.xlu0 %v10457, 14
        %v10614 = vpop.permute.xlu0 %10613
        %10623 = vrot.lane.b32.xlu0 %v10186, 16
        %v10624 = vpop.permute.xlu0 %10623
        %10625 = vrot.lane.b32.xlu0 %v10284, 16
        %v10626 = vpop.permute.xlu0 %10625
        %10627 = vrot.lane.b32.xlu0 %v10382, 16
        %v10628 = vpop.permute.xlu0 %10627
        %10629 = vrot.lane.b32.xlu0 %v10480, 16
        %v10630 = vpop.permute.xlu0 %10629
        %10639 = vrot.lane.b32.xlu0 %v10209, 18
        %v10640 = vpop.permute.xlu0 %10639
        %10641 = vrot.lane.b32.xlu0 %v10307, 18
        %v10642 = vpop.permute.xlu0 %10641
        %10643 = vrot.lane.b32.xlu0 %v10405, 18
        %v10644 = vpop.permute.xlu0 %10643
        %10645 = vrot.lane.b32.xlu0 %v10503, 18
        %v10646 = vpop.permute.xlu0 %10645
        %10655 = vrot.lane.b32.xlu0 %v10193, 20
        %v10656 = vpop.permute.xlu0 %10655
        %10657 = vrot.lane.b32.xlu0 %v10291, 20
        %v10658 = vpop.permute.xlu0 %10657
        %10659 = vrot.lane.b32.xlu0 %v10389, 20
        %v10660 = vpop.permute.xlu0 %10659
        %10661 = vrot.lane.b32.xlu0 %v10487, 20
        %v10662 = vpop.permute.xlu0 %10661
        %10671 = vrot.lane.b32.xlu0 %v10210, 22
        %v10672 = vpop.permute.xlu0 %10671
        %10673 = vrot.lane.b32.xlu0 %v10308, 22
        %v10674 = vpop.permute.xlu0 %10673
        %10675 = vrot.lane.b32.xlu0 %v10406, 22
        %v10676 = vpop.permute.xlu0 %10675
        %10677 = vrot.lane.b32.xlu0 %v10504, 22
        %v10678 = vpop.permute.xlu0 %10677
        %10687 = vrot.lane.b32.xlu0 %v10201, 24
        %v10688 = vpop.permute.xlu0 %10687
        %10689 = vrot.lane.b32.xlu0 %v10299, 24
        %v10690 = vpop.permute.xlu0 %10689
        %10691 = vrot.lane.b32.xlu0 %v10397, 24
        %v10692 = vpop.permute.xlu0 %10691
        %10693 = vrot.lane.b32.xlu0 %v10495, 24
        %v10694 = vpop.permute.xlu0 %10693
        %10703 = vrot.lane.b32.xlu0 %v10211, 26
        %v10704 = vpop.permute.xlu0 %10703
        %10705 = vrot.lane.b32.xlu0 %v10309, 26
        %v10706 = vpop.permute.xlu0 %10705
        %10707 = vrot.lane.b32.xlu0 %v10407, 26
        %v10708 = vpop.permute.xlu0 %10707
        %10709 = vrot.lane.b32.xlu0 %v10505, 26
        %v10710 = vpop.permute.xlu0 %10709
        %10719 = vrot.lane.b32.xlu0 %v10208, 28
        %v10720 = vpop.permute.xlu0 %10719
        %10721 = vrot.lane.b32.xlu0 %v10306, 28
        %v10722 = vpop.permute.xlu0 %10721
        %10723 = vrot.lane.b32.xlu0 %v10404, 28
        %v10724 = vpop.permute.xlu0 %10723
        %10725 = vrot.lane.b32.xlu0 %v10502, 28
        %v10726 = vpop.permute.xlu0 %10725
        %10735 = vrot.lane.b32.xlu0 %v10212, 30
        %v10736 = vpop.permute.xlu0 %10735
        %10737 = vrot.lane.b32.xlu0 %v10310, 30
        %v10738 = vpop.permute.xlu0 %10737
        %10739 = vrot.lane.b32.xlu0 %v10408, 30
        %v10740 = vpop.permute.xlu0 %10739
        %10741 = vrot.lane.b32.xlu0 %v10506, 30
        %v10742 = vpop.permute.xlu0 %10741
        %v10747 = vsel %vm851, %v10137, %v10512
        %v10748 = vsel %vm851, %v10235, %v10514
        %v10749 = vsel %vm851, %v10333, %v10516
        %v10750 = vsel %vm851, %v10431, %v10518
        %v10751 = vsel %vm856, %v10747, %v10528
        %v10752 = vsel %vm856, %v10748, %v10530
        %v10753 = vsel %vm856, %v10749, %v10532
        %v10754 = vsel %vm856, %v10750, %v10534
        %v10755 = vsel %vm861, %v10751, %v10544
        %v10756 = vsel %vm861, %v10752, %v10546
        %v10757 = vsel %vm861, %v10753, %v10548
        %v10758 = vsel %vm861, %v10754, %v10550
        %v10759 = vsel %vm866, %v10755, %v10560
        %v10760 = vsel %vm866, %v10756, %v10562
        %v10761 = vsel %vm866, %v10757, %v10564
        %v10762 = vsel %vm866, %v10758, %v10566
        %v10763 = vsel %vm871, %v10759, %v10576
        %v10764 = vsel %vm871, %v10760, %v10578
        %v10765 = vsel %vm871, %v10761, %v10580
        %v10766 = vsel %vm871, %v10762, %v10582
        %v10767 = vsel %vm876, %v10763, %v10592
        %v10768 = vsel %vm876, %v10764, %v10594
        %v10769 = vsel %vm876, %v10765, %v10596
        %v10770 = vsel %vm876, %v10766, %v10598
        %v10771 = vsel %vm881, %v10767, %v10608
        %v10772 = vsel %vm881, %v10768, %v10610
        %v10773 = vsel %vm881, %v10769, %v10612
        %v10774 = vsel %vm881, %v10770, %v10614
        %v10775 = vsel %vm886, %v10771, %v10624
        %v10776 = vsel %vm886, %v10772, %v10626
        %v10777 = vsel %vm886, %v10773, %v10628
        %v10778 = vsel %vm886, %v10774, %v10630
        %v10779 = vsel %vm891, %v10775, %v10640
        %v10780 = vsel %vm891, %v10776, %v10642
        %v10781 = vsel %vm891, %v10777, %v10644
        %v10782 = vsel %vm891, %v10778, %v10646
        %v10783 = vsel %vm896, %v10779, %v10656
        %v10784 = vsel %vm896, %v10780, %v10658
        %v10785 = vsel %vm896, %v10781, %v10660
        %v10786 = vsel %vm896, %v10782, %v10662
        %v10787 = vsel %vm901, %v10783, %v10672
        %v10788 = vsel %vm901, %v10784, %v10674
        %v10789 = vsel %vm901, %v10785, %v10676
        %v10790 = vsel %vm901, %v10786, %v10678
        %v10791 = vsel %vm906, %v10787, %v10688
        %v10792 = vsel %vm906, %v10788, %v10690
        %v10793 = vsel %vm906, %v10789, %v10692
        %v10794 = vsel %vm906, %v10790, %v10694
        %v10795 = vsel %vm911, %v10791, %v10704
        %v10796 = vsel %vm911, %v10792, %v10706
        %v10797 = vsel %vm911, %v10793, %v10708
        %v10798 = vsel %vm911, %v10794, %v10710
        %v10799 = vsel %vm916, %v10795, %v10720
        %v10800 = vsel %vm916, %v10796, %v10722
        %v10801 = vsel %vm916, %v10797, %v10724
        %v10802 = vsel %vm916, %v10798, %v10726
        %v10803 = vsel %vm921, %v10799, %v10736
        %v10804 = vsel %vm921, %v10800, %v10738
        %v10805 = vsel %vm921, %v10801, %v10740
        %v10806 = vsel %vm921, %v10802, %v10742
        %v10807 = vlaneseq
        %v10808 = vshrl.u32 %v10807, 7
        %v10809 = vsub.s32 0, %v10808
        %v10810 = vrot.slane %v10803, %v10809
        %v10811 = vlaneseq
        %v10812 = vshrl.u32 %v10811, 7
        %v10813 = vsub.s32 0, %v10812
        %v10814 = vrot.slane %v10804, %v10813
        %v10815 = vlaneseq
        %v10816 = vshrl.u32 %v10815, 7
        %v10817 = vsub.s32 0, %v10816
        %v10818 = vrot.slane %v10805, %v10817
        %v10819 = vlaneseq
        %v10820 = vshrl.u32 %v10819, 7
        %v10821 = vsub.s32 0, %v10820
        %v10822 = vrot.slane %v10806, %v10821
        %10823 = vst.msk [vmem:[%s166 + $0x1a] sm:$0x3] %vm942, %v10810
        %10824 = vst.msk [vmem:[%s166 + $0x3a] sm:$0x3] %vm942, %v10814
        %10825 = vst.msk [vmem:[%s166 + $0x5a] sm:$0x3] %vm942, %v10818
        %10826 = vst.msk [vmem:[%s166 + $0x7a] sm:$0x3] %vm942, %v10822
        %v10827 = vld [vmem:[%s148 + $0xe] sm:$0x1]
        %v10828 = vld [vmem:[%s148 + $0x1e] sm:$0x1]
        %v10829 = vld [vmem:[%s148 + $0x2e] sm:$0x1]
        %v10830 = vld [vmem:[%s148 + $0x3e] sm:$0x1]
        %v10831 = vlaneseq
        %v10832 = vshrl.u32 %v10831, 7
        %v10833 = vsub.s32 0, %v10832
        %v10834 = vrot.slane %v10827, %v10833
        %10836 = vbcast.lane.b32.xlu0 %v10834, 256
        %v10837 = vpop.permute.xlu0 %10836
        %s10839 = sor.u32 256, 8
        %10840 = vbcast.lane.b32.xlu0 %v10834, %s10839
        %v10841 = vpop.permute.xlu0 %10840
        %v10842 = vlaneseq
        %v10843 = vshrl.u32 %v10842, 7
        %v10844 = vsub.s32 0, %v10843
        %v10845 = vrot.slane %v10828, %v10844
        %10847 = vbcast.lane.b32.xlu0 %v10845, 256
        %v10848 = vpop.permute.xlu0 %10847
        %s10850 = sor.u32 256, 8
        %10851 = vbcast.lane.b32.xlu0 %v10845, %s10850
        %v10852 = vpop.permute.xlu0 %10851
        %v10853 = vlaneseq
        %v10854 = vshrl.u32 %v10853, 7
        %v10855 = vsub.s32 0, %v10854
        %v10856 = vrot.slane %v10829, %v10855
        %10858 = vbcast.lane.b32.xlu0 %v10856, 256
        %v10859 = vpop.permute.xlu0 %10858
        %s10861 = sor.u32 256, 8
        %10862 = vbcast.lane.b32.xlu0 %v10856, %s10861
        %v10863 = vpop.permute.xlu0 %10862
        %v10864 = vlaneseq
        %v10865 = vshrl.u32 %v10864, 7
        %v10866 = vsub.s32 0, %v10865
        %v10867 = vrot.slane %v10830, %v10866
        %10869 = vbcast.lane.b32.xlu0 %v10867, 256
        %v10870 = vpop.permute.xlu0 %10869
        %s10872 = sor.u32 256, 8
        %10873 = vbcast.lane.b32.xlu0 %v10867, %s10872
        %v10874 = vpop.permute.xlu0 %10873
        %v10875 = vcombine.high %v10837, 0.0
        %v10877 = vunpack.c.l.s4 1983009808
        %v10878 = vunpack.c.0.s8 %v10877
        %v10879 = vlaneseq
        %v10880 = vshrl.u32 %v10879, 7
        %v10881 = vsub.s32 %v10878, %v10880
        %v10882 = vrot.slane %v10837, %v10881
        %v10884 = vunpack.c.l.s4 1983009808
        %v10885 = vunpack.c.0.s8 %v10884
        %v10886 = vlaneseq
        %v10887 = vshrl.u32 %v10886, 7
        %v10888 = vsub.s32 %v10885, %v10887
        %v10889 = vrot.slane %v10875, %v10888
        %v10890 = vcombine.high %v10882, 0.0
        %v10892 = vunpack.c.l.s4 1934713408
        %v10893 = vunpack.c.0.s8 %v10892
        %v10894 = vlaneseq
        %v10895 = vshrl.u32 %v10894, 7
        %v10896 = vsub.s32 %v10893, %v10895
        %v10897 = vrot.slane %v10882, %v10896
        %v10899 = vunpack.c.l.s4 1934713408
        %v10900 = vunpack.c.0.s8 %v10899
        %v10901 = vlaneseq
        %v10902 = vshrl.u32 %v10901, 7
        %v10903 = vsub.s32 %v10900, %v10902
        %v10904 = vrot.slane %v10890, %v10903
        %v10905 = vcombine.high %v10889, 0.0
        %v10907 = vunpack.c.l.s4 1934713408
        %v10908 = vunpack.c.0.s8 %v10907
        %v10909 = vlaneseq
        %v10910 = vshrl.u32 %v10909, 7
        %v10911 = vsub.s32 %v10908, %v10910
        %v10912 = vrot.slane %v10889, %v10911
        %v10914 = vunpack.c.l.s4 1934713408
        %v10915 = vunpack.c.0.s8 %v10914
        %v10916 = vlaneseq
        %v10917 = vshrl.u32 %v10916, 7
        %v10918 = vsub.s32 %v10915, %v10917
        %v10919 = vrot.slane %v10905, %v10918
        %v10920 = vcombine.high %v10897, 0.0
        %v10921 = vcombine.high %v10904, 0.0
        %v10922 = vcombine.high %v10912, 0.0
        %v10923 = vcombine.high %v10919, 0.0
        %v10924 = vcombine.high %v10841, 0.0
        %v10926 = vunpack.c.l.s4 1983009808
        %v10927 = vunpack.c.0.s8 %v10926
        %v10928 = vlaneseq
        %v10929 = vshrl.u32 %v10928, 7
        %v10930 = vsub.s32 %v10927, %v10929
        %v10931 = vrot.slane %v10841, %v10930
        %v10933 = vunpack.c.l.s4 1983009808
        %v10934 = vunpack.c.0.s8 %v10933
        %v10935 = vlaneseq
        %v10936 = vshrl.u32 %v10935, 7
        %v10937 = vsub.s32 %v10934, %v10936
        %v10938 = vrot.slane %v10924, %v10937
        %v10939 = vcombine.high %v10931, 0.0
        %v10941 = vunpack.c.l.s4 1934713408
        %v10942 = vunpack.c.0.s8 %v10941
        %v10943 = vlaneseq
        %v10944 = vshrl.u32 %v10943, 7
        %v10945 = vsub.s32 %v10942, %v10944
        %v10946 = vrot.slane %v10931, %v10945
        %v10948 = vunpack.c.l.s4 1934713408
        %v10949 = vunpack.c.0.s8 %v10948
        %v10950 = vlaneseq
        %v10951 = vshrl.u32 %v10950, 7
        %v10952 = vsub.s32 %v10949, %v10951
        %v10953 = vrot.slane %v10939, %v10952
        %v10954 = vcombine.high %v10938, 0.0
        %v10956 = vunpack.c.l.s4 1934713408
        %v10957 = vunpack.c.0.s8 %v10956
        %v10958 = vlaneseq
        %v10959 = vshrl.u32 %v10958, 7
        %v10960 = vsub.s32 %v10957, %v10959
        %v10961 = vrot.slane %v10938, %v10960
        %v10963 = vunpack.c.l.s4 1934713408
        %v10964 = vunpack.c.0.s8 %v10963
        %v10965 = vlaneseq
        %v10966 = vshrl.u32 %v10965, 7
        %v10967 = vsub.s32 %v10964, %v10966
        %v10968 = vrot.slane %v10954, %v10967
        %v10969 = vcombine.high %v10946, 0.0
        %v10970 = vcombine.high %v10953, 0.0
        %v10971 = vcombine.high %v10961, 0.0
        %v10972 = vcombine.high %v10968, 0.0
        %v10973 = vcombine.high %v10848, 0.0
        %v10975 = vunpack.c.l.s4 1983009808
        %v10976 = vunpack.c.0.s8 %v10975
        %v10977 = vlaneseq
        %v10978 = vshrl.u32 %v10977, 7
        %v10979 = vsub.s32 %v10976, %v10978
        %v10980 = vrot.slane %v10848, %v10979
        %v10982 = vunpack.c.l.s4 1983009808
        %v10983 = vunpack.c.0.s8 %v10982
        %v10984 = vlaneseq
        %v10985 = vshrl.u32 %v10984, 7
        %v10986 = vsub.s32 %v10983, %v10985
        %v10987 = vrot.slane %v10973, %v10986
        %v10988 = vcombine.high %v10980, 0.0
        %v10990 = vunpack.c.l.s4 1934713408
        %v10991 = vunpack.c.0.s8 %v10990
        %v10992 = vlaneseq
        %v10993 = vshrl.u32 %v10992, 7
        %v10994 = vsub.s32 %v10991, %v10993
        %v10995 = vrot.slane %v10980, %v10994
        %v10997 = vunpack.c.l.s4 1934713408
        %v10998 = vunpack.c.0.s8 %v10997
        %v10999 = vlaneseq
        %v11000 = vshrl.u32 %v10999, 7
        %v11001 = vsub.s32 %v10998, %v11000
        %v11002 = vrot.slane %v10988, %v11001
        %v11003 = vcombine.high %v10987, 0.0
        %v11005 = vunpack.c.l.s4 1934713408
        %v11006 = vunpack.c.0.s8 %v11005
        %v11007 = vlaneseq
        %v11008 = vshrl.u32 %v11007, 7
        %v11009 = vsub.s32 %v11006, %v11008
        %v11010 = vrot.slane %v10987, %v11009
        %v11012 = vunpack.c.l.s4 1934713408
        %v11013 = vunpack.c.0.s8 %v11012
        %v11014 = vlaneseq
        %v11015 = vshrl.u32 %v11014, 7
        %v11016 = vsub.s32 %v11013, %v11015
        %v11017 = vrot.slane %v11003, %v11016
        %v11018 = vcombine.high %v10995, 0.0
        %v11019 = vcombine.high %v11002, 0.0
        %v11020 = vcombine.high %v11010, 0.0
        %v11021 = vcombine.high %v11017, 0.0
        %v11022 = vcombine.high %v10852, 0.0
        %v11024 = vunpack.c.l.s4 1983009808
        %v11025 = vunpack.c.0.s8 %v11024
        %v11026 = vlaneseq
        %v11027 = vshrl.u32 %v11026, 7
        %v11028 = vsub.s32 %v11025, %v11027
        %v11029 = vrot.slane %v10852, %v11028
        %v11031 = vunpack.c.l.s4 1983009808
        %v11032 = vunpack.c.0.s8 %v11031
        %v11033 = vlaneseq
        %v11034 = vshrl.u32 %v11033, 7
        %v11035 = vsub.s32 %v11032, %v11034
        %v11036 = vrot.slane %v11022, %v11035
        %v11037 = vcombine.high %v11029, 0.0
        %v11039 = vunpack.c.l.s4 1934713408
        %v11040 = vunpack.c.0.s8 %v11039
        %v11041 = vlaneseq
        %v11042 = vshrl.u32 %v11041, 7
        %v11043 = vsub.s32 %v11040, %v11042
        %v11044 = vrot.slane %v11029, %v11043
        %v11046 = vunpack.c.l.s4 1934713408
        %v11047 = vunpack.c.0.s8 %v11046
        %v11048 = vlaneseq
        %v11049 = vshrl.u32 %v11048, 7
        %v11050 = vsub.s32 %v11047, %v11049
        %v11051 = vrot.slane %v11037, %v11050
        %v11052 = vcombine.high %v11036, 0.0
        %v11054 = vunpack.c.l.s4 1934713408
        %v11055 = vunpack.c.0.s8 %v11054
        %v11056 = vlaneseq
        %v11057 = vshrl.u32 %v11056, 7
        %v11058 = vsub.s32 %v11055, %v11057
        %v11059 = vrot.slane %v11036, %v11058
        %v11061 = vunpack.c.l.s4 1934713408
        %v11062 = vunpack.c.0.s8 %v11061
        %v11063 = vlaneseq
        %v11064 = vshrl.u32 %v11063, 7
        %v11065 = vsub.s32 %v11062, %v11064
        %v11066 = vrot.slane %v11052, %v11065
        %v11067 = vcombine.high %v11044, 0.0
        %v11068 = vcombine.high %v11051, 0.0
        %v11069 = vcombine.high %v11059, 0.0
        %v11070 = vcombine.high %v11066, 0.0
        %v11071 = vcombine.high %v10859, 0.0
        %v11073 = vunpack.c.l.s4 1983009808
        %v11074 = vunpack.c.0.s8 %v11073
        %v11075 = vlaneseq
        %v11076 = vshrl.u32 %v11075, 7
        %v11077 = vsub.s32 %v11074, %v11076
        %v11078 = vrot.slane %v10859, %v11077
        %v11080 = vunpack.c.l.s4 1983009808
        %v11081 = vunpack.c.0.s8 %v11080
        %v11082 = vlaneseq
        %v11083 = vshrl.u32 %v11082, 7
        %v11084 = vsub.s32 %v11081, %v11083
        %v11085 = vrot.slane %v11071, %v11084
        %v11086 = vcombine.high %v11078, 0.0
        %v11088 = vunpack.c.l.s4 1934713408
        %v11089 = vunpack.c.0.s8 %v11088
        %v11090 = vlaneseq
        %v11091 = vshrl.u32 %v11090, 7
        %v11092 = vsub.s32 %v11089, %v11091
        %v11093 = vrot.slane %v11078, %v11092
        %v11095 = vunpack.c.l.s4 1934713408
        %v11096 = vunpack.c.0.s8 %v11095
        %v11097 = vlaneseq
        %v11098 = vshrl.u32 %v11097, 7
        %v11099 = vsub.s32 %v11096, %v11098
        %v11100 = vrot.slane %v11086, %v11099
        %v11101 = vcombine.high %v11085, 0.0
        %v11103 = vunpack.c.l.s4 1934713408
        %v11104 = vunpack.c.0.s8 %v11103
        %v11105 = vlaneseq
        %v11106 = vshrl.u32 %v11105, 7
        %v11107 = vsub.s32 %v11104, %v11106
        %v11108 = vrot.slane %v11085, %v11107
        %v11110 = vunpack.c.l.s4 1934713408
        %v11111 = vunpack.c.0.s8 %v11110
        %v11112 = vlaneseq
        %v11113 = vshrl.u32 %v11112, 7
        %v11114 = vsub.s32 %v11111, %v11113
        %v11115 = vrot.slane %v11101, %v11114
        %v11116 = vcombine.high %v11093, 0.0
        %v11117 = vcombine.high %v11100, 0.0
        %v11118 = vcombine.high %v11108, 0.0
        %v11119 = vcombine.high %v11115, 0.0
        %v11120 = vcombine.high %v10863, 0.0
        %v11122 = vunpack.c.l.s4 1983009808
        %v11123 = vunpack.c.0.s8 %v11122
        %v11124 = vlaneseq
        %v11125 = vshrl.u32 %v11124, 7
        %v11126 = vsub.s32 %v11123, %v11125
        %v11127 = vrot.slane %v10863, %v11126
        %v11129 = vunpack.c.l.s4 1983009808
        %v11130 = vunpack.c.0.s8 %v11129
        %v11131 = vlaneseq
        %v11132 = vshrl.u32 %v11131, 7
        %v11133 = vsub.s32 %v11130, %v11132
        %v11134 = vrot.slane %v11120, %v11133
        %v11135 = vcombine.high %v11127, 0.0
        %v11137 = vunpack.c.l.s4 1934713408
        %v11138 = vunpack.c.0.s8 %v11137
        %v11139 = vlaneseq
        %v11140 = vshrl.u32 %v11139, 7
        %v11141 = vsub.s32 %v11138, %v11140
        %v11142 = vrot.slane %v11127, %v11141
        %v11144 = vunpack.c.l.s4 1934713408
        %v11145 = vunpack.c.0.s8 %v11144
        %v11146 = vlaneseq
        %v11147 = vshrl.u32 %v11146, 7
        %v11148 = vsub.s32 %v11145, %v11147
        %v11149 = vrot.slane %v11135, %v11148
        %v11150 = vcombine.high %v11134, 0.0
        %v11152 = vunpack.c.l.s4 1934713408
        %v11153 = vunpack.c.0.s8 %v11152
        %v11154 = vlaneseq
        %v11155 = vshrl.u32 %v11154, 7
        %v11156 = vsub.s32 %v11153, %v11155
        %v11157 = vrot.slane %v11134, %v11156
        %v11159 = vunpack.c.l.s4 1934713408
        %v11160 = vunpack.c.0.s8 %v11159
        %v11161 = vlaneseq
        %v11162 = vshrl.u32 %v11161, 7
        %v11163 = vsub.s32 %v11160, %v11162
        %v11164 = vrot.slane %v11150, %v11163
        %v11165 = vcombine.high %v11142, 0.0
        %v11166 = vcombine.high %v11149, 0.0
        %v11167 = vcombine.high %v11157, 0.0
        %v11168 = vcombine.high %v11164, 0.0
        %v11169 = vcombine.high %v10870, 0.0
        %v11171 = vunpack.c.l.s4 1983009808
        %v11172 = vunpack.c.0.s8 %v11171
        %v11173 = vlaneseq
        %v11174 = vshrl.u32 %v11173, 7
        %v11175 = vsub.s32 %v11172, %v11174
        %v11176 = vrot.slane %v10870, %v11175
        %v11178 = vunpack.c.l.s4 1983009808
        %v11179 = vunpack.c.0.s8 %v11178
        %v11180 = vlaneseq
        %v11181 = vshrl.u32 %v11180, 7
        %v11182 = vsub.s32 %v11179, %v11181
        %v11183 = vrot.slane %v11169, %v11182
        %v11184 = vcombine.high %v11176, 0.0
        %v11186 = vunpack.c.l.s4 1934713408
        %v11187 = vunpack.c.0.s8 %v11186
        %v11188 = vlaneseq
        %v11189 = vshrl.u32 %v11188, 7
        %v11190 = vsub.s32 %v11187, %v11189
        %v11191 = vrot.slane %v11176, %v11190
        %v11193 = vunpack.c.l.s4 1934713408
        %v11194 = vunpack.c.0.s8 %v11193
        %v11195 = vlaneseq
        %v11196 = vshrl.u32 %v11195, 7
        %v11197 = vsub.s32 %v11194, %v11196
        %v11198 = vrot.slane %v11184, %v11197
        %v11199 = vcombine.high %v11183, 0.0
        %v11201 = vunpack.c.l.s4 1934713408
        %v11202 = vunpack.c.0.s8 %v11201
        %v11203 = vlaneseq
        %v11204 = vshrl.u32 %v11203, 7
        %v11205 = vsub.s32 %v11202, %v11204
        %v11206 = vrot.slane %v11183, %v11205
        %v11208 = vunpack.c.l.s4 1934713408
        %v11209 = vunpack.c.0.s8 %v11208
        %v11210 = vlaneseq
        %v11211 = vshrl.u32 %v11210, 7
        %v11212 = vsub.s32 %v11209, %v11211
        %v11213 = vrot.slane %v11199, %v11212
        %v11214 = vcombine.high %v11191, 0.0
        %v11215 = vcombine.high %v11198, 0.0
        %v11216 = vcombine.high %v11206, 0.0
        %v11217 = vcombine.high %v11213, 0.0
        %v11218 = vcombine.high %v10874, 0.0
        %v11220 = vunpack.c.l.s4 1983009808
        %v11221 = vunpack.c.0.s8 %v11220
        %v11222 = vlaneseq
        %v11223 = vshrl.u32 %v11222, 7
        %v11224 = vsub.s32 %v11221, %v11223
        %v11225 = vrot.slane %v10874, %v11224
        %v11227 = vunpack.c.l.s4 1983009808
        %v11228 = vunpack.c.0.s8 %v11227
        %v11229 = vlaneseq
        %v11230 = vshrl.u32 %v11229, 7
        %v11231 = vsub.s32 %v11228, %v11230
        %v11232 = vrot.slane %v11218, %v11231
        %v11233 = vcombine.high %v11225, 0.0
        %v11235 = vunpack.c.l.s4 1934713408
        %v11236 = vunpack.c.0.s8 %v11235
        %v11237 = vlaneseq
        %v11238 = vshrl.u32 %v11237, 7
        %v11239 = vsub.s32 %v11236, %v11238
        %v11240 = vrot.slane %v11225, %v11239
        %v11242 = vunpack.c.l.s4 1934713408
        %v11243 = vunpack.c.0.s8 %v11242
        %v11244 = vlaneseq
        %v11245 = vshrl.u32 %v11244, 7
        %v11246 = vsub.s32 %v11243, %v11245
        %v11247 = vrot.slane %v11233, %v11246
        %v11248 = vcombine.high %v11232, 0.0
        %v11250 = vunpack.c.l.s4 1934713408
        %v11251 = vunpack.c.0.s8 %v11250
        %v11252 = vlaneseq
        %v11253 = vshrl.u32 %v11252, 7
        %v11254 = vsub.s32 %v11251, %v11253
        %v11255 = vrot.slane %v11232, %v11254
        %v11257 = vunpack.c.l.s4 1934713408
        %v11258 = vunpack.c.0.s8 %v11257
        %v11259 = vlaneseq
        %v11260 = vshrl.u32 %v11259, 7
        %v11261 = vsub.s32 %v11258, %v11260
        %v11262 = vrot.slane %v11248, %v11261
        %v11263 = vcombine.high %v11240, 0.0
        %v11264 = vcombine.high %v11247, 0.0
        %v11265 = vcombine.high %v11255, 0.0
        %v11266 = vcombine.high %v11262, 0.0
        %11271 = vrot.lane.b32.xlu0 %v10920, 2
        %v11272 = vpop.permute.xlu0 %11271
        %11273 = vrot.lane.b32.xlu0 %v11018, 2
        %v11274 = vpop.permute.xlu0 %11273
        %11275 = vrot.lane.b32.xlu0 %v11116, 2
        %v11276 = vpop.permute.xlu0 %11275
        %11277 = vrot.lane.b32.xlu0 %v11214, 2
        %v11278 = vpop.permute.xlu0 %11277
        %11287 = vrot.lane.b32.xlu0 %v10904, 4
        %v11288 = vpop.permute.xlu0 %11287
        %11289 = vrot.lane.b32.xlu0 %v11002, 4
        %v11290 = vpop.permute.xlu0 %11289
        %11291 = vrot.lane.b32.xlu0 %v11100, 4
        %v11292 = vpop.permute.xlu0 %11291
        %11293 = vrot.lane.b32.xlu0 %v11198, 4
        %v11294 = vpop.permute.xlu0 %11293
        %11303 = vrot.lane.b32.xlu0 %v10921, 6
        %v11304 = vpop.permute.xlu0 %11303
        %11305 = vrot.lane.b32.xlu0 %v11019, 6
        %v11306 = vpop.permute.xlu0 %11305
        %11307 = vrot.lane.b32.xlu0 %v11117, 6
        %v11308 = vpop.permute.xlu0 %11307
        %11309 = vrot.lane.b32.xlu0 %v11215, 6
        %v11310 = vpop.permute.xlu0 %11309
        %11319 = vrot.lane.b32.xlu0 %v10912, 8
        %v11320 = vpop.permute.xlu0 %11319
        %11321 = vrot.lane.b32.xlu0 %v11010, 8
        %v11322 = vpop.permute.xlu0 %11321
        %11323 = vrot.lane.b32.xlu0 %v11108, 8
        %v11324 = vpop.permute.xlu0 %11323
        %11325 = vrot.lane.b32.xlu0 %v11206, 8
        %v11326 = vpop.permute.xlu0 %11325
        %11335 = vrot.lane.b32.xlu0 %v10922, 10
        %v11336 = vpop.permute.xlu0 %11335
        %11337 = vrot.lane.b32.xlu0 %v11020, 10
        %v11338 = vpop.permute.xlu0 %11337
        %11339 = vrot.lane.b32.xlu0 %v11118, 10
        %v11340 = vpop.permute.xlu0 %11339
        %11341 = vrot.lane.b32.xlu0 %v11216, 10
        %v11342 = vpop.permute.xlu0 %11341
        %11351 = vrot.lane.b32.xlu0 %v10919, 12
        %v11352 = vpop.permute.xlu0 %11351
        %11353 = vrot.lane.b32.xlu0 %v11017, 12
        %v11354 = vpop.permute.xlu0 %11353
        %11355 = vrot.lane.b32.xlu0 %v11115, 12
        %v11356 = vpop.permute.xlu0 %11355
        %11357 = vrot.lane.b32.xlu0 %v11213, 12
        %v11358 = vpop.permute.xlu0 %11357
        %11367 = vrot.lane.b32.xlu0 %v10923, 14
        %v11368 = vpop.permute.xlu0 %11367
        %11369 = vrot.lane.b32.xlu0 %v11021, 14
        %v11370 = vpop.permute.xlu0 %11369
        %11371 = vrot.lane.b32.xlu0 %v11119, 14
        %v11372 = vpop.permute.xlu0 %11371
        %11373 = vrot.lane.b32.xlu0 %v11217, 14
        %v11374 = vpop.permute.xlu0 %11373
        %11383 = vrot.lane.b32.xlu0 %v10946, 16
        %v11384 = vpop.permute.xlu0 %11383
        %11385 = vrot.lane.b32.xlu0 %v11044, 16
        %v11386 = vpop.permute.xlu0 %11385
        %11387 = vrot.lane.b32.xlu0 %v11142, 16
        %v11388 = vpop.permute.xlu0 %11387
        %11389 = vrot.lane.b32.xlu0 %v11240, 16
        %v11390 = vpop.permute.xlu0 %11389
        %11399 = vrot.lane.b32.xlu0 %v10969, 18
        %v11400 = vpop.permute.xlu0 %11399
        %11401 = vrot.lane.b32.xlu0 %v11067, 18
        %v11402 = vpop.permute.xlu0 %11401
        %11403 = vrot.lane.b32.xlu0 %v11165, 18
        %v11404 = vpop.permute.xlu0 %11403
        %11405 = vrot.lane.b32.xlu0 %v11263, 18
        %v11406 = vpop.permute.xlu0 %11405
        %11415 = vrot.lane.b32.xlu0 %v10953, 20
        %v11416 = vpop.permute.xlu0 %11415
        %11417 = vrot.lane.b32.xlu0 %v11051, 20
        %v11418 = vpop.permute.xlu0 %11417
        %11419 = vrot.lane.b32.xlu0 %v11149, 20
        %v11420 = vpop.permute.xlu0 %11419
        %11421 = vrot.lane.b32.xlu0 %v11247, 20
        %v11422 = vpop.permute.xlu0 %11421
        %11431 = vrot.lane.b32.xlu0 %v10970, 22
        %v11432 = vpop.permute.xlu0 %11431
        %11433 = vrot.lane.b32.xlu0 %v11068, 22
        %v11434 = vpop.permute.xlu0 %11433
        %11435 = vrot.lane.b32.xlu0 %v11166, 22
        %v11436 = vpop.permute.xlu0 %11435
        %11437 = vrot.lane.b32.xlu0 %v11264, 22
        %v11438 = vpop.permute.xlu0 %11437
        %11447 = vrot.lane.b32.xlu0 %v10961, 24
        %v11448 = vpop.permute.xlu0 %11447
        %11449 = vrot.lane.b32.xlu0 %v11059, 24
        %v11450 = vpop.permute.xlu0 %11449
        %11451 = vrot.lane.b32.xlu0 %v11157, 24
        %v11452 = vpop.permute.xlu0 %11451
        %11453 = vrot.lane.b32.xlu0 %v11255, 24
        %v11454 = vpop.permute.xlu0 %11453
        %11463 = vrot.lane.b32.xlu0 %v10971, 26
        %v11464 = vpop.permute.xlu0 %11463
        %11465 = vrot.lane.b32.xlu0 %v11069, 26
        %v11466 = vpop.permute.xlu0 %11465
        %11467 = vrot.lane.b32.xlu0 %v11167, 26
        %v11468 = vpop.permute.xlu0 %11467
        %11469 = vrot.lane.b32.xlu0 %v11265, 26
        %v11470 = vpop.permute.xlu0 %11469
        %11479 = vrot.lane.b32.xlu0 %v10968, 28
        %v11480 = vpop.permute.xlu0 %11479
        %11481 = vrot.lane.b32.xlu0 %v11066, 28
        %v11482 = vpop.permute.xlu0 %11481
        %11483 = vrot.lane.b32.xlu0 %v11164, 28
        %v11484 = vpop.permute.xlu0 %11483
        %11485 = vrot.lane.b32.xlu0 %v11262, 28
        %v11486 = vpop.permute.xlu0 %11485
        %11495 = vrot.lane.b32.xlu0 %v10972, 30
        %v11496 = vpop.permute.xlu0 %11495
        %11497 = vrot.lane.b32.xlu0 %v11070, 30
        %v11498 = vpop.permute.xlu0 %11497
        %11499 = vrot.lane.b32.xlu0 %v11168, 30
        %v11500 = vpop.permute.xlu0 %11499
        %11501 = vrot.lane.b32.xlu0 %v11266, 30
        %v11502 = vpop.permute.xlu0 %11501
        %v11507 = vsel %vm851, %v10897, %v11272
        %v11508 = vsel %vm851, %v10995, %v11274
        %v11509 = vsel %vm851, %v11093, %v11276
        %v11510 = vsel %vm851, %v11191, %v11278
        %v11511 = vsel %vm856, %v11507, %v11288
        %v11512 = vsel %vm856, %v11508, %v11290
        %v11513 = vsel %vm856, %v11509, %v11292
        %v11514 = vsel %vm856, %v11510, %v11294
        %v11515 = vsel %vm861, %v11511, %v11304
        %v11516 = vsel %vm861, %v11512, %v11306
        %v11517 = vsel %vm861, %v11513, %v11308
        %v11518 = vsel %vm861, %v11514, %v11310
        %v11519 = vsel %vm866, %v11515, %v11320
        %v11520 = vsel %vm866, %v11516, %v11322
        %v11521 = vsel %vm866, %v11517, %v11324
        %v11522 = vsel %vm866, %v11518, %v11326
        %v11523 = vsel %vm871, %v11519, %v11336
        %v11524 = vsel %vm871, %v11520, %v11338
        %v11525 = vsel %vm871, %v11521, %v11340
        %v11526 = vsel %vm871, %v11522, %v11342
        %v11527 = vsel %vm876, %v11523, %v11352
        %v11528 = vsel %vm876, %v11524, %v11354
        %v11529 = vsel %vm876, %v11525, %v11356
        %v11530 = vsel %vm876, %v11526, %v11358
        %v11531 = vsel %vm881, %v11527, %v11368
        %v11532 = vsel %vm881, %v11528, %v11370
        %v11533 = vsel %vm881, %v11529, %v11372
        %v11534 = vsel %vm881, %v11530, %v11374
        %v11535 = vsel %vm886, %v11531, %v11384
        %v11536 = vsel %vm886, %v11532, %v11386
        %v11537 = vsel %vm886, %v11533, %v11388
        %v11538 = vsel %vm886, %v11534, %v11390
        %v11539 = vsel %vm891, %v11535, %v11400
        %v11540 = vsel %vm891, %v11536, %v11402
        %v11541 = vsel %vm891, %v11537, %v11404
        %v11542 = vsel %vm891, %v11538, %v11406
        %v11543 = vsel %vm896, %v11539, %v11416
        %v11544 = vsel %vm896, %v11540, %v11418
        %v11545 = vsel %vm896, %v11541, %v11420
        %v11546 = vsel %vm896, %v11542, %v11422
        %v11547 = vsel %vm901, %v11543, %v11432
        %v11548 = vsel %vm901, %v11544, %v11434
        %v11549 = vsel %vm901, %v11545, %v11436
        %v11550 = vsel %vm901, %v11546, %v11438
        %v11551 = vsel %vm906, %v11547, %v11448
        %v11552 = vsel %vm906, %v11548, %v11450
        %v11553 = vsel %vm906, %v11549, %v11452
        %v11554 = vsel %vm906, %v11550, %v11454
        %v11555 = vsel %vm911, %v11551, %v11464
        %v11556 = vsel %vm911, %v11552, %v11466
        %v11557 = vsel %vm911, %v11553, %v11468
        %v11558 = vsel %vm911, %v11554, %v11470
        %v11559 = vsel %vm916, %v11555, %v11480
        %v11560 = vsel %vm916, %v11556, %v11482
        %v11561 = vsel %vm916, %v11557, %v11484
        %v11562 = vsel %vm916, %v11558, %v11486
        %v11563 = vsel %vm921, %v11559, %v11496
        %v11564 = vsel %vm921, %v11560, %v11498
        %v11565 = vsel %vm921, %v11561, %v11500
        %v11566 = vsel %vm921, %v11562, %v11502
        %v11567 = vlaneseq
        %v11568 = vshrl.u32 %v11567, 7
        %v11569 = vsub.s32 0, %v11568
        %v11570 = vrot.slane %v11563, %v11569
        %v11571 = vlaneseq
        %v11572 = vshrl.u32 %v11571, 7
        %v11573 = vsub.s32 0, %v11572
        %v11574 = vrot.slane %v11564, %v11573
        %v11575 = vlaneseq
        %v11576 = vshrl.u32 %v11575, 7
        %v11577 = vsub.s32 0, %v11576
        %v11578 = vrot.slane %v11565, %v11577
        %v11579 = vlaneseq
        %v11580 = vshrl.u32 %v11579, 7
        %v11581 = vsub.s32 0, %v11580
        %v11582 = vrot.slane %v11566, %v11581
        %11583 = vst.msk [vmem:[%s166 + $0x1c] sm:$0x3] %vm942, %v11570
        %11584 = vst.msk [vmem:[%s166 + $0x3c] sm:$0x3] %vm942, %v11574
        %11585 = vst.msk [vmem:[%s166 + $0x5c] sm:$0x3] %vm942, %v11578
        %11586 = vst.msk [vmem:[%s166 + $0x7c] sm:$0x3] %vm942, %v11582
        %v11587 = vld [vmem:[%s148 + $0xf] sm:$0x1]
        %v11588 = vld [vmem:[%s148 + $0x1f] sm:$0x1]
        %v11589 = vld [vmem:[%s148 + $0x2f] sm:$0x1]
        %v11590 = vld [vmem:[%s148 + $0x3f] sm:$0x1]
        %v11591 = vlaneseq
        %v11592 = vshrl.u32 %v11591, 7
        %v11593 = vsub.s32 0, %v11592
        %v11594 = vrot.slane %v11587, %v11593
        %11596 = vbcast.lane.b32.xlu0 %v11594, 256
        %v11597 = vpop.permute.xlu0 %11596
        %s11599 = sor.u32 256, 8
        %11600 = vbcast.lane.b32.xlu0 %v11594, %s11599
        %v11601 = vpop.permute.xlu0 %11600
        %v11602 = vlaneseq
        %v11603 = vshrl.u32 %v11602, 7
        %v11604 = vsub.s32 0, %v11603
        %v11605 = vrot.slane %v11588, %v11604
        %11607 = vbcast.lane.b32.xlu0 %v11605, 256
        %v11608 = vpop.permute.xlu0 %11607
        %s11610 = sor.u32 256, 8
        %11611 = vbcast.lane.b32.xlu0 %v11605, %s11610
        %v11612 = vpop.permute.xlu0 %11611
        %v11613 = vlaneseq
        %v11614 = vshrl.u32 %v11613, 7
        %v11615 = vsub.s32 0, %v11614
        %v11616 = vrot.slane %v11589, %v11615
        %11618 = vbcast.lane.b32.xlu0 %v11616, 256
        %v11619 = vpop.permute.xlu0 %11618
        %s11621 = sor.u32 256, 8
        %11622 = vbcast.lane.b32.xlu0 %v11616, %s11621
        %v11623 = vpop.permute.xlu0 %11622
        %v11624 = vlaneseq
        %v11625 = vshrl.u32 %v11624, 7
        %v11626 = vsub.s32 0, %v11625
        %v11627 = vrot.slane %v11590, %v11626
        %11629 = vbcast.lane.b32.xlu0 %v11627, 256
        %v11630 = vpop.permute.xlu0 %11629
        %s11632 = sor.u32 256, 8
        %11633 = vbcast.lane.b32.xlu0 %v11627, %s11632
        %v11634 = vpop.permute.xlu0 %11633
        %v11635 = vcombine.high %v11597, 0.0
        %v11637 = vunpack.c.l.s4 1983009808
        %v11638 = vunpack.c.0.s8 %v11637
        %v11639 = vlaneseq
        %v11640 = vshrl.u32 %v11639, 7
        %v11641 = vsub.s32 %v11638, %v11640
        %v11642 = vrot.slane %v11597, %v11641
        %v11644 = vunpack.c.l.s4 1983009808
        %v11645 = vunpack.c.0.s8 %v11644
        %v11646 = vlaneseq
        %v11647 = vshrl.u32 %v11646, 7
        %v11648 = vsub.s32 %v11645, %v11647
        %v11649 = vrot.slane %v11635, %v11648
        %v11650 = vcombine.high %v11642, 0.0
        %v11652 = vunpack.c.l.s4 1934713408
        %v11653 = vunpack.c.0.s8 %v11652
        %v11654 = vlaneseq
        %v11655 = vshrl.u32 %v11654, 7
        %v11656 = vsub.s32 %v11653, %v11655
        %v11657 = vrot.slane %v11642, %v11656
        %v11659 = vunpack.c.l.s4 1934713408
        %v11660 = vunpack.c.0.s8 %v11659
        %v11661 = vlaneseq
        %v11662 = vshrl.u32 %v11661, 7
        %v11663 = vsub.s32 %v11660, %v11662
        %v11664 = vrot.slane %v11650, %v11663
        %v11665 = vcombine.high %v11649, 0.0
        %v11667 = vunpack.c.l.s4 1934713408
        %v11668 = vunpack.c.0.s8 %v11667
        %v11669 = vlaneseq
        %v11670 = vshrl.u32 %v11669, 7
        %v11671 = vsub.s32 %v11668, %v11670
        %v11672 = vrot.slane %v11649, %v11671
        %v11674 = vunpack.c.l.s4 1934713408
        %v11675 = vunpack.c.0.s8 %v11674
        %v11676 = vlaneseq
        %v11677 = vshrl.u32 %v11676, 7
        %v11678 = vsub.s32 %v11675, %v11677
        %v11679 = vrot.slane %v11665, %v11678
        %v11680 = vcombine.high %v11657, 0.0
        %v11681 = vcombine.high %v11664, 0.0
        %v11682 = vcombine.high %v11672, 0.0
        %v11683 = vcombine.high %v11679, 0.0
        %v11684 = vcombine.high %v11601, 0.0
        %v11686 = vunpack.c.l.s4 1983009808
        %v11687 = vunpack.c.0.s8 %v11686
        %v11688 = vlaneseq
        %v11689 = vshrl.u32 %v11688, 7
        %v11690 = vsub.s32 %v11687, %v11689
        %v11691 = vrot.slane %v11601, %v11690
        %v11693 = vunpack.c.l.s4 1983009808
        %v11694 = vunpack.c.0.s8 %v11693
        %v11695 = vlaneseq
        %v11696 = vshrl.u32 %v11695, 7
        %v11697 = vsub.s32 %v11694, %v11696
        %v11698 = vrot.slane %v11684, %v11697
        %v11699 = vcombine.high %v11691, 0.0
        %v11701 = vunpack.c.l.s4 1934713408
        %v11702 = vunpack.c.0.s8 %v11701
        %v11703 = vlaneseq
        %v11704 = vshrl.u32 %v11703, 7
        %v11705 = vsub.s32 %v11702, %v11704
        %v11706 = vrot.slane %v11691, %v11705
        %v11708 = vunpack.c.l.s4 1934713408
        %v11709 = vunpack.c.0.s8 %v11708
        %v11710 = vlaneseq
        %v11711 = vshrl.u32 %v11710, 7
        %v11712 = vsub.s32 %v11709, %v11711
        %v11713 = vrot.slane %v11699, %v11712
        %v11714 = vcombine.high %v11698, 0.0
        %v11716 = vunpack.c.l.s4 1934713408
        %v11717 = vunpack.c.0.s8 %v11716
        %v11718 = vlaneseq
        %v11719 = vshrl.u32 %v11718, 7
        %v11720 = vsub.s32 %v11717, %v11719
        %v11721 = vrot.slane %v11698, %v11720
        %v11723 = vunpack.c.l.s4 1934713408
        %v11724 = vunpack.c.0.s8 %v11723
        %v11725 = vlaneseq
        %v11726 = vshrl.u32 %v11725, 7
        %v11727 = vsub.s32 %v11724, %v11726
        %v11728 = vrot.slane %v11714, %v11727
        %v11729 = vcombine.high %v11706, 0.0
        %v11730 = vcombine.high %v11713, 0.0
        %v11731 = vcombine.high %v11721, 0.0
        %v11732 = vcombine.high %v11728, 0.0
        %v11733 = vcombine.high %v11608, 0.0
        %v11735 = vunpack.c.l.s4 1983009808
        %v11736 = vunpack.c.0.s8 %v11735
        %v11737 = vlaneseq
        %v11738 = vshrl.u32 %v11737, 7
        %v11739 = vsub.s32 %v11736, %v11738
        %v11740 = vrot.slane %v11608, %v11739
        %v11742 = vunpack.c.l.s4 1983009808
        %v11743 = vunpack.c.0.s8 %v11742
        %v11744 = vlaneseq
        %v11745 = vshrl.u32 %v11744, 7
        %v11746 = vsub.s32 %v11743, %v11745
        %v11747 = vrot.slane %v11733, %v11746
        %v11748 = vcombine.high %v11740, 0.0
        %v11750 = vunpack.c.l.s4 1934713408
        %v11751 = vunpack.c.0.s8 %v11750
        %v11752 = vlaneseq
        %v11753 = vshrl.u32 %v11752, 7
        %v11754 = vsub.s32 %v11751, %v11753
        %v11755 = vrot.slane %v11740, %v11754
        %v11757 = vunpack.c.l.s4 1934713408
        %v11758 = vunpack.c.0.s8 %v11757
        %v11759 = vlaneseq
        %v11760 = vshrl.u32 %v11759, 7
        %v11761 = vsub.s32 %v11758, %v11760
        %v11762 = vrot.slane %v11748, %v11761
        %v11763 = vcombine.high %v11747, 0.0
        %v11765 = vunpack.c.l.s4 1934713408
        %v11766 = vunpack.c.0.s8 %v11765
        %v11767 = vlaneseq
        %v11768 = vshrl.u32 %v11767, 7
        %v11769 = vsub.s32 %v11766, %v11768
        %v11770 = vrot.slane %v11747, %v11769
        %v11772 = vunpack.c.l.s4 1934713408
        %v11773 = vunpack.c.0.s8 %v11772
        %v11774 = vlaneseq
        %v11775 = vshrl.u32 %v11774, 7
        %v11776 = vsub.s32 %v11773, %v11775
        %v11777 = vrot.slane %v11763, %v11776
        %v11778 = vcombine.high %v11755, 0.0
        %v11779 = vcombine.high %v11762, 0.0
        %v11780 = vcombine.high %v11770, 0.0
        %v11781 = vcombine.high %v11777, 0.0
        %v11782 = vcombine.high %v11612, 0.0
        %v11784 = vunpack.c.l.s4 1983009808
        %v11785 = vunpack.c.0.s8 %v11784
        %v11786 = vlaneseq
        %v11787 = vshrl.u32 %v11786, 7
        %v11788 = vsub.s32 %v11785, %v11787
        %v11789 = vrot.slane %v11612, %v11788
        %v11791 = vunpack.c.l.s4 1983009808
        %v11792 = vunpack.c.0.s8 %v11791
        %v11793 = vlaneseq
        %v11794 = vshrl.u32 %v11793, 7
        %v11795 = vsub.s32 %v11792, %v11794
        %v11796 = vrot.slane %v11782, %v11795
        %v11797 = vcombine.high %v11789, 0.0
        %v11799 = vunpack.c.l.s4 1934713408
        %v11800 = vunpack.c.0.s8 %v11799
        %v11801 = vlaneseq
        %v11802 = vshrl.u32 %v11801, 7
        %v11803 = vsub.s32 %v11800, %v11802
        %v11804 = vrot.slane %v11789, %v11803
        %v11806 = vunpack.c.l.s4 1934713408
        %v11807 = vunpack.c.0.s8 %v11806
        %v11808 = vlaneseq
        %v11809 = vshrl.u32 %v11808, 7
        %v11810 = vsub.s32 %v11807, %v11809
        %v11811 = vrot.slane %v11797, %v11810
        %v11812 = vcombine.high %v11796, 0.0
        %v11814 = vunpack.c.l.s4 1934713408
        %v11815 = vunpack.c.0.s8 %v11814
        %v11816 = vlaneseq
        %v11817 = vshrl.u32 %v11816, 7
        %v11818 = vsub.s32 %v11815, %v11817
        %v11819 = vrot.slane %v11796, %v11818
        %v11821 = vunpack.c.l.s4 1934713408
        %v11822 = vunpack.c.0.s8 %v11821
        %v11823 = vlaneseq
        %v11824 = vshrl.u32 %v11823, 7
        %v11825 = vsub.s32 %v11822, %v11824
        %v11826 = vrot.slane %v11812, %v11825
        %v11827 = vcombine.high %v11804, 0.0
        %v11828 = vcombine.high %v11811, 0.0
        %v11829 = vcombine.high %v11819, 0.0
        %v11830 = vcombine.high %v11826, 0.0
        %v11831 = vcombine.high %v11619, 0.0
        %v11833 = vunpack.c.l.s4 1983009808
        %v11834 = vunpack.c.0.s8 %v11833
        %v11835 = vlaneseq
        %v11836 = vshrl.u32 %v11835, 7
        %v11837 = vsub.s32 %v11834, %v11836
        %v11838 = vrot.slane %v11619, %v11837
        %v11840 = vunpack.c.l.s4 1983009808
        %v11841 = vunpack.c.0.s8 %v11840
        %v11842 = vlaneseq
        %v11843 = vshrl.u32 %v11842, 7
        %v11844 = vsub.s32 %v11841, %v11843
        %v11845 = vrot.slane %v11831, %v11844
        %v11846 = vcombine.high %v11838, 0.0
        %v11848 = vunpack.c.l.s4 1934713408
        %v11849 = vunpack.c.0.s8 %v11848
        %v11850 = vlaneseq
        %v11851 = vshrl.u32 %v11850, 7
        %v11852 = vsub.s32 %v11849, %v11851
        %v11853 = vrot.slane %v11838, %v11852
        %v11855 = vunpack.c.l.s4 1934713408
        %v11856 = vunpack.c.0.s8 %v11855
        %v11857 = vlaneseq
        %v11858 = vshrl.u32 %v11857, 7
        %v11859 = vsub.s32 %v11856, %v11858
        %v11860 = vrot.slane %v11846, %v11859
        %v11861 = vcombine.high %v11845, 0.0
        %v11863 = vunpack.c.l.s4 1934713408
        %v11864 = vunpack.c.0.s8 %v11863
        %v11865 = vlaneseq
        %v11866 = vshrl.u32 %v11865, 7
        %v11867 = vsub.s32 %v11864, %v11866
        %v11868 = vrot.slane %v11845, %v11867
        %v11870 = vunpack.c.l.s4 1934713408
        %v11871 = vunpack.c.0.s8 %v11870
        %v11872 = vlaneseq
        %v11873 = vshrl.u32 %v11872, 7
        %v11874 = vsub.s32 %v11871, %v11873
        %v11875 = vrot.slane %v11861, %v11874
        %v11876 = vcombine.high %v11853, 0.0
        %v11877 = vcombine.high %v11860, 0.0
        %v11878 = vcombine.high %v11868, 0.0
        %v11879 = vcombine.high %v11875, 0.0
        %v11880 = vcombine.high %v11623, 0.0
        %v11882 = vunpack.c.l.s4 1983009808
        %v11883 = vunpack.c.0.s8 %v11882
        %v11884 = vlaneseq
        %v11885 = vshrl.u32 %v11884, 7
        %v11886 = vsub.s32 %v11883, %v11885
        %v11887 = vrot.slane %v11623, %v11886
        %v11889 = vunpack.c.l.s4 1983009808
        %v11890 = vunpack.c.0.s8 %v11889
        %v11891 = vlaneseq
        %v11892 = vshrl.u32 %v11891, 7
        %v11893 = vsub.s32 %v11890, %v11892
        %v11894 = vrot.slane %v11880, %v11893
        %v11895 = vcombine.high %v11887, 0.0
        %v11897 = vunpack.c.l.s4 1934713408
        %v11898 = vunpack.c.0.s8 %v11897
        %v11899 = vlaneseq
        %v11900 = vshrl.u32 %v11899, 7
        %v11901 = vsub.s32 %v11898, %v11900
        %v11902 = vrot.slane %v11887, %v11901
        %v11904 = vunpack.c.l.s4 1934713408
        %v11905 = vunpack.c.0.s8 %v11904
        %v11906 = vlaneseq
        %v11907 = vshrl.u32 %v11906, 7
        %v11908 = vsub.s32 %v11905, %v11907
        %v11909 = vrot.slane %v11895, %v11908
        %v11910 = vcombine.high %v11894, 0.0
        %v11912 = vunpack.c.l.s4 1934713408
        %v11913 = vunpack.c.0.s8 %v11912
        %v11914 = vlaneseq
        %v11915 = vshrl.u32 %v11914, 7
        %v11916 = vsub.s32 %v11913, %v11915
        %v11917 = vrot.slane %v11894, %v11916
        %v11919 = vunpack.c.l.s4 1934713408
        %v11920 = vunpack.c.0.s8 %v11919
        %v11921 = vlaneseq
        %v11922 = vshrl.u32 %v11921, 7
        %v11923 = vsub.s32 %v11920, %v11922
        %v11924 = vrot.slane %v11910, %v11923
        %v11925 = vcombine.high %v11902, 0.0
        %v11926 = vcombine.high %v11909, 0.0
        %v11927 = vcombine.high %v11917, 0.0
        %v11928 = vcombine.high %v11924, 0.0
        %v11929 = vcombine.high %v11630, 0.0
        %v11931 = vunpack.c.l.s4 1983009808
        %v11932 = vunpack.c.0.s8 %v11931
        %v11933 = vlaneseq
        %v11934 = vshrl.u32 %v11933, 7
        %v11935 = vsub.s32 %v11932, %v11934
        %v11936 = vrot.slane %v11630, %v11935
        %v11938 = vunpack.c.l.s4 1983009808
        %v11939 = vunpack.c.0.s8 %v11938
        %v11940 = vlaneseq
        %v11941 = vshrl.u32 %v11940, 7
        %v11942 = vsub.s32 %v11939, %v11941
        %v11943 = vrot.slane %v11929, %v11942
        %v11944 = vcombine.high %v11936, 0.0
        %v11946 = vunpack.c.l.s4 1934713408
        %v11947 = vunpack.c.0.s8 %v11946
        %v11948 = vlaneseq
        %v11949 = vshrl.u32 %v11948, 7
        %v11950 = vsub.s32 %v11947, %v11949
        %v11951 = vrot.slane %v11936, %v11950
        %v11953 = vunpack.c.l.s4 1934713408
        %v11954 = vunpack.c.0.s8 %v11953
        %v11955 = vlaneseq
        %v11956 = vshrl.u32 %v11955, 7
        %v11957 = vsub.s32 %v11954, %v11956
        %v11958 = vrot.slane %v11944, %v11957
        %v11959 = vcombine.high %v11943, 0.0
        %v11961 = vunpack.c.l.s4 1934713408
        %v11962 = vunpack.c.0.s8 %v11961
        %v11963 = vlaneseq
        %v11964 = vshrl.u32 %v11963, 7
        %v11965 = vsub.s32 %v11962, %v11964
        %v11966 = vrot.slane %v11943, %v11965
        %v11968 = vunpack.c.l.s4 1934713408
        %v11969 = vunpack.c.0.s8 %v11968
        %v11970 = vlaneseq
        %v11971 = vshrl.u32 %v11970, 7
        %v11972 = vsub.s32 %v11969, %v11971
        %v11973 = vrot.slane %v11959, %v11972
        %v11974 = vcombine.high %v11951, 0.0
        %v11975 = vcombine.high %v11958, 0.0
        %v11976 = vcombine.high %v11966, 0.0
        %v11977 = vcombine.high %v11973, 0.0
        %v11978 = vcombine.high %v11634, 0.0
        %v11980 = vunpack.c.l.s4 1983009808
        %v11981 = vunpack.c.0.s8 %v11980
        %v11982 = vlaneseq
        %v11983 = vshrl.u32 %v11982, 7
        %v11984 = vsub.s32 %v11981, %v11983
        %v11985 = vrot.slane %v11634, %v11984
        %v11987 = vunpack.c.l.s4 1983009808
        %v11988 = vunpack.c.0.s8 %v11987
        %v11989 = vlaneseq
        %v11990 = vshrl.u32 %v11989, 7
        %v11991 = vsub.s32 %v11988, %v11990
        %v11992 = vrot.slane %v11978, %v11991
        %v11993 = vcombine.high %v11985, 0.0
        %v11995 = vunpack.c.l.s4 1934713408
        %v11996 = vunpack.c.0.s8 %v11995
        %v11997 = vlaneseq
        %v11998 = vshrl.u32 %v11997, 7
        %v11999 = vsub.s32 %v11996, %v11998
        %v12000 = vrot.slane %v11985, %v11999
        %v12002 = vunpack.c.l.s4 1934713408
        %v12003 = vunpack.c.0.s8 %v12002
        %v12004 = vlaneseq
        %v12005 = vshrl.u32 %v12004, 7
        %v12006 = vsub.s32 %v12003, %v12005
        %v12007 = vrot.slane %v11993, %v12006
        %v12008 = vcombine.high %v11992, 0.0
        %v12010 = vunpack.c.l.s4 1934713408
        %v12011 = vunpack.c.0.s8 %v12010
        %v12012 = vlaneseq
        %v12013 = vshrl.u32 %v12012, 7
        %v12014 = vsub.s32 %v12011, %v12013
        %v12015 = vrot.slane %v11992, %v12014
        %v12017 = vunpack.c.l.s4 1934713408
        %v12018 = vunpack.c.0.s8 %v12017
        %v12019 = vlaneseq
        %v12020 = vshrl.u32 %v12019, 7
        %v12021 = vsub.s32 %v12018, %v12020
        %v12022 = vrot.slane %v12008, %v12021
        %v12023 = vcombine.high %v12000, 0.0
        %v12024 = vcombine.high %v12007, 0.0
        %v12025 = vcombine.high %v12015, 0.0
        %v12026 = vcombine.high %v12022, 0.0
        %12031 = vrot.lane.b32.xlu0 %v11680, 2
        %v12032 = vpop.permute.xlu0 %12031
        %12033 = vrot.lane.b32.xlu0 %v11778, 2
        %v12034 = vpop.permute.xlu0 %12033
        %12035 = vrot.lane.b32.xlu0 %v11876, 2
        %v12036 = vpop.permute.xlu0 %12035
        %12037 = vrot.lane.b32.xlu0 %v11974, 2
        %v12038 = vpop.permute.xlu0 %12037
        %12047 = vrot.lane.b32.xlu0 %v11664, 4
        %v12048 = vpop.permute.xlu0 %12047
        %12049 = vrot.lane.b32.xlu0 %v11762, 4
        %v12050 = vpop.permute.xlu0 %12049
        %12051 = vrot.lane.b32.xlu0 %v11860, 4
        %v12052 = vpop.permute.xlu0 %12051
        %12053 = vrot.lane.b32.xlu0 %v11958, 4
        %v12054 = vpop.permute.xlu0 %12053
        %12063 = vrot.lane.b32.xlu0 %v11681, 6
        %v12064 = vpop.permute.xlu0 %12063
        %12065 = vrot.lane.b32.xlu0 %v11779, 6
        %v12066 = vpop.permute.xlu0 %12065
        %12067 = vrot.lane.b32.xlu0 %v11877, 6
        %v12068 = vpop.permute.xlu0 %12067
        %12069 = vrot.lane.b32.xlu0 %v11975, 6
        %v12070 = vpop.permute.xlu0 %12069
        %12079 = vrot.lane.b32.xlu0 %v11672, 8
        %v12080 = vpop.permute.xlu0 %12079
        %12081 = vrot.lane.b32.xlu0 %v11770, 8
        %v12082 = vpop.permute.xlu0 %12081
        %12083 = vrot.lane.b32.xlu0 %v11868, 8
        %v12084 = vpop.permute.xlu0 %12083
        %12085 = vrot.lane.b32.xlu0 %v11966, 8
        %v12086 = vpop.permute.xlu0 %12085
        %12095 = vrot.lane.b32.xlu0 %v11682, 10
        %v12096 = vpop.permute.xlu0 %12095
        %12097 = vrot.lane.b32.xlu0 %v11780, 10
        %v12098 = vpop.permute.xlu0 %12097
        %12099 = vrot.lane.b32.xlu0 %v11878, 10
        %v12100 = vpop.permute.xlu0 %12099
        %12101 = vrot.lane.b32.xlu0 %v11976, 10
        %v12102 = vpop.permute.xlu0 %12101
        %12111 = vrot.lane.b32.xlu0 %v11679, 12
        %v12112 = vpop.permute.xlu0 %12111
        %12113 = vrot.lane.b32.xlu0 %v11777, 12
        %v12114 = vpop.permute.xlu0 %12113
        %12115 = vrot.lane.b32.xlu0 %v11875, 12
        %v12116 = vpop.permute.xlu0 %12115
        %12117 = vrot.lane.b32.xlu0 %v11973, 12
        %v12118 = vpop.permute.xlu0 %12117
        %12127 = vrot.lane.b32.xlu0 %v11683, 14
        %v12128 = vpop.permute.xlu0 %12127
        %12129 = vrot.lane.b32.xlu0 %v11781, 14
        %v12130 = vpop.permute.xlu0 %12129
        %12131 = vrot.lane.b32.xlu0 %v11879, 14
        %v12132 = vpop.permute.xlu0 %12131
        %12133 = vrot.lane.b32.xlu0 %v11977, 14
        %v12134 = vpop.permute.xlu0 %12133
        %12143 = vrot.lane.b32.xlu0 %v11706, 16
        %v12144 = vpop.permute.xlu0 %12143
        %12145 = vrot.lane.b32.xlu0 %v11804, 16
        %v12146 = vpop.permute.xlu0 %12145
        %12147 = vrot.lane.b32.xlu0 %v11902, 16
        %v12148 = vpop.permute.xlu0 %12147
        %12149 = vrot.lane.b32.xlu0 %v12000, 16
        %v12150 = vpop.permute.xlu0 %12149
        %12159 = vrot.lane.b32.xlu0 %v11729, 18
        %v12160 = vpop.permute.xlu0 %12159
        %12161 = vrot.lane.b32.xlu0 %v11827, 18
        %v12162 = vpop.permute.xlu0 %12161
        %12163 = vrot.lane.b32.xlu0 %v11925, 18
        %v12164 = vpop.permute.xlu0 %12163
        %12165 = vrot.lane.b32.xlu0 %v12023, 18
        %v12166 = vpop.permute.xlu0 %12165
        %12175 = vrot.lane.b32.xlu0 %v11713, 20
        %v12176 = vpop.permute.xlu0 %12175
        %12177 = vrot.lane.b32.xlu0 %v11811, 20
        %v12178 = vpop.permute.xlu0 %12177
        %12179 = vrot.lane.b32.xlu0 %v11909, 20
        %v12180 = vpop.permute.xlu0 %12179
        %12181 = vrot.lane.b32.xlu0 %v12007, 20
        %v12182 = vpop.permute.xlu0 %12181
        %12191 = vrot.lane.b32.xlu0 %v11730, 22
        %v12192 = vpop.permute.xlu0 %12191
        %12193 = vrot.lane.b32.xlu0 %v11828, 22
        %v12194 = vpop.permute.xlu0 %12193
        %12195 = vrot.lane.b32.xlu0 %v11926, 22
        %v12196 = vpop.permute.xlu0 %12195
        %12197 = vrot.lane.b32.xlu0 %v12024, 22
        %v12198 = vpop.permute.xlu0 %12197
        %12207 = vrot.lane.b32.xlu0 %v11721, 24
        %v12208 = vpop.permute.xlu0 %12207
        %12209 = vrot.lane.b32.xlu0 %v11819, 24
        %v12210 = vpop.permute.xlu0 %12209
        %12211 = vrot.lane.b32.xlu0 %v11917, 24
        %v12212 = vpop.permute.xlu0 %12211
        %12213 = vrot.lane.b32.xlu0 %v12015, 24
        %v12214 = vpop.permute.xlu0 %12213
        %12223 = vrot.lane.b32.xlu0 %v11731, 26
        %v12224 = vpop.permute.xlu0 %12223
        %12225 = vrot.lane.b32.xlu0 %v11829, 26
        %v12226 = vpop.permute.xlu0 %12225
        %12227 = vrot.lane.b32.xlu0 %v11927, 26
        %v12228 = vpop.permute.xlu0 %12227
        %12229 = vrot.lane.b32.xlu0 %v12025, 26
        %v12230 = vpop.permute.xlu0 %12229
        %12239 = vrot.lane.b32.xlu0 %v11728, 28
        %v12240 = vpop.permute.xlu0 %12239
        %12241 = vrot.lane.b32.xlu0 %v11826, 28
        %v12242 = vpop.permute.xlu0 %12241
        %12243 = vrot.lane.b32.xlu0 %v11924, 28
        %v12244 = vpop.permute.xlu0 %12243
        %12245 = vrot.lane.b32.xlu0 %v12022, 28
        %v12246 = vpop.permute.xlu0 %12245
        %12255 = vrot.lane.b32.xlu0 %v11732, 30
        %v12256 = vpop.permute.xlu0 %12255
        %12257 = vrot.lane.b32.xlu0 %v11830, 30
        %v12258 = vpop.permute.xlu0 %12257
        %12259 = vrot.lane.b32.xlu0 %v11928, 30
        %v12260 = vpop.permute.xlu0 %12259
        %12261 = vrot.lane.b32.xlu0 %v12026, 30
        %v12262 = vpop.permute.xlu0 %12261
        %v12267 = vsel %vm851, %v11657, %v12032
        %v12268 = vsel %vm851, %v11755, %v12034
        %v12269 = vsel %vm851, %v11853, %v12036
        %v12270 = vsel %vm851, %v11951, %v12038
        %v12271 = vsel %vm856, %v12267, %v12048
        %v12272 = vsel %vm856, %v12268, %v12050
        %v12273 = vsel %vm856, %v12269, %v12052
        %v12274 = vsel %vm856, %v12270, %v12054
        %v12275 = vsel %vm861, %v12271, %v12064
        %v12276 = vsel %vm861, %v12272, %v12066
        %v12277 = vsel %vm861, %v12273, %v12068
        %v12278 = vsel %vm861, %v12274, %v12070
        %v12279 = vsel %vm866, %v12275, %v12080
        %v12280 = vsel %vm866, %v12276, %v12082
        %v12281 = vsel %vm866, %v12277, %v12084
        %v12282 = vsel %vm866, %v12278, %v12086
        %v12283 = vsel %vm871, %v12279, %v12096
        %v12284 = vsel %vm871, %v12280, %v12098
        %v12285 = vsel %vm871, %v12281, %v12100
        %v12286 = vsel %vm871, %v12282, %v12102
        %v12287 = vsel %vm876, %v12283, %v12112
        %v12288 = vsel %vm876, %v12284, %v12114
        %v12289 = vsel %vm876, %v12285, %v12116
        %v12290 = vsel %vm876, %v12286, %v12118
        %v12291 = vsel %vm881, %v12287, %v12128
        %v12292 = vsel %vm881, %v12288, %v12130
        %v12293 = vsel %vm881, %v12289, %v12132
        %v12294 = vsel %vm881, %v12290, %v12134
        %v12295 = vsel %vm886, %v12291, %v12144
        %v12296 = vsel %vm886, %v12292, %v12146
        %v12297 = vsel %vm886, %v12293, %v12148
        %v12298 = vsel %vm886, %v12294, %v12150
        %v12299 = vsel %vm891, %v12295, %v12160
        %v12300 = vsel %vm891, %v12296, %v12162
        %v12301 = vsel %vm891, %v12297, %v12164
        %v12302 = vsel %vm891, %v12298, %v12166
        %v12303 = vsel %vm896, %v12299, %v12176
        %v12304 = vsel %vm896, %v12300, %v12178
        %v12305 = vsel %vm896, %v12301, %v12180
        %v12306 = vsel %vm896, %v12302, %v12182
        %v12307 = vsel %vm901, %v12303, %v12192
        %v12308 = vsel %vm901, %v12304, %v12194
        %v12309 = vsel %vm901, %v12305, %v12196
        %v12310 = vsel %vm901, %v12306, %v12198
        %v12311 = vsel %vm906, %v12307, %v12208
        %v12312 = vsel %vm906, %v12308, %v12210
        %v12313 = vsel %vm906, %v12309, %v12212
        %v12314 = vsel %vm906, %v12310, %v12214
        %v12315 = vsel %vm911, %v12311, %v12224
        %v12316 = vsel %vm911, %v12312, %v12226
        %v12317 = vsel %vm911, %v12313, %v12228
        %v12318 = vsel %vm911, %v12314, %v12230
        %v12319 = vsel %vm916, %v12315, %v12240
        %v12320 = vsel %vm916, %v12316, %v12242
        %v12321 = vsel %vm916, %v12317, %v12244
        %v12322 = vsel %vm916, %v12318, %v12246
        %v12323 = vsel %vm921, %v12319, %v12256
        %v12324 = vsel %vm921, %v12320, %v12258
        %v12325 = vsel %vm921, %v12321, %v12260
        %v12326 = vsel %vm921, %v12322, %v12262
        %v12327 = vlaneseq
        %v12328 = vshrl.u32 %v12327, 7
        %v12329 = vsub.s32 0, %v12328
        %v12330 = vrot.slane %v12323, %v12329
        %v12331 = vlaneseq
        %v12332 = vshrl.u32 %v12331, 7
        %v12333 = vsub.s32 0, %v12332
        %v12334 = vrot.slane %v12324, %v12333
        %v12335 = vlaneseq
        %v12336 = vshrl.u32 %v12335, 7
        %v12337 = vsub.s32 0, %v12336
        %v12338 = vrot.slane %v12325, %v12337
        %v12339 = vlaneseq
        %v12340 = vshrl.u32 %v12339, 7
        %v12341 = vsub.s32 0, %v12340
        %v12342 = vrot.slane %v12326, %v12341
        %12343 = vst.msk [vmem:[%s166 + $0x1e] sm:$0x3] %vm942, %v12330
        %12344 = vst.msk [vmem:[%s166 + $0x3e] sm:$0x3] %vm942, %v12334
        %12345 = vst.msk [vmem:[%s166 + $0x5e] sm:$0x3] %vm942, %v12338
        %12346 = vst.msk [vmem:[%s166 + $0x7e] sm:$0x3] %vm942, %v12342
        %s12347 = sand.u32 %s79, 1
        %s12348 = scalar_lea.sflag [#allocation4], %s12347
        %s12349 = sand.u32 %s79, 1
        %s12350 = smul.addr %s12349, 128
        %s12351 = scalar_lea.vmem [#allocation5], %s12350
        // Predicated region
        $region29: #{tpu_custom_call.1} parent=23 // pred_check
          %p12352 = pneg %p89
        $region30: #{tpu_custom_call.1} parent=23 // pred_check_branch
          %12354 = sbr.rel (%p12352) target = $region32
        $region31: #{tpu_custom_call.1} parent=23 // pred_region
          %s12355 = smul.u32 4, %s24
          %s12356 = smul.u32 4, %s25
          %s12358 = ssub.s32 2048, 2048
          %12359 = vsyncadd %s12348, %s12358
          %s12360 = smul.addr %s12355, 4
          %s12361 = sadd.s32 %s12356, %s12360
          %s12362 = smul.addr %s23, 16
          %s12363 = sadd.s32 %s12361, %s12362
          %s12364 = smul.addr %s12363, 128
          %s12365 = scalar_lea.hbm %s1, %s12364
          %s12366 = sshll.u32 %s12351, 4
          %s12367 = int_to_ptr.vmem [resolvable:$true] %s12366
          %12372 = dma.vmem_to_hbm [thread:$0]  %s12367, 2048, %s12365, %s12348, 128, 128, 8
        $region32: #{tpu_custom_call.1} parent=23 // pred_fallthru
          _
      $region24: #{tpu_custom_call.1} parent=5 // pred_fallthru
        _
      %p12373 = scmp.le.s32.totalorder 2, %s13
      // Predicated region
      $region33: #{tpu_custom_call.1} parent=5 // pred_check
        %p12374 = pneg %p12373
      $region34: #{tpu_custom_call.1} parent=5 // pred_check_branch
        %12376 = sbr.rel (%p12374) target = $region36
      $region35: #{tpu_custom_call.1} parent=5 // pred_region
        %s12377 = ssub.s32 %s13, 2
        // Predicated region
        $region37: #{tpu_custom_call.1} parent=35 // pred_check
          %p12378 = pneg %p95
        $region38: #{tpu_custom_call.1} parent=35 // pred_check_branch
          %12380 = sbr.rel (%p12378) target = $region40
        $region39: #{tpu_custom_call.1} parent=35 // pred_region
          %s12381 = sand.u32 %s80, 1
          %s12382 = scalar_lea.sflag [#allocation4], %s12381
          %s12383 = sand.u32 %s80, 1
          %s12384 = smul.addr %s12383, 128
          %s12385 = scalar_lea.vmem [#allocation5], %s12384
          %12386 = dma.done %s12382, 2048
        $region40: #{tpu_custom_call.1} parent=35 // pred_fallthru
          _
      $region36: #{tpu_custom_call.1} parent=5 // pred_fallthru
        _
    $region6: #{tpu_custom_call.1} parent=1 // loop_footer
      %s17 = sadd.s32 1, %s13
    $region7: #{tpu_custom_call.1} parent=1 // loop_footer_branch
      %12 = sbr.rel target = $region3
    $region8: #{tpu_custom_call.1} parent=1 // loop_exit
      _
    %12387 = vsyncpa [#allocation3], 1
    %s12388 = scalar_lea.sflag [#allocation3], 1
    %12389 = vsyncpa %s12388, 1
    %12390 = vsyncpa [#allocation4], 1
    %s12391 = scalar_lea.sflag [#allocation4], 1
    %12392 = vsyncpa %s12391, 1

</llo_original>
